<compile_context>
chip_gen: v7x
topology: tpu7x:2x2x1
jax: 0.10.0
libtpu: 0.0.40
codegen_flags: <defaults>
</compile_context>

<pallas_src>
import functools

import jax
import jax.numpy as jnp
import numpy as np
from jax import lax
from jax.experimental import pallas as pl
from jax.experimental.pallas import tpu as pltpu

EPS = 1e-5


# --------------------------------------------------------------------------
# in-kernel helpers
# --------------------------------------------------------------------------
def _instance_norm(y):
    """InstanceNorm2d(affine=False): per-channel stats over spatial rows."""
    inv_n = 1.0 / y.shape[0]
    mean = jnp.sum(y, axis=0, keepdims=True) * inv_n
    ex2 = jnp.sum(y * y, axis=0, keepdims=True) * inv_n
    var = ex2 - mean * mean                       # one-pass variance
    return (y - mean) * lax.rsqrt(var + EPS)


def _reflect_conv3x3(x2, w_ref, is_col0, is_colw, H, W, use_roll):
    """3x3 'reflect'-padded conv on an (H*W, C) tile via 9 bf16 MXU matmuls.

    x2      : (H*W, C) f32, row p = i*W + j holds pixel (i, j).
    w_ref   : (3, 3, C, Co) bf16 ref (HWIO).
    is_col0 : ((H+2)*W, 1) bool, True where j == 0.
    is_colw : ((H+2)*W, 1) bool, True where j == W-1.
    returns : (H*W, Co) f32.
    """
    n_rows = (H + 2) * W
    co = w_ref.shape[3]

    # Reflection pad along H: prepend row 1, append row H-2.  These are W-row
    # (sublane-aligned) slabs, so the concat is a plain aligned tile copy.
    xrp = jnp.concatenate(
        [x2[W:2 * W], x2, x2[(H - 2) * W:(H - 1) * W]], axis=0)   # ((H+2)*W, C)

    # Column (W) neighbours: shift the whole padded block by one row (one
    # sublane).  The shift wraps/duplicates exactly at j==0 (left neighbour)
    # and j==W-1 (right neighbour); those columns need the reflected index
    # (1 / W-2), which is exactly what the *opposite* shift holds, so a single
    # select fixes them.  No misaligned slices, no per-tap relayouts.
    if use_roll:
        down = pltpu.roll(xrp, 1, axis=0)             # down[p] = xrp[p-1]
        up = pltpu.roll(xrp, n_rows - 1, axis=0)      # up[p]   = xrp[p+1]
    else:
        down = jnp.concatenate([xrp[:1], xrp[:-1]], axis=0)
        up = jnp.concatenate([xrp[1:], xrp[-1:]], axis=0)
    x_left = jnp.where(is_col0, up, down)     # x[.., j-1], reflected at j==0
    x_right = jnp.where(is_colw, down, up)    # x[.., j+1], reflected at j==W-1
    cols = (x_left, xrp, x_right)             # dx = 0, 1, 2 <-> offsets -1, 0, +1

    acc = jnp.zeros((H * W, co), jnp.float32)
    for dy in range(3):
        for dx in range(3):
            # Sublane-aligned slab: rows [dy*W, dy*W + H*W).
            patch = cols[dx][dy * W:dy * W + H * W, :].astype(jnp.bfloat16)
            acc = acc + jnp.dot(patch, w_ref[dy, dx],
                                preferred_element_type=jnp.float32)
    return acc


def resnet_block_kernel(x_ref, w1_ref, w2_ref, out_ref, *, use_roll):
    _, H, W, C = x_ref.shape
    n_pad_rows = (H + 2) * W

    x2 = x_ref[0].reshape(H * W, C).astype(jnp.float32)

    # j == 0 / j == W-1 masks over the row-padded layout (shared by both convs).
    col_id = lax.broadcasted_iota(jnp.int32, (n_pad_rows, 1), 0) % W
    is_col0 = col_id == 0
    is_colw = col_id == (W - 1)

    # conv1 -> instance norm -> relu
    h = _reflect_conv3x3(x2, w1_ref, is_col0, is_colw, H, W, use_roll)
    h = jnp.maximum(_instance_norm(h), 0.0)

    # conv2 -> instance norm
    y = _reflect_conv3x3(h, w2_ref, is_col0, is_colw, H, W, use_roll)
    y = _instance_norm(y)

    # residual add
    out_ref[...] = (x2 + y).reshape(1, H, W, C).astype(out_ref.dtype)


# --------------------------------------------------------------------------
# roll-support probe (compile + value check, cached)
# --------------------------------------------------------------------------
_ROLL_PROBE_CACHE = {}


def _sublane_roll_supported(n_rows, n_cols):
    key = (int(n_rows), int(n_cols))
    if key not in _ROLL_PROBE_CACHE:
        def probe_kernel(x_ref, o_ref):
            o_ref[...] = (pltpu.roll(x_ref[...], 1, axis=0)
                          + pltpu.roll(x_ref[...], n_rows - 1, axis=0))

        try:
            x = jnp.arange(n_rows * n_cols, dtype=jnp.float32).reshape(n_rows, n_cols)
            got = pl.pallas_call(
                probe_kernel,
                out_shape=jax.ShapeDtypeStruct((n_rows, n_cols), jnp.float32),
            )(x)
            want = jnp.roll(x, 1, axis=0) + jnp.roll(x, -1, axis=0)
            ok = bool(jnp.allclose(jax.block_until_ready(got), want))
        except Exception:
            ok = False
        _ROLL_PROBE_CACHE[key] = ok
    return _ROLL_PROBE_CACHE[key]


# --------------------------------------------------------------------------
# wrappers
# --------------------------------------------------------------------------
def resnet_block_nhwc(x, w1, w2, *, use_roll=None):
    """x: (N, H, W, C). w1, w2: (3, 3, C, C) HWIO. Returns (N, H, W, C)."""
    N, H, W, C = x.shape
    if use_roll is None:
        use_roll = _sublane_roll_supported((H + 2) * W, C)

    # bf16 weights: single-pass MXU matmuls and half the weight DMA.
    w1b = w1.astype(jnp.bfloat16)
    w2b = w2.astype(jnp.bfloat16)

    # VMEM budget: pipeline buffers (x in / out) + in-kernel f32 temporaries
    # (row-padded block, two shifted copies, conv accumulator, ...).  Clamp to
    # the smallest physical VMEM across generations (v7x: 64 MiB) and never
    # below the usual 32 MiB scoped default so small shapes always compile.
    est = 24 * H * W * C * x.dtype.itemsize + 4 * (w1b.size + w2b.size) * 2
    vmem_limit = int(min(64 * 2**20, max(32 * 2**20, est)))

    # TODO(synk): for batch=1 on v7x (2 TensorCores) split H across a second
    # parallel grid axis with a two-pass instance-norm reduction.
    kernel = functools.partial(resnet_block_kernel, use_roll=use_roll)
    return pl.pallas_call(
        kernel,
        out_shape=jax.ShapeDtypeStruct((N, H, W, C), x.dtype),
        grid=(N,),
        in_specs=[
            pl.BlockSpec((1, H, W, C), lambda n: (n, 0, 0, 0)),
            pl.BlockSpec((3, 3, C, C), lambda n: (0, 0, 0, 0)),
            pl.BlockSpec((3, 3, C, C), lambda n: (0, 0, 0, 0)),
        ],
        out_specs=pl.BlockSpec((1, H, W, C), lambda n: (n, 0, 0, 0)),
        compiler_params=pltpu.CompilerParams(
            dimension_semantics=("parallel",),
            vmem_limit_bytes=vmem_limit),
    )(x, w1b, w2b)


def resnet_block(x_nchw, w1, b1, w2, b2):
    """NCHW entry point matching the PyTorch module convention.

    b1 / b2 are accepted for parameter parity with nn.Conv2d but unused:
    InstanceNorm2d(affine=False) removes a per-channel bias exactly.
    """
    del b1, b2
    x = jnp.transpose(x_nchw, (0, 2, 3, 1))               # NHWC
    out = resnet_block_nhwc(x, w1, w2)
    return jnp.transpose(out, (0, 3, 1, 2))               # back to NCHW


# --------------------------------------------------------------------------
# pure-JAX reference (same bf16-operand / f32-accumulate matmul precision)
# --------------------------------------------------------------------------
def _ref_conv_in(x_nchw, w_hwio, b, relu):
    xp = jnp.pad(x_nchw, ((0, 0), (0, 0), (1, 1), (1, 1)), mode='reflect')
    w_oihw = jnp.transpose(w_hwio, (3, 2, 0, 1))
    y = lax.conv_general_dilated(
        xp.astype(jnp.bfloat16), w_oihw.astype(jnp.bfloat16), (1, 1), 'VALID',
        dimension_numbers=('NCHW', 'OIHW', 'NCHW'),
        preferred_element_type=jnp.float32)
    y = y + b[None, :, None, None]
    mean = jnp.mean(y, axis=(2, 3), keepdims=True)
    var = jnp.mean((y - mean) ** 2, axis=(2, 3), keepdims=True)
    y = (y - mean) / jnp.sqrt(var + EPS)
    return jnp.maximum(y, 0.0) if relu else y


def resnet_block_ref(x, w1, b1, w2, b2):
    h = _ref_conv_in(x, w1, b1, relu=True)
    y = _ref_conv_in(h, w2, b2, relu=False)
    return x + y


# --------------------------------------------------------------------------
if __name__ == "__main__":
    N, C, H, W = 2, 4, 16, 16
    key = jax.random.PRNGKey(0)
    kx, kw1, kb1, kw2, kb2 = jax.random.split(key, 5)

    x = jax.random.normal(kx, (N, C, H, W), dtype=jnp.float32)

    # Conv2d(dim, dim, 3) params, PyTorch-style uniform(-1/sqrt(fan_in), +...)
    fan_in = C * 3 * 3
    bound = 1.0 / np.sqrt(fan_in)
    w1 = jax.random.uniform(kw1, (3, 3, C, C), jnp.float32, -bound, bound)  # HWIO
    b1 = jax.random.uniform(kb1, (C,), jnp.float32, -bound, bound)
    w2 = jax.random.uniform(kw2, (3, 3, C, C), jnp.float32, -bound, bound)
    b2 = jax.random.uniform(kb2, (C,), jnp.float32, -bound, bound)

    out = jax.block_until_ready(resnet_block(x, w1, b1, w2, b2))
    ref = jax.block_until_ready(resnet_block_ref(x, w1, b1, w2, b2))
    np.testing.assert_allclose(np.asarray(out), np.asarray(ref),
                               rtol=1e-2, atol=1e-2)

    print("KERNEL_OK")
</pallas_src>

<mosaic_0001>
module attributes {stable_mosaic.version = 11 : i64} {
  func.func @probe_kernel(%arg0: memref<288x4xf32, #tpu.memory_space<vmem>>, %arg1: memref<288x4xf32, #tpu.memory_space<vmem>>) attributes {dimension_semantics = [], scalar_prefetch = 0 : i64, scratch_operands = 0 : i64, tpu.core_type = #tpu.core_type<tc>} {
    %c0 = arith.constant 0 : index
    %c0_0 = arith.constant 0 : index
    %0 = vector.load %arg0[%c0, %c0_0] : memref<288x4xf32, #tpu.memory_space<vmem>>, vector<288x4xf32>
    %c1_i32 = arith.constant 1 : i32
    %1 = tpu.dynamic_rotate %0 by %c1_i32 dim 0 : vector<288x4xf32>, i32 -> vector<288x4xf32>
    %c0_1 = arith.constant 0 : index
    %c0_2 = arith.constant 0 : index
    %2 = vector.load %arg0[%c0_1, %c0_2] : memref<288x4xf32, #tpu.memory_space<vmem>>, vector<288x4xf32>
    %c287_i32 = arith.constant 287 : i32
    %3 = tpu.dynamic_rotate %2 by %c287_i32 dim 0 : vector<288x4xf32>, i32 -> vector<288x4xf32>
    %4 = arith.addf %1, %3 : vector<288x4xf32>
    %c0_3 = arith.constant 0 : index
    %c0_4 = arith.constant 0 : index
    %5 = vector.load %arg1[%c0_3, %c0_4] : memref<288x4xf32, #tpu.memory_space<vmem>>, vector<288x4xf32>
    tpu.vector_store %arg1[%c0_3, %c0_4], %4 {strides = array<i32>} : memref<288x4xf32, #tpu.memory_space<vmem>>, vector<288x4xf32>,
    return
  }
}

module attributes {stable_mosaic.version = 11 : i64} {
  func.func @resnet_block_kernel(%arg0: i32, %arg1: memref<1x16x16x4xf32, #tpu.memory_space<vmem>>, %arg2: memref<3x3x4x4xbf16, #tpu.memory_space<vmem>>, %arg3: memref<3x3x4x4xbf16, #tpu.memory_space<vmem>>, %arg4: memref<1x16x16x4xf32, #tpu.memory_space<vmem>>) attributes {dimension_semantics = [#tpu.dimension_semantics<parallel>], iteration_bounds = array<i64: 2>, scalar_prefetch = 0 : i64, scratch_operands = 0 : i64, tpu.core_type = #tpu.core_type<tc>, window_params = [{transform_indices = @transform_0, window_bounds = array<i64: 1, 16, 16, 4>}, {pipeline_mode = #tpu.pipeline_mode<synchronous>, transform_indices = @transform_1, window_bounds = array<i64: 3, 3, 4, 4>}, {pipeline_mode = #tpu.pipeline_mode<synchronous>, transform_indices = @transform_2, window_bounds = array<i64: 3, 3, 4, 4>}, {transform_indices = @transform_3, window_bounds = array<i64: 1, 16, 16, 4>}]} {
    %c0 = arith.constant 0 : index
    %c0_0 = arith.constant 0 : index
    %c0_1 = arith.constant 0 : index
    %c0_2 = arith.constant 0 : index
    %0 = vector.load %arg1[%c0, %c0_0, %c0_1, %c0_2] : memref<1x16x16x4xf32, #tpu.memory_space<vmem>>, vector<1x16x16x4xf32>
    %1 = vector.shape_cast %0 : vector<1x16x16x4xf32> to vector<16x16x4xf32>
    %2 = vector.shape_cast %1 : vector<16x16x4xf32> to vector<256x4xf32>
    %3 = tpu.iota {dimensions = array<i32: 0>} : vector<288x1xi32>
    %c16_i32 = arith.constant 16 : i32
    %c0_i32 = arith.constant 0 : i32
    %4 = arith.cmpi eq, %c16_i32, %c0_i32 : i32
    %c1_i32 = arith.constant 1 : i32
    %5 = arith.select %4, %c1_i32, %c16_i32 : i32
    %6 = vector.broadcast %5 : i32 to vector<288x1xi32>
    %7 = arith.remsi %3, %6 : vector<288x1xi32>
    %c0_i32_3 = arith.constant 0 : i32
    %8 = vector.broadcast %c0_i32_3 : i32 to vector<288x1xi32>
    %9 = arith.cmpi ne, %7, %8 : vector<288x1xi32>
    %c0_i32_4 = arith.constant 0 : i32
    %10 = vector.broadcast %c0_i32_4 : i32 to vector<288x1xi32>
    %11 = arith.cmpi slt, %7, %10 : vector<288x1xi32>
    %c0_i32_5 = arith.constant 0 : i32
    %12 = arith.cmpi slt, %5, %c0_i32_5 : i32
    %13 = vector.broadcast %12 : i1 to vector<288x1xi1>
    %14 = vector.broadcast %13 : vector<288x1xi1> to vector<288x1xi1>
    %15 = arith.xori %11, %14 : vector<288x1xi1>
    %16 = arith.andi %15, %9 : vector<288x1xi1>
    %17 = vector.broadcast %5 : i32 to vector<288x1xi32>
    %18 = arith.addi %7, %17 : vector<288x1xi32>
    %19 = arith.select %16, %18, %7 : vector<288x1xi1>, vector<288x1xi32>
    %c0_i32_6 = arith.constant 0 : i32
    %20 = vector.broadcast %c0_i32_6 : i32 to vector<288x1xi32>
    %21 = arith.cmpi eq, %19, %20 : vector<288x1xi32>
    %c15_i32 = arith.constant 15 : i32
    %22 = vector.broadcast %c15_i32 : i32 to vector<288x1xi32>
    %23 = arith.cmpi eq, %19, %22 : vector<288x1xi32>
    %24 = vector.extract_strided_slice %2 {offsets = [16, 0], sizes = [16, 4], strides = [1, 1]} : vector<256x4xf32> to vector<16x4xf32>
    %25 = vector.extract_strided_slice %2 {offsets = [224, 0], sizes = [16, 4], strides = [1, 1]} : vector<256x4xf32> to vector<16x4xf32>
    %26 = tpu.concatenate %24, %2, %25 in 0 : vector<16x4xf32>, vector<256x4xf32>, vector<16x4xf32> -> vector<288x4xf32>
    %27 = vector.extract_strided_slice %26 {offsets = [0, 0], sizes = [1, 4], strides = [1, 1]} : vector<288x4xf32> to vector<1x4xf32>
    %28 = vector.extract_strided_slice %26 {offsets = [0, 0], sizes = [287, 4], strides = [1, 1]} : vector<288x4xf32> to vector<287x4xf32>
    %29 = tpu.concatenate %27, %28 in 0 : vector<1x4xf32>, vector<287x4xf32> -> vector<288x4xf32>
    %30 = vector.extract_strided_slice %26 {offsets = [1, 0], sizes = [287, 4], strides = [1, 1]} : vector<288x4xf32> to vector<287x4xf32>
    %31 = vector.extract_strided_slice %26 {offsets = [287, 0], sizes = [1, 4], strides = [1, 1]} : vector<288x4xf32> to vector<1x4xf32>
    %32 = tpu.concatenate %30, %31 in 0 : vector<287x4xf32>, vector<1x4xf32> -> vector<288x4xf32>
    %33 = vector.shape_cast %21 : vector<288x1xi1> to vector<288x1xi1>
    %34 = vector.broadcast %33 : vector<288x1xi1> to vector<288x4xi1>
    %35 = arith.select %34, %32, %29 : vector<288x4xi1>, vector<288x4xf32>
    %36 = vector.shape_cast %23 : vector<288x1xi1> to vector<288x1xi1>
    %37 = vector.broadcast %36 : vector<288x1xi1> to vector<288x4xi1>
    %38 = arith.select %37, %29, %32 : vector<288x4xi1>, vector<288x4xf32>
    %cst = arith.constant 0.000000e+00 : f32
    %39 = vector.broadcast %cst : f32 to vector<256x4xf32>
    %40 = vector.extract_strided_slice %35 {offsets = [0, 0], sizes = [256, 4], strides = [1, 1]} : vector<288x4xf32> to vector<256x4xf32>
    %41 = arith.truncf %40 : vector<256x4xf32> to vector<256x4xbf16>
    %c0_7 = arith.constant 0 : index
    %c0_8 = arith.constant 0 : index
    %c0_9 = arith.constant 0 : index
    %c0_10 = arith.constant 0 : index
    %42 = vector.load %arg2[%c0_7, %c0_8, %c0_9, %c0_10] : memref<3x3x4x4xbf16, #tpu.memory_space<vmem>>, vector<1x1x4x4xbf16>
    %43 = vector.shape_cast %42 : vector<1x1x4x4xbf16> to vector<4x4xbf16>
    %cst_11 = arith.constant dense<0.000000e+00> : vector<256x4xf32>
    %44 = tpu.matmul %41, %43, %cst_11 {dimension_numbers = #tpu.dot_dimension_numbers<[1], [0], [0], [1], [0, 0, 1, 1], [], []>} : vector<256x4xbf16>, vector<4x4xbf16>, vector<256x4xf32> -> vector<256x4xf32>
    %45 = arith.addf %39, %44 : vector<256x4xf32>
    %46 = vector.extract_strided_slice %26 {offsets = [0, 0], sizes = [256, 4], strides = [1, 1]} : vector<288x4xf32> to vector<256x4xf32>
    %47 = arith.truncf %46 : vector<256x4xf32> to vector<256x4xbf16>
    %c0_12 = arith.constant 0 : index
    %c1 = arith.constant 1 : index
    %c0_13 = arith.constant 0 : index
    %c0_14 = arith.constant 0 : index
    %48 = vector.load %arg2[%c0_12, %c1, %c0_13, %c0_14] : memref<3x3x4x4xbf16, #tpu.memory_space<vmem>>, vector<1x1x4x4xbf16>
    %49 = vector.shape_cast %48 : vector<1x1x4x4xbf16> to vector<4x4xbf16>
    %cst_15 = arith.constant dense<0.000000e+00> : vector<256x4xf32>
    %50 = tpu.matmul %47, %49, %cst_15 {dimension_numbers = #tpu.dot_dimension_numbers<[1], [0], [0], [1], [0, 0, 1, 1], [], []>} : vector<256x4xbf16>, vector<4x4xbf16>, vector<256x4xf32> -> vector<256x4xf32>
    %51 = arith.addf %45, %50 : vector<256x4xf32>
    %52 = vector.extract_strided_slice %38 {offsets = [0, 0], sizes = [256, 4], strides = [1, 1]} : vector<288x4xf32> to vector<256x4xf32>
    %53 = arith.truncf %52 : vector<256x4xf32> to vector<256x4xbf16>
    %c0_16 = arith.constant 0 : index
    %c2 = arith.constant 2 : index
    %c0_17 = arith.constant 0 : index
    %c0_18 = arith.constant 0 : index
    %54 = vector.load %arg2[%c0_16, %c2, %c0_17, %c0_18] : memref<3x3x4x4xbf16, #tpu.memory_space<vmem>>, vector<1x1x4x4xbf16>
    %55 = vector.shape_cast %54 : vector<1x1x4x4xbf16> to vector<4x4xbf16>
    %cst_19 = arith.constant dense<0.000000e+00> : vector<256x4xf32>
    %56 = tpu.matmul %53, %55, %cst_19 {dimension_numbers = #tpu.dot_dimension_numbers<[1], [0], [0], [1], [0, 0, 1, 1], [], []>} : vector<256x4xbf16>, vector<4x4xbf16>, vector<256x4xf32> -> vector<256x4xf32>
    %57 = arith.addf %51, %56 : vector<256x4xf32>
    %58 = vector.extract_strided_slice %35 {offsets = [16, 0], sizes = [256, 4], strides = [1, 1]} : vector<288x4xf32> to vector<256x4xf32>
    %59 = arith.truncf %58 : vector<256x4xf32> to vector<256x4xbf16>
    %c1_20 = arith.constant 1 : index
    %c0_21 = arith.constant 0 : index
    %c0_22 = arith.constant 0 : index
    %c0_23 = arith.constant 0 : index
    %60 = vector.load %arg2[%c1_20, %c0_21, %c0_22, %c0_23] : memref<3x3x4x4xbf16, #tpu.memory_space<vmem>>, vector<1x1x4x4xbf16>
    %61 = vector.shape_cast %60 : vector<1x1x4x4xbf16> to vector<4x4xbf16>
    %cst_24 = arith.constant dense<0.000000e+00> : vector<256x4xf32>
    %62 = tpu.matmul %59, %61, %cst_24 {dimension_numbers = #tpu.dot_dimension_numbers<[1], [0], [0], [1], [0, 0, 1, 1], [], []>} : vector<256x4xbf16>, vector<4x4xbf16>, vector<256x4xf32> -> vector<256x4xf32>
    %63 = arith.addf %57, %62 : vector<256x4xf32>
    %64 = vector.extract_strided_slice %26 {offsets = [16, 0], sizes = [256, 4], strides = [1, 1]} : vector<288x4xf32> to vector<256x4xf32>
    %65 = arith.truncf %64 : vector<256x4xf32> to vector<256x4xbf16>
    %c1_25 = arith.constant 1 : index
    %c1_26 = arith.constant 1 : index
    %c0_27 = arith.constant 0 : index
    %c0_28 = arith.constant 0 : index
    %66 = vector.load %arg2[%c1_25, %c1_26, %c0_27, %c0_28] : memref<3x3x4x4xbf16, #tpu.memory_space<vmem>>, vector<1x1x4x4xbf16>
    %67 = vector.shape_cast %66 : vector<1x1x4x4xbf16> to vector<4x4xbf16>
    %cst_29 = arith.constant dense<0.000000e+00> : vector<256x4xf32>
    %68 = tpu.matmul %65, %67, %cst_29 {dimension_numbers = #tpu.dot_dimension_numbers<[1], [0], [0], [1], [0, 0, 1, 1], [], []>} : vector<256x4xbf16>, vector<4x4xbf16>, vector<256x4xf32> -> vector<256x4xf32>
    %69 = arith.addf %63, %68 : vector<256x4xf32>
    %70 = vector.extract_strided_slice %38 {offsets = [16, 0], sizes = [256, 4], strides = [1, 1]} : vector<288x4xf32> to vector<256x4xf32>
    %71 = arith.truncf %70 : vector<256x4xf32> to vector<256x4xbf16>
    %c1_30 = arith.constant 1 : index
    %c2_31 = arith.constant 2 : index
    %c0_32 = arith.constant 0 : index
    %c0_33 = arith.constant 0 : index
    %72 = vector.load %arg2[%c1_30, %c2_31, %c0_32, %c0_33] : memref<3x3x4x4xbf16, #tpu.memory_space<vmem>>, vector<1x1x4x4xbf16>
    %73 = vector.shape_cast %72 : vector<1x1x4x4xbf16> to vector<4x4xbf16>
    %cst_34 = arith.constant dense<0.000000e+00> : vector<256x4xf32>
    %74 = tpu.matmul %71, %73, %cst_34 {dimension_numbers = #tpu.dot_dimension_numbers<[1], [0], [0], [1], [0, 0, 1, 1], [], []>} : vector<256x4xbf16>, vector<4x4xbf16>, vector<256x4xf32> -> vector<256x4xf32>
    %75 = arith.addf %69, %74 : vector<256x4xf32>
    %76 = vector.extract_strided_slice %35 {offsets = [32, 0], sizes = [256, 4], strides = [1, 1]} : vector<288x4xf32> to vector<256x4xf32>
    %77 = arith.truncf %76 : vector<256x4xf32> to vector<256x4xbf16>
    %c2_35 = arith.constant 2 : index
    %c0_36 = arith.constant 0 : index
    %c0_37 = arith.constant 0 : index
    %c0_38 = arith.constant 0 : index
    %78 = vector.load %arg2[%c2_35, %c0_36, %c0_37, %c0_38] : memref<3x3x4x4xbf16, #tpu.memory_space<vmem>>, vector<1x1x4x4xbf16>
    %79 = vector.shape_cast %78 : vector<1x1x4x4xbf16> to vector<4x4xbf16>
    %cst_39 = arith.constant dense<0.000000e+00> : vector<256x4xf32>
    %80 = tpu.matmul %77, %79, %cst_39 {dimension_numbers = #tpu.dot_dimension_numbers<[1], [0], [0], [1], [0, 0, 1, 1], [], []>} : vector<256x4xbf16>, vector<4x4xbf16>, vector<256x4xf32> -> vector<256x4xf32>
    %81 = arith.addf %75, %80 : vector<256x4xf32>
    %82 = vector.extract_strided_slice %26 {offsets = [32, 0], sizes = [256, 4], strides = [1, 1]} : vector<288x4xf32> to vector<256x4xf32>
    %83 = arith.truncf %82 : vector<256x4xf32> to vector<256x4xbf16>
    %c2_40 = arith.constant 2 : index
    %c1_41 = arith.constant 1 : index
    %c0_42 = arith.constant 0 : index
    %c0_43 = arith.constant 0 : index
    %84 = vector.load %arg2[%c2_40, %c1_41, %c0_42, %c0_43] : memref<3x3x4x4xbf16, #tpu.memory_space<vmem>>, vector<1x1x4x4xbf16>
    %85 = vector.shape_cast %84 : vector<1x1x4x4xbf16> to vector<4x4xbf16>
    %cst_44 = arith.constant dense<0.000000e+00> : vector<256x4xf32>
    %86 = tpu.matmul %83, %85, %cst_44 {dimension_numbers = #tpu.dot_dimension_numbers<[1], [0], [0], [1], [0, 0, 1, 1], [], []>} : vector<256x4xbf16>, vector<4x4xbf16>, vector<256x4xf32> -> vector<256x4xf32>
    %87 = arith.addf %81, %86 : vector<256x4xf32>
    %88 = vector.extract_strided_slice %38 {offsets = [32, 0], sizes = [256, 4], strides = [1, 1]} : vector<288x4xf32> to vector<256x4xf32>
    %89 = arith.truncf %88 : vector<256x4xf32> to vector<256x4xbf16>
    %c2_45 = arith.constant 2 : index
    %c2_46 = arith.constant 2 : index
    %c0_47 = arith.constant 0 : index
    %c0_48 = arith.constant 0 : index
    %90 = vector.load %arg2[%c2_45, %c2_46, %c0_47, %c0_48] : memref<3x3x4x4xbf16, #tpu.memory_space<vmem>>, vector<1x1x4x4xbf16>
    %91 = vector.shape_cast %90 : vector<1x1x4x4xbf16> to vector<4x4xbf16>
    %cst_49 = arith.constant dense<0.000000e+00> : vector<256x4xf32>
    %92 = tpu.matmul %89, %91, %cst_49 {dimension_numbers = #tpu.dot_dimension_numbers<[1], [0], [0], [1], [0, 0, 1, 1], [], []>} : vector<256x4xbf16>, vector<4x4xbf16>, vector<256x4xf32> -> vector<256x4xf32>
    %93 = arith.addf %87, %92 : vector<256x4xf32>
    %cst_50 = arith.constant dense<0.000000e+00> : vector<4xf32>
    %94 = vector.multi_reduction <add>, %93, %cst_50 [0] : vector<256x4xf32> to vector<4xf32>
    %95 = vector.shape_cast %94 : vector<4xf32> to vector<1x4xf32>
    %cst_51 = arith.constant 3.906250e-03 : f32
    %96 = vector.broadcast %cst_51 : f32 to vector<1x4xf32>
    %97 = arith.mulf %95, %96 : vector<1x4xf32>
    %98 = arith.mulf %93, %93 : vector<256x4xf32>
    %cst_52 = arith.constant dense<0.000000e+00> : vector<4xf32>
    %99 = vector.multi_reduction <add>, %98, %cst_52 [0] : vector<256x4xf32> to vector<4xf32>
    %100 = vector.shape_cast %99 : vector<4xf32> to vector<1x4xf32>
    %cst_53 = arith.constant 3.906250e-03 : f32
    %101 = vector.broadcast %cst_53 : f32 to vector<1x4xf32>
    %102 = arith.mulf %100, %101 : vector<1x4xf32>
    %103 = arith.mulf %97, %97 : vector<1x4xf32>
    %104 = arith.subf %102, %103 : vector<1x4xf32>
    %105 = vector.broadcast %97 : vector<1x4xf32> to vector<256x4xf32>
    %106 = arith.subf %93, %105 : vector<256x4xf32>
    %cst_54 = arith.constant 9.99999974E-6 : f32
    %107 = vector.broadcast %cst_54 : f32 to vector<1x4xf32>
    %108 = arith.addf %104, %107 : vector<1x4xf32>
    %109 = math.rsqrt %108 : vector<1x4xf32>
    %110 = vector.broadcast %109 : vector<1x4xf32> to vector<256x4xf32>
    %111 = arith.mulf %106, %110 : vector<256x4xf32>
    %cst_55 = arith.constant 0.000000e+00 : f32
    %112 = vector.broadcast %cst_55 : f32 to vector<256x4xf32>
    %113 = arith.maximumf %111, %112 : vector<256x4xf32>
    %114 = vector.extract_strided_slice %113 {offsets = [16, 0], sizes = [16, 4], strides = [1, 1]} : vector<256x4xf32> to vector<16x4xf32>
    %115 = vector.extract_strided_slice %113 {offsets = [224, 0], sizes = [16, 4], strides = [1, 1]} : vector<256x4xf32> to vector<16x4xf32>
    %116 = tpu.concatenate %114, %113, %115 in 0 : vector<16x4xf32>, vector<256x4xf32>, vector<16x4xf32> -> vector<288x4xf32>
    %117 = vector.extract_strided_slice %116 {offsets = [0, 0], sizes = [1, 4], strides = [1, 1]} : vector<288x4xf32> to vector<1x4xf32>
    %118 = vector.extract_strided_slice %116 {offsets = [0, 0], sizes = [287, 4], strides = [1, 1]} : vector<288x4xf32> to vector<287x4xf32>
    %119 = tpu.concatenate %117, %118 in 0 : vector<1x4xf32>, vector<287x4xf32> -> vector<288x4xf32>
    %120 = vector.extract_strided_slice %116 {offsets = [1, 0], sizes = [287, 4], strides = [1, 1]} : vector<288x4xf32> to vector<287x4xf32>
    %121 = vector.extract_strided_slice %116 {offsets = [287, 0], sizes = [1, 4], strides = [1, 1]} : vector<288x4xf32> to vector<1x4xf32>
    %122 = tpu.concatenate %120, %121 in 0 : vector<287x4xf32>, vector<1x4xf32> -> vector<288x4xf32>
    %123 = vector.shape_cast %21 : vector<288x1xi1> to vector<288x1xi1>
    %124 = vector.broadcast %123 : vector<288x1xi1> to vector<288x4xi1>
    %125 = arith.select %124, %122, %119 : vector<288x4xi1>, vector<288x4xf32>
    %126 = vector.shape_cast %23 : vector<288x1xi1> to vector<288x1xi1>
    %127 = vector.broadcast %126 : vector<288x1xi1> to vector<288x4xi1>
    %128 = arith.select %127, %119, %122 : vector<288x4xi1>, vector<288x4xf32>
    %cst_56 = arith.constant 0.000000e+00 : f32
    %129 = vector.broadcast %cst_56 : f32 to vector<256x4xf32>
    %130 = vector.extract_strided_slice %125 {offsets = [0, 0], sizes = [256, 4], strides = [1, 1]} : vector<288x4xf32> to vector<256x4xf32>
    %131 = arith.truncf %130 : vector<256x4xf32> to vector<256x4xbf16>
    %c0_57 = arith.constant 0 : index
    %c0_58 = arith.constant 0 : index
    %c0_59 = arith.constant 0 : index
    %c0_60 = arith.constant 0 : index
    %132 = vector.load %arg3[%c0_57, %c0_58, %c0_59, %c0_60] : memref<3x3x4x4xbf16, #tpu.memory_space<vmem>>, vector<1x1x4x4xbf16>
    %133 = vector.shape_cast %132 : vector<1x1x4x4xbf16> to vector<4x4xbf16>
    %cst_61 = arith.constant dense<0.000000e+00> : vector<256x4xf32>
    %134 = tpu.matmul %131, %133, %cst_61 {dimension_numbers = #tpu.dot_dimension_numbers<[1], [0], [0], [1], [0, 0, 1, 1], [], []>} : vector<256x4xbf16>, vector<4x4xbf16>, vector<256x4xf32> -> vector<256x4xf32>
    %135 = arith.addf %129, %134 : vector<256x4xf32>
    %136 = vector.extract_strided_slice %116 {offsets = [0, 0], sizes = [256, 4], strides = [1, 1]} : vector<288x4xf32> to vector<256x4xf32>
    %137 = arith.truncf %136 : vector<256x4xf32> to vector<256x4xbf16>
    %c0_62 = arith.constant 0 : index
    %c1_63 = arith.constant 1 : index
    %c0_64 = arith.constant 0 : index
    %c0_65 = arith.constant 0 : index
    %138 = vector.load %arg3[%c0_62, %c1_63, %c0_64, %c0_65] : memref<3x3x4x4xbf16, #tpu.memory_space<vmem>>, vector<1x1x4x4xbf16>
    %139 = vector.shape_cast %138 : vector<1x1x4x4xbf16> to vector<4x4xbf16>
    %cst_66 = arith.constant dense<0.000000e+00> : vector<256x4xf32>
    %140 = tpu.matmul %137, %139, %cst_66 {dimension_numbers = #tpu.dot_dimension_numbers<[1], [0], [0], [1], [0, 0, 1, 1], [], []>} : vector<256x4xbf16>, vector<4x4xbf16>, vector<256x4xf32> -> vector<256x4xf32>
    %141 = arith.addf %135, %140 : vector<256x4xf32>
    %142 = vector.extract_strided_slice %128 {offsets = [0, 0], sizes = [256, 4], strides = [1, 1]} : vector<288x4xf32> to vector<256x4xf32>
    %143 = arith.truncf %142 : vector<256x4xf32> to vector<256x4xbf16>
    %c0_67 = arith.constant 0 : index
    %c2_68 = arith.constant 2 : index
    %c0_69 = arith.constant 0 : index
    %c0_70 = arith.constant 0 : index
    %144 = vector.load %arg3[%c0_67, %c2_68, %c0_69, %c0_70] : memref<3x3x4x4xbf16, #tpu.memory_space<vmem>>, vector<1x1x4x4xbf16>
    %145 = vector.shape_cast %144 : vector<1x1x4x4xbf16> to vector<4x4xbf16>
    %cst_71 = arith.constant dense<0.000000e+00> : vector<256x4xf32>
    %146 = tpu.matmul %143, %145, %cst_71 {dimension_numbers = #tpu.dot_dimension_numbers<[1], [0], [0], [1], [0, 0, 1, 1], [], []>} : vector<256x4xbf16>, vector<4x4xbf16>, vector<256x4xf32> -> vector<256x4xf32>
    %147 = arith.addf %141, %146 : vector<256x4xf32>
    %148 = vector.extract_strided_slice %125 {offsets = [16, 0], sizes = [256, 4], strides = [1, 1]} : vector<288x4xf32> to vector<256x4xf32>
    %149 = arith.truncf %148 : vector<256x4xf32> to vector<256x4xbf16>
    %c1_72 = arith.constant 1 : index
    %c0_73 = arith.constant 0 : index
    %c0_74 = arith.constant 0 : index
    %c0_75 = arith.constant 0 : index
    %150 = vector.load %arg3[%c1_72, %c0_73, %c0_74, %c0_75] : memref<3x3x4x4xbf16, #tpu.memory_space<vmem>>, vector<1x1x4x4xbf16>
    %151 = vector.shape_cast %150 : vector<1x1x4x4xbf16> to vector<4x4xbf16>
    %cst_76 = arith.constant dense<0.000000e+00> : vector<256x4xf32>
    %152 = tpu.matmul %149, %151, %cst_76 {dimension_numbers = #tpu.dot_dimension_numbers<[1], [0], [0], [1], [0, 0, 1, 1], [], []>} : vector<256x4xbf16>, vector<4x4xbf16>, vector<256x4xf32> -> vector<256x4xf32>
    %153 = arith.addf %147, %152 : vector<256x4xf32>
    %154 = vector.extract_strided_slice %116 {offsets = [16, 0], sizes = [256, 4], strides = [1, 1]} : vector<288x4xf32> to vector<256x4xf32>
    %155 = arith.truncf %154 : vector<256x4xf32> to vector<256x4xbf16>
    %c1_77 = arith.constant 1 : index
    %c1_78 = arith.constant 1 : index
    %c0_79 = arith.constant 0 : index
    %c0_80 = arith.constant 0 : index
    %156 = vector.load %arg3[%c1_77, %c1_78, %c0_79, %c0_80] : memref<3x3x4x4xbf16, #tpu.memory_space<vmem>>, vector<1x1x4x4xbf16>
    %157 = vector.shape_cast %156 : vector<1x1x4x4xbf16> to vector<4x4xbf16>
    %cst_81 = arith.constant dense<0.000000e+00> : vector<256x4xf32>
    %158 = tpu.matmul %155, %157, %cst_81 {dimension_numbers = #tpu.dot_dimension_numbers<[1], [0], [0], [1], [0, 0, 1, 1], [], []>} : vector<256x4xbf16>, vector<4x4xbf16>, vector<256x4xf32> -> vector<256x4xf32>
    %159 = arith.addf %153, %158 : vector<256x4xf32>
    %160 = vector.extract_strided_slice %128 {offsets = [16, 0], sizes = [256, 4], strides = [1, 1]} : vector<288x4xf32> to vector<256x4xf32>
    %161 = arith.truncf %160 : vector<256x4xf32> to vector<256x4xbf16>
    %c1_82 = arith.constant 1 : index
    %c2_83 = arith.constant 2 : index
    %c0_84 = arith.constant 0 : index
    %c0_85 = arith.constant 0 : index
    %162 = vector.load %arg3[%c1_82, %c2_83, %c0_84, %c0_85] : memref<3x3x4x4xbf16, #tpu.memory_space<vmem>>, vector<1x1x4x4xbf16>
    %163 = vector.shape_cast %162 : vector<1x1x4x4xbf16> to vector<4x4xbf16>
    %cst_86 = arith.constant dense<0.000000e+00> : vector<256x4xf32>
    %164 = tpu.matmul %161, %163, %cst_86 {dimension_numbers = #tpu.dot_dimension_numbers<[1], [0], [0], [1], [0, 0, 1, 1], [], []>} : vector<256x4xbf16>, vector<4x4xbf16>, vector<256x4xf32> -> vector<256x4xf32>
    %165 = arith.addf %159, %164 : vector<256x4xf32>
    %166 = vector.extract_strided_slice %125 {offsets = [32, 0], sizes = [256, 4], strides = [1, 1]} : vector<288x4xf32> to vector<256x4xf32>
    %167 = arith.truncf %166 : vector<256x4xf32> to vector<256x4xbf16>
    %c2_87 = arith.constant 2 : index
    %c0_88 = arith.constant 0 : index
    %c0_89 = arith.constant 0 : index
    %c0_90 = arith.constant 0 : index
    %168 = vector.load %arg3[%c2_87, %c0_88, %c0_89, %c0_90] : memref<3x3x4x4xbf16, #tpu.memory_space<vmem>>, vector<1x1x4x4xbf16>
    %169 = vector.shape_cast %168 : vector<1x1x4x4xbf16> to vector<4x4xbf16>
    %cst_91 = arith.constant dense<0.000000e+00> : vector<256x4xf32>
    %170 = tpu.matmul %167, %169, %cst_91 {dimension_numbers = #tpu.dot_dimension_numbers<[1], [0], [0], [1], [0, 0, 1, 1], [], []>} : vector<256x4xbf16>, vector<4x4xbf16>, vector<256x4xf32> -> vector<256x4xf32>
    %171 = arith.addf %165, %170 : vector<256x4xf32>
    %172 = vector.extract_strided_slice %116 {offsets = [32, 0], sizes = [256, 4], strides = [1, 1]} : vector<288x4xf32> to vector<256x4xf32>
    %173 = arith.truncf %172 : vector<256x4xf32> to vector<256x4xbf16>
    %c2_92 = arith.constant 2 : index
    %c1_93 = arith.constant 1 : index
    %c0_94 = arith.constant 0 : index
    %c0_95 = arith.constant 0 : index
    %174 = vector.load %arg3[%c2_92, %c1_93, %c0_94, %c0_95] : memref<3x3x4x4xbf16, #tpu.memory_space<vmem>>, vector<1x1x4x4xbf16>
    %175 = vector.shape_cast %174 : vector<1x1x4x4xbf16> to vector<4x4xbf16>
    %cst_96 = arith.constant dense<0.000000e+00> : vector<256x4xf32>
    %176 = tpu.matmul %173, %175, %cst_96 {dimension_numbers = #tpu.dot_dimension_numbers<[1], [0], [0], [1], [0, 0, 1, 1], [], []>} : vector<256x4xbf16>, vector<4x4xbf16>, vector<256x4xf32> -> vector<256x4xf32>
    %177 = arith.addf %171, %176 : vector<256x4xf32>
    %178 = vector.extract_strided_slice %128 {offsets = [32, 0], sizes = [256, 4], strides = [1, 1]} : vector<288x4xf32> to vector<256x4xf32>
    %179 = arith.truncf %178 : vector<256x4xf32> to vector<256x4xbf16>
    %c2_97 = arith.constant 2 : index
    %c2_98 = arith.constant 2 : index
    %c0_99 = arith.constant 0 : index
    %c0_100 = arith.constant 0 : index
    %180 = vector.load %arg3[%c2_97, %c2_98, %c0_99, %c0_100] : memref<3x3x4x4xbf16, #tpu.memory_space<vmem>>, vector<1x1x4x4xbf16>
    %181 = vector.shape_cast %180 : vector<1x1x4x4xbf16> to vector<4x4xbf16>
    %cst_101 = arith.constant dense<0.000000e+00> : vector<256x4xf32>
    %182 = tpu.matmul %179, %181, %cst_101 {dimension_numbers = #tpu.dot_dimension_numbers<[1], [0], [0], [1], [0, 0, 1, 1], [], []>} : vector<256x4xbf16>, vector<4x4xbf16>, vector<256x4xf32> -> vector<256x4xf32>
    %183 = arith.addf %177, %182 : vector<256x4xf32>
    %cst_102 = arith.constant dense<0.000000e+00> : vector<4xf32>
    %184 = vector.multi_reduction <add>, %183, %cst_102 [0] : vector<256x4xf32> to vector<4xf32>
    %185 = vector.shape_cast %184 : vector<4xf32> to vector<1x4xf32>
    %cst_103 = arith.constant 3.906250e-03 : f32
    %186 = vector.broadcast %cst_103 : f32 to vector<1x4xf32>
    %187 = arith.mulf %185, %186 : vector<1x4xf32>
    %188 = arith.mulf %183, %183 : vector<256x4xf32>
    %cst_104 = arith.constant dense<0.000000e+00> : vector<4xf32>
    %189 = vector.multi_reduction <add>, %188, %cst_104 [0] : vector<256x4xf32> to vector<4xf32>
    %190 = vector.shape_cast %189 : vector<4xf32> to vector<1x4xf32>
    %cst_105 = arith.constant 3.906250e-03 : f32
    %191 = vector.broadcast %cst_105 : f32 to vector<1x4xf32>
    %192 = arith.mulf %190, %191 : vector<1x4xf32>
    %193 = arith.mulf %187, %187 : vector<1x4xf32>
    %194 = arith.subf %192, %193 : vector<1x4xf32>
    %195 = vector.broadcast %187 : vector<1x4xf32> to vector<256x4xf32>
    %196 = arith.subf %183, %195 : vector<256x4xf32>
    %cst_106 = arith.constant 9.99999974E-6 : f32
    %197 = vector.broadcast %cst_106 : f32 to vector<1x4xf32>
    %198 = arith.addf %194, %197 : vector<1x4xf32>
    %199 = math.rsqrt %198 : vector<1x4xf32>
    %200 = vector.broadcast %199 : vector<1x4xf32> to vector<256x4xf32>
    %201 = arith.mulf %196, %200 : vector<256x4xf32>
    %202 = arith.addf %2, %201 : vector<256x4xf32>
    %203 = vector.shape_cast %202 : vector<256x4xf32> to vector<1x16x16x4xf32>
    %c0_107 = arith.constant 0 : index
    %c0_108 = arith.constant 0 : index
    %c0_109 = arith.constant 0 : index
    %c0_110 = arith.constant 0 : index
    %204 = vector.load %arg4[%c0_107, %c0_108, %c0_109, %c0_110] : memref<1x16x16x4xf32, #tpu.memory_space<vmem>>, vector<1x16x16x4xf32>
    tpu.vector_store %arg4[%c0_107, %c0_108, %c0_109, %c0_110], %203 {strides = array<i32>} : memref<1x16x16x4xf32, #tpu.memory_space<vmem>>, vector<1x16x16x4xf32>,
    return
  }
  func.func @transform_0(%arg0: i32) -> (i32, i32, i32, i32) {
    %c0_i32 = arith.constant 0 : i32
    %c0_i32_0 = arith.constant 0 : i32
    %c0_i32_1 = arith.constant 0 : i32
    %c0_i32_2 = arith.constant 0 : i32
    return %arg0, %c0_i32, %c0_i32_0, %c0_i32_1 : i32, i32, i32, i32
  }
  func.func @transform_1(%arg0: i32) -> (i32, i32, i32, i32) {
    %c0_i32 = arith.constant 0 : i32
    %c0_i32_0 = arith.constant 0 : i32
    %c0_i32_1 = arith.constant 0 : i32
    %c0_i32_2 = arith.constant 0 : i32
    %c0_i32_3 = arith.constant 0 : i32
    return %c0_i32, %c0_i32_0, %c0_i32_1, %c0_i32_2 : i32, i32, i32, i32
  }
  func.func @transform_2(%arg0: i32) -> (i32, i32, i32, i32) {
    %c0_i32 = arith.constant 0 : i32
    %c0_i32_0 = arith.constant 0 : i32
    %c0_i32_1 = arith.constant 0 : i32
    %c0_i32_2 = arith.constant 0 : i32
    %c0_i32_3 = arith.constant 0 : i32
    return %c0_i32, %c0_i32_0, %c0_i32_1, %c0_i32_2 : i32, i32, i32, i32
  }
  func.func @transform_3(%arg0: i32) -> (i32, i32, i32, i32) {
    %c0_i32 = arith.constant 0 : i32
    %c0_i32_0 = arith.constant 0 : i32
    %c0_i32_1 = arith.constant 0 : i32
    %c0_i32_2 = arith.constant 0 : i32
    return %arg0, %c0_i32, %c0_i32_0, %c0_i32_1 : i32, i32, i32, i32
  }
}

</mosaic_0001>

<llo_original>
// kernel: tpu_custom_call.1
$region0: #{tpu_custom_call.1}
  #allocation0 [shape = 'u32[]', space=smem, size = 0x4, offset = 0x4, fixed_abs, tag = 'smem constant byte address 0x4 - core index']
  #allocation1 [shape = 'u32[144,128]{1,0:T(1,128)}', space=vmem, size = 0x12000, scoped, tag = 'internal scratch']
  %s0 = inlined_call_operand.vmem [shape: f32[288,4], index: 0, kind: input, shape index: {}]
  %s1 = inlined_call_operand.vmem [shape: f32[288,4], index: 1, kind: output, shape index: {}]
  %s2 = sld [smem:[#allocation0]]
  $region14: #{tpu_custom_call.1} parent=0
    _
  %s4 = ssub.s32 1, %s2
  %s5 = scalar_select 0, %s4, %s2
  // Predicated region
  $region2: #{tpu_custom_call.1} parent=0 // pred_check
    _
  $region3: #{tpu_custom_call.1} parent=0 // pred_check_branch
    %7 = sbr.rel (0) target = $region5
  $region4: #{tpu_custom_call.1} parent=0 // pred_region
    _
  $region5: #{tpu_custom_call.1} parent=0 // pred_fallthru
    _
  %v8 = vld [vmem:[%s0] sm:$0xff]
  %v9 = vld [vmem:[%s0 + $0x8] sm:$0xff]
  %v10 = vld [vmem:[%s0 + $0x10] sm:$0xff]
  %v11 = vld [vmem:[%s0 + $0x18] sm:$0xff]
  %v12 = vld [vmem:[%s0 + $0x20] sm:$0xff]
  %v13 = vld [vmem:[%s0 + $0x28] sm:$0xff]
  %v14 = vld [vmem:[%s0 + $0x30] sm:$0xff]
  %v15 = vld [vmem:[%s0 + $0x38] sm:$0xff]
  %v16 = vld [vmem:[%s0 + $0x40] sm:$0xff]
  %v17 = vld [vmem:[%s0 + $0x48] sm:$0xff]
  %v18 = vld [vmem:[%s0 + $0x50] sm:$0xff]
  %v19 = vld [vmem:[%s0 + $0x58] sm:$0xff]
  %v20 = vld [vmem:[%s0 + $0x60] sm:$0xff]
  %v21 = vld [vmem:[%s0 + $0x68] sm:$0xff]
  %v22 = vld [vmem:[%s0 + $0x70] sm:$0xff]
  %v23 = vld [vmem:[%s0 + $0x78] sm:$0xff]
  %v24 = vld [vmem:[%s0 + $0x80] sm:$0xff]
  %v25 = vld [vmem:[%s0 + $0x88] sm:$0xff]
  %v26 = vld [vmem:[%s0 + $0x90] sm:$0xff]
  %v27 = vld [vmem:[%s0 + $0x98] sm:$0xff]
  %v28 = vld [vmem:[%s0 + $0xa0] sm:$0xff]
  %v29 = vld [vmem:[%s0 + $0xa8] sm:$0xff]
  %v30 = vld [vmem:[%s0 + $0xb0] sm:$0xff]
  %v31 = vld [vmem:[%s0 + $0xb8] sm:$0xff]
  %v32 = vld [vmem:[%s0 + $0xc0] sm:$0xff]
  %v33 = vld [vmem:[%s0 + $0xc8] sm:$0xff]
  %v34 = vld [vmem:[%s0 + $0xd0] sm:$0xff]
  %v35 = vld [vmem:[%s0 + $0xd8] sm:$0xff]
  %v36 = vld [vmem:[%s0 + $0xe0] sm:$0xff]
  %v37 = vld [vmem:[%s0 + $0xe8] sm:$0xff]
  %v38 = vld [vmem:[%s0 + $0xf0] sm:$0xff]
  %v39 = vld [vmem:[%s0 + $0xf8] sm:$0xff]
  %v40 = vld [vmem:[%s0 + $0x100] sm:$0xff]
  %v41 = vld [vmem:[%s0 + $0x108] sm:$0xff]
  %v42 = vld [vmem:[%s0 + $0x110] sm:$0xff]
  %v43 = vld [vmem:[%s0 + $0x118] sm:$0xff]
  %v44 = vrot.slane %v8, 7
  %v45 = vrot.slane %v9, 7
  %v46 = vrot.slane %v10, 7
  %v47 = vrot.slane %v11, 7
  %v48 = vrot.slane %v12, 7
  %v49 = vrot.slane %v13, 7
  %v50 = vrot.slane %v14, 7
  %v51 = vrot.slane %v15, 7
  %v52 = vrot.slane %v16, 7
  %v53 = vrot.slane %v17, 7
  %v54 = vrot.slane %v18, 7
  %v55 = vrot.slane %v19, 7
  %v56 = vrot.slane %v20, 7
  %v57 = vrot.slane %v21, 7
  %v58 = vrot.slane %v22, 7
  %v59 = vrot.slane %v23, 7
  %v60 = vrot.slane %v24, 7
  %v61 = vrot.slane %v25, 7
  %v62 = vrot.slane %v26, 7
  %v63 = vrot.slane %v27, 7
  %v64 = vrot.slane %v28, 7
  %v65 = vrot.slane %v29, 7
  %v66 = vrot.slane %v30, 7
  %v67 = vrot.slane %v31, 7
  %v68 = vrot.slane %v32, 7
  %v69 = vrot.slane %v33, 7
  %v70 = vrot.slane %v34, 7
  %v71 = vrot.slane %v35, 7
  %v72 = vrot.slane %v36, 7
  %v73 = vrot.slane %v37, 7
  %v74 = vrot.slane %v38, 7
  %v75 = vrot.slane %v39, 7
  %v76 = vrot.slane %v40, 7
  %v77 = vrot.slane %v41, 7
  %v78 = vrot.slane %v42, 7
  %v79 = vrot.slane %v43, 7
  %v80 = vlaneseq
  %v81 = vshrl.u32 %v80, 7
  %vm82 = vcmp.lt.s32.totalorder %v81, 1
  %v83 = vsel %vm82, %v78, %v79
  %v84 = vsel %vm82, %v77, %v78
  %v85 = vsel %vm82, %v76, %v77
  %v86 = vsel %vm82, %v75, %v76
  %v87 = vsel %vm82, %v74, %v75
  %v88 = vsel %vm82, %v73, %v74
  %v89 = vsel %vm82, %v72, %v73
  %v90 = vsel %vm82, %v71, %v72
  %v91 = vsel %vm82, %v70, %v71
  %v92 = vsel %vm82, %v69, %v70
  %v93 = vsel %vm82, %v68, %v69
  %v94 = vsel %vm82, %v67, %v68
  %v95 = vsel %vm82, %v66, %v67
  %v96 = vsel %vm82, %v65, %v66
  %v97 = vsel %vm82, %v64, %v65
  %v98 = vsel %vm82, %v63, %v64
  %v99 = vsel %vm82, %v62, %v63
  %v100 = vsel %vm82, %v61, %v62
  %v101 = vsel %vm82, %v60, %v61
  %v102 = vsel %vm82, %v59, %v60
  %v103 = vsel %vm82, %v58, %v59
  %v104 = vsel %vm82, %v57, %v58
  %v105 = vsel %vm82, %v56, %v57
  %v106 = vsel %vm82, %v55, %v56
  %v107 = vsel %vm82, %v54, %v55
  %v108 = vsel %vm82, %v53, %v54
  %v109 = vsel %vm82, %v52, %v53
  %v110 = vsel %vm82, %v51, %v52
  %v111 = vsel %vm82, %v50, %v51
  %v112 = vsel %vm82, %v49, %v50
  %v113 = vsel %vm82, %v48, %v49
  %v114 = vsel %vm82, %v47, %v48
  %v115 = vsel %vm82, %v46, %v47
  %v116 = vsel %vm82, %v45, %v46
  %v117 = vsel %vm82, %v44, %v45
  %v118 = vsel %vm82, %v79, %v44
  %v119 = vrot.slane %v8, 1
  %v120 = vrot.slane %v9, 1
  %v121 = vrot.slane %v10, 1
  %v122 = vrot.slane %v11, 1
  %v123 = vrot.slane %v12, 1
  %v124 = vrot.slane %v13, 1
  %v125 = vrot.slane %v14, 1
  %v126 = vrot.slane %v15, 1
  %v127 = vrot.slane %v16, 1
  %v128 = vrot.slane %v17, 1
  %v129 = vrot.slane %v18, 1
  %v130 = vrot.slane %v19, 1
  %v131 = vrot.slane %v20, 1
  %v132 = vrot.slane %v21, 1
  %v133 = vrot.slane %v22, 1
  %v134 = vrot.slane %v23, 1
  %v135 = vrot.slane %v24, 1
  %v136 = vrot.slane %v25, 1
  %v137 = vrot.slane %v26, 1
  %v138 = vrot.slane %v27, 1
  %v139 = vrot.slane %v28, 1
  %v140 = vrot.slane %v29, 1
  %v141 = vrot.slane %v30, 1
  %v142 = vrot.slane %v31, 1
  %v143 = vrot.slane %v32, 1
  %v144 = vrot.slane %v33, 1
  %v145 = vrot.slane %v34, 1
  %v146 = vrot.slane %v35, 1
  %v147 = vrot.slane %v36, 1
  %v148 = vrot.slane %v37, 1
  %v149 = vrot.slane %v38, 1
  %v150 = vrot.slane %v39, 1
  %v151 = vrot.slane %v40, 1
  %v152 = vrot.slane %v41, 1
  %v153 = vrot.slane %v42, 1
  %v154 = vrot.slane %v43, 1
  %vm155 = vcmp.lt.s32.totalorder %v81, 7
  %v156 = vsel %vm155, %v153, %v154
  %v157 = vsel %vm155, %v152, %v153
  %v158 = vsel %vm155, %v151, %v152
  %v159 = vsel %vm155, %v150, %v151
  %v160 = vsel %vm155, %v149, %v150
  %v161 = vsel %vm155, %v148, %v149
  %v162 = vsel %vm155, %v147, %v148
  %v163 = vsel %vm155, %v146, %v147
  %v164 = vsel %vm155, %v145, %v146
  %v165 = vsel %vm155, %v144, %v145
  %v166 = vsel %vm155, %v143, %v144
  %v167 = vsel %vm155, %v142, %v143
  %v168 = vsel %vm155, %v141, %v142
  %v169 = vsel %vm155, %v140, %v141
  %v170 = vsel %vm155, %v139, %v140
  %v171 = vsel %vm155, %v138, %v139
  %v172 = vsel %vm155, %v137, %v138
  %v173 = vsel %vm155, %v136, %v137
  %v174 = vsel %vm155, %v135, %v136
  %v175 = vsel %vm155, %v134, %v135
  %v176 = vsel %vm155, %v133, %v134
  %v177 = vsel %vm155, %v132, %v133
  %v178 = vsel %vm155, %v131, %v132
  %v179 = vsel %vm155, %v130, %v131
  %v180 = vsel %vm155, %v129, %v130
  %v181 = vsel %vm155, %v128, %v129
  %v182 = vsel %vm155, %v127, %v128
  %v183 = vsel %vm155, %v126, %v127
  %v184 = vsel %vm155, %v125, %v126
  %v185 = vsel %vm155, %v124, %v125
  %v186 = vsel %vm155, %v123, %v124
  %v187 = vsel %vm155, %v122, %v123
  %v188 = vsel %vm155, %v121, %v122
  %v189 = vsel %vm155, %v120, %v121
  %v190 = vsel %vm155, %v119, %v120
  %v191 = vsel %vm155, %v154, %v119
  %v192 = vadd.f32 %v118, %v190
  %v193 = vadd.f32 %v117, %v189
  %v194 = vadd.f32 %v116, %v188
  %v195 = vadd.f32 %v115, %v187
  %v196 = vadd.f32 %v114, %v186
  %v197 = vadd.f32 %v113, %v185
  %v198 = vadd.f32 %v112, %v184
  %v199 = vadd.f32 %v111, %v183
  %v200 = vadd.f32 %v110, %v182
  %v201 = vadd.f32 %v109, %v181
  %v202 = vadd.f32 %v108, %v180
  %v203 = vadd.f32 %v107, %v179
  %v204 = vadd.f32 %v106, %v178
  %v205 = vadd.f32 %v105, %v177
  %v206 = vadd.f32 %v104, %v176
  %v207 = vadd.f32 %v103, %v175
  %v208 = vadd.f32 %v102, %v174
  %v209 = vadd.f32 %v101, %v173
  %v210 = vadd.f32 %v100, %v172
  %v211 = vadd.f32 %v99, %v171
  %v212 = vadd.f32 %v98, %v170
  %v213 = vadd.f32 %v97, %v169
  %v214 = vadd.f32 %v96, %v168
  %v215 = vadd.f32 %v95, %v167
  %v216 = vadd.f32 %v94, %v166
  %v217 = vadd.f32 %v93, %v165
  %v218 = vadd.f32 %v92, %v164
  %v219 = vadd.f32 %v91, %v163
  %v220 = vadd.f32 %v90, %v162
  %v221 = vadd.f32 %v89, %v161
  %v222 = vadd.f32 %v88, %v160
  %v223 = vadd.f32 %v87, %v159
  %v224 = vadd.f32 %v86, %v158
  %v225 = vadd.f32 %v85, %v157
  %v226 = vadd.f32 %v84, %v156
  %v227 = vadd.f32 %v83, %v191
  %vm228 = vcmask 31744
  %229 = vst.msk [vmem:[%s1] sm:$0xff] %vm228, %v192
  %230 = vst.msk [vmem:[%s1 + $0x8] sm:$0xff] %vm228, %v193
  %231 = vst.msk [vmem:[%s1 + $0x10] sm:$0xff] %vm228, %v194
  %232 = vst.msk [vmem:[%s1 + $0x18] sm:$0xff] %vm228, %v195
  %233 = vst.msk [vmem:[%s1 + $0x20] sm:$0xff] %vm228, %v196
  %234 = vst.msk [vmem:[%s1 + $0x28] sm:$0xff] %vm228, %v197
  %235 = vst.msk [vmem:[%s1 + $0x30] sm:$0xff] %vm228, %v198
  %236 = vst.msk [vmem:[%s1 + $0x38] sm:$0xff] %vm228, %v199
  %237 = vst.msk [vmem:[%s1 + $0x40] sm:$0xff] %vm228, %v200
  %238 = vst.msk [vmem:[%s1 + $0x48] sm:$0xff] %vm228, %v201
  %239 = vst.msk [vmem:[%s1 + $0x50] sm:$0xff] %vm228, %v202
  %240 = vst.msk [vmem:[%s1 + $0x58] sm:$0xff] %vm228, %v203
  %241 = vst.msk [vmem:[%s1 + $0x60] sm:$0xff] %vm228, %v204
  %242 = vst.msk [vmem:[%s1 + $0x68] sm:$0xff] %vm228, %v205
  %243 = vst.msk [vmem:[%s1 + $0x70] sm:$0xff] %vm228, %v206
  %244 = vst.msk [vmem:[%s1 + $0x78] sm:$0xff] %vm228, %v207
  %245 = vst.msk [vmem:[%s1 + $0x80] sm:$0xff] %vm228, %v208
  %246 = vst.msk [vmem:[%s1 + $0x88] sm:$0xff] %vm228, %v209
  %247 = vst.msk [vmem:[%s1 + $0x90] sm:$0xff] %vm228, %v210
  %248 = vst.msk [vmem:[%s1 + $0x98] sm:$0xff] %vm228, %v211
  %249 = vst.msk [vmem:[%s1 + $0xa0] sm:$0xff] %vm228, %v212
  %250 = vst.msk [vmem:[%s1 + $0xa8] sm:$0xff] %vm228, %v213
  %251 = vst.msk [vmem:[%s1 + $0xb0] sm:$0xff] %vm228, %v214
  %252 = vst.msk [vmem:[%s1 + $0xb8] sm:$0xff] %vm228, %v215
  %253 = vst.msk [vmem:[%s1 + $0xc0] sm:$0xff] %vm228, %v216
  %254 = vst.msk [vmem:[%s1 + $0xc8] sm:$0xff] %vm228, %v217
  %255 = vst.msk [vmem:[%s1 + $0xd0] sm:$0xff] %vm228, %v218
  %256 = vst.msk [vmem:[%s1 + $0xd8] sm:$0xff] %vm228, %v219
  %257 = vst.msk [vmem:[%s1 + $0xe0] sm:$0xff] %vm228, %v220
  %258 = vst.msk [vmem:[%s1 + $0xe8] sm:$0xff] %vm228, %v221
  %259 = vst.msk [vmem:[%s1 + $0xf0] sm:$0xff] %vm228, %v222
  %260 = vst.msk [vmem:[%s1 + $0xf8] sm:$0xff] %vm228, %v223
  %261 = vst.msk [vmem:[%s1 + $0x100] sm:$0xff] %vm228, %v224
  %262 = vst.msk [vmem:[%s1 + $0x108] sm:$0xff] %vm228, %v225
  %263 = vst.msk [vmem:[%s1 + $0x110] sm:$0xff] %vm228, %v226
  %264 = vst.msk [vmem:[%s1 + $0x118] sm:$0xff] %vm228, %v227
  // Predicated region
  $region6: #{tpu_custom_call.1} parent=0 // pred_check
    _
  $region7: #{tpu_custom_call.1} parent=0 // pred_check_branch
    %266 = sbr.rel (0) target = $region9
  $region8: #{tpu_custom_call.1} parent=0 // pred_region
    _
  $region9: #{tpu_custom_call.1} parent=0 // pred_fallthru
    _
  // Predicated region
  $region10: #{tpu_custom_call.1} parent=0 // pred_check
    _
  $region11: #{tpu_custom_call.1} parent=0 // pred_check_branch
    %268 = sbr.rel (0) target = $region13
  $region12: #{tpu_custom_call.1} parent=0 // pred_region
    _
  $region13: #{tpu_custom_call.1} parent=0 // pred_fallthru
    _

// kernel: tpu_custom_call.1
$region0: #{tpu_custom_call.1}
  #allocation0 [shape = 'u32[]', space=smem, size = 0x4, offset = 0x4, fixed_abs, tag = 'smem constant byte address 0x4 - core index']
  #allocation1 [shape = 'u32[144,128]{1,0:T(1,128)}', space=vmem, size = 0x12000, scoped, tag = 'internal scratch']
  %s0 = inlined_call_operand.vmem [shape: f32[2,16,16,4], index: 0, kind: input, shape index: {}]
  %s1 = inlined_call_operand.vmem [shape: bf16[3,3,4,4], index: 1, kind: input, shape index: {}]
  %s2 = inlined_call_operand.vmem [shape: bf16[3,3,4,4], index: 2, kind: input, shape index: {}]
  %s3 = inlined_call_operand.vmem [shape: f32[2,16,16,4], index: 3, kind: output, shape index: {}]
  %s4 = sld [smem:[#allocation0]]
  $region45: #{tpu_custom_call.1} parent=0
    _
  %s6 = ssub.s32 1, %s4
  %s7 = scalar_select 0, %s6, %s4
  loop: start=0, step=1, limit=4
  $region2: #{tpu_custom_call.1} parent=0 // loop_pre_header
    _
  $region3: #{tpu_custom_call.1} parent=0 // loop_header
    %s9 = sphi 0, %s13
    %p10 = scmp.ge.s32.totalorder %s9, 4
    %s19 = sphi 0, %s21
    %s22 = sphi 0, %s19
    %s23 = sphi 0, %s22
    %s39 = sphi 0, %s23
    %s43 = sphi 0, %s43
    %s45 = sphi 0, %s43
    %s46 = sphi 0, %s45
    %s60 = sphi 0, %s46
    %s64 = sphi 0, %s64
    %s66 = sphi 0, %s64
    %s67 = sphi 0, %s66
    %s81 = sphi 0, %s67
    %s87 = sphi 0, %s89
    %s90 = sphi 0, %s87
    %s91 = sphi 0, %s90
    %s107 = sphi 0, %s91
  $region4: #{tpu_custom_call.1} parent=0 // loop_header_branch
    %12 = sbr.rel (%p10) target = $region8
  $region5: #{tpu_custom_call.1} parent=0 // loop_body
    %s14 = ssub.s32 %s9, 1
    %s15 = ssub.s32 %s9, 2
    %s16 = sadd.s32 %s9, 1
    %s17 = ssub.s32 %s9, %s16
    %p18 = scmp.eq.s32.totalorder %s17, 0
    %s20 = sadd.s32 %s19, 1
    %s21 = scalar_select %p18, %s19, %s20
    %p24 = pneg %p18
    %p25 = scmp.eq.s32.totalorder %s9, 1
    %p26 = por %p24, %p25
    %p27 = scmp.ne.s32.totalorder %s19, %s22
    %p28 = scmp.eq.s32.totalorder %s9, 0
    %p29 = por %p27, %p28
    %p30 = scmp.ne.s32.totalorder %s19, %s22
    %p31 = scmp.eq.s32.totalorder %s14, 1
    %p32 = por %p30, %p31
    %p33 = scmp.ne.s32.totalorder %s22, %s23
    %p34 = scmp.eq.s32.totalorder %s14, 0
    %p35 = por %p33, %p34
    %p36 = scmp.ne.s32.totalorder %s22, %s23
    %p37 = scmp.eq.s32.totalorder %s15, 1
    %p38 = por %p36, %p37
    %p40 = scmp.ne.s32.totalorder %s23, %s39
    %p41 = scmp.eq.s32.totalorder %s15, 0
    %p42 = por %p40, %p41
    %s44 = sadd.s32 %s43, 1
    %p47 = scmp.eq.s32.totalorder %s9, 1
    %p48 = scmp.ne.s32.totalorder %s43, %s45
    %p49 = scmp.eq.s32.totalorder %s9, 0
    %p50 = por %p48, %p49
    %p51 = scmp.ne.s32.totalorder %s43, %s45
    %p52 = scmp.eq.s32.totalorder %s14, 1
    %p53 = por %p51, %p52
    %p54 = scmp.ne.s32.totalorder %s45, %s46
    %p55 = scmp.eq.s32.totalorder %s14, 0
    %p56 = por %p54, %p55
    %p57 = scmp.ne.s32.totalorder %s45, %s46
    %p58 = scmp.eq.s32.totalorder %s15, 1
    %p59 = por %p57, %p58
    %p61 = scmp.ne.s32.totalorder %s46, %s60
    %p62 = scmp.eq.s32.totalorder %s15, 0
    %p63 = por %p61, %p62
    %s65 = sadd.s32 %s64, 1
    %p68 = scmp.eq.s32.totalorder %s9, 1
    %p69 = scmp.ne.s32.totalorder %s64, %s66
    %p70 = scmp.eq.s32.totalorder %s9, 0
    %p71 = por %p69, %p70
    %p72 = scmp.ne.s32.totalorder %s64, %s66
    %p73 = scmp.eq.s32.totalorder %s14, 1
    %p74 = por %p72, %p73
    %p75 = scmp.ne.s32.totalorder %s66, %s67
    %p76 = scmp.eq.s32.totalorder %s14, 0
    %p77 = por %p75, %p76
    %p78 = scmp.ne.s32.totalorder %s66, %s67
    %p79 = scmp.eq.s32.totalorder %s15, 1
    %p80 = por %p78, %p79
    %p82 = scmp.ne.s32.totalorder %s67, %s81
    %p83 = scmp.eq.s32.totalorder %s15, 0
    %p84 = por %p82, %p83
    %s85 = ssub.s32 %s9, %s16
    %p86 = scmp.eq.s32.totalorder %s85, 0
    %s88 = sadd.s32 %s87, 1
    %s89 = scalar_select %p86, %s87, %s88
    %p92 = pneg %p86
    %p93 = scmp.eq.s32.totalorder %s9, 1
    %p94 = por %p92, %p93
    %p95 = scmp.ne.s32.totalorder %s87, %s90
    %p96 = scmp.eq.s32.totalorder %s9, 0
    %p97 = por %p95, %p96
    %p98 = scmp.ne.s32.totalorder %s87, %s90
    %p99 = scmp.eq.s32.totalorder %s14, 1
    %p100 = por %p98, %p99
    %p101 = scmp.ne.s32.totalorder %s90, %s91
    %p102 = scmp.eq.s32.totalorder %s14, 0
    %p103 = por %p101, %p102
    %p104 = scmp.ne.s32.totalorder %s90, %s91
    %p105 = scmp.eq.s32.totalorder %s15, 1
    %p106 = por %p104, %p105
    %p108 = scmp.ne.s32.totalorder %s91, %s107
    %p109 = scmp.eq.s32.totalorder %s15, 0
    %p110 = por %p108, %p109
    %p111 = scmp.le.s32.totalorder 1, %s9
    %p112 = scmp.lt.s32.totalorder %s9, 3
    %p113 = pnand %p111, %p112
    %p114 = pneg %p113
    // Predicated region
    $region9: #{tpu_custom_call.1} parent=5 // pred_check
      _
    $region10: #{tpu_custom_call.1} parent=5 // pred_check_branch
      %116 = sbr.rel (%p113) target = $region12
    $region11: #{tpu_custom_call.1} parent=5 // pred_region
      %s117 = ssub.s32 %s9, 1
      // Predicated region
      $region13: #{tpu_custom_call.1} parent=11 // pred_check
        %p118 = pneg %p56
      $region14: #{tpu_custom_call.1} parent=11 // pred_check_branch
        %120 = sbr.rel (%p118) target = $region16
      $region15: #{tpu_custom_call.1} parent=11 // pred_region
        _
      $region16: #{tpu_custom_call.1} parent=11 // pred_fallthru
        _
      // Predicated region
      $region17: #{tpu_custom_call.1} parent=11 // pred_check
        %p121 = pneg %p77
      $region18: #{tpu_custom_call.1} parent=11 // pred_check_branch
        %123 = sbr.rel (%p121) target = $region20
      $region19: #{tpu_custom_call.1} parent=11 // pred_region
        _
      $region20: #{tpu_custom_call.1} parent=11 // pred_fallthru
        _
    $region12: #{tpu_custom_call.1} parent=5 // pred_fallthru
      _
    %p124 = scmp.lt.s32.totalorder %s9, 2
    // Predicated region
    $region21: #{tpu_custom_call.1} parent=5 // pred_check
      %p125 = pneg %p124
    $region22: #{tpu_custom_call.1} parent=5 // pred_check_branch
      %127 = sbr.rel (%p125) target = $region24
    $region23: #{tpu_custom_call.1} parent=5 // pred_region
      // Predicated region
      $region25: #{tpu_custom_call.1} parent=23 // pred_check
        %p128 = pneg %p29
      $region26: #{tpu_custom_call.1} parent=23 // pred_check_branch
        %130 = sbr.rel (%p128) target = $region28
      $region27: #{tpu_custom_call.1} parent=23 // pred_region
        %p131 = scmp.lt.s32.totalorder %s9, 1
        %s132 = scalar_select %p131, %s9, 1
        %s133 = smul.addr %s132, 32
        %s134 = smul.addr %s133, 8
        %s135 = scalar_lea.vmem %s0, %s134
      $region28: #{tpu_custom_call.1} parent=23 // pred_fallthru
        _
    $region24: #{tpu_custom_call.1} parent=5 // pred_fallthru
      _
    %p136 = scmp.le.s32.totalorder 1, %s9
    %p137 = scmp.lt.s32.totalorder %s9, 3
    %p138 = pnand %p136, %p137
    %p139 = pneg %p138
    // Predicated region
    $region29: #{tpu_custom_call.1} parent=5 // pred_check
      _
    $region30: #{tpu_custom_call.1} parent=5 // pred_check_branch
      %141 = sbr.rel (%p138) target = $region32
    $region31: #{tpu_custom_call.1} parent=5 // pred_region
      %s142 = ssub.s32 %s9, 1
      %p143 = scmp.lt.s32.totalorder %s14, 1
      %s144 = scalar_select %p143, %s14, 1
      %s145 = smul.addr %s144, 32
      %s146 = smul.addr %s145, 8
      %s147 = scalar_lea.vmem %s0, %s146
      %p148 = pneg %p35
      %p149 = pneg %p32
      %p150 = pneg %p56
      %p151 = pneg %p53
      %p152 = pneg %p77
      %p153 = pneg %p74
      %p154 = pneg %p103
      %p155 = pneg %p100
      %p156 = scmp.lt.s32.totalorder %s14, 1
      %s157 = scalar_select %p156, %s14, 1
      %s158 = smul.addr %s157, 32
      %s159 = smul.addr %s158, 8
      %s160 = scalar_lea.vmem %s3, %s159
      %p161 = scmp.lt.s32.totalorder %s14, 1
      %s162 = scalar_select %p161, %s14, 1
      %s163 = smul.addr %s162, 32
      %s164 = smul.addr %s163, 8
      %s165 = scalar_lea.vmem %s0, %s164
      %p166 = scmp.lt.s32.totalorder %s14, 1
      %s167 = scalar_select %p166, %s14, 1
      %s168 = smul.addr %s167, 32
      %s169 = smul.addr %s168, 8
      %s170 = scalar_lea.vmem %s3, %s169
      %v172 = vld [vmem:[%s165] sm:$0xff]
      %v173 = vld [vmem:[%s165 + $0x8] sm:$0xff]
      %v174 = vld [vmem:[%s165 + $0x10] sm:$0xff]
      %v175 = vld [vmem:[%s165 + $0x18] sm:$0xff]
      %v176 = vld [vmem:[%s165 + $0x20] sm:$0xff]
      %v177 = vld [vmem:[%s165 + $0x28] sm:$0xff]
      %v178 = vld [vmem:[%s165 + $0x30] sm:$0xff]
      %v179 = vld [vmem:[%s165 + $0x38] sm:$0xff]
      %v180 = vld [vmem:[%s165 + $0x40] sm:$0xff]
      %v181 = vld [vmem:[%s165 + $0x48] sm:$0xff]
      %v182 = vld [vmem:[%s165 + $0x50] sm:$0xff]
      %v183 = vld [vmem:[%s165 + $0x58] sm:$0xff]
      %v184 = vld [vmem:[%s165 + $0x60] sm:$0xff]
      %v185 = vld [vmem:[%s165 + $0x68] sm:$0xff]
      %v186 = vld [vmem:[%s165 + $0x70] sm:$0xff]
      %v187 = vld [vmem:[%s165 + $0x78] sm:$0xff]
      %v188 = vld [vmem:[%s165 + $0x80] sm:$0xff]
      %v189 = vld [vmem:[%s165 + $0x88] sm:$0xff]
      %v190 = vld [vmem:[%s165 + $0x90] sm:$0xff]
      %v191 = vld [vmem:[%s165 + $0x98] sm:$0xff]
      %v192 = vld [vmem:[%s165 + $0xa0] sm:$0xff]
      %v193 = vld [vmem:[%s165 + $0xa8] sm:$0xff]
      %v194 = vld [vmem:[%s165 + $0xb0] sm:$0xff]
      %v195 = vld [vmem:[%s165 + $0xb8] sm:$0xff]
      %v196 = vld [vmem:[%s165 + $0xc0] sm:$0xff]
      %v197 = vld [vmem:[%s165 + $0xc8] sm:$0xff]
      %v198 = vld [vmem:[%s165 + $0xd0] sm:$0xff]
      %v199 = vld [vmem:[%s165 + $0xd8] sm:$0xff]
      %v200 = vld [vmem:[%s165 + $0xe0] sm:$0xff]
      %v201 = vld [vmem:[%s165 + $0xe8] sm:$0xff]
      %v202 = vld [vmem:[%s165 + $0xf0] sm:$0xff]
      %v203 = vld [vmem:[%s165 + $0xf8] sm:$0xff]
      %v204 = vlaneseq
      %v205 = vshrl.u32 %v204, 7
      %v206 = vadd.s32 %v205, 8
      %v207 = vadd.s32 %v205, 16
      %v208 = vadd.s32 %v205, 24
      %v209 = vadd.s32 %v205, 32
      %v210 = vadd.s32 %v205, 40
      %v211 = vadd.s32 %v205, 48
      %v212 = vadd.s32 %v205, 56
      %v213 = vadd.s32 %v205, 64
      %v214 = vadd.s32 %v205, 72
      %v215 = vadd.s32 %v205, 80
      %v216 = vadd.s32 %v205, 88
      %v217 = vadd.s32 %v205, 96
      %v218 = vadd.s32 %v205, 104
      %v219 = vadd.s32 %v205, 112
      %v220 = vadd.s32 %v205, 120
      %v221 = vadd.s32 %v205, 128
      %v222 = vadd.s32 %v205, 136
      %v223 = vadd.s32 %v205, 144
      %v224 = vadd.s32 %v205, 152
      %v225 = vadd.s32 %v205, 160
      %v226 = vadd.s32 %v205, 168
      %v227 = vadd.s32 %v205, 176
      %v228 = vadd.s32 %v205, 184
      %v229 = vadd.s32 %v205, 192
      %v230 = vadd.s32 %v205, 200
      %v231 = vadd.s32 %v205, 208
      %v232 = vadd.s32 %v205, 216
      %v233 = vadd.s32 %v205, 224
      %v234 = vadd.s32 %v205, 232
      %v235 = vadd.s32 %v205, 240
      %v236 = vadd.s32 %v205, 248
      %v237 = vadd.s32 %v205, 256
      %v238 = vadd.s32 %v205, 264
      %v239 = vadd.s32 %v205, 272
      %v240 = vadd.s32 %v205, 280
      %vm241 = vcmp.lt.s32.totalorder %v205, 0
      %v242 = vsub.s32 0, %v205
      %v243 = vsel %vm241, %v242, %v205
      %v244 = vshrl.u32 %v243, 4
      %v245 = vand.u32 %v243, 15
      %v246 = vsub.s32 0, %v245
      %v247 = vsel %vm241, %v246, %v245
      %vm248 = vcmp.lt.s32.totalorder %v206, 0
      %v249 = vsub.s32 0, %v206
      %v250 = vsel %vm248, %v249, %v206
      %v251 = vshrl.u32 %v250, 4
      %v252 = vand.u32 %v250, 15
      %v253 = vsub.s32 0, %v252
      %v254 = vsel %vm248, %v253, %v252
      %vm255 = vcmp.lt.s32.totalorder %v207, 0
      %v256 = vsub.s32 0, %v207
      %v257 = vsel %vm255, %v256, %v207
      %v258 = vshrl.u32 %v257, 4
      %v259 = vand.u32 %v257, 15
      %v260 = vsub.s32 0, %v259
      %v261 = vsel %vm255, %v260, %v259
      %vm262 = vcmp.lt.s32.totalorder %v208, 0
      %v263 = vsub.s32 0, %v208
      %v264 = vsel %vm262, %v263, %v208
      %v265 = vshrl.u32 %v264, 4
      %v266 = vand.u32 %v264, 15
      %v267 = vsub.s32 0, %v266
      %v268 = vsel %vm262, %v267, %v266
      %vm269 = vcmp.lt.s32.totalorder %v209, 0
      %v270 = vsub.s32 0, %v209
      %v271 = vsel %vm269, %v270, %v209
      %v272 = vshrl.u32 %v271, 4
      %v273 = vand.u32 %v271, 15
      %v274 = vsub.s32 0, %v273
      %v275 = vsel %vm269, %v274, %v273
      %vm276 = vcmp.lt.s32.totalorder %v210, 0
      %v277 = vsub.s32 0, %v210
      %v278 = vsel %vm276, %v277, %v210
      %v279 = vshrl.u32 %v278, 4
      %v280 = vand.u32 %v278, 15
      %v281 = vsub.s32 0, %v280
      %v282 = vsel %vm276, %v281, %v280
      %vm283 = vcmp.lt.s32.totalorder %v211, 0
      %v284 = vsub.s32 0, %v211
      %v285 = vsel %vm283, %v284, %v211
      %v286 = vshrl.u32 %v285, 4
      %v287 = vand.u32 %v285, 15
      %v288 = vsub.s32 0, %v287
      %v289 = vsel %vm283, %v288, %v287
      %vm290 = vcmp.lt.s32.totalorder %v212, 0
      %v291 = vsub.s32 0, %v212
      %v292 = vsel %vm290, %v291, %v212
      %v293 = vshrl.u32 %v292, 4
      %v294 = vand.u32 %v292, 15
      %v295 = vsub.s32 0, %v294
      %v296 = vsel %vm290, %v295, %v294
      %vm297 = vcmp.lt.s32.totalorder %v213, 0
      %v298 = vsub.s32 0, %v213
      %v299 = vsel %vm297, %v298, %v213
      %v300 = vshrl.u32 %v299, 4
      %v301 = vand.u32 %v299, 15
      %v302 = vsub.s32 0, %v301
      %v303 = vsel %vm297, %v302, %v301
      %vm304 = vcmp.lt.s32.totalorder %v214, 0
      %v305 = vsub.s32 0, %v214
      %v306 = vsel %vm304, %v305, %v214
      %v307 = vshrl.u32 %v306, 4
      %v308 = vand.u32 %v306, 15
      %v309 = vsub.s32 0, %v308
      %v310 = vsel %vm304, %v309, %v308
      %vm311 = vcmp.lt.s32.totalorder %v215, 0
      %v312 = vsub.s32 0, %v215
      %v313 = vsel %vm311, %v312, %v215
      %v314 = vshrl.u32 %v313, 4
      %v315 = vand.u32 %v313, 15
      %v316 = vsub.s32 0, %v315
      %v317 = vsel %vm311, %v316, %v315
      %vm318 = vcmp.lt.s32.totalorder %v216, 0
      %v319 = vsub.s32 0, %v216
      %v320 = vsel %vm318, %v319, %v216
      %v321 = vshrl.u32 %v320, 4
      %v322 = vand.u32 %v320, 15
      %v323 = vsub.s32 0, %v322
      %v324 = vsel %vm318, %v323, %v322
      %vm325 = vcmp.lt.s32.totalorder %v217, 0
      %v326 = vsub.s32 0, %v217
      %v327 = vsel %vm325, %v326, %v217
      %v328 = vshrl.u32 %v327, 4
      %v329 = vand.u32 %v327, 15
      %v330 = vsub.s32 0, %v329
      %v331 = vsel %vm325, %v330, %v329
      %vm332 = vcmp.lt.s32.totalorder %v218, 0
      %v333 = vsub.s32 0, %v218
      %v334 = vsel %vm332, %v333, %v218
      %v335 = vshrl.u32 %v334, 4
      %v336 = vand.u32 %v334, 15
      %v337 = vsub.s32 0, %v336
      %v338 = vsel %vm332, %v337, %v336
      %vm339 = vcmp.lt.s32.totalorder %v219, 0
      %v340 = vsub.s32 0, %v219
      %v341 = vsel %vm339, %v340, %v219
      %v342 = vshrl.u32 %v341, 4
      %v343 = vand.u32 %v341, 15
      %v344 = vsub.s32 0, %v343
      %v345 = vsel %vm339, %v344, %v343
      %vm346 = vcmp.lt.s32.totalorder %v220, 0
      %v347 = vsub.s32 0, %v220
      %v348 = vsel %vm346, %v347, %v220
      %v349 = vshrl.u32 %v348, 4
      %v350 = vand.u32 %v348, 15
      %v351 = vsub.s32 0, %v350
      %v352 = vsel %vm346, %v351, %v350
      %vm353 = vcmp.lt.s32.totalorder %v221, 0
      %v354 = vsub.s32 0, %v221
      %v355 = vsel %vm353, %v354, %v221
      %v356 = vshrl.u32 %v355, 4
      %v357 = vand.u32 %v355, 15
      %v358 = vsub.s32 0, %v357
      %v359 = vsel %vm353, %v358, %v357
      %vm360 = vcmp.lt.s32.totalorder %v222, 0
      %v361 = vsub.s32 0, %v222
      %v362 = vsel %vm360, %v361, %v222
      %v363 = vshrl.u32 %v362, 4
      %v364 = vand.u32 %v362, 15
      %v365 = vsub.s32 0, %v364
      %v366 = vsel %vm360, %v365, %v364
      %vm367 = vcmp.lt.s32.totalorder %v223, 0
      %v368 = vsub.s32 0, %v223
      %v369 = vsel %vm367, %v368, %v223
      %v370 = vshrl.u32 %v369, 4
      %v371 = vand.u32 %v369, 15
      %v372 = vsub.s32 0, %v371
      %v373 = vsel %vm367, %v372, %v371
      %vm374 = vcmp.lt.s32.totalorder %v224, 0
      %v375 = vsub.s32 0, %v224
      %v376 = vsel %vm374, %v375, %v224
      %v377 = vshrl.u32 %v376, 4
      %v378 = vand.u32 %v376, 15
      %v379 = vsub.s32 0, %v378
      %v380 = vsel %vm374, %v379, %v378
      %vm381 = vcmp.lt.s32.totalorder %v225, 0
      %v382 = vsub.s32 0, %v225
      %v383 = vsel %vm381, %v382, %v225
      %v384 = vshrl.u32 %v383, 4
      %v385 = vand.u32 %v383, 15
      %v386 = vsub.s32 0, %v385
      %v387 = vsel %vm381, %v386, %v385
      %vm388 = vcmp.lt.s32.totalorder %v226, 0
      %v389 = vsub.s32 0, %v226
      %v390 = vsel %vm388, %v389, %v226
      %v391 = vshrl.u32 %v390, 4
      %v392 = vand.u32 %v390, 15
      %v393 = vsub.s32 0, %v392
      %v394 = vsel %vm388, %v393, %v392
      %vm395 = vcmp.lt.s32.totalorder %v227, 0
      %v396 = vsub.s32 0, %v227
      %v397 = vsel %vm395, %v396, %v227
      %v398 = vshrl.u32 %v397, 4
      %v399 = vand.u32 %v397, 15
      %v400 = vsub.s32 0, %v399
      %v401 = vsel %vm395, %v400, %v399
      %vm402 = vcmp.lt.s32.totalorder %v228, 0
      %v403 = vsub.s32 0, %v228
      %v404 = vsel %vm402, %v403, %v228
      %v405 = vshrl.u32 %v404, 4
      %v406 = vand.u32 %v404, 15
      %v407 = vsub.s32 0, %v406
      %v408 = vsel %vm402, %v407, %v406
      %vm409 = vcmp.lt.s32.totalorder %v229, 0
      %v410 = vsub.s32 0, %v229
      %v411 = vsel %vm409, %v410, %v229
      %v412 = vshrl.u32 %v411, 4
      %v413 = vand.u32 %v411, 15
      %v414 = vsub.s32 0, %v413
      %v415 = vsel %vm409, %v414, %v413
      %vm416 = vcmp.lt.s32.totalorder %v230, 0
      %v417 = vsub.s32 0, %v230
      %v418 = vsel %vm416, %v417, %v230
      %v419 = vshrl.u32 %v418, 4
      %v420 = vand.u32 %v418, 15
      %v421 = vsub.s32 0, %v420
      %v422 = vsel %vm416, %v421, %v420
      %vm423 = vcmp.lt.s32.totalorder %v231, 0
      %v424 = vsub.s32 0, %v231
      %v425 = vsel %vm423, %v424, %v231
      %v426 = vshrl.u32 %v425, 4
      %v427 = vand.u32 %v425, 15
      %v428 = vsub.s32 0, %v427
      %v429 = vsel %vm423, %v428, %v427
      %vm430 = vcmp.lt.s32.totalorder %v232, 0
      %v431 = vsub.s32 0, %v232
      %v432 = vsel %vm430, %v431, %v232
      %v433 = vshrl.u32 %v432, 4
      %v434 = vand.u32 %v432, 15
      %v435 = vsub.s32 0, %v434
      %v436 = vsel %vm430, %v435, %v434
      %vm437 = vcmp.lt.s32.totalorder %v233, 0
      %v438 = vsub.s32 0, %v233
      %v439 = vsel %vm437, %v438, %v233
      %v440 = vshrl.u32 %v439, 4
      %v441 = vand.u32 %v439, 15
      %v442 = vsub.s32 0, %v441
      %v443 = vsel %vm437, %v442, %v441
      %vm444 = vcmp.lt.s32.totalorder %v234, 0
      %v445 = vsub.s32 0, %v234
      %v446 = vsel %vm444, %v445, %v234
      %v447 = vshrl.u32 %v446, 4
      %v448 = vand.u32 %v446, 15
      %v449 = vsub.s32 0, %v448
      %v450 = vsel %vm444, %v449, %v448
      %vm451 = vcmp.lt.s32.totalorder %v235, 0
      %v452 = vsub.s32 0, %v235
      %v453 = vsel %vm451, %v452, %v235
      %v454 = vshrl.u32 %v453, 4
      %v455 = vand.u32 %v453, 15
      %v456 = vsub.s32 0, %v455
      %v457 = vsel %vm451, %v456, %v455
      %vm458 = vcmp.lt.s32.totalorder %v236, 0
      %v459 = vsub.s32 0, %v236
      %v460 = vsel %vm458, %v459, %v236
      %v461 = vshrl.u32 %v460, 4
      %v462 = vand.u32 %v460, 15
      %v463 = vsub.s32 0, %v462
      %v464 = vsel %vm458, %v463, %v462
      %vm465 = vcmp.lt.s32.totalorder %v237, 0
      %v466 = vsub.s32 0, %v237
      %v467 = vsel %vm465, %v466, %v237
      %v468 = vshrl.u32 %v467, 4
      %v469 = vand.u32 %v467, 15
      %v470 = vsub.s32 0, %v469
      %v471 = vsel %vm465, %v470, %v469
      %vm472 = vcmp.lt.s32.totalorder %v238, 0
      %v473 = vsub.s32 0, %v238
      %v474 = vsel %vm472, %v473, %v238
      %v475 = vshrl.u32 %v474, 4
      %v476 = vand.u32 %v474, 15
      %v477 = vsub.s32 0, %v476
      %v478 = vsel %vm472, %v477, %v476
      %vm479 = vcmp.lt.s32.totalorder %v239, 0
      %v480 = vsub.s32 0, %v239
      %v481 = vsel %vm479, %v480, %v239
      %v482 = vshrl.u32 %v481, 4
      %v483 = vand.u32 %v481, 15
      %v484 = vsub.s32 0, %v483
      %v485 = vsel %vm479, %v484, %v483
      %vm486 = vcmp.lt.s32.totalorder %v240, 0
      %v487 = vsub.s32 0, %v240
      %v488 = vsel %vm486, %v487, %v240
      %v489 = vshrl.u32 %v488, 4
      %v490 = vand.u32 %v488, 15
      %v491 = vsub.s32 0, %v490
      %v492 = vsel %vm486, %v491, %v490
      %vm493 = vcmp.ne.s32.totalorder %v247, 0
      %vm494 = vcmp.ne.s32.totalorder %v254, 0
      %vm495 = vcmp.ne.s32.totalorder %v261, 0
      %vm496 = vcmp.ne.s32.totalorder %v268, 0
      %vm497 = vcmp.ne.s32.totalorder %v275, 0
      %vm498 = vcmp.ne.s32.totalorder %v282, 0
      %vm499 = vcmp.ne.s32.totalorder %v289, 0
      %vm500 = vcmp.ne.s32.totalorder %v296, 0
      %vm501 = vcmp.ne.s32.totalorder %v303, 0
      %vm502 = vcmp.ne.s32.totalorder %v310, 0
      %vm503 = vcmp.ne.s32.totalorder %v317, 0
      %vm504 = vcmp.ne.s32.totalorder %v324, 0
      %vm505 = vcmp.ne.s32.totalorder %v331, 0
      %vm506 = vcmp.ne.s32.totalorder %v338, 0
      %vm507 = vcmp.ne.s32.totalorder %v345, 0
      %vm508 = vcmp.ne.s32.totalorder %v352, 0
      %vm509 = vcmp.ne.s32.totalorder %v359, 0
      %vm510 = vcmp.ne.s32.totalorder %v366, 0
      %vm511 = vcmp.ne.s32.totalorder %v373, 0
      %vm512 = vcmp.ne.s32.totalorder %v380, 0
      %vm513 = vcmp.ne.s32.totalorder %v387, 0
      %vm514 = vcmp.ne.s32.totalorder %v394, 0
      %vm515 = vcmp.ne.s32.totalorder %v401, 0
      %vm516 = vcmp.ne.s32.totalorder %v408, 0
      %vm517 = vcmp.ne.s32.totalorder %v415, 0
      %vm518 = vcmp.ne.s32.totalorder %v422, 0
      %vm519 = vcmp.ne.s32.totalorder %v429, 0
      %vm520 = vcmp.ne.s32.totalorder %v436, 0
      %vm521 = vcmp.ne.s32.totalorder %v443, 0
      %vm522 = vcmp.ne.s32.totalorder %v450, 0
      %vm523 = vcmp.ne.s32.totalorder %v457, 0
      %vm524 = vcmp.ne.s32.totalorder %v464, 0
      %vm525 = vcmp.ne.s32.totalorder %v471, 0
      %vm526 = vcmp.ne.s32.totalorder %v478, 0
      %vm527 = vcmp.ne.s32.totalorder %v485, 0
      %vm528 = vcmp.ne.s32.totalorder %v492, 0
      %vm529 = vcmp.lt.s32.totalorder %v247, 0
      %vm530 = vcmp.lt.s32.totalorder %v254, 0
      %vm531 = vcmp.lt.s32.totalorder %v261, 0
      %vm532 = vcmp.lt.s32.totalorder %v268, 0
      %vm533 = vcmp.lt.s32.totalorder %v275, 0
      %vm534 = vcmp.lt.s32.totalorder %v282, 0
      %vm535 = vcmp.lt.s32.totalorder %v289, 0
      %vm536 = vcmp.lt.s32.totalorder %v296, 0
      %vm537 = vcmp.lt.s32.totalorder %v303, 0
      %vm538 = vcmp.lt.s32.totalorder %v310, 0
      %vm539 = vcmp.lt.s32.totalorder %v317, 0
      %vm540 = vcmp.lt.s32.totalorder %v324, 0
      %vm541 = vcmp.lt.s32.totalorder %v331, 0
      %vm542 = vcmp.lt.s32.totalorder %v338, 0
      %vm543 = vcmp.lt.s32.totalorder %v345, 0
      %vm544 = vcmp.lt.s32.totalorder %v352, 0
      %vm545 = vcmp.lt.s32.totalorder %v359, 0
      %vm546 = vcmp.lt.s32.totalorder %v366, 0
      %vm547 = vcmp.lt.s32.totalorder %v373, 0
      %vm548 = vcmp.lt.s32.totalorder %v380, 0
      %vm549 = vcmp.lt.s32.totalorder %v387, 0
      %vm550 = vcmp.lt.s32.totalorder %v394, 0
      %vm551 = vcmp.lt.s32.totalorder %v401, 0
      %vm552 = vcmp.lt.s32.totalorder %v408, 0
      %vm553 = vcmp.lt.s32.totalorder %v415, 0
      %vm554 = vcmp.lt.s32.totalorder %v422, 0
      %vm555 = vcmp.lt.s32.totalorder %v429, 0
      %vm556 = vcmp.lt.s32.totalorder %v436, 0
      %vm557 = vcmp.lt.s32.totalorder %v443, 0
      %vm558 = vcmp.lt.s32.totalorder %v450, 0
      %vm559 = vcmp.lt.s32.totalorder %v457, 0
      %vm560 = vcmp.lt.s32.totalorder %v464, 0
      %vm561 = vcmp.lt.s32.totalorder %v471, 0
      %vm562 = vcmp.lt.s32.totalorder %v478, 0
      %vm563 = vcmp.lt.s32.totalorder %v485, 0
      %vm564 = vcmp.lt.s32.totalorder %v492, 0
      %vm565 = vmand %vm529, %vm493
      %vm566 = vmand %vm530, %vm494
      %vm567 = vmand %vm531, %vm495
      %vm568 = vmand %vm532, %vm496
      %vm569 = vmand %vm533, %vm497
      %vm570 = vmand %vm534, %vm498
      %vm571 = vmand %vm535, %vm499
      %vm572 = vmand %vm536, %vm500
      %vm573 = vmand %vm537, %vm501
      %vm574 = vmand %vm538, %vm502
      %vm575 = vmand %vm539, %vm503
      %vm576 = vmand %vm540, %vm504
      %vm577 = vmand %vm541, %vm505
      %vm578 = vmand %vm542, %vm506
      %vm579 = vmand %vm543, %vm507
      %vm580 = vmand %vm544, %vm508
      %vm581 = vmand %vm545, %vm509
      %vm582 = vmand %vm546, %vm510
      %vm583 = vmand %vm547, %vm511
      %vm584 = vmand %vm548, %vm512
      %vm585 = vmand %vm549, %vm513
      %vm586 = vmand %vm550, %vm514
      %vm587 = vmand %vm551, %vm515
      %vm588 = vmand %vm552, %vm516
      %vm589 = vmand %vm553, %vm517
      %vm590 = vmand %vm554, %vm518
      %vm591 = vmand %vm555, %vm519
      %vm592 = vmand %vm556, %vm520
      %vm593 = vmand %vm557, %vm521
      %vm594 = vmand %vm558, %vm522
      %vm595 = vmand %vm559, %vm523
      %vm596 = vmand %vm560, %vm524
      %vm597 = vmand %vm561, %vm525
      %vm598 = vmand %vm562, %vm526
      %vm599 = vmand %vm563, %vm527
      %vm600 = vmand %vm564, %vm528
      %v601 = vadd.s32 %v247, 16
      %v602 = vadd.s32 %v254, 16
      %v603 = vadd.s32 %v261, 16
      %v604 = vadd.s32 %v268, 16
      %v605 = vadd.s32 %v275, 16
      %v606 = vadd.s32 %v282, 16
      %v607 = vadd.s32 %v289, 16
      %v608 = vadd.s32 %v296, 16
      %v609 = vadd.s32 %v303, 16
      %v610 = vadd.s32 %v310, 16
      %v611 = vadd.s32 %v317, 16
      %v612 = vadd.s32 %v324, 16
      %v613 = vadd.s32 %v331, 16
      %v614 = vadd.s32 %v338, 16
      %v615 = vadd.s32 %v345, 16
      %v616 = vadd.s32 %v352, 16
      %v617 = vadd.s32 %v359, 16
      %v618 = vadd.s32 %v366, 16
      %v619 = vadd.s32 %v373, 16
      %v620 = vadd.s32 %v380, 16
      %v621 = vadd.s32 %v387, 16
      %v622 = vadd.s32 %v394, 16
      %v623 = vadd.s32 %v401, 16
      %v624 = vadd.s32 %v408, 16
      %v625 = vadd.s32 %v415, 16
      %v626 = vadd.s32 %v422, 16
      %v627 = vadd.s32 %v429, 16
      %v628 = vadd.s32 %v436, 16
      %v629 = vadd.s32 %v443, 16
      %v630 = vadd.s32 %v450, 16
      %v631 = vadd.s32 %v457, 16
      %v632 = vadd.s32 %v464, 16
      %v633 = vadd.s32 %v471, 16
      %v634 = vadd.s32 %v478, 16
      %v635 = vadd.s32 %v485, 16
      %v636 = vadd.s32 %v492, 16
      %v637 = vsel %vm565, %v601, %v247
      %v638 = vsel %vm566, %v602, %v254
      %v639 = vsel %vm567, %v603, %v261
      %v640 = vsel %vm568, %v604, %v268
      %v641 = vsel %vm569, %v605, %v275
      %v642 = vsel %vm570, %v606, %v282
      %v643 = vsel %vm571, %v607, %v289
      %v644 = vsel %vm572, %v608, %v296
      %v645 = vsel %vm573, %v609, %v303
      %v646 = vsel %vm574, %v610, %v310
      %v647 = vsel %vm575, %v611, %v317
      %v648 = vsel %vm576, %v612, %v324
      %v649 = vsel %vm577, %v613, %v331
      %v650 = vsel %vm578, %v614, %v338
      %v651 = vsel %vm579, %v615, %v345
      %v652 = vsel %vm580, %v616, %v352
      %v653 = vsel %vm581, %v617, %v359
      %v654 = vsel %vm582, %v618, %v366
      %v655 = vsel %vm583, %v619, %v373
      %v656 = vsel %vm584, %v620, %v380
      %v657 = vsel %vm585, %v621, %v387
      %v658 = vsel %vm586, %v622, %v394
      %v659 = vsel %vm587, %v623, %v401
      %v660 = vsel %vm588, %v624, %v408
      %v661 = vsel %vm589, %v625, %v415
      %v662 = vsel %vm590, %v626, %v422
      %v663 = vsel %vm591, %v627, %v429
      %v664 = vsel %vm592, %v628, %v436
      %v665 = vsel %vm593, %v629, %v443
      %v666 = vsel %vm594, %v630, %v450
      %v667 = vsel %vm595, %v631, %v457
      %v668 = vsel %vm596, %v632, %v464
      %v669 = vsel %vm597, %v633, %v471
      %v670 = vsel %vm598, %v634, %v478
      %v671 = vsel %vm599, %v635, %v485
      %v672 = vsel %vm600, %v636, %v492
      %vm673 = vcmp.eq.s32.totalorder %v637, 0
      %vm674 = vcmp.eq.s32.totalorder %v638, 0
      %vm675 = vcmp.eq.s32.totalorder %v639, 0
      %vm676 = vcmp.eq.s32.totalorder %v640, 0
      %vm677 = vcmp.eq.s32.totalorder %v641, 0
      %vm678 = vcmp.eq.s32.totalorder %v642, 0
      %vm679 = vcmp.eq.s32.totalorder %v643, 0
      %vm680 = vcmp.eq.s32.totalorder %v644, 0
      %vm681 = vcmp.eq.s32.totalorder %v645, 0
      %vm682 = vcmp.eq.s32.totalorder %v646, 0
      %vm683 = vcmp.eq.s32.totalorder %v647, 0
      %vm684 = vcmp.eq.s32.totalorder %v648, 0
      %vm685 = vcmp.eq.s32.totalorder %v649, 0
      %vm686 = vcmp.eq.s32.totalorder %v650, 0
      %vm687 = vcmp.eq.s32.totalorder %v651, 0
      %vm688 = vcmp.eq.s32.totalorder %v652, 0
      %vm689 = vcmp.eq.s32.totalorder %v653, 0
      %vm690 = vcmp.eq.s32.totalorder %v654, 0
      %vm691 = vcmp.eq.s32.totalorder %v655, 0
      %vm692 = vcmp.eq.s32.totalorder %v656, 0
      %vm693 = vcmp.eq.s32.totalorder %v657, 0
      %vm694 = vcmp.eq.s32.totalorder %v658, 0
      %vm695 = vcmp.eq.s32.totalorder %v659, 0
      %vm696 = vcmp.eq.s32.totalorder %v660, 0
      %vm697 = vcmp.eq.s32.totalorder %v661, 0
      %vm698 = vcmp.eq.s32.totalorder %v662, 0
      %vm699 = vcmp.eq.s32.totalorder %v663, 0
      %vm700 = vcmp.eq.s32.totalorder %v664, 0
      %vm701 = vcmp.eq.s32.totalorder %v665, 0
      %vm702 = vcmp.eq.s32.totalorder %v666, 0
      %vm703 = vcmp.eq.s32.totalorder %v667, 0
      %vm704 = vcmp.eq.s32.totalorder %v668, 0
      %vm705 = vcmp.eq.s32.totalorder %v669, 0
      %vm706 = vcmp.eq.s32.totalorder %v670, 0
      %vm707 = vcmp.eq.s32.totalorder %v671, 0
      %vm708 = vcmp.eq.s32.totalorder %v672, 0
      %vm709 = vcmp.eq.s32.totalorder %v637, 15
      %vm710 = vcmp.eq.s32.totalorder %v638, 15
      %vm711 = vcmp.eq.s32.totalorder %v639, 15
      %vm712 = vcmp.eq.s32.totalorder %v640, 15
      %vm713 = vcmp.eq.s32.totalorder %v641, 15
      %vm714 = vcmp.eq.s32.totalorder %v642, 15
      %vm715 = vcmp.eq.s32.totalorder %v643, 15
      %vm716 = vcmp.eq.s32.totalorder %v644, 15
      %vm717 = vcmp.eq.s32.totalorder %v645, 15
      %vm718 = vcmp.eq.s32.totalorder %v646, 15
      %vm719 = vcmp.eq.s32.totalorder %v647, 15
      %vm720 = vcmp.eq.s32.totalorder %v648, 15
      %vm721 = vcmp.eq.s32.totalorder %v649, 15
      %vm722 = vcmp.eq.s32.totalorder %v650, 15
      %vm723 = vcmp.eq.s32.totalorder %v651, 15
      %vm724 = vcmp.eq.s32.totalorder %v652, 15
      %vm725 = vcmp.eq.s32.totalorder %v653, 15
      %vm726 = vcmp.eq.s32.totalorder %v654, 15
      %vm727 = vcmp.eq.s32.totalorder %v655, 15
      %vm728 = vcmp.eq.s32.totalorder %v656, 15
      %vm729 = vcmp.eq.s32.totalorder %v657, 15
      %vm730 = vcmp.eq.s32.totalorder %v658, 15
      %vm731 = vcmp.eq.s32.totalorder %v659, 15
      %vm732 = vcmp.eq.s32.totalorder %v660, 15
      %vm733 = vcmp.eq.s32.totalorder %v661, 15
      %vm734 = vcmp.eq.s32.totalorder %v662, 15
      %vm735 = vcmp.eq.s32.totalorder %v663, 15
      %vm736 = vcmp.eq.s32.totalorder %v664, 15
      %vm737 = vcmp.eq.s32.totalorder %v665, 15
      %vm738 = vcmp.eq.s32.totalorder %v666, 15
      %vm739 = vcmp.eq.s32.totalorder %v667, 15
      %vm740 = vcmp.eq.s32.totalorder %v668, 15
      %vm741 = vcmp.eq.s32.totalorder %v669, 15
      %vm742 = vcmp.eq.s32.totalorder %v670, 15
      %vm743 = vcmp.eq.s32.totalorder %v671, 15
      %vm744 = vcmp.eq.s32.totalorder %v672, 15
      %vm777 = vcmask 1040384
      %v778 = vrot.slane %v174, 7
      %v779 = vrot.slane %v175, 7
      %v780 = vsel %vm777, %v778, %v779
      %v781 = vrot.slane %v172, 7
      %v782 = vsel %vm777, %v779, %v781
      %v783 = vrot.slane %v173, 7
      %v784 = vsel %vm777, %v781, %v783
      %v785 = vsel %vm777, %v783, %v778
      %v786 = vrot.slane %v176, 7
      %v787 = vsel %vm777, %v779, %v786
      %v788 = vrot.slane %v177, 7
      %v789 = vsel %vm777, %v786, %v788
      %v790 = vrot.slane %v178, 7
      %v791 = vsel %vm777, %v788, %v790
      %v792 = vrot.slane %v179, 7
      %v793 = vsel %vm777, %v790, %v792
      %v794 = vrot.slane %v180, 7
      %v795 = vsel %vm777, %v792, %v794
      %v796 = vrot.slane %v181, 7
      %v797 = vsel %vm777, %v794, %v796
      %v798 = vrot.slane %v182, 7
      %v799 = vsel %vm777, %v796, %v798
      %v800 = vrot.slane %v183, 7
      %v801 = vsel %vm777, %v798, %v800
      %v802 = vrot.slane %v184, 7
      %v803 = vsel %vm777, %v800, %v802
      %v804 = vrot.slane %v185, 7
      %v805 = vsel %vm777, %v802, %v804
      %v806 = vrot.slane %v186, 7
      %v807 = vsel %vm777, %v804, %v806
      %v808 = vrot.slane %v187, 7
      %v809 = vsel %vm777, %v806, %v808
      %v810 = vrot.slane %v188, 7
      %v811 = vsel %vm777, %v808, %v810
      %v812 = vrot.slane %v189, 7
      %v813 = vsel %vm777, %v810, %v812
      %v814 = vrot.slane %v190, 7
      %v815 = vsel %vm777, %v812, %v814
      %v816 = vrot.slane %v191, 7
      %v817 = vsel %vm777, %v814, %v816
      %v818 = vrot.slane %v192, 7
      %v819 = vsel %vm777, %v816, %v818
      %v820 = vrot.slane %v193, 7
      %v821 = vsel %vm777, %v818, %v820
      %v822 = vrot.slane %v194, 7
      %v823 = vsel %vm777, %v820, %v822
      %v824 = vrot.slane %v195, 7
      %v825 = vsel %vm777, %v822, %v824
      %v826 = vrot.slane %v196, 7
      %v827 = vsel %vm777, %v824, %v826
      %v828 = vrot.slane %v197, 7
      %v829 = vsel %vm777, %v826, %v828
      %v830 = vrot.slane %v198, 7
      %v831 = vsel %vm777, %v828, %v830
      %v832 = vrot.slane %v199, 7
      %v833 = vsel %vm777, %v830, %v832
      %v834 = vrot.slane %v200, 7
      %v835 = vsel %vm777, %v832, %v834
      %v836 = vrot.slane %v201, 7
      %v837 = vsel %vm777, %v834, %v836
      %v838 = vrot.slane %v202, 7
      %v839 = vsel %vm777, %v836, %v838
      %v840 = vrot.slane %v203, 7
      %v841 = vsel %vm777, %v838, %v840
      %v842 = vsel %vm777, %v840, %v834
      %v877 = vsel %vm777, %v174, %v778
      %vm878 = vcmask 1046528
      %v879 = vrot.slane %v174, 1
      %v880 = vrot.slane %v175, 1
      %v881 = vsel %vm878, %v879, %v880
      %v882 = vrot.slane %v172, 1
      %v883 = vsel %vm878, %v880, %v882
      %v884 = vrot.slane %v173, 1
      %v885 = vsel %vm878, %v882, %v884
      %v886 = vsel %vm878, %v884, %v879
      %v887 = vrot.slane %v176, 1
      %v888 = vsel %vm878, %v880, %v887
      %v889 = vrot.slane %v177, 1
      %v890 = vsel %vm878, %v887, %v889
      %v891 = vrot.slane %v178, 1
      %v892 = vsel %vm878, %v889, %v891
      %v893 = vrot.slane %v179, 1
      %v894 = vsel %vm878, %v891, %v893
      %v895 = vrot.slane %v180, 1
      %v896 = vsel %vm878, %v893, %v895
      %v897 = vrot.slane %v181, 1
      %v898 = vsel %vm878, %v895, %v897
      %v899 = vrot.slane %v182, 1
      %v900 = vsel %vm878, %v897, %v899
      %v901 = vrot.slane %v183, 1
      %v902 = vsel %vm878, %v899, %v901
      %v903 = vrot.slane %v184, 1
      %v904 = vsel %vm878, %v901, %v903
      %v905 = vrot.slane %v185, 1
      %v906 = vsel %vm878, %v903, %v905
      %v907 = vrot.slane %v186, 1
      %v908 = vsel %vm878, %v905, %v907
      %v909 = vrot.slane %v187, 1
      %v910 = vsel %vm878, %v907, %v909
      %v911 = vrot.slane %v188, 1
      %v912 = vsel %vm878, %v909, %v911
      %v913 = vrot.slane %v189, 1
      %v914 = vsel %vm878, %v911, %v913
      %v915 = vrot.slane %v190, 1
      %v916 = vsel %vm878, %v913, %v915
      %v917 = vrot.slane %v191, 1
      %v918 = vsel %vm878, %v915, %v917
      %v919 = vrot.slane %v192, 1
      %v920 = vsel %vm878, %v917, %v919
      %v921 = vrot.slane %v193, 1
      %v922 = vsel %vm878, %v919, %v921
      %v923 = vrot.slane %v194, 1
      %v924 = vsel %vm878, %v921, %v923
      %v925 = vrot.slane %v195, 1
      %v926 = vsel %vm878, %v923, %v925
      %v927 = vrot.slane %v196, 1
      %v928 = vsel %vm878, %v925, %v927
      %v929 = vrot.slane %v197, 1
      %v930 = vsel %vm878, %v927, %v929
      %v931 = vrot.slane %v198, 1
      %v932 = vsel %vm878, %v929, %v931
      %v933 = vrot.slane %v199, 1
      %v934 = vsel %vm878, %v931, %v933
      %v935 = vrot.slane %v200, 1
      %v936 = vsel %vm878, %v933, %v935
      %v937 = vrot.slane %v201, 1
      %v938 = vsel %vm878, %v935, %v937
      %v939 = vrot.slane %v202, 1
      %v940 = vsel %vm878, %v937, %v939
      %v941 = vrot.slane %v203, 1
      %v942 = vsel %vm878, %v939, %v941
      %v943 = vsel %vm878, %v941, %v935
      %v978 = vsel %vm878, %v937, %v201
      %v979 = vsel %vm673, 1, 0
      %v980 = vsel %vm674, 1, 0
      %v981 = vsel %vm675, 1, 0
      %v982 = vsel %vm676, 1, 0
      %v983 = vsel %vm677, 1, 0
      %v984 = vsel %vm678, 1, 0
      %v985 = vsel %vm679, 1, 0
      %v986 = vsel %vm680, 1, 0
      %v987 = vsel %vm681, 1, 0
      %v988 = vsel %vm682, 1, 0
      %v989 = vsel %vm683, 1, 0
      %v990 = vsel %vm684, 1, 0
      %v991 = vsel %vm685, 1, 0
      %v992 = vsel %vm686, 1, 0
      %v993 = vsel %vm687, 1, 0
      %v994 = vsel %vm688, 1, 0
      %v995 = vsel %vm689, 1, 0
      %v996 = vsel %vm690, 1, 0
      %v997 = vsel %vm691, 1, 0
      %v998 = vsel %vm692, 1, 0
      %v999 = vsel %vm693, 1, 0
      %v1000 = vsel %vm694, 1, 0
      %v1001 = vsel %vm695, 1, 0
      %v1002 = vsel %vm696, 1, 0
      %v1003 = vsel %vm697, 1, 0
      %v1004 = vsel %vm698, 1, 0
      %v1005 = vsel %vm699, 1, 0
      %v1006 = vsel %vm700, 1, 0
      %v1007 = vsel %vm701, 1, 0
      %v1008 = vsel %vm702, 1, 0
      %v1009 = vsel %vm703, 1, 0
      %v1010 = vsel %vm704, 1, 0
      %v1011 = vsel %vm705, 1, 0
      %v1012 = vsel %vm706, 1, 0
      %v1013 = vsel %vm707, 1, 0
      %v1014 = vsel %vm708, 1, 0
      %vm1015 = vcmp.eq.s32.totalorder %v979, 1
      %vm1016 = vcmp.eq.s32.totalorder %v980, 1
      %vm1017 = vcmp.eq.s32.totalorder %v981, 1
      %vm1018 = vcmp.eq.s32.totalorder %v982, 1
      %vm1019 = vcmp.eq.s32.totalorder %v983, 1
      %vm1020 = vcmp.eq.s32.totalorder %v984, 1
      %vm1021 = vcmp.eq.s32.totalorder %v985, 1
      %vm1022 = vcmp.eq.s32.totalorder %v986, 1
      %vm1023 = vcmp.eq.s32.totalorder %v987, 1
      %vm1024 = vcmp.eq.s32.totalorder %v988, 1
      %vm1025 = vcmp.eq.s32.totalorder %v989, 1
      %vm1026 = vcmp.eq.s32.totalorder %v990, 1
      %vm1027 = vcmp.eq.s32.totalorder %v991, 1
      %vm1028 = vcmp.eq.s32.totalorder %v992, 1
      %vm1029 = vcmp.eq.s32.totalorder %v993, 1
      %vm1030 = vcmp.eq.s32.totalorder %v994, 1
      %vm1031 = vcmp.eq.s32.totalorder %v995, 1
      %vm1032 = vcmp.eq.s32.totalorder %v996, 1
      %vm1033 = vcmp.eq.s32.totalorder %v997, 1
      %vm1034 = vcmp.eq.s32.totalorder %v998, 1
      %vm1035 = vcmp.eq.s32.totalorder %v999, 1
      %vm1036 = vcmp.eq.s32.totalorder %v1000, 1
      %vm1037 = vcmp.eq.s32.totalorder %v1001, 1
      %vm1038 = vcmp.eq.s32.totalorder %v1002, 1
      %vm1039 = vcmp.eq.s32.totalorder %v1003, 1
      %vm1040 = vcmp.eq.s32.totalorder %v1004, 1
      %vm1041 = vcmp.eq.s32.totalorder %v1005, 1
      %vm1042 = vcmp.eq.s32.totalorder %v1006, 1
      %vm1043 = vcmp.eq.s32.totalorder %v1007, 1
      %vm1044 = vcmp.eq.s32.totalorder %v1008, 1
      %vm1045 = vcmp.eq.s32.totalorder %v1009, 1
      %vm1046 = vcmp.eq.s32.totalorder %v1010, 1
      %vm1047 = vcmp.eq.s32.totalorder %v1011, 1
      %vm1048 = vcmp.eq.s32.totalorder %v1012, 1
      %vm1049 = vcmp.eq.s32.totalorder %v1013, 1
      %vm1050 = vcmp.eq.s32.totalorder %v1014, 1
      %v1051 = vsel %vm1015, %v881, %v877
      %v1052 = vsel %vm1016, %v883, %v780
      %v1053 = vsel %vm1017, %v885, %v782
      %v1054 = vsel %vm1018, %v886, %v784
      %v1055 = vsel %vm1019, %v881, %v785
      %v1056 = vsel %vm1020, %v888, %v780
      %v1057 = vsel %vm1021, %v890, %v787
      %v1058 = vsel %vm1022, %v892, %v789
      %v1059 = vsel %vm1023, %v894, %v791
      %v1060 = vsel %vm1024, %v896, %v793
      %v1061 = vsel %vm1025, %v898, %v795
      %v1062 = vsel %vm1026, %v900, %v797
      %v1063 = vsel %vm1027, %v902, %v799
      %v1064 = vsel %vm1028, %v904, %v801
      %v1065 = vsel %vm1029, %v906, %v803
      %v1066 = vsel %vm1030, %v908, %v805
      %v1067 = vsel %vm1031, %v910, %v807
      %v1068 = vsel %vm1032, %v912, %v809
      %v1069 = vsel %vm1033, %v914, %v811
      %v1070 = vsel %vm1034, %v916, %v813
      %v1071 = vsel %vm1035, %v918, %v815
      %v1072 = vsel %vm1036, %v920, %v817
      %v1073 = vsel %vm1037, %v922, %v819
      %v1074 = vsel %vm1038, %v924, %v821
      %v1075 = vsel %vm1039, %v926, %v823
      %v1076 = vsel %vm1040, %v928, %v825
      %v1077 = vsel %vm1041, %v930, %v827
      %v1078 = vsel %vm1042, %v932, %v829
      %v1079 = vsel %vm1043, %v934, %v831
      %v1080 = vsel %vm1044, %v936, %v833
      %v1081 = vsel %vm1045, %v938, %v835
      %v1082 = vsel %vm1046, %v940, %v837
      %v1083 = vsel %vm1047, %v942, %v839
      %v1084 = vsel %vm1048, %v943, %v841
      %v1085 = vsel %vm1049, %v938, %v842
      %v1086 = vsel %vm1050, %v978, %v837
      %v1087 = vsel %vm709, 1, 0
      %v1088 = vsel %vm710, 1, 0
      %v1089 = vsel %vm711, 1, 0
      %v1090 = vsel %vm712, 1, 0
      %v1091 = vsel %vm713, 1, 0
      %v1092 = vsel %vm714, 1, 0
      %v1093 = vsel %vm715, 1, 0
      %v1094 = vsel %vm716, 1, 0
      %v1095 = vsel %vm717, 1, 0
      %v1096 = vsel %vm718, 1, 0
      %v1097 = vsel %vm719, 1, 0
      %v1098 = vsel %vm720, 1, 0
      %v1099 = vsel %vm721, 1, 0
      %v1100 = vsel %vm722, 1, 0
      %v1101 = vsel %vm723, 1, 0
      %v1102 = vsel %vm724, 1, 0
      %v1103 = vsel %vm725, 1, 0
      %v1104 = vsel %vm726, 1, 0
      %v1105 = vsel %vm727, 1, 0
      %v1106 = vsel %vm728, 1, 0
      %v1107 = vsel %vm729, 1, 0
      %v1108 = vsel %vm730, 1, 0
      %v1109 = vsel %vm731, 1, 0
      %v1110 = vsel %vm732, 1, 0
      %v1111 = vsel %vm733, 1, 0
      %v1112 = vsel %vm734, 1, 0
      %v1113 = vsel %vm735, 1, 0
      %v1114 = vsel %vm736, 1, 0
      %v1115 = vsel %vm737, 1, 0
      %v1116 = vsel %vm738, 1, 0
      %v1117 = vsel %vm739, 1, 0
      %v1118 = vsel %vm740, 1, 0
      %v1119 = vsel %vm741, 1, 0
      %v1120 = vsel %vm742, 1, 0
      %v1121 = vsel %vm743, 1, 0
      %v1122 = vsel %vm744, 1, 0
      %vm1123 = vcmp.eq.s32.totalorder %v1087, 1
      %vm1124 = vcmp.eq.s32.totalorder %v1088, 1
      %vm1125 = vcmp.eq.s32.totalorder %v1089, 1
      %vm1126 = vcmp.eq.s32.totalorder %v1090, 1
      %vm1127 = vcmp.eq.s32.totalorder %v1091, 1
      %vm1128 = vcmp.eq.s32.totalorder %v1092, 1
      %vm1129 = vcmp.eq.s32.totalorder %v1093, 1
      %vm1130 = vcmp.eq.s32.totalorder %v1094, 1
      %vm1131 = vcmp.eq.s32.totalorder %v1095, 1
      %vm1132 = vcmp.eq.s32.totalorder %v1096, 1
      %vm1133 = vcmp.eq.s32.totalorder %v1097, 1
      %vm1134 = vcmp.eq.s32.totalorder %v1098, 1
      %vm1135 = vcmp.eq.s32.totalorder %v1099, 1
      %vm1136 = vcmp.eq.s32.totalorder %v1100, 1
      %vm1137 = vcmp.eq.s32.totalorder %v1101, 1
      %vm1138 = vcmp.eq.s32.totalorder %v1102, 1
      %vm1139 = vcmp.eq.s32.totalorder %v1103, 1
      %vm1140 = vcmp.eq.s32.totalorder %v1104, 1
      %vm1141 = vcmp.eq.s32.totalorder %v1105, 1
      %vm1142 = vcmp.eq.s32.totalorder %v1106, 1
      %vm1143 = vcmp.eq.s32.totalorder %v1107, 1
      %vm1144 = vcmp.eq.s32.totalorder %v1108, 1
      %vm1145 = vcmp.eq.s32.totalorder %v1109, 1
      %vm1146 = vcmp.eq.s32.totalorder %v1110, 1
      %vm1147 = vcmp.eq.s32.totalorder %v1111, 1
      %vm1148 = vcmp.eq.s32.totalorder %v1112, 1
      %vm1149 = vcmp.eq.s32.totalorder %v1113, 1
      %vm1150 = vcmp.eq.s32.totalorder %v1114, 1
      %vm1151 = vcmp.eq.s32.totalorder %v1115, 1
      %vm1152 = vcmp.eq.s32.totalorder %v1116, 1
      %vm1153 = vcmp.eq.s32.totalorder %v1117, 1
      %vm1154 = vcmp.eq.s32.totalorder %v1118, 1
      %vm1155 = vcmp.eq.s32.totalorder %v1119, 1
      %vm1156 = vcmp.eq.s32.totalorder %v1120, 1
      %vm1157 = vcmp.eq.s32.totalorder %v1121, 1
      %vm1158 = vcmp.eq.s32.totalorder %v1122, 1
      %v1159 = vsel %vm1123, %v877, %v881
      %v1160 = vsel %vm1124, %v780, %v883
      %v1161 = vsel %vm1125, %v782, %v885
      %v1162 = vsel %vm1126, %v784, %v886
      %v1163 = vsel %vm1127, %v785, %v881
      %v1164 = vsel %vm1128, %v780, %v888
      %v1165 = vsel %vm1129, %v787, %v890
      %v1166 = vsel %vm1130, %v789, %v892
      %v1167 = vsel %vm1131, %v791, %v894
      %v1168 = vsel %vm1132, %v793, %v896
      %v1169 = vsel %vm1133, %v795, %v898
      %v1170 = vsel %vm1134, %v797, %v900
      %v1171 = vsel %vm1135, %v799, %v902
      %v1172 = vsel %vm1136, %v801, %v904
      %v1173 = vsel %vm1137, %v803, %v906
      %v1174 = vsel %vm1138, %v805, %v908
      %v1175 = vsel %vm1139, %v807, %v910
      %v1176 = vsel %vm1140, %v809, %v912
      %v1177 = vsel %vm1141, %v811, %v914
      %v1178 = vsel %vm1142, %v813, %v916
      %v1179 = vsel %vm1143, %v815, %v918
      %v1180 = vsel %vm1144, %v817, %v920
      %v1181 = vsel %vm1145, %v819, %v922
      %v1182 = vsel %vm1146, %v821, %v924
      %v1183 = vsel %vm1147, %v823, %v926
      %v1184 = vsel %vm1148, %v825, %v928
      %v1185 = vsel %vm1149, %v827, %v930
      %v1186 = vsel %vm1150, %v829, %v932
      %v1187 = vsel %vm1151, %v831, %v934
      %v1188 = vsel %vm1152, %v833, %v936
      %v1189 = vsel %vm1153, %v835, %v938
      %v1190 = vsel %vm1154, %v837, %v940
      %v1191 = vsel %vm1155, %v839, %v942
      %v1192 = vsel %vm1156, %v841, %v943
      %v1193 = vsel %vm1157, %v842, %v938
      %v1194 = vsel %vm1158, %v837, %v978
      %v1195 = vpack.c.bf16 %v1052, %v1051
      %v1196 = vpack.c.bf16 %v1054, %v1053
      %v1197 = vpack.c.bf16 %v1056, %v1055
      %v1198 = vpack.c.bf16 %v1058, %v1057
      %v1199 = vpack.c.bf16 %v1060, %v1059
      %v1200 = vpack.c.bf16 %v1062, %v1061
      %v1201 = vpack.c.bf16 %v1064, %v1063
      %v1202 = vpack.c.bf16 %v1066, %v1065
      %v1203 = vpack.c.bf16 %v1068, %v1067
      %v1204 = vpack.c.bf16 %v1070, %v1069
      %v1205 = vpack.c.bf16 %v1072, %v1071
      %v1206 = vpack.c.bf16 %v1074, %v1073
      %v1207 = vpack.c.bf16 %v1076, %v1075
      %v1208 = vpack.c.bf16 %v1078, %v1077
      %v1209 = vpack.c.bf16 %v1080, %v1079
      %v1210 = vpack.c.bf16 %v1082, %v1081
      %v1211 = vld [vmem:[%s1] sm:$0x3]
      %v1212 = vpack.c.bf16 %v175, %v174
      %v1213 = vpack.c.bf16 %v173, %v172
      %v1214 = vpack.c.bf16 %v177, %v176
      %v1215 = vpack.c.bf16 %v179, %v178
      %v1216 = vpack.c.bf16 %v181, %v180
      %v1217 = vpack.c.bf16 %v183, %v182
      %v1218 = vpack.c.bf16 %v185, %v184
      %v1219 = vpack.c.bf16 %v187, %v186
      %v1220 = vpack.c.bf16 %v189, %v188
      %v1221 = vpack.c.bf16 %v191, %v190
      %v1222 = vpack.c.bf16 %v193, %v192
      %v1223 = vpack.c.bf16 %v195, %v194
      %v1224 = vpack.c.bf16 %v197, %v196
      %v1225 = vpack.c.bf16 %v199, %v198
      %v1226 = vpack.c.bf16 %v201, %v200
      %s1227 = scalar_lea.vmem %s1, 2
      %v1228 = vld [vmem:[%s1227] sm:$0x3]
      %vm1229 = vcmask 31744
      %v1231 = vsel %vm1229, %v1212, 0
      %v1234 = vsel %vm1229, %v1213, 0
      %v1237 = vsel %vm1229, %v1214, 0
      %v1240 = vsel %vm1229, %v1215, 0
      %v1243 = vsel %vm1229, %v1216, 0
      %v1246 = vsel %vm1229, %v1217, 0
      %v1249 = vsel %vm1229, %v1218, 0
      %v1252 = vsel %vm1229, %v1219, 0
      %v1255 = vsel %vm1229, %v1220, 0
      %v1258 = vsel %vm1229, %v1221, 0
      %v1261 = vsel %vm1229, %v1222, 0
      %v1264 = vsel %vm1229, %v1223, 0
      %v1267 = vsel %vm1229, %v1224, 0
      %v1270 = vsel %vm1229, %v1225, 0
      %v1273 = vsel %vm1229, %v1226, 0
      %vm1275 = vcmask 1041408
      %v1277 = vsel %vm1275, %v1228, 0
      %1279 = vmatprep.subr.bf16.mxu0 0
      %1280 = vmatpush1.bf16.msra.mxu0 %v1277
      %1281 = vmatprep.subr.bf16.mxu0 0
      %1282 = vmatpush1.bf16.msra.mxu0 0
      %1283 = vmatprep.subr.bf16.mxu0 0
      %1284 = vmatpush1.bf16.msra.mxu0 0
      %1285 = vmatprep.subr.bf16.mxu0 0
      %1286 = vmatpush1.bf16.msra.mxu0 0
      %1287 = vmatprep.subr.bf16.mxu0 0
      %1288 = vmatpush1.bf16.msra.mxu0 0
      %1289 = vmatprep.subr.bf16.mxu0 0
      %1290 = vmatpush1.bf16.msra.mxu0 0
      %1291 = vmatprep.subr.bf16.mxu0 0
      %1292 = vmatpush1.bf16.msra.mxu0 0
      %1293 = vmatprep.subr.bf16.mxu0 0
      %1294 = vmatpush1.bf16.msra.mxu0 0
      %1295 = vmatprep.subr.bf16.mxu0 0
      %1296 = vmatpush1.bf16.msra.mxu0 0
      %1297 = vmatprep.subr.bf16.mxu0 0
      %1298 = vmatpush1.bf16.msra.mxu0 0
      %1299 = vmatprep.subr.bf16.mxu0 0
      %1300 = vmatpush1.bf16.msra.mxu0 0
      %1301 = vmatprep.subr.bf16.mxu0 0
      %1302 = vmatpush1.bf16.msra.mxu0 0
      %1303 = vmatprep.subr.bf16.mxu0 0
      %1304 = vmatpush1.bf16.msra.mxu0 0
      %1305 = vmatprep.subr.bf16.mxu0 0
      %1306 = vmatpush1.bf16.msra.mxu0 0
      %1307 = vmatprep.subr.bf16.mxu0 0
      %1308 = vmatpush1.bf16.msra.mxu0 0
      %1309 = vmatprep.subr.bf16.mxu0 0
      %1310 = vmatpush1.bf16.msra.mxu0 0
      %1311 = vmatprep.mubr.bf16.mxu0 0
      %1312 = vmatmul.mubr.bf16.gmra.mrb[0].mxu0 %v1231
      %v1313 = vpop.f32.mrb[0].mxu0
      %v1314 = vadd.f32 0.0, %v1313
      %v1315 = vpop.f32.mrb[0].mxu0
      %v1316 = vpop.f32.mrb[0].mxu0
      %v1317 = vadd.f32 0.0, %v1316
      %v1318 = vpop.f32.mrb[0].mxu0
      %1319 = vmatprep.mubr.bf16.mxu0 0
      %1320 = vmatmul.mubr.bf16.gmra.mrb[0].mxu0 %v1234
      %v1321 = vpop.f32.mrb[0].mxu0
      %v1322 = vadd.f32 0.0, %v1321
      %v1323 = vpop.f32.mrb[0].mxu0
      %v1324 = vpop.f32.mrb[0].mxu0
      %v1325 = vadd.f32 0.0, %v1324
      %v1326 = vpop.f32.mrb[0].mxu0
      %1327 = vmatprep.mubr.bf16.mxu0 0
      %1328 = vmatmul.mubr.bf16.gmra.mrb[0].mxu0 %v1231
      %v1329 = vpop.f32.mrb[0].mxu0
      %v1330 = vadd.f32 0.0, %v1329
      %v1331 = vpop.f32.mrb[0].mxu0
      %v1332 = vpop.f32.mrb[0].mxu0
      %v1333 = vadd.f32 0.0, %v1332
      %v1334 = vpop.f32.mrb[0].mxu0
      %1335 = vmatprep.mubr.bf16.mxu0 0
      %1336 = vmatmul.mubr.bf16.gmra.mrb[0].mxu0 %v1237
      %v1337 = vpop.f32.mrb[0].mxu0
      %v1338 = vadd.f32 0.0, %v1337
      %v1339 = vpop.f32.mrb[0].mxu0
      %v1340 = vpop.f32.mrb[0].mxu0
      %v1341 = vadd.f32 0.0, %v1340
      %v1342 = vpop.f32.mrb[0].mxu0
      %1343 = vmatprep.mubr.bf16.mxu0 0
      %1344 = vmatmul.mubr.bf16.gmra.mrb[0].mxu0 %v1240
      %v1345 = vpop.f32.mrb[0].mxu0
      %v1346 = vadd.f32 0.0, %v1345
      %v1347 = vpop.f32.mrb[0].mxu0
      %v1348 = vpop.f32.mrb[0].mxu0
      %v1349 = vadd.f32 0.0, %v1348
      %v1350 = vpop.f32.mrb[0].mxu0
      %1351 = vmatprep.mubr.bf16.mxu0 0
      %1352 = vmatmul.mubr.bf16.gmra.mrb[0].mxu0 %v1243
      %v1353 = vpop.f32.mrb[0].mxu0
      %v1354 = vadd.f32 0.0, %v1353
      %v1355 = vpop.f32.mrb[0].mxu0
      %v1356 = vpop.f32.mrb[0].mxu0
      %v1357 = vadd.f32 0.0, %v1356
      %v1358 = vpop.f32.mrb[0].mxu0
      %1359 = vmatprep.mubr.bf16.mxu0 0
      %1360 = vmatmul.mubr.bf16.gmra.mrb[0].mxu0 %v1246
      %v1361 = vpop.f32.mrb[0].mxu0
      %v1362 = vadd.f32 0.0, %v1361
      %v1363 = vpop.f32.mrb[0].mxu0
      %v1364 = vpop.f32.mrb[0].mxu0
      %v1365 = vadd.f32 0.0, %v1364
      %v1366 = vpop.f32.mrb[0].mxu0
      %1367 = vmatprep.mubr.bf16.mxu0 0
      %1368 = vmatmul.mubr.bf16.gmra.mrb[0].mxu0 %v1249
      %v1369 = vpop.f32.mrb[0].mxu0
      %v1370 = vadd.f32 0.0, %v1369
      %v1371 = vpop.f32.mrb[0].mxu0
      %v1372 = vpop.f32.mrb[0].mxu0
      %v1373 = vadd.f32 0.0, %v1372
      %v1374 = vpop.f32.mrb[0].mxu0
      %1375 = vmatprep.mubr.bf16.mxu0 0
      %1376 = vmatmul.mubr.bf16.gmra.mrb[0].mxu0 %v1252
      %v1377 = vpop.f32.mrb[0].mxu0
      %v1378 = vadd.f32 0.0, %v1377
      %v1379 = vpop.f32.mrb[0].mxu0
      %v1380 = vpop.f32.mrb[0].mxu0
      %v1381 = vadd.f32 0.0, %v1380
      %v1382 = vpop.f32.mrb[0].mxu0
      %1383 = vmatprep.mubr.bf16.mxu0 0
      %1384 = vmatmul.mubr.bf16.gmra.mrb[0].mxu0 %v1255
      %v1385 = vpop.f32.mrb[0].mxu0
      %v1386 = vadd.f32 0.0, %v1385
      %v1387 = vpop.f32.mrb[0].mxu0
      %v1388 = vpop.f32.mrb[0].mxu0
      %v1389 = vadd.f32 0.0, %v1388
      %v1390 = vpop.f32.mrb[0].mxu0
      %1391 = vmatprep.mubr.bf16.mxu0 0
      %1392 = vmatmul.mubr.bf16.gmra.mrb[0].mxu0 %v1258
      %v1393 = vpop.f32.mrb[0].mxu0
      %v1394 = vadd.f32 0.0, %v1393
      %v1395 = vpop.f32.mrb[0].mxu0
      %v1396 = vpop.f32.mrb[0].mxu0
      %v1397 = vadd.f32 0.0, %v1396
      %v1398 = vpop.f32.mrb[0].mxu0
      %1399 = vmatprep.mubr.bf16.mxu0 0
      %1400 = vmatmul.mubr.bf16.gmra.mrb[0].mxu0 %v1261
      %v1401 = vpop.f32.mrb[0].mxu0
      %v1402 = vadd.f32 0.0, %v1401
      %v1403 = vpop.f32.mrb[0].mxu0
      %v1404 = vpop.f32.mrb[0].mxu0
      %v1405 = vadd.f32 0.0, %v1404
      %v1406 = vpop.f32.mrb[0].mxu0
      %1407 = vmatprep.mubr.bf16.mxu0 0
      %1408 = vmatmul.mubr.bf16.gmra.mrb[0].mxu0 %v1264
      %v1409 = vpop.f32.mrb[0].mxu0
      %v1410 = vadd.f32 0.0, %v1409
      %v1411 = vpop.f32.mrb[0].mxu0
      %v1412 = vpop.f32.mrb[0].mxu0
      %v1413 = vadd.f32 0.0, %v1412
      %v1414 = vpop.f32.mrb[0].mxu0
      %1415 = vmatprep.mubr.bf16.mxu0 0
      %1416 = vmatmul.mubr.bf16.gmra.mrb[0].mxu0 %v1267
      %v1417 = vpop.f32.mrb[0].mxu0
      %v1418 = vadd.f32 0.0, %v1417
      %v1419 = vpop.f32.mrb[0].mxu0
      %v1420 = vpop.f32.mrb[0].mxu0
      %v1421 = vadd.f32 0.0, %v1420
      %v1422 = vpop.f32.mrb[0].mxu0
      %1423 = vmatprep.mubr.bf16.mxu0 0
      %1424 = vmatmul.mubr.bf16.gmra.mrb[0].mxu0 %v1270
      %v1425 = vpop.f32.mrb[0].mxu0
      %v1426 = vadd.f32 0.0, %v1425
      %v1427 = vpop.f32.mrb[0].mxu0
      %v1428 = vpop.f32.mrb[0].mxu0
      %v1429 = vadd.f32 0.0, %v1428
      %v1430 = vpop.f32.mrb[0].mxu0
      %1431 = vmatprep.mubr.bf16.mxu0 0
      %1432 = vmatmul.mubr.bf16.gmra.mrb[0].mxu0 %v1273
      %v1433 = vpop.f32.mrb[0].mxu0
      %v1434 = vadd.f32 0.0, %v1433
      %v1435 = vpop.f32.mrb[0].mxu0
      %v1436 = vpop.f32.mrb[0].mxu0
      %v1437 = vadd.f32 0.0, %v1436
      %v1438 = vpop.f32.mrb[0].mxu0
      %1439 = vdwg.mxu0
      %v1441 = vsel %vm1229, %v1195, 0
      %v1444 = vsel %vm1229, %v1196, 0
      %v1447 = vsel %vm1229, %v1197, 0
      %v1450 = vsel %vm1229, %v1198, 0
      %v1453 = vsel %vm1229, %v1199, 0
      %v1456 = vsel %vm1229, %v1200, 0
      %v1459 = vsel %vm1229, %v1201, 0
      %v1462 = vsel %vm1229, %v1202, 0
      %v1465 = vsel %vm1229, %v1203, 0
      %v1468 = vsel %vm1229, %v1204, 0
      %v1471 = vsel %vm1229, %v1205, 0
      %v1474 = vsel %vm1229, %v1206, 0
      %v1477 = vsel %vm1229, %v1207, 0
      %v1480 = vsel %vm1229, %v1208, 0
      %v1483 = vsel %vm1229, %v1209, 0
      %v1486 = vsel %vm1229, %v1210, 0
      %v1489 = vsel %vm1275, %v1211, 0
      %1491 = vmatprep.subr.bf16.mxu0 0
      %1492 = vmatpush1.bf16.msra.mxu0 %v1489
      %1493 = vmatprep.subr.bf16.mxu0 0
      %1494 = vmatpush1.bf16.msra.mxu0 0
      %1495 = vmatprep.subr.bf16.mxu0 0
      %1496 = vmatpush1.bf16.msra.mxu0 0
      %1497 = vmatprep.subr.bf16.mxu0 0
      %1498 = vmatpush1.bf16.msra.mxu0 0
      %1499 = vmatprep.subr.bf16.mxu0 0
      %1500 = vmatpush1.bf16.msra.mxu0 0
      %1501 = vmatprep.subr.bf16.mxu0 0
      %1502 = vmatpush1.bf16.msra.mxu0 0
      %1503 = vmatprep.subr.bf16.mxu0 0
      %1504 = vmatpush1.bf16.msra.mxu0 0
      %1505 = vmatprep.subr.bf16.mxu0 0
      %1506 = vmatpush1.bf16.msra.mxu0 0
      %1507 = vmatprep.subr.bf16.mxu0 0
      %1508 = vmatpush1.bf16.msra.mxu0 0
      %1509 = vmatprep.subr.bf16.mxu0 0
      %1510 = vmatpush1.bf16.msra.mxu0 0
      %1511 = vmatprep.subr.bf16.mxu0 0
      %1512 = vmatpush1.bf16.msra.mxu0 0
      %1513 = vmatprep.subr.bf16.mxu0 0
      %1514 = vmatpush1.bf16.msra.mxu0 0
      %1515 = vmatprep.subr.bf16.mxu0 0
      %1516 = vmatpush1.bf16.msra.mxu0 0
      %1517 = vmatprep.subr.bf16.mxu0 0
      %1518 = vmatpush1.bf16.msra.mxu0 0
      %1519 = vmatprep.subr.bf16.mxu0 0
      %1520 = vmatpush1.bf16.msra.mxu0 0
      %1521 = vmatprep.subr.bf16.mxu0 0
      %1522 = vmatpush1.bf16.msra.mxu0 0
      %1523 = vmatprep.mubr.bf16.mxu0 0
      %1524 = vmatmul.mubr.bf16.gmra.mrb[0].mxu0 %v1441
      %v1525 = vpop.f32.mrb[0].mxu0
      %v1526 = vadd.f32 %v1314, %v1525
      %v1527 = vpop.f32.mrb[0].mxu0
      %v1528 = vpop.f32.mrb[0].mxu0
      %v1529 = vadd.f32 %v1317, %v1528
      %v1530 = vpop.f32.mrb[0].mxu0
      %1531 = vmatprep.mubr.bf16.mxu0 0
      %1532 = vmatmul.mubr.bf16.gmra.mrb[0].mxu0 %v1444
      %v1533 = vpop.f32.mrb[0].mxu0
      %v1534 = vadd.f32 %v1322, %v1533
      %v1535 = vpop.f32.mrb[0].mxu0
      %v1536 = vpop.f32.mrb[0].mxu0
      %v1537 = vadd.f32 %v1325, %v1536
      %v1538 = vpop.f32.mrb[0].mxu0
      %1539 = vmatprep.mubr.bf16.mxu0 0
      %1540 = vmatmul.mubr.bf16.gmra.mrb[0].mxu0 %v1447
      %v1541 = vpop.f32.mrb[0].mxu0
      %v1542 = vadd.f32 %v1330, %v1541
      %v1543 = vpop.f32.mrb[0].mxu0
      %v1544 = vpop.f32.mrb[0].mxu0
      %v1545 = vadd.f32 %v1333, %v1544
      %v1546 = vpop.f32.mrb[0].mxu0
      %1547 = vmatprep.mubr.bf16.mxu0 0
      %1548 = vmatmul.mubr.bf16.gmra.mrb[0].mxu0 %v1450
      %v1549 = vpop.f32.mrb[0].mxu0
      %v1550 = vadd.f32 %v1338, %v1549
      %v1551 = vpop.f32.mrb[0].mxu0
      %v1552 = vpop.f32.mrb[0].mxu0
      %v1553 = vadd.f32 %v1341, %v1552
      %v1554 = vpop.f32.mrb[0].mxu0
      %1555 = vmatprep.mubr.bf16.mxu0 0
      %1556 = vmatmul.mubr.bf16.gmra.mrb[0].mxu0 %v1453
      %v1557 = vpop.f32.mrb[0].mxu0
      %v1558 = vadd.f32 %v1346, %v1557
      %v1559 = vpop.f32.mrb[0].mxu0
      %v1560 = vpop.f32.mrb[0].mxu0
      %v1561 = vadd.f32 %v1349, %v1560
      %v1562 = vpop.f32.mrb[0].mxu0
      %1563 = vmatprep.mubr.bf16.mxu0 0
      %1564 = vmatmul.mubr.bf16.gmra.mrb[0].mxu0 %v1456
      %v1565 = vpop.f32.mrb[0].mxu0
      %v1566 = vadd.f32 %v1354, %v1565
      %v1567 = vpop.f32.mrb[0].mxu0
      %v1568 = vpop.f32.mrb[0].mxu0
      %v1569 = vadd.f32 %v1357, %v1568
      %v1570 = vpop.f32.mrb[0].mxu0
      %1571 = vmatprep.mubr.bf16.mxu0 0
      %1572 = vmatmul.mubr.bf16.gmra.mrb[0].mxu0 %v1459
      %v1573 = vpop.f32.mrb[0].mxu0
      %v1574 = vadd.f32 %v1362, %v1573
      %v1575 = vpop.f32.mrb[0].mxu0
      %v1576 = vpop.f32.mrb[0].mxu0
      %v1577 = vadd.f32 %v1365, %v1576
      %v1578 = vpop.f32.mrb[0].mxu0
      %1579 = vmatprep.mubr.bf16.mxu0 0
      %1580 = vmatmul.mubr.bf16.gmra.mrb[0].mxu0 %v1462
      %v1581 = vpop.f32.mrb[0].mxu0
      %v1582 = vadd.f32 %v1370, %v1581
      %v1583 = vpop.f32.mrb[0].mxu0
      %v1584 = vpop.f32.mrb[0].mxu0
      %v1585 = vadd.f32 %v1373, %v1584
      %v1586 = vpop.f32.mrb[0].mxu0
      %1587 = vmatprep.mubr.bf16.mxu0 0
      %1588 = vmatmul.mubr.bf16.gmra.mrb[0].mxu0 %v1465
      %v1589 = vpop.f32.mrb[0].mxu0
      %v1590 = vadd.f32 %v1378, %v1589
      %v1591 = vpop.f32.mrb[0].mxu0
      %v1592 = vpop.f32.mrb[0].mxu0
      %v1593 = vadd.f32 %v1381, %v1592
      %v1594 = vpop.f32.mrb[0].mxu0
      %1595 = vmatprep.mubr.bf16.mxu0 0
      %1596 = vmatmul.mubr.bf16.gmra.mrb[0].mxu0 %v1468
      %v1597 = vpop.f32.mrb[0].mxu0
      %v1598 = vadd.f32 %v1386, %v1597
      %v1599 = vpop.f32.mrb[0].mxu0
      %v1600 = vpop.f32.mrb[0].mxu0
      %v1601 = vadd.f32 %v1389, %v1600
      %v1602 = vpop.f32.mrb[0].mxu0
      %1603 = vmatprep.mubr.bf16.mxu0 0
      %1604 = vmatmul.mubr.bf16.gmra.mrb[0].mxu0 %v1471
      %v1605 = vpop.f32.mrb[0].mxu0
      %v1606 = vadd.f32 %v1394, %v1605
      %v1607 = vpop.f32.mrb[0].mxu0
      %v1608 = vpop.f32.mrb[0].mxu0
      %v1609 = vadd.f32 %v1397, %v1608
      %v1610 = vpop.f32.mrb[0].mxu0
      %1611 = vmatprep.mubr.bf16.mxu0 0
      %1612 = vmatmul.mubr.bf16.gmra.mrb[0].mxu0 %v1474
      %v1613 = vpop.f32.mrb[0].mxu0
      %v1614 = vadd.f32 %v1402, %v1613
      %v1615 = vpop.f32.mrb[0].mxu0
      %v1616 = vpop.f32.mrb[0].mxu0
      %v1617 = vadd.f32 %v1405, %v1616
      %v1618 = vpop.f32.mrb[0].mxu0
      %1619 = vmatprep.mubr.bf16.mxu0 0
      %1620 = vmatmul.mubr.bf16.gmra.mrb[0].mxu0 %v1477
      %v1621 = vpop.f32.mrb[0].mxu0
      %v1622 = vadd.f32 %v1410, %v1621
      %v1623 = vpop.f32.mrb[0].mxu0
      %v1624 = vpop.f32.mrb[0].mxu0
      %v1625 = vadd.f32 %v1413, %v1624
      %v1626 = vpop.f32.mrb[0].mxu0
      %1627 = vmatprep.mubr.bf16.mxu0 0
      %1628 = vmatmul.mubr.bf16.gmra.mrb[0].mxu0 %v1480
      %v1629 = vpop.f32.mrb[0].mxu0
      %v1630 = vadd.f32 %v1418, %v1629
      %v1631 = vpop.f32.mrb[0].mxu0
      %v1632 = vpop.f32.mrb[0].mxu0
      %v1633 = vadd.f32 %v1421, %v1632
      %v1634 = vpop.f32.mrb[0].mxu0
      %1635 = vmatprep.mubr.bf16.mxu0 0
      %1636 = vmatmul.mubr.bf16.gmra.mrb[0].mxu0 %v1483
      %v1637 = vpop.f32.mrb[0].mxu0
      %v1638 = vadd.f32 %v1426, %v1637
      %v1639 = vpop.f32.mrb[0].mxu0
      %v1640 = vpop.f32.mrb[0].mxu0
      %v1641 = vadd.f32 %v1429, %v1640
      %v1642 = vpop.f32.mrb[0].mxu0
      %1643 = vmatprep.mubr.bf16.mxu0 0
      %1644 = vmatmul.mubr.bf16.gmra.mrb[0].mxu0 %v1486
      %v1645 = vpop.f32.mrb[0].mxu0
      %v1646 = vadd.f32 %v1434, %v1645
      %v1647 = vpop.f32.mrb[0].mxu0
      %v1648 = vpop.f32.mrb[0].mxu0
      %v1649 = vadd.f32 %v1437, %v1648
      %v1650 = vpop.f32.mrb[0].mxu0
      %1651 = vdwg.mxu0
      %v1652 = vpack.c.bf16 %v1160, %v1159
      %v1653 = vpack.c.bf16 %v1162, %v1161
      %v1654 = vpack.c.bf16 %v1164, %v1163
      %v1655 = vpack.c.bf16 %v1166, %v1165
      %v1656 = vpack.c.bf16 %v1168, %v1167
      %v1657 = vpack.c.bf16 %v1170, %v1169
      %v1658 = vpack.c.bf16 %v1172, %v1171
      %v1659 = vpack.c.bf16 %v1174, %v1173
      %v1660 = vpack.c.bf16 %v1176, %v1175
      %v1661 = vpack.c.bf16 %v1178, %v1177
      %v1662 = vpack.c.bf16 %v1180, %v1179
      %v1663 = vpack.c.bf16 %v1182, %v1181
      %v1664 = vpack.c.bf16 %v1184, %v1183
      %v1665 = vpack.c.bf16 %v1186, %v1185
      %v1666 = vpack.c.bf16 %v1188, %v1187
      %v1667 = vpack.c.bf16 %v1190, %v1189
      %s1668 = scalar_lea.vmem %s1, 4
      %v1669 = vld [vmem:[%s1668] sm:$0x3]
      %v1671 = vsel %vm1229, %v1652, 0
      %v1674 = vsel %vm1229, %v1653, 0
      %v1677 = vsel %vm1229, %v1654, 0
      %v1680 = vsel %vm1229, %v1655, 0
      %v1683 = vsel %vm1229, %v1656, 0
      %v1686 = vsel %vm1229, %v1657, 0
      %v1689 = vsel %vm1229, %v1658, 0
      %v1692 = vsel %vm1229, %v1659, 0
      %v1695 = vsel %vm1229, %v1660, 0
      %v1698 = vsel %vm1229, %v1661, 0
      %v1701 = vsel %vm1229, %v1662, 0
      %v1704 = vsel %vm1229, %v1663, 0
      %v1707 = vsel %vm1229, %v1664, 0
      %v1710 = vsel %vm1229, %v1665, 0
      %v1713 = vsel %vm1229, %v1666, 0
      %v1716 = vsel %vm1229, %v1667, 0
      %v1719 = vsel %vm1275, %v1669, 0
      %1721 = vmatprep.subr.bf16.mxu0 0
      %1722 = vmatpush1.bf16.msra.mxu0 %v1719
      %1723 = vmatprep.subr.bf16.mxu0 0
      %1724 = vmatpush1.bf16.msra.mxu0 0
      %1725 = vmatprep.subr.bf16.mxu0 0
      %1726 = vmatpush1.bf16.msra.mxu0 0
      %1727 = vmatprep.subr.bf16.mxu0 0
      %1728 = vmatpush1.bf16.msra.mxu0 0
      %1729 = vmatprep.subr.bf16.mxu0 0
      %1730 = vmatpush1.bf16.msra.mxu0 0
      %1731 = vmatprep.subr.bf16.mxu0 0
      %1732 = vmatpush1.bf16.msra.mxu0 0
      %1733 = vmatprep.subr.bf16.mxu0 0
      %1734 = vmatpush1.bf16.msra.mxu0 0
      %1735 = vmatprep.subr.bf16.mxu0 0
      %1736 = vmatpush1.bf16.msra.mxu0 0
      %1737 = vmatprep.subr.bf16.mxu0 0
      %1738 = vmatpush1.bf16.msra.mxu0 0
      %1739 = vmatprep.subr.bf16.mxu0 0
      %1740 = vmatpush1.bf16.msra.mxu0 0
      %1741 = vmatprep.subr.bf16.mxu0 0
      %1742 = vmatpush1.bf16.msra.mxu0 0
      %1743 = vmatprep.subr.bf16.mxu0 0
      %1744 = vmatpush1.bf16.msra.mxu0 0
      %1745 = vmatprep.subr.bf16.mxu0 0
      %1746 = vmatpush1.bf16.msra.mxu0 0
      %1747 = vmatprep.subr.bf16.mxu0 0
      %1748 = vmatpush1.bf16.msra.mxu0 0
      %1749 = vmatprep.subr.bf16.mxu0 0
      %1750 = vmatpush1.bf16.msra.mxu0 0
      %1751 = vmatprep.subr.bf16.mxu0 0
      %1752 = vmatpush1.bf16.msra.mxu0 0
      %1753 = vmatprep.mubr.bf16.mxu0 0
      %1754 = vmatmul.mubr.bf16.gmra.mrb[0].mxu0 %v1671
      %v1755 = vpop.f32.mrb[0].mxu0
      %v1756 = vadd.f32 0.0, %v1755
      %v1757 = vpop.f32.mrb[0].mxu0
      %v1758 = vpop.f32.mrb[0].mxu0
      %v1759 = vadd.f32 0.0, %v1758
      %v1760 = vpop.f32.mrb[0].mxu0
      %1761 = vmatprep.mubr.bf16.mxu0 0
      %1762 = vmatmul.mubr.bf16.gmra.mrb[0].mxu0 %v1674
      %v1763 = vpop.f32.mrb[0].mxu0
      %v1764 = vadd.f32 0.0, %v1763
      %v1765 = vpop.f32.mrb[0].mxu0
      %v1766 = vpop.f32.mrb[0].mxu0
      %v1767 = vadd.f32 0.0, %v1766
      %v1768 = vpop.f32.mrb[0].mxu0
      %1769 = vmatprep.mubr.bf16.mxu0 0
      %1770 = vmatmul.mubr.bf16.gmra.mrb[0].mxu0 %v1677
      %v1771 = vpop.f32.mrb[0].mxu0
      %v1772 = vadd.f32 0.0, %v1771
      %v1773 = vpop.f32.mrb[0].mxu0
      %v1774 = vpop.f32.mrb[0].mxu0
      %v1775 = vadd.f32 0.0, %v1774
      %v1776 = vpop.f32.mrb[0].mxu0
      %1777 = vmatprep.mubr.bf16.mxu0 0
      %1778 = vmatmul.mubr.bf16.gmra.mrb[0].mxu0 %v1680
      %v1779 = vpop.f32.mrb[0].mxu0
      %v1780 = vadd.f32 0.0, %v1779
      %v1781 = vpop.f32.mrb[0].mxu0
      %v1782 = vpop.f32.mrb[0].mxu0
      %v1783 = vadd.f32 0.0, %v1782
      %v1784 = vpop.f32.mrb[0].mxu0
      %1785 = vmatprep.mubr.bf16.mxu0 0
      %1786 = vmatmul.mubr.bf16.gmra.mrb[0].mxu0 %v1683
      %v1787 = vpop.f32.mrb[0].mxu0
      %v1788 = vadd.f32 0.0, %v1787
      %v1789 = vpop.f32.mrb[0].mxu0
      %v1790 = vpop.f32.mrb[0].mxu0
      %v1791 = vadd.f32 0.0, %v1790
      %v1792 = vpop.f32.mrb[0].mxu0
      %1793 = vmatprep.mubr.bf16.mxu0 0
      %1794 = vmatmul.mubr.bf16.gmra.mrb[0].mxu0 %v1686
      %v1795 = vpop.f32.mrb[0].mxu0
      %v1796 = vadd.f32 0.0, %v1795
      %v1797 = vpop.f32.mrb[0].mxu0
      %v1798 = vpop.f32.mrb[0].mxu0
      %v1799 = vadd.f32 0.0, %v1798
      %v1800 = vpop.f32.mrb[0].mxu0
      %1801 = vmatprep.mubr.bf16.mxu0 0
      %1802 = vmatmul.mubr.bf16.gmra.mrb[0].mxu0 %v1689
      %v1803 = vpop.f32.mrb[0].mxu0
      %v1804 = vadd.f32 0.0, %v1803
      %v1805 = vpop.f32.mrb[0].mxu0
      %v1806 = vpop.f32.mrb[0].mxu0
      %v1807 = vadd.f32 0.0, %v1806
      %v1808 = vpop.f32.mrb[0].mxu0
      %1809 = vmatprep.mubr.bf16.mxu0 0
      %1810 = vmatmul.mubr.bf16.gmra.mrb[0].mxu0 %v1692
      %v1811 = vpop.f32.mrb[0].mxu0
      %v1812 = vadd.f32 0.0, %v1811
      %v1813 = vpop.f32.mrb[0].mxu0
      %v1814 = vpop.f32.mrb[0].mxu0
      %v1815 = vadd.f32 0.0, %v1814
      %v1816 = vpop.f32.mrb[0].mxu0
      %1817 = vmatprep.mubr.bf16.mxu0 0
      %1818 = vmatmul.mubr.bf16.gmra.mrb[0].mxu0 %v1695
      %v1819 = vpop.f32.mrb[0].mxu0
      %v1820 = vadd.f32 0.0, %v1819
      %v1821 = vpop.f32.mrb[0].mxu0
      %v1822 = vpop.f32.mrb[0].mxu0
      %v1823 = vadd.f32 0.0, %v1822
      %v1824 = vpop.f32.mrb[0].mxu0
      %1825 = vmatprep.mubr.bf16.mxu0 0
      %1826 = vmatmul.mubr.bf16.gmra.mrb[0].mxu0 %v1698
      %v1827 = vpop.f32.mrb[0].mxu0
      %v1828 = vadd.f32 0.0, %v1827
      %v1829 = vpop.f32.mrb[0].mxu0
      %v1830 = vpop.f32.mrb[0].mxu0
      %v1831 = vadd.f32 0.0, %v1830
      %v1832 = vpop.f32.mrb[0].mxu0
      %1833 = vmatprep.mubr.bf16.mxu0 0
      %1834 = vmatmul.mubr.bf16.gmra.mrb[0].mxu0 %v1701
      %v1835 = vpop.f32.mrb[0].mxu0
      %v1836 = vadd.f32 0.0, %v1835
      %v1837 = vpop.f32.mrb[0].mxu0
      %v1838 = vpop.f32.mrb[0].mxu0
      %v1839 = vadd.f32 0.0, %v1838
      %v1840 = vpop.f32.mrb[0].mxu0
      %1841 = vmatprep.mubr.bf16.mxu0 0
      %1842 = vmatmul.mubr.bf16.gmra.mrb[0].mxu0 %v1704
      %v1843 = vpop.f32.mrb[0].mxu0
      %v1844 = vadd.f32 0.0, %v1843
      %v1845 = vpop.f32.mrb[0].mxu0
      %v1846 = vpop.f32.mrb[0].mxu0
      %v1847 = vadd.f32 0.0, %v1846
      %v1848 = vpop.f32.mrb[0].mxu0
      %1849 = vmatprep.mubr.bf16.mxu0 0
      %1850 = vmatmul.mubr.bf16.gmra.mrb[0].mxu0 %v1707
      %v1851 = vpop.f32.mrb[0].mxu0
      %v1852 = vadd.f32 0.0, %v1851
      %v1853 = vpop.f32.mrb[0].mxu0
      %v1854 = vpop.f32.mrb[0].mxu0
      %v1855 = vadd.f32 0.0, %v1854
      %v1856 = vpop.f32.mrb[0].mxu0
      %1857 = vmatprep.mubr.bf16.mxu0 0
      %1858 = vmatmul.mubr.bf16.gmra.mrb[0].mxu0 %v1710
      %v1859 = vpop.f32.mrb[0].mxu0
      %v1860 = vadd.f32 0.0, %v1859
      %v1861 = vpop.f32.mrb[0].mxu0
      %v1862 = vpop.f32.mrb[0].mxu0
      %v1863 = vadd.f32 0.0, %v1862
      %v1864 = vpop.f32.mrb[0].mxu0
      %1865 = vmatprep.mubr.bf16.mxu0 0
      %1866 = vmatmul.mubr.bf16.gmra.mrb[0].mxu0 %v1713
      %v1867 = vpop.f32.mrb[0].mxu0
      %v1868 = vadd.f32 0.0, %v1867
      %v1869 = vpop.f32.mrb[0].mxu0
      %v1870 = vpop.f32.mrb[0].mxu0
      %v1871 = vadd.f32 0.0, %v1870
      %v1872 = vpop.f32.mrb[0].mxu0
      %1873 = vmatprep.mubr.bf16.mxu0 0
      %1874 = vmatmul.mubr.bf16.gmra.mrb[0].mxu0 %v1716
      %v1875 = vpop.f32.mrb[0].mxu0
      %v1876 = vadd.f32 0.0, %v1875
      %v1877 = vpop.f32.mrb[0].mxu0
      %v1878 = vpop.f32.mrb[0].mxu0
      %v1879 = vadd.f32 0.0, %v1878
      %v1880 = vpop.f32.mrb[0].mxu0
      %1881 = vdwg.mxu0
      %v1882 = vadd.f32 %v1526, %v1756
      %v1883 = vadd.f32 %v1529, %v1759
      %v1884 = vadd.f32 %v1534, %v1764
      %v1885 = vadd.f32 %v1537, %v1767
      %v1886 = vadd.f32 %v1542, %v1772
      %v1887 = vadd.f32 %v1545, %v1775
      %v1888 = vadd.f32 %v1550, %v1780
      %v1889 = vadd.f32 %v1553, %v1783
      %v1890 = vadd.f32 %v1558, %v1788
      %v1891 = vadd.f32 %v1561, %v1791
      %v1892 = vadd.f32 %v1566, %v1796
      %v1893 = vadd.f32 %v1569, %v1799
      %v1894 = vadd.f32 %v1574, %v1804
      %v1895 = vadd.f32 %v1577, %v1807
      %v1896 = vadd.f32 %v1582, %v1812
      %v1897 = vadd.f32 %v1585, %v1815
      %v1898 = vadd.f32 %v1590, %v1820
      %v1899 = vadd.f32 %v1593, %v1823
      %v1900 = vadd.f32 %v1598, %v1828
      %v1901 = vadd.f32 %v1601, %v1831
      %v1902 = vadd.f32 %v1606, %v1836
      %v1903 = vadd.f32 %v1609, %v1839
      %v1904 = vadd.f32 %v1614, %v1844
      %v1905 = vadd.f32 %v1617, %v1847
      %v1906 = vadd.f32 %v1622, %v1852
      %v1907 = vadd.f32 %v1625, %v1855
      %v1908 = vadd.f32 %v1630, %v1860
      %v1909 = vadd.f32 %v1633, %v1863
      %v1910 = vadd.f32 %v1638, %v1868
      %v1911 = vadd.f32 %v1641, %v1871
      %v1912 = vadd.f32 %v1646, %v1876
      %v1913 = vadd.f32 %v1649, %v1879
      %v1914 = vpack.c.bf16 %v1084, %v1083
      %s1915 = scalar_lea.vmem %s1, 6
      %v1916 = vld [vmem:[%s1915] sm:$0x3]
      %v1918 = vsel %vm1229, %v1914, 0
      %v1921 = vsel %vm1275, %v1916, 0
      %1923 = vmatprep.subr.bf16.mxu0 0
      %1924 = vmatpush1.bf16.msra.mxu0 %v1921
      %1925 = vmatprep.subr.bf16.mxu0 0
      %1926 = vmatpush1.bf16.msra.mxu0 0
      %1927 = vmatprep.subr.bf16.mxu0 0
      %1928 = vmatpush1.bf16.msra.mxu0 0
      %1929 = vmatprep.subr.bf16.mxu0 0
      %1930 = vmatpush1.bf16.msra.mxu0 0
      %1931 = vmatprep.subr.bf16.mxu0 0
      %1932 = vmatpush1.bf16.msra.mxu0 0
      %1933 = vmatprep.subr.bf16.mxu0 0
      %1934 = vmatpush1.bf16.msra.mxu0 0
      %1935 = vmatprep.subr.bf16.mxu0 0
      %1936 = vmatpush1.bf16.msra.mxu0 0
      %1937 = vmatprep.subr.bf16.mxu0 0
      %1938 = vmatpush1.bf16.msra.mxu0 0
      %1939 = vmatprep.subr.bf16.mxu0 0
      %1940 = vmatpush1.bf16.msra.mxu0 0
      %1941 = vmatprep.subr.bf16.mxu0 0
      %1942 = vmatpush1.bf16.msra.mxu0 0
      %1943 = vmatprep.subr.bf16.mxu0 0
      %1944 = vmatpush1.bf16.msra.mxu0 0
      %1945 = vmatprep.subr.bf16.mxu0 0
      %1946 = vmatpush1.bf16.msra.mxu0 0
      %1947 = vmatprep.subr.bf16.mxu0 0
      %1948 = vmatpush1.bf16.msra.mxu0 0
      %1949 = vmatprep.subr.bf16.mxu0 0
      %1950 = vmatpush1.bf16.msra.mxu0 0
      %1951 = vmatprep.subr.bf16.mxu0 0
      %1952 = vmatpush1.bf16.msra.mxu0 0
      %1953 = vmatprep.subr.bf16.mxu0 0
      %1954 = vmatpush1.bf16.msra.mxu0 0
      %1955 = vmatprep.mubr.bf16.mxu0 0
      %1956 = vmatmul.mubr.bf16.gmra.mrb[0].mxu0 %v1444
      %v1957 = vpop.f32.mrb[0].mxu0
      %v1958 = vadd.f32 0.0, %v1957
      %v1959 = vpop.f32.mrb[0].mxu0
      %v1960 = vpop.f32.mrb[0].mxu0
      %v1961 = vadd.f32 0.0, %v1960
      %v1962 = vpop.f32.mrb[0].mxu0
      %1963 = vmatprep.mubr.bf16.mxu0 0
      %1964 = vmatmul.mubr.bf16.gmra.mrb[0].mxu0 %v1447
      %v1965 = vpop.f32.mrb[0].mxu0
      %v1966 = vadd.f32 0.0, %v1965
      %v1967 = vpop.f32.mrb[0].mxu0
      %v1968 = vpop.f32.mrb[0].mxu0
      %v1969 = vadd.f32 0.0, %v1968
      %v1970 = vpop.f32.mrb[0].mxu0
      %1971 = vmatprep.mubr.bf16.mxu0 0
      %1972 = vmatmul.mubr.bf16.gmra.mrb[0].mxu0 %v1450
      %v1973 = vpop.f32.mrb[0].mxu0
      %v1974 = vadd.f32 0.0, %v1973
      %v1975 = vpop.f32.mrb[0].mxu0
      %v1976 = vpop.f32.mrb[0].mxu0
      %v1977 = vadd.f32 0.0, %v1976
      %v1978 = vpop.f32.mrb[0].mxu0
      %1979 = vmatprep.mubr.bf16.mxu0 0
      %1980 = vmatmul.mubr.bf16.gmra.mrb[0].mxu0 %v1453
      %v1981 = vpop.f32.mrb[0].mxu0
      %v1982 = vadd.f32 0.0, %v1981
      %v1983 = vpop.f32.mrb[0].mxu0
      %v1984 = vpop.f32.mrb[0].mxu0
      %v1985 = vadd.f32 0.0, %v1984
      %v1986 = vpop.f32.mrb[0].mxu0
      %1987 = vmatprep.mubr.bf16.mxu0 0
      %1988 = vmatmul.mubr.bf16.gmra.mrb[0].mxu0 %v1456
      %v1989 = vpop.f32.mrb[0].mxu0
      %v1990 = vadd.f32 0.0, %v1989
      %v1991 = vpop.f32.mrb[0].mxu0
      %v1992 = vpop.f32.mrb[0].mxu0
      %v1993 = vadd.f32 0.0, %v1992
      %v1994 = vpop.f32.mrb[0].mxu0
      %1995 = vmatprep.mubr.bf16.mxu0 0
      %1996 = vmatmul.mubr.bf16.gmra.mrb[0].mxu0 %v1459
      %v1997 = vpop.f32.mrb[0].mxu0
      %v1998 = vadd.f32 0.0, %v1997
      %v1999 = vpop.f32.mrb[0].mxu0
      %v2000 = vpop.f32.mrb[0].mxu0
      %v2001 = vadd.f32 0.0, %v2000
      %v2002 = vpop.f32.mrb[0].mxu0
      %2003 = vmatprep.mubr.bf16.mxu0 0
      %2004 = vmatmul.mubr.bf16.gmra.mrb[0].mxu0 %v1462
      %v2005 = vpop.f32.mrb[0].mxu0
      %v2006 = vadd.f32 0.0, %v2005
      %v2007 = vpop.f32.mrb[0].mxu0
      %v2008 = vpop.f32.mrb[0].mxu0
      %v2009 = vadd.f32 0.0, %v2008
      %v2010 = vpop.f32.mrb[0].mxu0
      %2011 = vmatprep.mubr.bf16.mxu0 0
      %2012 = vmatmul.mubr.bf16.gmra.mrb[0].mxu0 %v1465
      %v2013 = vpop.f32.mrb[0].mxu0
      %v2014 = vadd.f32 0.0, %v2013
      %v2015 = vpop.f32.mrb[0].mxu0
      %v2016 = vpop.f32.mrb[0].mxu0
      %v2017 = vadd.f32 0.0, %v2016
      %v2018 = vpop.f32.mrb[0].mxu0
      %2019 = vmatprep.mubr.bf16.mxu0 0
      %2020 = vmatmul.mubr.bf16.gmra.mrb[0].mxu0 %v1468
      %v2021 = vpop.f32.mrb[0].mxu0
      %v2022 = vadd.f32 0.0, %v2021
      %v2023 = vpop.f32.mrb[0].mxu0
      %v2024 = vpop.f32.mrb[0].mxu0
      %v2025 = vadd.f32 0.0, %v2024
      %v2026 = vpop.f32.mrb[0].mxu0
      %2027 = vmatprep.mubr.bf16.mxu0 0
      %2028 = vmatmul.mubr.bf16.gmra.mrb[0].mxu0 %v1471
      %v2029 = vpop.f32.mrb[0].mxu0
      %v2030 = vadd.f32 0.0, %v2029
      %v2031 = vpop.f32.mrb[0].mxu0
      %v2032 = vpop.f32.mrb[0].mxu0
      %v2033 = vadd.f32 0.0, %v2032
      %v2034 = vpop.f32.mrb[0].mxu0
      %2035 = vmatprep.mubr.bf16.mxu0 0
      %2036 = vmatmul.mubr.bf16.gmra.mrb[0].mxu0 %v1474
      %v2037 = vpop.f32.mrb[0].mxu0
      %v2038 = vadd.f32 0.0, %v2037
      %v2039 = vpop.f32.mrb[0].mxu0
      %v2040 = vpop.f32.mrb[0].mxu0
      %v2041 = vadd.f32 0.0, %v2040
      %v2042 = vpop.f32.mrb[0].mxu0
      %2043 = vmatprep.mubr.bf16.mxu0 0
      %2044 = vmatmul.mubr.bf16.gmra.mrb[0].mxu0 %v1477
      %v2045 = vpop.f32.mrb[0].mxu0
      %v2046 = vadd.f32 0.0, %v2045
      %v2047 = vpop.f32.mrb[0].mxu0
      %v2048 = vpop.f32.mrb[0].mxu0
      %v2049 = vadd.f32 0.0, %v2048
      %v2050 = vpop.f32.mrb[0].mxu0
      %2051 = vmatprep.mubr.bf16.mxu0 0
      %2052 = vmatmul.mubr.bf16.gmra.mrb[0].mxu0 %v1480
      %v2053 = vpop.f32.mrb[0].mxu0
      %v2054 = vadd.f32 0.0, %v2053
      %v2055 = vpop.f32.mrb[0].mxu0
      %v2056 = vpop.f32.mrb[0].mxu0
      %v2057 = vadd.f32 0.0, %v2056
      %v2058 = vpop.f32.mrb[0].mxu0
      %2059 = vmatprep.mubr.bf16.mxu0 0
      %2060 = vmatmul.mubr.bf16.gmra.mrb[0].mxu0 %v1483
      %v2061 = vpop.f32.mrb[0].mxu0
      %v2062 = vadd.f32 0.0, %v2061
      %v2063 = vpop.f32.mrb[0].mxu0
      %v2064 = vpop.f32.mrb[0].mxu0
      %v2065 = vadd.f32 0.0, %v2064
      %v2066 = vpop.f32.mrb[0].mxu0
      %2067 = vmatprep.mubr.bf16.mxu0 0
      %2068 = vmatmul.mubr.bf16.gmra.mrb[0].mxu0 %v1486
      %v2069 = vpop.f32.mrb[0].mxu0
      %v2070 = vadd.f32 0.0, %v2069
      %v2071 = vpop.f32.mrb[0].mxu0
      %v2072 = vpop.f32.mrb[0].mxu0
      %v2073 = vadd.f32 0.0, %v2072
      %v2074 = vpop.f32.mrb[0].mxu0
      %2075 = vmatprep.mubr.bf16.mxu0 0
      %2076 = vmatmul.mubr.bf16.gmra.mrb[0].mxu0 %v1918
      %v2077 = vpop.f32.mrb[0].mxu0
      %v2078 = vadd.f32 0.0, %v2077
      %v2079 = vpop.f32.mrb[0].mxu0
      %v2080 = vpop.f32.mrb[0].mxu0
      %v2081 = vadd.f32 0.0, %v2080
      %v2082 = vpop.f32.mrb[0].mxu0
      %2083 = vdwg.mxu0
      %v2084 = vadd.f32 %v1882, %v1958
      %v2085 = vadd.f32 %v1883, %v1961
      %v2086 = vadd.f32 %v1884, %v1966
      %v2087 = vadd.f32 %v1885, %v1969
      %v2088 = vadd.f32 %v1886, %v1974
      %v2089 = vadd.f32 %v1887, %v1977
      %v2090 = vadd.f32 %v1888, %v1982
      %v2091 = vadd.f32 %v1889, %v1985
      %v2092 = vadd.f32 %v1890, %v1990
      %v2093 = vadd.f32 %v1891, %v1993
      %v2094 = vadd.f32 %v1892, %v1998
      %v2095 = vadd.f32 %v1893, %v2001
      %v2096 = vadd.f32 %v1894, %v2006
      %v2097 = vadd.f32 %v1895, %v2009
      %v2098 = vadd.f32 %v1896, %v2014
      %v2099 = vadd.f32 %v1897, %v2017
      %v2100 = vadd.f32 %v1898, %v2022
      %v2101 = vadd.f32 %v1899, %v2025
      %v2102 = vadd.f32 %v1900, %v2030
      %v2103 = vadd.f32 %v1901, %v2033
      %v2104 = vadd.f32 %v1902, %v2038
      %v2105 = vadd.f32 %v1903, %v2041
      %v2106 = vadd.f32 %v1904, %v2046
      %v2107 = vadd.f32 %v1905, %v2049
      %v2108 = vadd.f32 %v1906, %v2054
      %v2109 = vadd.f32 %v1907, %v2057
      %v2110 = vadd.f32 %v1908, %v2062
      %v2111 = vadd.f32 %v1909, %v2065
      %v2112 = vadd.f32 %v1910, %v2070
      %v2113 = vadd.f32 %v1911, %v2073
      %v2114 = vadd.f32 %v1912, %v2078
      %v2115 = vadd.f32 %v1913, %v2081
      %v2116 = vpack.c.bf16 %v203, %v202
      %s2117 = scalar_lea.vmem %s1, 8
      %v2118 = vld [vmem:[%s2117] sm:$0x3]
      %v2120 = vsel %vm1229, %v2116, 0
      %v2123 = vsel %vm1275, %v2118, 0
      %2125 = vmatprep.subr.bf16.mxu0 0
      %2126 = vmatpush1.bf16.msra.mxu0 %v2123
      %2127 = vmatprep.subr.bf16.mxu0 0
      %2128 = vmatpush1.bf16.msra.mxu0 0
      %2129 = vmatprep.subr.bf16.mxu0 0
      %2130 = vmatpush1.bf16.msra.mxu0 0
      %2131 = vmatprep.subr.bf16.mxu0 0
      %2132 = vmatpush1.bf16.msra.mxu0 0
      %2133 = vmatprep.subr.bf16.mxu0 0
      %2134 = vmatpush1.bf16.msra.mxu0 0
      %2135 = vmatprep.subr.bf16.mxu0 0
      %2136 = vmatpush1.bf16.msra.mxu0 0
      %2137 = vmatprep.subr.bf16.mxu0 0
      %2138 = vmatpush1.bf16.msra.mxu0 0
      %2139 = vmatprep.subr.bf16.mxu0 0
      %2140 = vmatpush1.bf16.msra.mxu0 0
      %2141 = vmatprep.subr.bf16.mxu0 0
      %2142 = vmatpush1.bf16.msra.mxu0 0
      %2143 = vmatprep.subr.bf16.mxu0 0
      %2144 = vmatpush1.bf16.msra.mxu0 0
      %2145 = vmatprep.subr.bf16.mxu0 0
      %2146 = vmatpush1.bf16.msra.mxu0 0
      %2147 = vmatprep.subr.bf16.mxu0 0
      %2148 = vmatpush1.bf16.msra.mxu0 0
      %2149 = vmatprep.subr.bf16.mxu0 0
      %2150 = vmatpush1.bf16.msra.mxu0 0
      %2151 = vmatprep.subr.bf16.mxu0 0
      %2152 = vmatpush1.bf16.msra.mxu0 0
      %2153 = vmatprep.subr.bf16.mxu0 0
      %2154 = vmatpush1.bf16.msra.mxu0 0
      %2155 = vmatprep.subr.bf16.mxu0 0
      %2156 = vmatpush1.bf16.msra.mxu0 0
      %2157 = vmatprep.mubr.bf16.mxu0 0
      %2158 = vmatmul.mubr.bf16.gmra.mrb[0].mxu0 %v1234
      %v2159 = vpop.f32.mrb[0].mxu0
      %v2160 = vadd.f32 0.0, %v2159
      %v2161 = vpop.f32.mrb[0].mxu0
      %v2162 = vpop.f32.mrb[0].mxu0
      %v2163 = vadd.f32 0.0, %v2162
      %v2164 = vpop.f32.mrb[0].mxu0
      %2165 = vmatprep.mubr.bf16.mxu0 0
      %2166 = vmatmul.mubr.bf16.gmra.mrb[0].mxu0 %v1231
      %v2167 = vpop.f32.mrb[0].mxu0
      %v2168 = vadd.f32 0.0, %v2167
      %v2169 = vpop.f32.mrb[0].mxu0
      %v2170 = vpop.f32.mrb[0].mxu0
      %v2171 = vadd.f32 0.0, %v2170
      %v2172 = vpop.f32.mrb[0].mxu0
      %2173 = vmatprep.mubr.bf16.mxu0 0
      %2174 = vmatmul.mubr.bf16.gmra.mrb[0].mxu0 %v1237
      %v2175 = vpop.f32.mrb[0].mxu0
      %v2176 = vadd.f32 0.0, %v2175
      %v2177 = vpop.f32.mrb[0].mxu0
      %v2178 = vpop.f32.mrb[0].mxu0
      %v2179 = vadd.f32 0.0, %v2178
      %v2180 = vpop.f32.mrb[0].mxu0
      %2181 = vmatprep.mubr.bf16.mxu0 0
      %2182 = vmatmul.mubr.bf16.gmra.mrb[0].mxu0 %v1240
      %v2183 = vpop.f32.mrb[0].mxu0
      %v2184 = vadd.f32 0.0, %v2183
      %v2185 = vpop.f32.mrb[0].mxu0
      %v2186 = vpop.f32.mrb[0].mxu0
      %v2187 = vadd.f32 0.0, %v2186
      %v2188 = vpop.f32.mrb[0].mxu0
      %2189 = vmatprep.mubr.bf16.mxu0 0
      %2190 = vmatmul.mubr.bf16.gmra.mrb[0].mxu0 %v1243
      %v2191 = vpop.f32.mrb[0].mxu0
      %v2192 = vadd.f32 0.0, %v2191
      %v2193 = vpop.f32.mrb[0].mxu0
      %v2194 = vpop.f32.mrb[0].mxu0
      %v2195 = vadd.f32 0.0, %v2194
      %v2196 = vpop.f32.mrb[0].mxu0
      %2197 = vmatprep.mubr.bf16.mxu0 0
      %2198 = vmatmul.mubr.bf16.gmra.mrb[0].mxu0 %v1246
      %v2199 = vpop.f32.mrb[0].mxu0
      %v2200 = vadd.f32 0.0, %v2199
      %v2201 = vpop.f32.mrb[0].mxu0
      %v2202 = vpop.f32.mrb[0].mxu0
      %v2203 = vadd.f32 0.0, %v2202
      %v2204 = vpop.f32.mrb[0].mxu0
      %2205 = vmatprep.mubr.bf16.mxu0 0
      %2206 = vmatmul.mubr.bf16.gmra.mrb[0].mxu0 %v1249
      %v2207 = vpop.f32.mrb[0].mxu0
      %v2208 = vadd.f32 0.0, %v2207
      %v2209 = vpop.f32.mrb[0].mxu0
      %v2210 = vpop.f32.mrb[0].mxu0
      %v2211 = vadd.f32 0.0, %v2210
      %v2212 = vpop.f32.mrb[0].mxu0
      %2213 = vmatprep.mubr.bf16.mxu0 0
      %2214 = vmatmul.mubr.bf16.gmra.mrb[0].mxu0 %v1252
      %v2215 = vpop.f32.mrb[0].mxu0
      %v2216 = vadd.f32 0.0, %v2215
      %v2217 = vpop.f32.mrb[0].mxu0
      %v2218 = vpop.f32.mrb[0].mxu0
      %v2219 = vadd.f32 0.0, %v2218
      %v2220 = vpop.f32.mrb[0].mxu0
      %2221 = vmatprep.mubr.bf16.mxu0 0
      %2222 = vmatmul.mubr.bf16.gmra.mrb[0].mxu0 %v1255
      %v2223 = vpop.f32.mrb[0].mxu0
      %v2224 = vadd.f32 0.0, %v2223
      %v2225 = vpop.f32.mrb[0].mxu0
      %v2226 = vpop.f32.mrb[0].mxu0
      %v2227 = vadd.f32 0.0, %v2226
      %v2228 = vpop.f32.mrb[0].mxu0
      %2229 = vmatprep.mubr.bf16.mxu0 0
      %2230 = vmatmul.mubr.bf16.gmra.mrb[0].mxu0 %v1258
      %v2231 = vpop.f32.mrb[0].mxu0
      %v2232 = vadd.f32 0.0, %v2231
      %v2233 = vpop.f32.mrb[0].mxu0
      %v2234 = vpop.f32.mrb[0].mxu0
      %v2235 = vadd.f32 0.0, %v2234
      %v2236 = vpop.f32.mrb[0].mxu0
      %2237 = vmatprep.mubr.bf16.mxu0 0
      %2238 = vmatmul.mubr.bf16.gmra.mrb[0].mxu0 %v1261
      %v2239 = vpop.f32.mrb[0].mxu0
      %v2240 = vadd.f32 0.0, %v2239
      %v2241 = vpop.f32.mrb[0].mxu0
      %v2242 = vpop.f32.mrb[0].mxu0
      %v2243 = vadd.f32 0.0, %v2242
      %v2244 = vpop.f32.mrb[0].mxu0
      %2245 = vmatprep.mubr.bf16.mxu0 0
      %2246 = vmatmul.mubr.bf16.gmra.mrb[0].mxu0 %v1264
      %v2247 = vpop.f32.mrb[0].mxu0
      %v2248 = vadd.f32 0.0, %v2247
      %v2249 = vpop.f32.mrb[0].mxu0
      %v2250 = vpop.f32.mrb[0].mxu0
      %v2251 = vadd.f32 0.0, %v2250
      %v2252 = vpop.f32.mrb[0].mxu0
      %2253 = vmatprep.mubr.bf16.mxu0 0
      %2254 = vmatmul.mubr.bf16.gmra.mrb[0].mxu0 %v1267
      %v2255 = vpop.f32.mrb[0].mxu0
      %v2256 = vadd.f32 0.0, %v2255
      %v2257 = vpop.f32.mrb[0].mxu0
      %v2258 = vpop.f32.mrb[0].mxu0
      %v2259 = vadd.f32 0.0, %v2258
      %v2260 = vpop.f32.mrb[0].mxu0
      %2261 = vmatprep.mubr.bf16.mxu0 0
      %2262 = vmatmul.mubr.bf16.gmra.mrb[0].mxu0 %v1270
      %v2263 = vpop.f32.mrb[0].mxu0
      %v2264 = vadd.f32 0.0, %v2263
      %v2265 = vpop.f32.mrb[0].mxu0
      %v2266 = vpop.f32.mrb[0].mxu0
      %v2267 = vadd.f32 0.0, %v2266
      %v2268 = vpop.f32.mrb[0].mxu0
      %2269 = vmatprep.mubr.bf16.mxu0 0
      %2270 = vmatmul.mubr.bf16.gmra.mrb[0].mxu0 %v1273
      %v2271 = vpop.f32.mrb[0].mxu0
      %v2272 = vadd.f32 0.0, %v2271
      %v2273 = vpop.f32.mrb[0].mxu0
      %v2274 = vpop.f32.mrb[0].mxu0
      %v2275 = vadd.f32 0.0, %v2274
      %v2276 = vpop.f32.mrb[0].mxu0
      %2277 = vmatprep.mubr.bf16.mxu0 0
      %2278 = vmatmul.mubr.bf16.gmra.mrb[0].mxu0 %v2120
      %v2279 = vpop.f32.mrb[0].mxu0
      %v2280 = vadd.f32 0.0, %v2279
      %v2281 = vpop.f32.mrb[0].mxu0
      %v2282 = vpop.f32.mrb[0].mxu0
      %v2283 = vadd.f32 0.0, %v2282
      %v2284 = vpop.f32.mrb[0].mxu0
      %2285 = vdwg.mxu0
      %v2286 = vadd.f32 %v2084, %v2160
      %v2287 = vadd.f32 %v2085, %v2163
      %v2288 = vadd.f32 %v2086, %v2168
      %v2289 = vadd.f32 %v2087, %v2171
      %v2290 = vadd.f32 %v2088, %v2176
      %v2291 = vadd.f32 %v2089, %v2179
      %v2292 = vadd.f32 %v2090, %v2184
      %v2293 = vadd.f32 %v2091, %v2187
      %v2294 = vadd.f32 %v2092, %v2192
      %v2295 = vadd.f32 %v2093, %v2195
      %v2296 = vadd.f32 %v2094, %v2200
      %v2297 = vadd.f32 %v2095, %v2203
      %v2298 = vadd.f32 %v2096, %v2208
      %v2299 = vadd.f32 %v2097, %v2211
      %v2300 = vadd.f32 %v2098, %v2216
      %v2301 = vadd.f32 %v2099, %v2219
      %v2302 = vadd.f32 %v2100, %v2224
      %v2303 = vadd.f32 %v2101, %v2227
      %v2304 = vadd.f32 %v2102, %v2232
      %v2305 = vadd.f32 %v2103, %v2235
      %v2306 = vadd.f32 %v2104, %v2240
      %v2307 = vadd.f32 %v2105, %v2243
      %v2308 = vadd.f32 %v2106, %v2248
      %v2309 = vadd.f32 %v2107, %v2251
      %v2310 = vadd.f32 %v2108, %v2256
      %v2311 = vadd.f32 %v2109, %v2259
      %v2312 = vadd.f32 %v2110, %v2264
      %v2313 = vadd.f32 %v2111, %v2267
      %v2314 = vadd.f32 %v2112, %v2272
      %v2315 = vadd.f32 %v2113, %v2275
      %v2316 = vadd.f32 %v2114, %v2280
      %v2317 = vadd.f32 %v2115, %v2283
      %v2318 = vpack.c.bf16 %v1192, %v1191
      %s2319 = scalar_lea.vmem %s1, 10
      %v2320 = vld [vmem:[%s2319] sm:$0x3]
      %v2322 = vsel %vm1229, %v2318, 0
      %v2325 = vsel %vm1275, %v2320, 0
      %2327 = vmatprep.subr.bf16.mxu0 0
      %2328 = vmatpush1.bf16.msra.mxu0 %v2325
      %2329 = vmatprep.subr.bf16.mxu0 0
      %2330 = vmatpush1.bf16.msra.mxu0 0
      %2331 = vmatprep.subr.bf16.mxu0 0
      %2332 = vmatpush1.bf16.msra.mxu0 0
      %2333 = vmatprep.subr.bf16.mxu0 0
      %2334 = vmatpush1.bf16.msra.mxu0 0
      %2335 = vmatprep.subr.bf16.mxu0 0
      %2336 = vmatpush1.bf16.msra.mxu0 0
      %2337 = vmatprep.subr.bf16.mxu0 0
      %2338 = vmatpush1.bf16.msra.mxu0 0
      %2339 = vmatprep.subr.bf16.mxu0 0
      %2340 = vmatpush1.bf16.msra.mxu0 0
      %2341 = vmatprep.subr.bf16.mxu0 0
      %2342 = vmatpush1.bf16.msra.mxu0 0
      %2343 = vmatprep.subr.bf16.mxu0 0
      %2344 = vmatpush1.bf16.msra.mxu0 0
      %2345 = vmatprep.subr.bf16.mxu0 0
      %2346 = vmatpush1.bf16.msra.mxu0 0
      %2347 = vmatprep.subr.bf16.mxu0 0
      %2348 = vmatpush1.bf16.msra.mxu0 0
      %2349 = vmatprep.subr.bf16.mxu0 0
      %2350 = vmatpush1.bf16.msra.mxu0 0
      %2351 = vmatprep.subr.bf16.mxu0 0
      %2352 = vmatpush1.bf16.msra.mxu0 0
      %2353 = vmatprep.subr.bf16.mxu0 0
      %2354 = vmatpush1.bf16.msra.mxu0 0
      %2355 = vmatprep.subr.bf16.mxu0 0
      %2356 = vmatpush1.bf16.msra.mxu0 0
      %2357 = vmatprep.subr.bf16.mxu0 0
      %2358 = vmatpush1.bf16.msra.mxu0 0
      %2359 = vmatprep.mubr.bf16.mxu0 0
      %2360 = vmatmul.mubr.bf16.gmra.mrb[0].mxu0 %v1674
      %v2361 = vpop.f32.mrb[0].mxu0
      %v2362 = vadd.f32 0.0, %v2361
      %v2363 = vpop.f32.mrb[0].mxu0
      %v2364 = vpop.f32.mrb[0].mxu0
      %v2365 = vadd.f32 0.0, %v2364
      %v2366 = vpop.f32.mrb[0].mxu0
      %2367 = vmatprep.mubr.bf16.mxu0 0
      %2368 = vmatmul.mubr.bf16.gmra.mrb[0].mxu0 %v1677
      %v2369 = vpop.f32.mrb[0].mxu0
      %v2370 = vadd.f32 0.0, %v2369
      %v2371 = vpop.f32.mrb[0].mxu0
      %v2372 = vpop.f32.mrb[0].mxu0
      %v2373 = vadd.f32 0.0, %v2372
      %v2374 = vpop.f32.mrb[0].mxu0
      %2375 = vmatprep.mubr.bf16.mxu0 0
      %2376 = vmatmul.mubr.bf16.gmra.mrb[0].mxu0 %v1680
      %v2377 = vpop.f32.mrb[0].mxu0
      %v2378 = vadd.f32 0.0, %v2377
      %v2379 = vpop.f32.mrb[0].mxu0
      %v2380 = vpop.f32.mrb[0].mxu0
      %v2381 = vadd.f32 0.0, %v2380
      %v2382 = vpop.f32.mrb[0].mxu0
      %2383 = vmatprep.mubr.bf16.mxu0 0
      %2384 = vmatmul.mubr.bf16.gmra.mrb[0].mxu0 %v1683
      %v2385 = vpop.f32.mrb[0].mxu0
      %v2386 = vadd.f32 0.0, %v2385
      %v2387 = vpop.f32.mrb[0].mxu0
      %v2388 = vpop.f32.mrb[0].mxu0
      %v2389 = vadd.f32 0.0, %v2388
      %v2390 = vpop.f32.mrb[0].mxu0
      %2391 = vmatprep.mubr.bf16.mxu0 0
      %2392 = vmatmul.mubr.bf16.gmra.mrb[0].mxu0 %v1686
      %v2393 = vpop.f32.mrb[0].mxu0
      %v2394 = vadd.f32 0.0, %v2393
      %v2395 = vpop.f32.mrb[0].mxu0
      %v2396 = vpop.f32.mrb[0].mxu0
      %v2397 = vadd.f32 0.0, %v2396
      %v2398 = vpop.f32.mrb[0].mxu0
      %2399 = vmatprep.mubr.bf16.mxu0 0
      %2400 = vmatmul.mubr.bf16.gmra.mrb[0].mxu0 %v1689
      %v2401 = vpop.f32.mrb[0].mxu0
      %v2402 = vadd.f32 0.0, %v2401
      %v2403 = vpop.f32.mrb[0].mxu0
      %v2404 = vpop.f32.mrb[0].mxu0
      %v2405 = vadd.f32 0.0, %v2404
      %v2406 = vpop.f32.mrb[0].mxu0
      %2407 = vmatprep.mubr.bf16.mxu0 0
      %2408 = vmatmul.mubr.bf16.gmra.mrb[0].mxu0 %v1692
      %v2409 = vpop.f32.mrb[0].mxu0
      %v2410 = vadd.f32 0.0, %v2409
      %v2411 = vpop.f32.mrb[0].mxu0
      %v2412 = vpop.f32.mrb[0].mxu0
      %v2413 = vadd.f32 0.0, %v2412
      %v2414 = vpop.f32.mrb[0].mxu0
      %2415 = vmatprep.mubr.bf16.mxu0 0
      %2416 = vmatmul.mubr.bf16.gmra.mrb[0].mxu0 %v1695
      %v2417 = vpop.f32.mrb[0].mxu0
      %v2418 = vadd.f32 0.0, %v2417
      %v2419 = vpop.f32.mrb[0].mxu0
      %v2420 = vpop.f32.mrb[0].mxu0
      %v2421 = vadd.f32 0.0, %v2420
      %v2422 = vpop.f32.mrb[0].mxu0
      %2423 = vmatprep.mubr.bf16.mxu0 0
      %2424 = vmatmul.mubr.bf16.gmra.mrb[0].mxu0 %v1698
      %v2425 = vpop.f32.mrb[0].mxu0
      %v2426 = vadd.f32 0.0, %v2425
      %v2427 = vpop.f32.mrb[0].mxu0
      %v2428 = vpop.f32.mrb[0].mxu0
      %v2429 = vadd.f32 0.0, %v2428
      %v2430 = vpop.f32.mrb[0].mxu0
      %2431 = vmatprep.mubr.bf16.mxu0 0
      %2432 = vmatmul.mubr.bf16.gmra.mrb[0].mxu0 %v1701
      %v2433 = vpop.f32.mrb[0].mxu0
      %v2434 = vadd.f32 0.0, %v2433
      %v2435 = vpop.f32.mrb[0].mxu0
      %v2436 = vpop.f32.mrb[0].mxu0
      %v2437 = vadd.f32 0.0, %v2436
      %v2438 = vpop.f32.mrb[0].mxu0
      %2439 = vmatprep.mubr.bf16.mxu0 0
      %2440 = vmatmul.mubr.bf16.gmra.mrb[0].mxu0 %v1704
      %v2441 = vpop.f32.mrb[0].mxu0
      %v2442 = vadd.f32 0.0, %v2441
      %v2443 = vpop.f32.mrb[0].mxu0
      %v2444 = vpop.f32.mrb[0].mxu0
      %v2445 = vadd.f32 0.0, %v2444
      %v2446 = vpop.f32.mrb[0].mxu0
      %2447 = vmatprep.mubr.bf16.mxu0 0
      %2448 = vmatmul.mubr.bf16.gmra.mrb[0].mxu0 %v1707
      %v2449 = vpop.f32.mrb[0].mxu0
      %v2450 = vadd.f32 0.0, %v2449
      %v2451 = vpop.f32.mrb[0].mxu0
      %v2452 = vpop.f32.mrb[0].mxu0
      %v2453 = vadd.f32 0.0, %v2452
      %v2454 = vpop.f32.mrb[0].mxu0
      %2455 = vmatprep.mubr.bf16.mxu0 0
      %2456 = vmatmul.mubr.bf16.gmra.mrb[0].mxu0 %v1710
      %v2457 = vpop.f32.mrb[0].mxu0
      %v2458 = vadd.f32 0.0, %v2457
      %v2459 = vpop.f32.mrb[0].mxu0
      %v2460 = vpop.f32.mrb[0].mxu0
      %v2461 = vadd.f32 0.0, %v2460
      %v2462 = vpop.f32.mrb[0].mxu0
      %2463 = vmatprep.mubr.bf16.mxu0 0
      %2464 = vmatmul.mubr.bf16.gmra.mrb[0].mxu0 %v1713
      %v2465 = vpop.f32.mrb[0].mxu0
      %v2466 = vadd.f32 0.0, %v2465
      %v2467 = vpop.f32.mrb[0].mxu0
      %v2468 = vpop.f32.mrb[0].mxu0
      %v2469 = vadd.f32 0.0, %v2468
      %v2470 = vpop.f32.mrb[0].mxu0
      %2471 = vmatprep.mubr.bf16.mxu0 0
      %2472 = vmatmul.mubr.bf16.gmra.mrb[0].mxu0 %v1716
      %v2473 = vpop.f32.mrb[0].mxu0
      %v2474 = vadd.f32 0.0, %v2473
      %v2475 = vpop.f32.mrb[0].mxu0
      %v2476 = vpop.f32.mrb[0].mxu0
      %v2477 = vadd.f32 0.0, %v2476
      %v2478 = vpop.f32.mrb[0].mxu0
      %2479 = vmatprep.mubr.bf16.mxu0 0
      %2480 = vmatmul.mubr.bf16.gmra.mrb[0].mxu0 %v2322
      %v2481 = vpop.f32.mrb[0].mxu0
      %v2482 = vadd.f32 0.0, %v2481
      %v2483 = vpop.f32.mrb[0].mxu0
      %v2484 = vpop.f32.mrb[0].mxu0
      %v2485 = vadd.f32 0.0, %v2484
      %v2486 = vpop.f32.mrb[0].mxu0
      %2487 = vdwg.mxu0
      %v2488 = vadd.f32 %v2286, %v2362
      %v2489 = vadd.f32 %v2287, %v2365
      %v2490 = vadd.f32 %v2288, %v2370
      %v2491 = vadd.f32 %v2289, %v2373
      %v2492 = vadd.f32 %v2290, %v2378
      %v2493 = vadd.f32 %v2291, %v2381
      %v2494 = vadd.f32 %v2292, %v2386
      %v2495 = vadd.f32 %v2293, %v2389
      %v2496 = vadd.f32 %v2294, %v2394
      %v2497 = vadd.f32 %v2295, %v2397
      %v2498 = vadd.f32 %v2296, %v2402
      %v2499 = vadd.f32 %v2297, %v2405
      %v2500 = vadd.f32 %v2298, %v2410
      %v2501 = vadd.f32 %v2299, %v2413
      %v2502 = vadd.f32 %v2300, %v2418
      %v2503 = vadd.f32 %v2301, %v2421
      %v2504 = vadd.f32 %v2302, %v2426
      %v2505 = vadd.f32 %v2303, %v2429
      %v2506 = vadd.f32 %v2304, %v2434
      %v2507 = vadd.f32 %v2305, %v2437
      %v2508 = vadd.f32 %v2306, %v2442
      %v2509 = vadd.f32 %v2307, %v2445
      %v2510 = vadd.f32 %v2308, %v2450
      %v2511 = vadd.f32 %v2309, %v2453
      %v2512 = vadd.f32 %v2310, %v2458
      %v2513 = vadd.f32 %v2311, %v2461
      %v2514 = vadd.f32 %v2312, %v2466
      %v2515 = vadd.f32 %v2313, %v2469
      %v2516 = vadd.f32 %v2314, %v2474
      %v2517 = vadd.f32 %v2315, %v2477
      %v2518 = vadd.f32 %v2316, %v2482
      %v2519 = vadd.f32 %v2317, %v2485
      %v2520 = vpack.c.bf16 %v1086, %v1085
      %s2521 = scalar_lea.vmem %s1, 12
      %v2522 = vld [vmem:[%s2521] sm:$0x3]
      %v2524 = vsel %vm1229, %v2520, 0
      %v2527 = vsel %vm1275, %v2522, 0
      %2529 = vmatprep.subr.bf16.mxu0 0
      %2530 = vmatpush1.bf16.msra.mxu0 %v2527
      %2531 = vmatprep.subr.bf16.mxu0 0
      %2532 = vmatpush1.bf16.msra.mxu0 0
      %2533 = vmatprep.subr.bf16.mxu0 0
      %2534 = vmatpush1.bf16.msra.mxu0 0
      %2535 = vmatprep.subr.bf16.mxu0 0
      %2536 = vmatpush1.bf16.msra.mxu0 0
      %2537 = vmatprep.subr.bf16.mxu0 0
      %2538 = vmatpush1.bf16.msra.mxu0 0
      %2539 = vmatprep.subr.bf16.mxu0 0
      %2540 = vmatpush1.bf16.msra.mxu0 0
      %2541 = vmatprep.subr.bf16.mxu0 0
      %2542 = vmatpush1.bf16.msra.mxu0 0
      %2543 = vmatprep.subr.bf16.mxu0 0
      %2544 = vmatpush1.bf16.msra.mxu0 0
      %2545 = vmatprep.subr.bf16.mxu0 0
      %2546 = vmatpush1.bf16.msra.mxu0 0
      %2547 = vmatprep.subr.bf16.mxu0 0
      %2548 = vmatpush1.bf16.msra.mxu0 0
      %2549 = vmatprep.subr.bf16.mxu0 0
      %2550 = vmatpush1.bf16.msra.mxu0 0
      %2551 = vmatprep.subr.bf16.mxu0 0
      %2552 = vmatpush1.bf16.msra.mxu0 0
      %2553 = vmatprep.subr.bf16.mxu0 0
      %2554 = vmatpush1.bf16.msra.mxu0 0
      %2555 = vmatprep.subr.bf16.mxu0 0
      %2556 = vmatpush1.bf16.msra.mxu0 0
      %2557 = vmatprep.subr.bf16.mxu0 0
      %2558 = vmatpush1.bf16.msra.mxu0 0
      %2559 = vmatprep.subr.bf16.mxu0 0
      %2560 = vmatpush1.bf16.msra.mxu0 0
      %2561 = vmatprep.mubr.bf16.mxu0 0
      %2562 = vmatmul.mubr.bf16.gmra.mrb[0].mxu0 %v1447
      %v2563 = vpop.f32.mrb[0].mxu0
      %v2564 = vadd.f32 0.0, %v2563
      %v2565 = vpop.f32.mrb[0].mxu0
      %v2566 = vpop.f32.mrb[0].mxu0
      %v2567 = vadd.f32 0.0, %v2566
      %v2568 = vpop.f32.mrb[0].mxu0
      %2569 = vmatprep.mubr.bf16.mxu0 0
      %2570 = vmatmul.mubr.bf16.gmra.mrb[0].mxu0 %v1450
      %v2571 = vpop.f32.mrb[0].mxu0
      %v2572 = vadd.f32 0.0, %v2571
      %v2573 = vpop.f32.mrb[0].mxu0
      %v2574 = vpop.f32.mrb[0].mxu0
      %v2575 = vadd.f32 0.0, %v2574
      %v2576 = vpop.f32.mrb[0].mxu0
      %2577 = vmatprep.mubr.bf16.mxu0 0
      %2578 = vmatmul.mubr.bf16.gmra.mrb[0].mxu0 %v1453
      %v2579 = vpop.f32.mrb[0].mxu0
      %v2580 = vadd.f32 0.0, %v2579
      %v2581 = vpop.f32.mrb[0].mxu0
      %v2582 = vpop.f32.mrb[0].mxu0
      %v2583 = vadd.f32 0.0, %v2582
      %v2584 = vpop.f32.mrb[0].mxu0
      %2585 = vmatprep.mubr.bf16.mxu0 0
      %2586 = vmatmul.mubr.bf16.gmra.mrb[0].mxu0 %v1456
      %v2587 = vpop.f32.mrb[0].mxu0
      %v2588 = vadd.f32 0.0, %v2587
      %v2589 = vpop.f32.mrb[0].mxu0
      %v2590 = vpop.f32.mrb[0].mxu0
      %v2591 = vadd.f32 0.0, %v2590
      %v2592 = vpop.f32.mrb[0].mxu0
      %2593 = vmatprep.mubr.bf16.mxu0 0
      %2594 = vmatmul.mubr.bf16.gmra.mrb[0].mxu0 %v1459
      %v2595 = vpop.f32.mrb[0].mxu0
      %v2596 = vadd.f32 0.0, %v2595
      %v2597 = vpop.f32.mrb[0].mxu0
      %v2598 = vpop.f32.mrb[0].mxu0
      %v2599 = vadd.f32 0.0, %v2598
      %v2600 = vpop.f32.mrb[0].mxu0
      %2601 = vmatprep.mubr.bf16.mxu0 0
      %2602 = vmatmul.mubr.bf16.gmra.mrb[0].mxu0 %v1462
      %v2603 = vpop.f32.mrb[0].mxu0
      %v2604 = vadd.f32 0.0, %v2603
      %v2605 = vpop.f32.mrb[0].mxu0
      %v2606 = vpop.f32.mrb[0].mxu0
      %v2607 = vadd.f32 0.0, %v2606
      %v2608 = vpop.f32.mrb[0].mxu0
      %2609 = vmatprep.mubr.bf16.mxu0 0
      %2610 = vmatmul.mubr.bf16.gmra.mrb[0].mxu0 %v1465
      %v2611 = vpop.f32.mrb[0].mxu0
      %v2612 = vadd.f32 0.0, %v2611
      %v2613 = vpop.f32.mrb[0].mxu0
      %v2614 = vpop.f32.mrb[0].mxu0
      %v2615 = vadd.f32 0.0, %v2614
      %v2616 = vpop.f32.mrb[0].mxu0
      %2617 = vmatprep.mubr.bf16.mxu0 0
      %2618 = vmatmul.mubr.bf16.gmra.mrb[0].mxu0 %v1468
      %v2619 = vpop.f32.mrb[0].mxu0
      %v2620 = vadd.f32 0.0, %v2619
      %v2621 = vpop.f32.mrb[0].mxu0
      %v2622 = vpop.f32.mrb[0].mxu0
      %v2623 = vadd.f32 0.0, %v2622
      %v2624 = vpop.f32.mrb[0].mxu0
      %2625 = vmatprep.mubr.bf16.mxu0 0
      %2626 = vmatmul.mubr.bf16.gmra.mrb[0].mxu0 %v1471
      %v2627 = vpop.f32.mrb[0].mxu0
      %v2628 = vadd.f32 0.0, %v2627
      %v2629 = vpop.f32.mrb[0].mxu0
      %v2630 = vpop.f32.mrb[0].mxu0
      %v2631 = vadd.f32 0.0, %v2630
      %v2632 = vpop.f32.mrb[0].mxu0
      %2633 = vmatprep.mubr.bf16.mxu0 0
      %2634 = vmatmul.mubr.bf16.gmra.mrb[0].mxu0 %v1474
      %v2635 = vpop.f32.mrb[0].mxu0
      %v2636 = vadd.f32 0.0, %v2635
      %v2637 = vpop.f32.mrb[0].mxu0
      %v2638 = vpop.f32.mrb[0].mxu0
      %v2639 = vadd.f32 0.0, %v2638
      %v2640 = vpop.f32.mrb[0].mxu0
      %2641 = vmatprep.mubr.bf16.mxu0 0
      %2642 = vmatmul.mubr.bf16.gmra.mrb[0].mxu0 %v1477
      %v2643 = vpop.f32.mrb[0].mxu0
      %v2644 = vadd.f32 0.0, %v2643
      %v2645 = vpop.f32.mrb[0].mxu0
      %v2646 = vpop.f32.mrb[0].mxu0
      %v2647 = vadd.f32 0.0, %v2646
      %v2648 = vpop.f32.mrb[0].mxu0
      %2649 = vmatprep.mubr.bf16.mxu0 0
      %2650 = vmatmul.mubr.bf16.gmra.mrb[0].mxu0 %v1480
      %v2651 = vpop.f32.mrb[0].mxu0
      %v2652 = vadd.f32 0.0, %v2651
      %v2653 = vpop.f32.mrb[0].mxu0
      %v2654 = vpop.f32.mrb[0].mxu0
      %v2655 = vadd.f32 0.0, %v2654
      %v2656 = vpop.f32.mrb[0].mxu0
      %2657 = vmatprep.mubr.bf16.mxu0 0
      %2658 = vmatmul.mubr.bf16.gmra.mrb[0].mxu0 %v1483
      %v2659 = vpop.f32.mrb[0].mxu0
      %v2660 = vadd.f32 0.0, %v2659
      %v2661 = vpop.f32.mrb[0].mxu0
      %v2662 = vpop.f32.mrb[0].mxu0
      %v2663 = vadd.f32 0.0, %v2662
      %v2664 = vpop.f32.mrb[0].mxu0
      %2665 = vmatprep.mubr.bf16.mxu0 0
      %2666 = vmatmul.mubr.bf16.gmra.mrb[0].mxu0 %v1486
      %v2667 = vpop.f32.mrb[0].mxu0
      %v2668 = vadd.f32 0.0, %v2667
      %v2669 = vpop.f32.mrb[0].mxu0
      %v2670 = vpop.f32.mrb[0].mxu0
      %v2671 = vadd.f32 0.0, %v2670
      %v2672 = vpop.f32.mrb[0].mxu0
      %2673 = vmatprep.mubr.bf16.mxu0 0
      %2674 = vmatmul.mubr.bf16.gmra.mrb[0].mxu0 %v1918
      %v2675 = vpop.f32.mrb[0].mxu0
      %v2676 = vadd.f32 0.0, %v2675
      %v2677 = vpop.f32.mrb[0].mxu0
      %v2678 = vpop.f32.mrb[0].mxu0
      %v2679 = vadd.f32 0.0, %v2678
      %v2680 = vpop.f32.mrb[0].mxu0
      %2681 = vmatprep.mubr.bf16.mxu0 0
      %2682 = vmatmul.mubr.bf16.gmra.mrb[0].mxu0 %v2524
      %v2683 = vpop.f32.mrb[0].mxu0
      %v2684 = vadd.f32 0.0, %v2683
      %v2685 = vpop.f32.mrb[0].mxu0
      %v2686 = vpop.f32.mrb[0].mxu0
      %v2687 = vadd.f32 0.0, %v2686
      %v2688 = vpop.f32.mrb[0].mxu0
      %2689 = vdwg.mxu0
      %v2690 = vadd.f32 %v2488, %v2564
      %v2691 = vadd.f32 %v2489, %v2567
      %v2692 = vadd.f32 %v2490, %v2572
      %v2693 = vadd.f32 %v2491, %v2575
      %v2694 = vadd.f32 %v2492, %v2580
      %v2695 = vadd.f32 %v2493, %v2583
      %v2696 = vadd.f32 %v2494, %v2588
      %v2697 = vadd.f32 %v2495, %v2591
      %v2698 = vadd.f32 %v2496, %v2596
      %v2699 = vadd.f32 %v2497, %v2599
      %v2700 = vadd.f32 %v2498, %v2604
      %v2701 = vadd.f32 %v2499, %v2607
      %v2702 = vadd.f32 %v2500, %v2612
      %v2703 = vadd.f32 %v2501, %v2615
      %v2704 = vadd.f32 %v2502, %v2620
      %v2705 = vadd.f32 %v2503, %v2623
      %v2706 = vadd.f32 %v2504, %v2628
      %v2707 = vadd.f32 %v2505, %v2631
      %v2708 = vadd.f32 %v2506, %v2636
      %v2709 = vadd.f32 %v2507, %v2639
      %v2710 = vadd.f32 %v2508, %v2644
      %v2711 = vadd.f32 %v2509, %v2647
      %v2712 = vadd.f32 %v2510, %v2652
      %v2713 = vadd.f32 %v2511, %v2655
      %v2714 = vadd.f32 %v2512, %v2660
      %v2715 = vadd.f32 %v2513, %v2663
      %v2716 = vadd.f32 %v2514, %v2668
      %v2717 = vadd.f32 %v2515, %v2671
      %v2718 = vadd.f32 %v2516, %v2676
      %v2719 = vadd.f32 %v2517, %v2679
      %v2720 = vadd.f32 %v2518, %v2684
      %v2721 = vadd.f32 %v2519, %v2687
      %s2722 = scalar_lea.vmem %s1, 14
      %v2723 = vld [vmem:[%s2722] sm:$0x3]
      %v2725 = vsel %vm1275, %v2723, 0
      %2727 = vmatprep.subr.bf16.mxu0 0
      %2728 = vmatpush1.bf16.msra.mxu0 %v2725
      %2729 = vmatprep.subr.bf16.mxu0 0
      %2730 = vmatpush1.bf16.msra.mxu0 0
      %2731 = vmatprep.subr.bf16.mxu0 0
      %2732 = vmatpush1.bf16.msra.mxu0 0
      %2733 = vmatprep.subr.bf16.mxu0 0
      %2734 = vmatpush1.bf16.msra.mxu0 0
      %2735 = vmatprep.subr.bf16.mxu0 0
      %2736 = vmatpush1.bf16.msra.mxu0 0
      %2737 = vmatprep.subr.bf16.mxu0 0
      %2738 = vmatpush1.bf16.msra.mxu0 0
      %2739 = vmatprep.subr.bf16.mxu0 0
      %2740 = vmatpush1.bf16.msra.mxu0 0
      %2741 = vmatprep.subr.bf16.mxu0 0
      %2742 = vmatpush1.bf16.msra.mxu0 0
      %2743 = vmatprep.subr.bf16.mxu0 0
      %2744 = vmatpush1.bf16.msra.mxu0 0
      %2745 = vmatprep.subr.bf16.mxu0 0
      %2746 = vmatpush1.bf16.msra.mxu0 0
      %2747 = vmatprep.subr.bf16.mxu0 0
      %2748 = vmatpush1.bf16.msra.mxu0 0
      %2749 = vmatprep.subr.bf16.mxu0 0
      %2750 = vmatpush1.bf16.msra.mxu0 0
      %2751 = vmatprep.subr.bf16.mxu0 0
      %2752 = vmatpush1.bf16.msra.mxu0 0
      %2753 = vmatprep.subr.bf16.mxu0 0
      %2754 = vmatpush1.bf16.msra.mxu0 0
      %2755 = vmatprep.subr.bf16.mxu0 0
      %2756 = vmatpush1.bf16.msra.mxu0 0
      %2757 = vmatprep.subr.bf16.mxu0 0
      %2758 = vmatpush1.bf16.msra.mxu0 0
      %2759 = vmatprep.mubr.bf16.mxu0 0
      %2760 = vmatmul.mubr.bf16.gmra.mrb[0].mxu0 %v1231
      %v2761 = vpop.f32.mrb[0].mxu0
      %v2762 = vadd.f32 0.0, %v2761
      %v2763 = vpop.f32.mrb[0].mxu0
      %v2764 = vpop.f32.mrb[0].mxu0
      %v2765 = vadd.f32 0.0, %v2764
      %v2766 = vpop.f32.mrb[0].mxu0
      %2767 = vmatprep.mubr.bf16.mxu0 0
      %2768 = vmatmul.mubr.bf16.gmra.mrb[0].mxu0 %v1237
      %v2769 = vpop.f32.mrb[0].mxu0
      %v2770 = vadd.f32 0.0, %v2769
      %v2771 = vpop.f32.mrb[0].mxu0
      %v2772 = vpop.f32.mrb[0].mxu0
      %v2773 = vadd.f32 0.0, %v2772
      %v2774 = vpop.f32.mrb[0].mxu0
      %2775 = vmatprep.mubr.bf16.mxu0 0
      %2776 = vmatmul.mubr.bf16.gmra.mrb[0].mxu0 %v1240
      %v2777 = vpop.f32.mrb[0].mxu0
      %v2778 = vadd.f32 0.0, %v2777
      %v2779 = vpop.f32.mrb[0].mxu0
      %v2780 = vpop.f32.mrb[0].mxu0
      %v2781 = vadd.f32 0.0, %v2780
      %v2782 = vpop.f32.mrb[0].mxu0
      %2783 = vmatprep.mubr.bf16.mxu0 0
      %2784 = vmatmul.mubr.bf16.gmra.mrb[0].mxu0 %v1243
      %v2785 = vpop.f32.mrb[0].mxu0
      %v2786 = vadd.f32 0.0, %v2785
      %v2787 = vpop.f32.mrb[0].mxu0
      %v2788 = vpop.f32.mrb[0].mxu0
      %v2789 = vadd.f32 0.0, %v2788
      %v2790 = vpop.f32.mrb[0].mxu0
      %2791 = vmatprep.mubr.bf16.mxu0 0
      %2792 = vmatmul.mubr.bf16.gmra.mrb[0].mxu0 %v1246
      %v2793 = vpop.f32.mrb[0].mxu0
      %v2794 = vadd.f32 0.0, %v2793
      %v2795 = vpop.f32.mrb[0].mxu0
      %v2796 = vpop.f32.mrb[0].mxu0
      %v2797 = vadd.f32 0.0, %v2796
      %v2798 = vpop.f32.mrb[0].mxu0
      %2799 = vmatprep.mubr.bf16.mxu0 0
      %2800 = vmatmul.mubr.bf16.gmra.mrb[0].mxu0 %v1249
      %v2801 = vpop.f32.mrb[0].mxu0
      %v2802 = vadd.f32 0.0, %v2801
      %v2803 = vpop.f32.mrb[0].mxu0
      %v2804 = vpop.f32.mrb[0].mxu0
      %v2805 = vadd.f32 0.0, %v2804
      %v2806 = vpop.f32.mrb[0].mxu0
      %2807 = vmatprep.mubr.bf16.mxu0 0
      %2808 = vmatmul.mubr.bf16.gmra.mrb[0].mxu0 %v1252
      %v2809 = vpop.f32.mrb[0].mxu0
      %v2810 = vadd.f32 0.0, %v2809
      %v2811 = vpop.f32.mrb[0].mxu0
      %v2812 = vpop.f32.mrb[0].mxu0
      %v2813 = vadd.f32 0.0, %v2812
      %v2814 = vpop.f32.mrb[0].mxu0
      %2815 = vmatprep.mubr.bf16.mxu0 0
      %2816 = vmatmul.mubr.bf16.gmra.mrb[0].mxu0 %v1255
      %v2817 = vpop.f32.mrb[0].mxu0
      %v2818 = vadd.f32 0.0, %v2817
      %v2819 = vpop.f32.mrb[0].mxu0
      %v2820 = vpop.f32.mrb[0].mxu0
      %v2821 = vadd.f32 0.0, %v2820
      %v2822 = vpop.f32.mrb[0].mxu0
      %2823 = vmatprep.mubr.bf16.mxu0 0
      %2824 = vmatmul.mubr.bf16.gmra.mrb[0].mxu0 %v1258
      %v2825 = vpop.f32.mrb[0].mxu0
      %v2826 = vadd.f32 0.0, %v2825
      %v2827 = vpop.f32.mrb[0].mxu0
      %v2828 = vpop.f32.mrb[0].mxu0
      %v2829 = vadd.f32 0.0, %v2828
      %v2830 = vpop.f32.mrb[0].mxu0
      %2831 = vmatprep.mubr.bf16.mxu0 0
      %2832 = vmatmul.mubr.bf16.gmra.mrb[0].mxu0 %v1261
      %v2833 = vpop.f32.mrb[0].mxu0
      %v2834 = vadd.f32 0.0, %v2833
      %v2835 = vpop.f32.mrb[0].mxu0
      %v2836 = vpop.f32.mrb[0].mxu0
      %v2837 = vadd.f32 0.0, %v2836
      %v2838 = vpop.f32.mrb[0].mxu0
      %2839 = vmatprep.mubr.bf16.mxu0 0
      %2840 = vmatmul.mubr.bf16.gmra.mrb[0].mxu0 %v1264
      %v2841 = vpop.f32.mrb[0].mxu0
      %v2842 = vadd.f32 0.0, %v2841
      %v2843 = vpop.f32.mrb[0].mxu0
      %v2844 = vpop.f32.mrb[0].mxu0
      %v2845 = vadd.f32 0.0, %v2844
      %v2846 = vpop.f32.mrb[0].mxu0
      %2847 = vmatprep.mubr.bf16.mxu0 0
      %2848 = vmatmul.mubr.bf16.gmra.mrb[0].mxu0 %v1267
      %v2849 = vpop.f32.mrb[0].mxu0
      %v2850 = vadd.f32 0.0, %v2849
      %v2851 = vpop.f32.mrb[0].mxu0
      %v2852 = vpop.f32.mrb[0].mxu0
      %v2853 = vadd.f32 0.0, %v2852
      %v2854 = vpop.f32.mrb[0].mxu0
      %2855 = vmatprep.mubr.bf16.mxu0 0
      %2856 = vmatmul.mubr.bf16.gmra.mrb[0].mxu0 %v1270
      %v2857 = vpop.f32.mrb[0].mxu0
      %v2858 = vadd.f32 0.0, %v2857
      %v2859 = vpop.f32.mrb[0].mxu0
      %v2860 = vpop.f32.mrb[0].mxu0
      %v2861 = vadd.f32 0.0, %v2860
      %v2862 = vpop.f32.mrb[0].mxu0
      %2863 = vmatprep.mubr.bf16.mxu0 0
      %2864 = vmatmul.mubr.bf16.gmra.mrb[0].mxu0 %v1273
      %v2865 = vpop.f32.mrb[0].mxu0
      %v2866 = vadd.f32 0.0, %v2865
      %v2867 = vpop.f32.mrb[0].mxu0
      %v2868 = vpop.f32.mrb[0].mxu0
      %v2869 = vadd.f32 0.0, %v2868
      %v2870 = vpop.f32.mrb[0].mxu0
      %2871 = vmatprep.mubr.bf16.mxu0 0
      %2872 = vmatmul.mubr.bf16.gmra.mrb[0].mxu0 %v2120
      %v2873 = vpop.f32.mrb[0].mxu0
      %v2874 = vadd.f32 0.0, %v2873
      %v2875 = vpop.f32.mrb[0].mxu0
      %v2876 = vpop.f32.mrb[0].mxu0
      %v2877 = vadd.f32 0.0, %v2876
      %v2878 = vpop.f32.mrb[0].mxu0
      %2879 = vmatprep.mubr.bf16.mxu0 0
      %2880 = vmatmul.mubr.bf16.gmra.mrb[0].mxu0 %v1273
      %v2881 = vpop.f32.mrb[0].mxu0
      %v2882 = vadd.f32 0.0, %v2881
      %v2883 = vpop.f32.mrb[0].mxu0
      %v2884 = vpop.f32.mrb[0].mxu0
      %v2885 = vadd.f32 0.0, %v2884
      %v2886 = vpop.f32.mrb[0].mxu0
      %2887 = vdwg.mxu0
      %v2888 = vadd.f32 %v2690, %v2762
      %v2889 = vadd.f32 %v2691, %v2765
      %v2890 = vadd.f32 %v2692, %v2770
      %v2891 = vadd.f32 %v2693, %v2773
      %v2892 = vadd.f32 %v2694, %v2778
      %v2893 = vadd.f32 %v2695, %v2781
      %v2894 = vadd.f32 %v2696, %v2786
      %v2895 = vadd.f32 %v2697, %v2789
      %v2896 = vadd.f32 %v2698, %v2794
      %v2897 = vadd.f32 %v2699, %v2797
      %v2898 = vadd.f32 %v2700, %v2802
      %v2899 = vadd.f32 %v2701, %v2805
      %v2900 = vadd.f32 %v2702, %v2810
      %v2901 = vadd.f32 %v2703, %v2813
      %v2902 = vadd.f32 %v2704, %v2818
      %v2903 = vadd.f32 %v2705, %v2821
      %v2904 = vadd.f32 %v2706, %v2826
      %v2905 = vadd.f32 %v2707, %v2829
      %v2906 = vadd.f32 %v2708, %v2834
      %v2907 = vadd.f32 %v2709, %v2837
      %v2908 = vadd.f32 %v2710, %v2842
      %v2909 = vadd.f32 %v2711, %v2845
      %v2910 = vadd.f32 %v2712, %v2850
      %v2911 = vadd.f32 %v2713, %v2853
      %v2912 = vadd.f32 %v2714, %v2858
      %v2913 = vadd.f32 %v2715, %v2861
      %v2914 = vadd.f32 %v2716, %v2866
      %v2915 = vadd.f32 %v2717, %v2869
      %v2916 = vadd.f32 %v2718, %v2874
      %v2917 = vadd.f32 %v2719, %v2877
      %v2918 = vadd.f32 %v2720, %v2882
      %v2919 = vadd.f32 %v2721, %v2885
      %v2920 = vpack.c.bf16 %v1194, %v1193
      %s2921 = scalar_lea.vmem %s1, 16
      %v2922 = vld [vmem:[%s2921] sm:$0x3]
      %v2924 = vsel %vm1229, %v2920, 0
      %v2927 = vsel %vm1275, %v2922, 0
      %2929 = vmatprep.subr.bf16.mxu0 0
      %2930 = vmatpush1.bf16.msra.mxu0 %v2927
      %2931 = vmatprep.subr.bf16.mxu0 0
      %2932 = vmatpush1.bf16.msra.mxu0 0
      %2933 = vmatprep.subr.bf16.mxu0 0
      %2934 = vmatpush1.bf16.msra.mxu0 0
      %2935 = vmatprep.subr.bf16.mxu0 0
      %2936 = vmatpush1.bf16.msra.mxu0 0
      %2937 = vmatprep.subr.bf16.mxu0 0
      %2938 = vmatpush1.bf16.msra.mxu0 0
      %2939 = vmatprep.subr.bf16.mxu0 0
      %2940 = vmatpush1.bf16.msra.mxu0 0
      %2941 = vmatprep.subr.bf16.mxu0 0
      %2942 = vmatpush1.bf16.msra.mxu0 0
      %2943 = vmatprep.subr.bf16.mxu0 0
      %2944 = vmatpush1.bf16.msra.mxu0 0
      %2945 = vmatprep.subr.bf16.mxu0 0
      %2946 = vmatpush1.bf16.msra.mxu0 0
      %2947 = vmatprep.subr.bf16.mxu0 0
      %2948 = vmatpush1.bf16.msra.mxu0 0
      %2949 = vmatprep.subr.bf16.mxu0 0
      %2950 = vmatpush1.bf16.msra.mxu0 0
      %2951 = vmatprep.subr.bf16.mxu0 0
      %2952 = vmatpush1.bf16.msra.mxu0 0
      %2953 = vmatprep.subr.bf16.mxu0 0
      %2954 = vmatpush1.bf16.msra.mxu0 0
      %2955 = vmatprep.subr.bf16.mxu0 0
      %2956 = vmatpush1.bf16.msra.mxu0 0
      %2957 = vmatprep.subr.bf16.mxu0 0
      %2958 = vmatpush1.bf16.msra.mxu0 0
      %2959 = vmatprep.subr.bf16.mxu0 0
      %2960 = vmatpush1.bf16.msra.mxu0 0
      %2961 = vmatprep.mubr.bf16.mxu0 0
      %2962 = vmatmul.mubr.bf16.gmra.mrb[0].mxu0 %v1677
      %v2963 = vpop.f32.mrb[0].mxu0
      %v2964 = vadd.f32 0.0, %v2963
      %v2965 = vpop.f32.mrb[0].mxu0
      %v2966 = vpop.f32.mrb[0].mxu0
      %v2967 = vadd.f32 0.0, %v2966
      %v2968 = vpop.f32.mrb[0].mxu0
      %2969 = vmatprep.mubr.bf16.mxu0 0
      %2970 = vmatmul.mubr.bf16.gmra.mrb[0].mxu0 %v1680
      %v2971 = vpop.f32.mrb[0].mxu0
      %v2972 = vadd.f32 0.0, %v2971
      %v2973 = vpop.f32.mrb[0].mxu0
      %v2974 = vpop.f32.mrb[0].mxu0
      %v2975 = vadd.f32 0.0, %v2974
      %v2976 = vpop.f32.mrb[0].mxu0
      %2977 = vmatprep.mubr.bf16.mxu0 0
      %2978 = vmatmul.mubr.bf16.gmra.mrb[0].mxu0 %v1683
      %v2979 = vpop.f32.mrb[0].mxu0
      %v2980 = vadd.f32 0.0, %v2979
      %v2981 = vpop.f32.mrb[0].mxu0
      %v2982 = vpop.f32.mrb[0].mxu0
      %v2983 = vadd.f32 0.0, %v2982
      %v2984 = vpop.f32.mrb[0].mxu0
      %2985 = vmatprep.mubr.bf16.mxu0 0
      %2986 = vmatmul.mubr.bf16.gmra.mrb[0].mxu0 %v1686
      %v2987 = vpop.f32.mrb[0].mxu0
      %v2988 = vadd.f32 0.0, %v2987
      %v2989 = vpop.f32.mrb[0].mxu0
      %v2990 = vpop.f32.mrb[0].mxu0
      %v2991 = vadd.f32 0.0, %v2990
      %v2992 = vpop.f32.mrb[0].mxu0
      %2993 = vmatprep.mubr.bf16.mxu0 0
      %2994 = vmatmul.mubr.bf16.gmra.mrb[0].mxu0 %v1689
      %v2995 = vpop.f32.mrb[0].mxu0
      %v2996 = vadd.f32 0.0, %v2995
      %v2997 = vpop.f32.mrb[0].mxu0
      %v2998 = vpop.f32.mrb[0].mxu0
      %v2999 = vadd.f32 0.0, %v2998
      %v3000 = vpop.f32.mrb[0].mxu0
      %3001 = vmatprep.mubr.bf16.mxu0 0
      %3002 = vmatmul.mubr.bf16.gmra.mrb[0].mxu0 %v1692
      %v3003 = vpop.f32.mrb[0].mxu0
      %v3004 = vadd.f32 0.0, %v3003
      %v3005 = vpop.f32.mrb[0].mxu0
      %v3006 = vpop.f32.mrb[0].mxu0
      %v3007 = vadd.f32 0.0, %v3006
      %v3008 = vpop.f32.mrb[0].mxu0
      %3009 = vmatprep.mubr.bf16.mxu0 0
      %3010 = vmatmul.mubr.bf16.gmra.mrb[0].mxu0 %v1695
      %v3011 = vpop.f32.mrb[0].mxu0
      %v3012 = vadd.f32 0.0, %v3011
      %v3013 = vpop.f32.mrb[0].mxu0
      %v3014 = vpop.f32.mrb[0].mxu0
      %v3015 = vadd.f32 0.0, %v3014
      %v3016 = vpop.f32.mrb[0].mxu0
      %3017 = vmatprep.mubr.bf16.mxu0 0
      %3018 = vmatmul.mubr.bf16.gmra.mrb[0].mxu0 %v1698
      %v3019 = vpop.f32.mrb[0].mxu0
      %v3020 = vadd.f32 0.0, %v3019
      %v3021 = vpop.f32.mrb[0].mxu0
      %v3022 = vpop.f32.mrb[0].mxu0
      %v3023 = vadd.f32 0.0, %v3022
      %v3024 = vpop.f32.mrb[0].mxu0
      %3025 = vmatprep.mubr.bf16.mxu0 0
      %3026 = vmatmul.mubr.bf16.gmra.mrb[0].mxu0 %v1701
      %v3027 = vpop.f32.mrb[0].mxu0
      %v3028 = vadd.f32 0.0, %v3027
      %v3029 = vpop.f32.mrb[0].mxu0
      %v3030 = vpop.f32.mrb[0].mxu0
      %v3031 = vadd.f32 0.0, %v3030
      %v3032 = vpop.f32.mrb[0].mxu0
      %3033 = vmatprep.mubr.bf16.mxu0 0
      %3034 = vmatmul.mubr.bf16.gmra.mrb[0].mxu0 %v1704
      %v3035 = vpop.f32.mrb[0].mxu0
      %v3036 = vadd.f32 0.0, %v3035
      %v3037 = vpop.f32.mrb[0].mxu0
      %v3038 = vpop.f32.mrb[0].mxu0
      %v3039 = vadd.f32 0.0, %v3038
      %v3040 = vpop.f32.mrb[0].mxu0
      %3041 = vmatprep.mubr.bf16.mxu0 0
      %3042 = vmatmul.mubr.bf16.gmra.mrb[0].mxu0 %v1707
      %v3043 = vpop.f32.mrb[0].mxu0
      %v3044 = vadd.f32 0.0, %v3043
      %v3045 = vpop.f32.mrb[0].mxu0
      %v3046 = vpop.f32.mrb[0].mxu0
      %v3047 = vadd.f32 0.0, %v3046
      %v3048 = vpop.f32.mrb[0].mxu0
      %3049 = vmatprep.mubr.bf16.mxu0 0
      %3050 = vmatmul.mubr.bf16.gmra.mrb[0].mxu0 %v1710
      %v3051 = vpop.f32.mrb[0].mxu0
      %v3052 = vadd.f32 0.0, %v3051
      %v3053 = vpop.f32.mrb[0].mxu0
      %v3054 = vpop.f32.mrb[0].mxu0
      %v3055 = vadd.f32 0.0, %v3054
      %v3056 = vpop.f32.mrb[0].mxu0
      %3057 = vmatprep.mubr.bf16.mxu0 0
      %3058 = vmatmul.mubr.bf16.gmra.mrb[0].mxu0 %v1713
      %v3059 = vpop.f32.mrb[0].mxu0
      %v3060 = vadd.f32 0.0, %v3059
      %v3061 = vpop.f32.mrb[0].mxu0
      %v3062 = vpop.f32.mrb[0].mxu0
      %v3063 = vadd.f32 0.0, %v3062
      %v3064 = vpop.f32.mrb[0].mxu0
      %3065 = vmatprep.mubr.bf16.mxu0 0
      %3066 = vmatmul.mubr.bf16.gmra.mrb[0].mxu0 %v1716
      %v3067 = vpop.f32.mrb[0].mxu0
      %v3068 = vadd.f32 0.0, %v3067
      %v3069 = vpop.f32.mrb[0].mxu0
      %v3070 = vpop.f32.mrb[0].mxu0
      %v3071 = vadd.f32 0.0, %v3070
      %v3072 = vpop.f32.mrb[0].mxu0
      %3073 = vmatprep.mubr.bf16.mxu0 0
      %3074 = vmatmul.mubr.bf16.gmra.mrb[0].mxu0 %v2322
      %v3075 = vpop.f32.mrb[0].mxu0
      %v3076 = vadd.f32 0.0, %v3075
      %v3077 = vpop.f32.mrb[0].mxu0
      %v3078 = vpop.f32.mrb[0].mxu0
      %v3079 = vadd.f32 0.0, %v3078
      %v3080 = vpop.f32.mrb[0].mxu0
      %3081 = vmatprep.mubr.bf16.mxu0 0
      %3082 = vmatmul.mubr.bf16.gmra.mrb[0].mxu0 %v2924
      %v3083 = vpop.f32.mrb[0].mxu0
      %v3084 = vadd.f32 0.0, %v3083
      %v3085 = vpop.f32.mrb[0].mxu0
      %v3086 = vpop.f32.mrb[0].mxu0
      %v3087 = vadd.f32 0.0, %v3086
      %v3088 = vpop.f32.mrb[0].mxu0
      %3089 = vdwg.mxu0
      %v3090 = vadd.f32 %v2888, %v2964
      %v3091 = vadd.f32 %v2889, %v2967
      %v3092 = vadd.f32 %v2890, %v2972
      %v3093 = vadd.f32 %v2891, %v2975
      %v3094 = vadd.f32 %v2892, %v2980
      %v3095 = vadd.f32 %v2893, %v2983
      %v3096 = vadd.f32 %v2894, %v2988
      %v3097 = vadd.f32 %v2895, %v2991
      %v3098 = vadd.f32 %v2896, %v2996
      %v3099 = vadd.f32 %v2897, %v2999
      %v3100 = vadd.f32 %v2898, %v3004
      %v3101 = vadd.f32 %v2899, %v3007
      %v3102 = vadd.f32 %v2900, %v3012
      %v3103 = vadd.f32 %v2901, %v3015
      %v3104 = vadd.f32 %v2902, %v3020
      %v3105 = vadd.f32 %v2903, %v3023
      %v3106 = vadd.f32 %v2904, %v3028
      %v3107 = vadd.f32 %v2905, %v3031
      %v3108 = vadd.f32 %v2906, %v3036
      %v3109 = vadd.f32 %v2907, %v3039
      %v3110 = vadd.f32 %v2908, %v3044
      %v3111 = vadd.f32 %v2909, %v3047
      %v3112 = vadd.f32 %v2910, %v3052
      %v3113 = vadd.f32 %v2911, %v3055
      %v3114 = vadd.f32 %v2912, %v3060
      %v3115 = vadd.f32 %v2913, %v3063
      %v3116 = vadd.f32 %v2914, %v3068
      %v3117 = vadd.f32 %v2915, %v3071
      %v3118 = vadd.f32 %v2916, %v3076
      %v3119 = vadd.f32 %v2917, %v3079
      %v3120 = vadd.f32 %v2918, %v3084
      %v3121 = vadd.f32 %v2919, %v3087
      %v3122 = vsel %vm1229, %v3090, 0.0
      %v3123 = vsel %vm1229, %v3091, 0.0
      %v3124 = vadd.f32 %v3122, %v3123
      %v3125 = vsel %vm1229, %v3092, 0.0
      %v3126 = vadd.f32 %v3124, %v3125
      %v3127 = vsel %vm1229, %v3093, 0.0
      %v3128 = vadd.f32 %v3126, %v3127
      %v3129 = vsel %vm1229, %v3094, 0.0
      %v3130 = vadd.f32 %v3128, %v3129
      %v3131 = vsel %vm1229, %v3095, 0.0
      %v3132 = vadd.f32 %v3130, %v3131
      %v3133 = vsel %vm1229, %v3096, 0.0
      %v3134 = vadd.f32 %v3132, %v3133
      %v3135 = vsel %vm1229, %v3097, 0.0
      %v3136 = vadd.f32 %v3134, %v3135
      %v3137 = vsel %vm1229, %v3098, 0.0
      %v3138 = vadd.f32 %v3136, %v3137
      %v3139 = vsel %vm1229, %v3099, 0.0
      %v3140 = vadd.f32 %v3138, %v3139
      %v3141 = vsel %vm1229, %v3100, 0.0
      %v3142 = vadd.f32 %v3140, %v3141
      %v3143 = vsel %vm1229, %v3101, 0.0
      %v3144 = vadd.f32 %v3142, %v3143
      %v3145 = vsel %vm1229, %v3102, 0.0
      %v3146 = vadd.f32 %v3144, %v3145
      %v3147 = vsel %vm1229, %v3103, 0.0
      %v3148 = vadd.f32 %v3146, %v3147
      %v3149 = vsel %vm1229, %v3104, 0.0
      %v3150 = vadd.f32 %v3148, %v3149
      %v3151 = vsel %vm1229, %v3105, 0.0
      %v3152 = vadd.f32 %v3150, %v3151
      %v3153 = vsel %vm1229, %v3106, 0.0
      %v3154 = vadd.f32 %v3152, %v3153
      %v3155 = vsel %vm1229, %v3107, 0.0
      %v3156 = vadd.f32 %v3154, %v3155
      %v3157 = vsel %vm1229, %v3108, 0.0
      %v3158 = vadd.f32 %v3156, %v3157
      %v3159 = vsel %vm1229, %v3109, 0.0
      %v3160 = vadd.f32 %v3158, %v3159
      %v3161 = vsel %vm1229, %v3110, 0.0
      %v3162 = vadd.f32 %v3160, %v3161
      %v3163 = vsel %vm1229, %v3111, 0.0
      %v3164 = vadd.f32 %v3162, %v3163
      %v3165 = vsel %vm1229, %v3112, 0.0
      %v3166 = vadd.f32 %v3164, %v3165
      %v3167 = vsel %vm1229, %v3113, 0.0
      %v3168 = vadd.f32 %v3166, %v3167
      %v3169 = vsel %vm1229, %v3114, 0.0
      %v3170 = vadd.f32 %v3168, %v3169
      %v3171 = vsel %vm1229, %v3115, 0.0
      %v3172 = vadd.f32 %v3170, %v3171
      %v3173 = vsel %vm1229, %v3116, 0.0
      %v3174 = vadd.f32 %v3172, %v3173
      %v3175 = vsel %vm1229, %v3117, 0.0
      %v3176 = vadd.f32 %v3174, %v3175
      %v3177 = vsel %vm1229, %v3118, 0.0
      %v3178 = vadd.f32 %v3176, %v3177
      %v3179 = vsel %vm1229, %v3119, 0.0
      %v3180 = vadd.f32 %v3178, %v3179
      %v3181 = vsel %vm1229, %v3120, 0.0
      %v3182 = vadd.f32 %v3180, %v3181
      %v3183 = vsel %vm1229, %v3121, 0.0
      %v3184 = vadd.f32 %v3182, %v3183
      %v3185 = vrot.slane %v3184, 4
      %v3186 = vadd.f32 %v3184, %v3185
      %v3187 = vrot.slane %v3186, 2
      %v3188 = vadd.f32 %v3186, %v3187
      %v3189 = vrot.slane %v3188, 1
      %v3190 = vadd.f32 %v3188, %v3189
      %v3191 = vmul.f32 %v3190, 0.00390625
      %v3192 = vmul.f32 %v3090, %v3090
      %v3193 = vmul.f32 %v3091, %v3091
      %v3194 = vmul.f32 %v3092, %v3092
      %v3195 = vmul.f32 %v3093, %v3093
      %v3196 = vmul.f32 %v3094, %v3094
      %v3197 = vmul.f32 %v3095, %v3095
      %v3198 = vmul.f32 %v3096, %v3096
      %v3199 = vmul.f32 %v3097, %v3097
      %v3200 = vmul.f32 %v3098, %v3098
      %v3201 = vmul.f32 %v3099, %v3099
      %v3202 = vmul.f32 %v3100, %v3100
      %v3203 = vmul.f32 %v3101, %v3101
      %v3204 = vmul.f32 %v3102, %v3102
      %v3205 = vmul.f32 %v3103, %v3103
      %v3206 = vmul.f32 %v3104, %v3104
      %v3207 = vmul.f32 %v3105, %v3105
      %v3208 = vmul.f32 %v3106, %v3106
      %v3209 = vmul.f32 %v3107, %v3107
      %v3210 = vmul.f32 %v3108, %v3108
      %v3211 = vmul.f32 %v3109, %v3109
      %v3212 = vmul.f32 %v3110, %v3110
      %v3213 = vmul.f32 %v3111, %v3111
      %v3214 = vmul.f32 %v3112, %v3112
      %v3215 = vmul.f32 %v3113, %v3113
      %v3216 = vmul.f32 %v3114, %v3114
      %v3217 = vmul.f32 %v3115, %v3115
      %v3218 = vmul.f32 %v3116, %v3116
      %v3219 = vmul.f32 %v3117, %v3117
      %v3220 = vmul.f32 %v3118, %v3118
      %v3221 = vmul.f32 %v3119, %v3119
      %v3222 = vmul.f32 %v3120, %v3120
      %v3223 = vmul.f32 %v3121, %v3121
      %v3224 = vsel %vm1229, %v3192, 0.0
      %v3225 = vsel %vm1229, %v3193, 0.0
      %v3226 = vadd.f32 %v3224, %v3225
      %v3227 = vsel %vm1229, %v3194, 0.0
      %v3228 = vadd.f32 %v3226, %v3227
      %v3229 = vsel %vm1229, %v3195, 0.0
      %v3230 = vadd.f32 %v3228, %v3229
      %v3231 = vsel %vm1229, %v3196, 0.0
      %v3232 = vadd.f32 %v3230, %v3231
      %v3233 = vsel %vm1229, %v3197, 0.0
      %v3234 = vadd.f32 %v3232, %v3233
      %v3235 = vsel %vm1229, %v3198, 0.0
      %v3236 = vadd.f32 %v3234, %v3235
      %v3237 = vsel %vm1229, %v3199, 0.0
      %v3238 = vadd.f32 %v3236, %v3237
      %v3239 = vsel %vm1229, %v3200, 0.0
      %v3240 = vadd.f32 %v3238, %v3239
      %v3241 = vsel %vm1229, %v3201, 0.0
      %v3242 = vadd.f32 %v3240, %v3241
      %v3243 = vsel %vm1229, %v3202, 0.0
      %v3244 = vadd.f32 %v3242, %v3243
      %v3245 = vsel %vm1229, %v3203, 0.0
      %v3246 = vadd.f32 %v3244, %v3245
      %v3247 = vsel %vm1229, %v3204, 0.0
      %v3248 = vadd.f32 %v3246, %v3247
      %v3249 = vsel %vm1229, %v3205, 0.0
      %v3250 = vadd.f32 %v3248, %v3249
      %v3251 = vsel %vm1229, %v3206, 0.0
      %v3252 = vadd.f32 %v3250, %v3251
      %v3253 = vsel %vm1229, %v3207, 0.0
      %v3254 = vadd.f32 %v3252, %v3253
      %v3255 = vsel %vm1229, %v3208, 0.0
      %v3256 = vadd.f32 %v3254, %v3255
      %v3257 = vsel %vm1229, %v3209, 0.0
      %v3258 = vadd.f32 %v3256, %v3257
      %v3259 = vsel %vm1229, %v3210, 0.0
      %v3260 = vadd.f32 %v3258, %v3259
      %v3261 = vsel %vm1229, %v3211, 0.0
      %v3262 = vadd.f32 %v3260, %v3261
      %v3263 = vsel %vm1229, %v3212, 0.0
      %v3264 = vadd.f32 %v3262, %v3263
      %v3265 = vsel %vm1229, %v3213, 0.0
      %v3266 = vadd.f32 %v3264, %v3265
      %v3267 = vsel %vm1229, %v3214, 0.0
      %v3268 = vadd.f32 %v3266, %v3267
      %v3269 = vsel %vm1229, %v3215, 0.0
      %v3270 = vadd.f32 %v3268, %v3269
      %v3271 = vsel %vm1229, %v3216, 0.0
      %v3272 = vadd.f32 %v3270, %v3271
      %v3273 = vsel %vm1229, %v3217, 0.0
      %v3274 = vadd.f32 %v3272, %v3273
      %v3275 = vsel %vm1229, %v3218, 0.0
      %v3276 = vadd.f32 %v3274, %v3275
      %v3277 = vsel %vm1229, %v3219, 0.0
      %v3278 = vadd.f32 %v3276, %v3277
      %v3279 = vsel %vm1229, %v3220, 0.0
      %v3280 = vadd.f32 %v3278, %v3279
      %v3281 = vsel %vm1229, %v3221, 0.0
      %v3282 = vadd.f32 %v3280, %v3281
      %v3283 = vsel %vm1229, %v3222, 0.0
      %v3284 = vadd.f32 %v3282, %v3283
      %v3285 = vsel %vm1229, %v3223, 0.0
      %v3286 = vadd.f32 %v3284, %v3285
      %v3287 = vrot.slane %v3286, 4
      %v3288 = vadd.f32 %v3286, %v3287
      %v3289 = vrot.slane %v3288, 2
      %v3290 = vadd.f32 %v3288, %v3289
      %v3291 = vrot.slane %v3290, 1
      %v3292 = vadd.f32 %v3290, %v3291
      %v3293 = vmul.f32 %v3292, 0.00390625
      %v3294 = vmul.f32 %v3191, %v3191
      %v3295 = vsub.f32 %v3293, %v3294
      %v3296 = vsub.f32 %v3090, %v3191
      %v3297 = vsub.f32 %v3091, %v3191
      %v3298 = vsub.f32 %v3092, %v3191
      %v3299 = vsub.f32 %v3093, %v3191
      %v3300 = vsub.f32 %v3094, %v3191
      %v3301 = vsub.f32 %v3095, %v3191
      %v3302 = vsub.f32 %v3096, %v3191
      %v3303 = vsub.f32 %v3097, %v3191
      %v3304 = vsub.f32 %v3098, %v3191
      %v3305 = vsub.f32 %v3099, %v3191
      %v3306 = vsub.f32 %v3100, %v3191
      %v3307 = vsub.f32 %v3101, %v3191
      %v3308 = vsub.f32 %v3102, %v3191
      %v3309 = vsub.f32 %v3103, %v3191
      %v3310 = vsub.f32 %v3104, %v3191
      %v3311 = vsub.f32 %v3105, %v3191
      %v3312 = vsub.f32 %v3106, %v3191
      %v3313 = vsub.f32 %v3107, %v3191
      %v3314 = vsub.f32 %v3108, %v3191
      %v3315 = vsub.f32 %v3109, %v3191
      %v3316 = vsub.f32 %v3110, %v3191
      %v3317 = vsub.f32 %v3111, %v3191
      %v3318 = vsub.f32 %v3112, %v3191
      %v3319 = vsub.f32 %v3113, %v3191
      %v3320 = vsub.f32 %v3114, %v3191
      %v3321 = vsub.f32 %v3115, %v3191
      %v3322 = vsub.f32 %v3116, %v3191
      %v3323 = vsub.f32 %v3117, %v3191
      %v3324 = vsub.f32 %v3118, %v3191
      %v3325 = vsub.f32 %v3119, %v3191
      %v3326 = vsub.f32 %v3120, %v3191
      %v3327 = vsub.f32 %v3121, %v3191
      %v3328 = vadd.f32 %v3295, 1e-05
      %v3329 = vrsqrt.pop %v3328
      %v3330 = vmul.f32 %v3296, %v3329
      %v3331 = vmul.f32 %v3297, %v3329
      %v3332 = vmul.f32 %v3298, %v3329
      %v3333 = vmul.f32 %v3299, %v3329
      %v3334 = vmul.f32 %v3300, %v3329
      %v3335 = vmul.f32 %v3301, %v3329
      %v3336 = vmul.f32 %v3302, %v3329
      %v3337 = vmul.f32 %v3303, %v3329
      %v3338 = vmul.f32 %v3304, %v3329
      %v3339 = vmul.f32 %v3305, %v3329
      %v3340 = vmul.f32 %v3306, %v3329
      %v3341 = vmul.f32 %v3307, %v3329
      %v3342 = vmul.f32 %v3308, %v3329
      %v3343 = vmul.f32 %v3309, %v3329
      %v3344 = vmul.f32 %v3310, %v3329
      %v3345 = vmul.f32 %v3311, %v3329
      %v3346 = vmul.f32 %v3312, %v3329
      %v3347 = vmul.f32 %v3313, %v3329
      %v3348 = vmul.f32 %v3314, %v3329
      %v3349 = vmul.f32 %v3315, %v3329
      %v3350 = vmul.f32 %v3316, %v3329
      %v3351 = vmul.f32 %v3317, %v3329
      %v3352 = vmul.f32 %v3318, %v3329
      %v3353 = vmul.f32 %v3319, %v3329
      %v3354 = vmul.f32 %v3320, %v3329
      %v3355 = vmul.f32 %v3321, %v3329
      %v3356 = vmul.f32 %v3322, %v3329
      %v3357 = vmul.f32 %v3323, %v3329
      %v3358 = vmul.f32 %v3324, %v3329
      %v3359 = vmul.f32 %v3325, %v3329
      %v3360 = vmul.f32 %v3326, %v3329
      %v3361 = vmul.f32 %v3327, %v3329
      %v3362 = vmax.f32 %v3330, 0.0
      %v3363 = vmax.f32 %v3331, 0.0
      %v3364 = vmax.f32 %v3332, 0.0
      %v3365 = vmax.f32 %v3333, 0.0
      %v3366 = vmax.f32 %v3334, 0.0
      %v3367 = vmax.f32 %v3335, 0.0
      %v3368 = vmax.f32 %v3336, 0.0
      %v3369 = vmax.f32 %v3337, 0.0
      %v3370 = vmax.f32 %v3338, 0.0
      %v3371 = vmax.f32 %v3339, 0.0
      %v3372 = vmax.f32 %v3340, 0.0
      %v3373 = vmax.f32 %v3341, 0.0
      %v3374 = vmax.f32 %v3342, 0.0
      %v3375 = vmax.f32 %v3343, 0.0
      %v3376 = vmax.f32 %v3344, 0.0
      %v3377 = vmax.f32 %v3345, 0.0
      %v3378 = vmax.f32 %v3346, 0.0
      %v3379 = vmax.f32 %v3347, 0.0
      %v3380 = vmax.f32 %v3348, 0.0
      %v3381 = vmax.f32 %v3349, 0.0
      %v3382 = vmax.f32 %v3350, 0.0
      %v3383 = vmax.f32 %v3351, 0.0
      %v3384 = vmax.f32 %v3352, 0.0
      %v3385 = vmax.f32 %v3353, 0.0
      %v3386 = vmax.f32 %v3354, 0.0
      %v3387 = vmax.f32 %v3355, 0.0
      %v3388 = vmax.f32 %v3356, 0.0
      %v3389 = vmax.f32 %v3357, 0.0
      %v3390 = vmax.f32 %v3358, 0.0
      %v3391 = vmax.f32 %v3359, 0.0
      %v3392 = vmax.f32 %v3360, 0.0
      %v3393 = vmax.f32 %v3361, 0.0
      %v3426 = vrot.slane %v3364, 7
      %v3427 = vrot.slane %v3365, 7
      %v3428 = vsel %vm777, %v3426, %v3427
      %v3429 = vrot.slane %v3362, 7
      %v3430 = vsel %vm777, %v3427, %v3429
      %v3431 = vrot.slane %v3363, 7
      %v3432 = vsel %vm777, %v3429, %v3431
      %v3433 = vsel %vm777, %v3431, %v3426
      %v3434 = vrot.slane %v3366, 7
      %v3435 = vsel %vm777, %v3427, %v3434
      %v3436 = vrot.slane %v3367, 7
      %v3437 = vsel %vm777, %v3434, %v3436
      %v3438 = vrot.slane %v3368, 7
      %v3439 = vsel %vm777, %v3436, %v3438
      %v3440 = vrot.slane %v3369, 7
      %v3441 = vsel %vm777, %v3438, %v3440
      %v3442 = vrot.slane %v3370, 7
      %v3443 = vsel %vm777, %v3440, %v3442
      %v3444 = vrot.slane %v3371, 7
      %v3445 = vsel %vm777, %v3442, %v3444
      %v3446 = vrot.slane %v3372, 7
      %v3447 = vsel %vm777, %v3444, %v3446
      %v3448 = vrot.slane %v3373, 7
      %v3449 = vsel %vm777, %v3446, %v3448
      %v3450 = vrot.slane %v3374, 7
      %v3451 = vsel %vm777, %v3448, %v3450
      %v3452 = vrot.slane %v3375, 7
      %v3453 = vsel %vm777, %v3450, %v3452
      %v3454 = vrot.slane %v3376, 7
      %v3455 = vsel %vm777, %v3452, %v3454
      %v3456 = vrot.slane %v3377, 7
      %v3457 = vsel %vm777, %v3454, %v3456
      %v3458 = vrot.slane %v3378, 7
      %v3459 = vsel %vm777, %v3456, %v3458
      %v3460 = vrot.slane %v3379, 7
      %v3461 = vsel %vm777, %v3458, %v3460
      %v3462 = vrot.slane %v3380, 7
      %v3463 = vsel %vm777, %v3460, %v3462
      %v3464 = vrot.slane %v3381, 7
      %v3465 = vsel %vm777, %v3462, %v3464
      %v3466 = vrot.slane %v3382, 7
      %v3467 = vsel %vm777, %v3464, %v3466
      %v3468 = vrot.slane %v3383, 7
      %v3469 = vsel %vm777, %v3466, %v3468
      %v3470 = vrot.slane %v3384, 7
      %v3471 = vsel %vm777, %v3468, %v3470
      %v3472 = vrot.slane %v3385, 7
      %v3473 = vsel %vm777, %v3470, %v3472
      %v3474 = vrot.slane %v3386, 7
      %v3475 = vsel %vm777, %v3472, %v3474
      %v3476 = vrot.slane %v3387, 7
      %v3477 = vsel %vm777, %v3474, %v3476
      %v3478 = vrot.slane %v3388, 7
      %v3479 = vsel %vm777, %v3476, %v3478
      %v3480 = vrot.slane %v3389, 7
      %v3481 = vsel %vm777, %v3478, %v3480
      %v3482 = vrot.slane %v3390, 7
      %v3483 = vsel %vm777, %v3480, %v3482
      %v3484 = vrot.slane %v3391, 7
      %v3485 = vsel %vm777, %v3482, %v3484
      %v3486 = vrot.slane %v3392, 7
      %v3487 = vsel %vm777, %v3484, %v3486
      %v3488 = vrot.slane %v3393, 7
      %v3489 = vsel %vm777, %v3486, %v3488
      %v3490 = vsel %vm777, %v3488, %v3482
      %v3525 = vsel %vm777, %v3364, %v3426
      %v3526 = vrot.slane %v3364, 1
      %v3527 = vrot.slane %v3365, 1
      %v3528 = vsel %vm878, %v3526, %v3527
      %v3529 = vrot.slane %v3362, 1
      %v3530 = vsel %vm878, %v3527, %v3529
      %v3531 = vrot.slane %v3363, 1
      %v3532 = vsel %vm878, %v3529, %v3531
      %v3533 = vsel %vm878, %v3531, %v3526
      %v3534 = vrot.slane %v3366, 1
      %v3535 = vsel %vm878, %v3527, %v3534
      %v3536 = vrot.slane %v3367, 1
      %v3537 = vsel %vm878, %v3534, %v3536
      %v3538 = vrot.slane %v3368, 1
      %v3539 = vsel %vm878, %v3536, %v3538
      %v3540 = vrot.slane %v3369, 1
      %v3541 = vsel %vm878, %v3538, %v3540
      %v3542 = vrot.slane %v3370, 1
      %v3543 = vsel %vm878, %v3540, %v3542
      %v3544 = vrot.slane %v3371, 1
      %v3545 = vsel %vm878, %v3542, %v3544
      %v3546 = vrot.slane %v3372, 1
      %v3547 = vsel %vm878, %v3544, %v3546
      %v3548 = vrot.slane %v3373, 1
      %v3549 = vsel %vm878, %v3546, %v3548
      %v3550 = vrot.slane %v3374, 1
      %v3551 = vsel %vm878, %v3548, %v3550
      %v3552 = vrot.slane %v3375, 1
      %v3553 = vsel %vm878, %v3550, %v3552
      %v3554 = vrot.slane %v3376, 1
      %v3555 = vsel %vm878, %v3552, %v3554
      %v3556 = vrot.slane %v3377, 1
      %v3557 = vsel %vm878, %v3554, %v3556
      %v3558 = vrot.slane %v3378, 1
      %v3559 = vsel %vm878, %v3556, %v3558
      %v3560 = vrot.slane %v3379, 1
      %v3561 = vsel %vm878, %v3558, %v3560
      %v3562 = vrot.slane %v3380, 1
      %v3563 = vsel %vm878, %v3560, %v3562
      %v3564 = vrot.slane %v3381, 1
      %v3565 = vsel %vm878, %v3562, %v3564
      %v3566 = vrot.slane %v3382, 1
      %v3567 = vsel %vm878, %v3564, %v3566
      %v3568 = vrot.slane %v3383, 1
      %v3569 = vsel %vm878, %v3566, %v3568
      %v3570 = vrot.slane %v3384, 1
      %v3571 = vsel %vm878, %v3568, %v3570
      %v3572 = vrot.slane %v3385, 1
      %v3573 = vsel %vm878, %v3570, %v3572
      %v3574 = vrot.slane %v3386, 1
      %v3575 = vsel %vm878, %v3572, %v3574
      %v3576 = vrot.slane %v3387, 1
      %v3577 = vsel %vm878, %v3574, %v3576
      %v3578 = vrot.slane %v3388, 1
      %v3579 = vsel %vm878, %v3576, %v3578
      %v3580 = vrot.slane %v3389, 1
      %v3581 = vsel %vm878, %v3578, %v3580
      %v3582 = vrot.slane %v3390, 1
      %v3583 = vsel %vm878, %v3580, %v3582
      %v3584 = vrot.slane %v3391, 1
      %v3585 = vsel %vm878, %v3582, %v3584
      %v3586 = vrot.slane %v3392, 1
      %v3587 = vsel %vm878, %v3584, %v3586
      %v3588 = vrot.slane %v3393, 1
      %v3589 = vsel %vm878, %v3586, %v3588
      %v3590 = vsel %vm878, %v3588, %v3582
      %v3625 = vsel %vm878, %v3584, %v3391
      %v3626 = vsel %vm1015, %v3528, %v3525
      %v3627 = vsel %vm1016, %v3530, %v3428
      %v3628 = vsel %vm1017, %v3532, %v3430
      %v3629 = vsel %vm1018, %v3533, %v3432
      %v3630 = vsel %vm1019, %v3528, %v3433
      %v3631 = vsel %vm1020, %v3535, %v3428
      %v3632 = vsel %vm1021, %v3537, %v3435
      %v3633 = vsel %vm1022, %v3539, %v3437
      %v3634 = vsel %vm1023, %v3541, %v3439
      %v3635 = vsel %vm1024, %v3543, %v3441
      %v3636 = vsel %vm1025, %v3545, %v3443
      %v3637 = vsel %vm1026, %v3547, %v3445
      %v3638 = vsel %vm1027, %v3549, %v3447
      %v3639 = vsel %vm1028, %v3551, %v3449
      %v3640 = vsel %vm1029, %v3553, %v3451
      %v3641 = vsel %vm1030, %v3555, %v3453
      %v3642 = vsel %vm1031, %v3557, %v3455
      %v3643 = vsel %vm1032, %v3559, %v3457
      %v3644 = vsel %vm1033, %v3561, %v3459
      %v3645 = vsel %vm1034, %v3563, %v3461
      %v3646 = vsel %vm1035, %v3565, %v3463
      %v3647 = vsel %vm1036, %v3567, %v3465
      %v3648 = vsel %vm1037, %v3569, %v3467
      %v3649 = vsel %vm1038, %v3571, %v3469
      %v3650 = vsel %vm1039, %v3573, %v3471
      %v3651 = vsel %vm1040, %v3575, %v3473
      %v3652 = vsel %vm1041, %v3577, %v3475
      %v3653 = vsel %vm1042, %v3579, %v3477
      %v3654 = vsel %vm1043, %v3581, %v3479
      %v3655 = vsel %vm1044, %v3583, %v3481
      %v3656 = vsel %vm1045, %v3585, %v3483
      %v3657 = vsel %vm1046, %v3587, %v3485
      %v3658 = vsel %vm1047, %v3589, %v3487
      %v3659 = vsel %vm1048, %v3590, %v3489
      %v3660 = vsel %vm1049, %v3585, %v3490
      %v3661 = vsel %vm1050, %v3625, %v3485
      %v3662 = vsel %vm1123, %v3525, %v3528
      %v3663 = vsel %vm1124, %v3428, %v3530
      %v3664 = vsel %vm1125, %v3430, %v3532
      %v3665 = vsel %vm1126, %v3432, %v3533
      %v3666 = vsel %vm1127, %v3433, %v3528
      %v3667 = vsel %vm1128, %v3428, %v3535
      %v3668 = vsel %vm1129, %v3435, %v3537
      %v3669 = vsel %vm1130, %v3437, %v3539
      %v3670 = vsel %vm1131, %v3439, %v3541
      %v3671 = vsel %vm1132, %v3441, %v3543
      %v3672 = vsel %vm1133, %v3443, %v3545
      %v3673 = vsel %vm1134, %v3445, %v3547
      %v3674 = vsel %vm1135, %v3447, %v3549
      %v3675 = vsel %vm1136, %v3449, %v3551
      %v3676 = vsel %vm1137, %v3451, %v3553
      %v3677 = vsel %vm1138, %v3453, %v3555
      %v3678 = vsel %vm1139, %v3455, %v3557
      %v3679 = vsel %vm1140, %v3457, %v3559
      %v3680 = vsel %vm1141, %v3459, %v3561
      %v3681 = vsel %vm1142, %v3461, %v3563
      %v3682 = vsel %vm1143, %v3463, %v3565
      %v3683 = vsel %vm1144, %v3465, %v3567
      %v3684 = vsel %vm1145, %v3467, %v3569
      %v3685 = vsel %vm1146, %v3469, %v3571
      %v3686 = vsel %vm1147, %v3471, %v3573
      %v3687 = vsel %vm1148, %v3473, %v3575
      %v3688 = vsel %vm1149, %v3475, %v3577
      %v3689 = vsel %vm1150, %v3477, %v3579
      %v3690 = vsel %vm1151, %v3479, %v3581
      %v3691 = vsel %vm1152, %v3481, %v3583
      %v3692 = vsel %vm1153, %v3483, %v3585
      %v3693 = vsel %vm1154, %v3485, %v3587
      %v3694 = vsel %vm1155, %v3487, %v3589
      %v3695 = vsel %vm1156, %v3489, %v3590
      %v3696 = vsel %vm1157, %v3490, %v3585
      %v3697 = vsel %vm1158, %v3485, %v3625
      %v3698 = vpack.c.bf16 %v3627, %v3626
      %v3699 = vpack.c.bf16 %v3629, %v3628
      %v3700 = vpack.c.bf16 %v3631, %v3630
      %v3701 = vpack.c.bf16 %v3633, %v3632
      %v3702 = vpack.c.bf16 %v3635, %v3634
      %v3703 = vpack.c.bf16 %v3637, %v3636
      %v3704 = vpack.c.bf16 %v3639, %v3638
      %v3705 = vpack.c.bf16 %v3641, %v3640
      %v3706 = vpack.c.bf16 %v3643, %v3642
      %v3707 = vpack.c.bf16 %v3645, %v3644
      %v3708 = vpack.c.bf16 %v3647, %v3646
      %v3709 = vpack.c.bf16 %v3649, %v3648
      %v3710 = vpack.c.bf16 %v3651, %v3650
      %v3711 = vpack.c.bf16 %v3653, %v3652
      %v3712 = vpack.c.bf16 %v3655, %v3654
      %v3713 = vpack.c.bf16 %v3657, %v3656
      %v3714 = vld [vmem:[%s2] sm:$0x3]
      %v3715 = vpack.c.bf16 %v3365, %v3364
      %v3716 = vpack.c.bf16 %v3363, %v3362
      %v3717 = vpack.c.bf16 %v3367, %v3366
      %v3718 = vpack.c.bf16 %v3369, %v3368
      %v3719 = vpack.c.bf16 %v3371, %v3370
      %v3720 = vpack.c.bf16 %v3373, %v3372
      %v3721 = vpack.c.bf16 %v3375, %v3374
      %v3722 = vpack.c.bf16 %v3377, %v3376
      %v3723 = vpack.c.bf16 %v3379, %v3378
      %v3724 = vpack.c.bf16 %v3381, %v3380
      %v3725 = vpack.c.bf16 %v3383, %v3382
      %v3726 = vpack.c.bf16 %v3385, %v3384
      %v3727 = vpack.c.bf16 %v3387, %v3386
      %v3728 = vpack.c.bf16 %v3389, %v3388
      %v3729 = vpack.c.bf16 %v3391, %v3390
      %s3730 = scalar_lea.vmem %s2, 2
      %v3731 = vld [vmem:[%s3730] sm:$0x3]
      %v3733 = vsel %vm1229, %v3715, 0
      %v3736 = vsel %vm1229, %v3716, 0
      %v3739 = vsel %vm1229, %v3717, 0
      %v3742 = vsel %vm1229, %v3718, 0
      %v3745 = vsel %vm1229, %v3719, 0
      %v3748 = vsel %vm1229, %v3720, 0
      %v3751 = vsel %vm1229, %v3721, 0
      %v3754 = vsel %vm1229, %v3722, 0
      %v3757 = vsel %vm1229, %v3723, 0
      %v3760 = vsel %vm1229, %v3724, 0
      %v3763 = vsel %vm1229, %v3725, 0
      %v3766 = vsel %vm1229, %v3726, 0
      %v3769 = vsel %vm1229, %v3727, 0
      %v3772 = vsel %vm1229, %v3728, 0
      %v3775 = vsel %vm1229, %v3729, 0
      %v3778 = vsel %vm1275, %v3731, 0
      %3780 = vmatprep.subr.bf16.mxu0 0
      %3781 = vmatpush1.bf16.msra.mxu0 %v3778
      %3782 = vmatprep.subr.bf16.mxu0 0
      %3783 = vmatpush1.bf16.msra.mxu0 0
      %3784 = vmatprep.subr.bf16.mxu0 0
      %3785 = vmatpush1.bf16.msra.mxu0 0
      %3786 = vmatprep.subr.bf16.mxu0 0
      %3787 = vmatpush1.bf16.msra.mxu0 0
      %3788 = vmatprep.subr.bf16.mxu0 0
      %3789 = vmatpush1.bf16.msra.mxu0 0
      %3790 = vmatprep.subr.bf16.mxu0 0
      %3791 = vmatpush1.bf16.msra.mxu0 0
      %3792 = vmatprep.subr.bf16.mxu0 0
      %3793 = vmatpush1.bf16.msra.mxu0 0
      %3794 = vmatprep.subr.bf16.mxu0 0
      %3795 = vmatpush1.bf16.msra.mxu0 0
      %3796 = vmatprep.subr.bf16.mxu0 0
      %3797 = vmatpush1.bf16.msra.mxu0 0
      %3798 = vmatprep.subr.bf16.mxu0 0
      %3799 = vmatpush1.bf16.msra.mxu0 0
      %3800 = vmatprep.subr.bf16.mxu0 0
      %3801 = vmatpush1.bf16.msra.mxu0 0
      %3802 = vmatprep.subr.bf16.mxu0 0
      %3803 = vmatpush1.bf16.msra.mxu0 0
      %3804 = vmatprep.subr.bf16.mxu0 0
      %3805 = vmatpush1.bf16.msra.mxu0 0
      %3806 = vmatprep.subr.bf16.mxu0 0
      %3807 = vmatpush1.bf16.msra.mxu0 0
      %3808 = vmatprep.subr.bf16.mxu0 0
      %3809 = vmatpush1.bf16.msra.mxu0 0
      %3810 = vmatprep.subr.bf16.mxu0 0
      %3811 = vmatpush1.bf16.msra.mxu0 0
      %3812 = vmatprep.mubr.bf16.mxu0 0
      %3813 = vmatmul.mubr.bf16.gmra.mrb[0].mxu0 %v3733
      %v3814 = vpop.f32.mrb[0].mxu0
      %v3815 = vadd.f32 0.0, %v3814
      %v3816 = vpop.f32.mrb[0].mxu0
      %v3817 = vpop.f32.mrb[0].mxu0
      %v3818 = vadd.f32 0.0, %v3817
      %v3819 = vpop.f32.mrb[0].mxu0
      %3820 = vmatprep.mubr.bf16.mxu0 0
      %3821 = vmatmul.mubr.bf16.gmra.mrb[0].mxu0 %v3736
      %v3822 = vpop.f32.mrb[0].mxu0
      %v3823 = vadd.f32 0.0, %v3822
      %v3824 = vpop.f32.mrb[0].mxu0
      %v3825 = vpop.f32.mrb[0].mxu0
      %v3826 = vadd.f32 0.0, %v3825
      %v3827 = vpop.f32.mrb[0].mxu0
      %3828 = vmatprep.mubr.bf16.mxu0 0
      %3829 = vmatmul.mubr.bf16.gmra.mrb[0].mxu0 %v3733
      %v3830 = vpop.f32.mrb[0].mxu0
      %v3831 = vadd.f32 0.0, %v3830
      %v3832 = vpop.f32.mrb[0].mxu0
      %v3833 = vpop.f32.mrb[0].mxu0
      %v3834 = vadd.f32 0.0, %v3833
      %v3835 = vpop.f32.mrb[0].mxu0
      %3836 = vmatprep.mubr.bf16.mxu0 0
      %3837 = vmatmul.mubr.bf16.gmra.mrb[0].mxu0 %v3739
      %v3838 = vpop.f32.mrb[0].mxu0
      %v3839 = vadd.f32 0.0, %v3838
      %v3840 = vpop.f32.mrb[0].mxu0
      %v3841 = vpop.f32.mrb[0].mxu0
      %v3842 = vadd.f32 0.0, %v3841
      %v3843 = vpop.f32.mrb[0].mxu0
      %3844 = vmatprep.mubr.bf16.mxu0 0
      %3845 = vmatmul.mubr.bf16.gmra.mrb[0].mxu0 %v3742
      %v3846 = vpop.f32.mrb[0].mxu0
      %v3847 = vadd.f32 0.0, %v3846
      %v3848 = vpop.f32.mrb[0].mxu0
      %v3849 = vpop.f32.mrb[0].mxu0
      %v3850 = vadd.f32 0.0, %v3849
      %v3851 = vpop.f32.mrb[0].mxu0
      %3852 = vmatprep.mubr.bf16.mxu0 0
      %3853 = vmatmul.mubr.bf16.gmra.mrb[0].mxu0 %v3745
      %v3854 = vpop.f32.mrb[0].mxu0
      %v3855 = vadd.f32 0.0, %v3854
      %v3856 = vpop.f32.mrb[0].mxu0
      %v3857 = vpop.f32.mrb[0].mxu0
      %v3858 = vadd.f32 0.0, %v3857
      %v3859 = vpop.f32.mrb[0].mxu0
      %3860 = vmatprep.mubr.bf16.mxu0 0
      %3861 = vmatmul.mubr.bf16.gmra.mrb[0].mxu0 %v3748
      %v3862 = vpop.f32.mrb[0].mxu0
      %v3863 = vadd.f32 0.0, %v3862
      %v3864 = vpop.f32.mrb[0].mxu0
      %v3865 = vpop.f32.mrb[0].mxu0
      %v3866 = vadd.f32 0.0, %v3865
      %v3867 = vpop.f32.mrb[0].mxu0
      %3868 = vmatprep.mubr.bf16.mxu0 0
      %3869 = vmatmul.mubr.bf16.gmra.mrb[0].mxu0 %v3751
      %v3870 = vpop.f32.mrb[0].mxu0
      %v3871 = vadd.f32 0.0, %v3870
      %v3872 = vpop.f32.mrb[0].mxu0
      %v3873 = vpop.f32.mrb[0].mxu0
      %v3874 = vadd.f32 0.0, %v3873
      %v3875 = vpop.f32.mrb[0].mxu0
      %3876 = vmatprep.mubr.bf16.mxu0 0
      %3877 = vmatmul.mubr.bf16.gmra.mrb[0].mxu0 %v3754
      %v3878 = vpop.f32.mrb[0].mxu0
      %v3879 = vadd.f32 0.0, %v3878
      %v3880 = vpop.f32.mrb[0].mxu0
      %v3881 = vpop.f32.mrb[0].mxu0
      %v3882 = vadd.f32 0.0, %v3881
      %v3883 = vpop.f32.mrb[0].mxu0
      %3884 = vmatprep.mubr.bf16.mxu0 0
      %3885 = vmatmul.mubr.bf16.gmra.mrb[0].mxu0 %v3757
      %v3886 = vpop.f32.mrb[0].mxu0
      %v3887 = vadd.f32 0.0, %v3886
      %v3888 = vpop.f32.mrb[0].mxu0
      %v3889 = vpop.f32.mrb[0].mxu0
      %v3890 = vadd.f32 0.0, %v3889
      %v3891 = vpop.f32.mrb[0].mxu0
      %3892 = vmatprep.mubr.bf16.mxu0 0
      %3893 = vmatmul.mubr.bf16.gmra.mrb[0].mxu0 %v3760
      %v3894 = vpop.f32.mrb[0].mxu0
      %v3895 = vadd.f32 0.0, %v3894
      %v3896 = vpop.f32.mrb[0].mxu0
      %v3897 = vpop.f32.mrb[0].mxu0
      %v3898 = vadd.f32 0.0, %v3897
      %v3899 = vpop.f32.mrb[0].mxu0
      %3900 = vmatprep.mubr.bf16.mxu0 0
      %3901 = vmatmul.mubr.bf16.gmra.mrb[0].mxu0 %v3763
      %v3902 = vpop.f32.mrb[0].mxu0
      %v3903 = vadd.f32 0.0, %v3902
      %v3904 = vpop.f32.mrb[0].mxu0
      %v3905 = vpop.f32.mrb[0].mxu0
      %v3906 = vadd.f32 0.0, %v3905
      %v3907 = vpop.f32.mrb[0].mxu0
      %3908 = vmatprep.mubr.bf16.mxu0 0
      %3909 = vmatmul.mubr.bf16.gmra.mrb[0].mxu0 %v3766
      %v3910 = vpop.f32.mrb[0].mxu0
      %v3911 = vadd.f32 0.0, %v3910
      %v3912 = vpop.f32.mrb[0].mxu0
      %v3913 = vpop.f32.mrb[0].mxu0
      %v3914 = vadd.f32 0.0, %v3913
      %v3915 = vpop.f32.mrb[0].mxu0
      %3916 = vmatprep.mubr.bf16.mxu0 0
      %3917 = vmatmul.mubr.bf16.gmra.mrb[0].mxu0 %v3769
      %v3918 = vpop.f32.mrb[0].mxu0
      %v3919 = vadd.f32 0.0, %v3918
      %v3920 = vpop.f32.mrb[0].mxu0
      %v3921 = vpop.f32.mrb[0].mxu0
      %v3922 = vadd.f32 0.0, %v3921
      %v3923 = vpop.f32.mrb[0].mxu0
      %3924 = vmatprep.mubr.bf16.mxu0 0
      %3925 = vmatmul.mubr.bf16.gmra.mrb[0].mxu0 %v3772
      %v3926 = vpop.f32.mrb[0].mxu0
      %v3927 = vadd.f32 0.0, %v3926
      %v3928 = vpop.f32.mrb[0].mxu0
      %v3929 = vpop.f32.mrb[0].mxu0
      %v3930 = vadd.f32 0.0, %v3929
      %v3931 = vpop.f32.mrb[0].mxu0
      %3932 = vmatprep.mubr.bf16.mxu0 0
      %3933 = vmatmul.mubr.bf16.gmra.mrb[0].mxu0 %v3775
      %v3934 = vpop.f32.mrb[0].mxu0
      %v3935 = vadd.f32 0.0, %v3934
      %v3936 = vpop.f32.mrb[0].mxu0
      %v3937 = vpop.f32.mrb[0].mxu0
      %v3938 = vadd.f32 0.0, %v3937
      %v3939 = vpop.f32.mrb[0].mxu0
      %3940 = vdwg.mxu0
      %v3942 = vsel %vm1229, %v3698, 0
      %v3945 = vsel %vm1229, %v3699, 0
      %v3948 = vsel %vm1229, %v3700, 0
      %v3951 = vsel %vm1229, %v3701, 0
      %v3954 = vsel %vm1229, %v3702, 0
      %v3957 = vsel %vm1229, %v3703, 0
      %v3960 = vsel %vm1229, %v3704, 0
      %v3963 = vsel %vm1229, %v3705, 0
      %v3966 = vsel %vm1229, %v3706, 0
      %v3969 = vsel %vm1229, %v3707, 0
      %v3972 = vsel %vm1229, %v3708, 0
      %v3975 = vsel %vm1229, %v3709, 0
      %v3978 = vsel %vm1229, %v3710, 0
      %v3981 = vsel %vm1229, %v3711, 0
      %v3984 = vsel %vm1229, %v3712, 0
      %v3987 = vsel %vm1229, %v3713, 0
      %v3990 = vsel %vm1275, %v3714, 0
      %3992 = vmatprep.subr.bf16.mxu0 0
      %3993 = vmatpush1.bf16.msra.mxu0 %v3990
      %3994 = vmatprep.subr.bf16.mxu0 0
      %3995 = vmatpush1.bf16.msra.mxu0 0
      %3996 = vmatprep.subr.bf16.mxu0 0
      %3997 = vmatpush1.bf16.msra.mxu0 0
      %3998 = vmatprep.subr.bf16.mxu0 0
      %3999 = vmatpush1.bf16.msra.mxu0 0
      %4000 = vmatprep.subr.bf16.mxu0 0
      %4001 = vmatpush1.bf16.msra.mxu0 0
      %4002 = vmatprep.subr.bf16.mxu0 0
      %4003 = vmatpush1.bf16.msra.mxu0 0
      %4004 = vmatprep.subr.bf16.mxu0 0
      %4005 = vmatpush1.bf16.msra.mxu0 0
      %4006 = vmatprep.subr.bf16.mxu0 0
      %4007 = vmatpush1.bf16.msra.mxu0 0
      %4008 = vmatprep.subr.bf16.mxu0 0
      %4009 = vmatpush1.bf16.msra.mxu0 0
      %4010 = vmatprep.subr.bf16.mxu0 0
      %4011 = vmatpush1.bf16.msra.mxu0 0
      %4012 = vmatprep.subr.bf16.mxu0 0
      %4013 = vmatpush1.bf16.msra.mxu0 0
      %4014 = vmatprep.subr.bf16.mxu0 0
      %4015 = vmatpush1.bf16.msra.mxu0 0
      %4016 = vmatprep.subr.bf16.mxu0 0
      %4017 = vmatpush1.bf16.msra.mxu0 0
      %4018 = vmatprep.subr.bf16.mxu0 0
      %4019 = vmatpush1.bf16.msra.mxu0 0
      %4020 = vmatprep.subr.bf16.mxu0 0
      %4021 = vmatpush1.bf16.msra.mxu0 0
      %4022 = vmatprep.subr.bf16.mxu0 0
      %4023 = vmatpush1.bf16.msra.mxu0 0
      %4024 = vmatprep.mubr.bf16.mxu0 0
      %4025 = vmatmul.mubr.bf16.gmra.mrb[0].mxu0 %v3942
      %v4026 = vpop.f32.mrb[0].mxu0
      %v4027 = vadd.f32 %v3815, %v4026
      %v4028 = vpop.f32.mrb[0].mxu0
      %v4029 = vpop.f32.mrb[0].mxu0
      %v4030 = vadd.f32 %v3818, %v4029
      %v4031 = vpop.f32.mrb[0].mxu0
      %4032 = vmatprep.mubr.bf16.mxu0 0
      %4033 = vmatmul.mubr.bf16.gmra.mrb[0].mxu0 %v3945
      %v4034 = vpop.f32.mrb[0].mxu0
      %v4035 = vadd.f32 %v3823, %v4034
      %v4036 = vpop.f32.mrb[0].mxu0
      %v4037 = vpop.f32.mrb[0].mxu0
      %v4038 = vadd.f32 %v3826, %v4037
      %v4039 = vpop.f32.mrb[0].mxu0
      %4040 = vmatprep.mubr.bf16.mxu0 0
      %4041 = vmatmul.mubr.bf16.gmra.mrb[0].mxu0 %v3948
      %v4042 = vpop.f32.mrb[0].mxu0
      %v4043 = vadd.f32 %v3831, %v4042
      %v4044 = vpop.f32.mrb[0].mxu0
      %v4045 = vpop.f32.mrb[0].mxu0
      %v4046 = vadd.f32 %v3834, %v4045
      %v4047 = vpop.f32.mrb[0].mxu0
      %4048 = vmatprep.mubr.bf16.mxu0 0
      %4049 = vmatmul.mubr.bf16.gmra.mrb[0].mxu0 %v3951
      %v4050 = vpop.f32.mrb[0].mxu0
      %v4051 = vadd.f32 %v3839, %v4050
      %v4052 = vpop.f32.mrb[0].mxu0
      %v4053 = vpop.f32.mrb[0].mxu0
      %v4054 = vadd.f32 %v3842, %v4053
      %v4055 = vpop.f32.mrb[0].mxu0
      %4056 = vmatprep.mubr.bf16.mxu0 0
      %4057 = vmatmul.mubr.bf16.gmra.mrb[0].mxu0 %v3954
      %v4058 = vpop.f32.mrb[0].mxu0
      %v4059 = vadd.f32 %v3847, %v4058
      %v4060 = vpop.f32.mrb[0].mxu0
      %v4061 = vpop.f32.mrb[0].mxu0
      %v4062 = vadd.f32 %v3850, %v4061
      %v4063 = vpop.f32.mrb[0].mxu0
      %4064 = vmatprep.mubr.bf16.mxu0 0
      %4065 = vmatmul.mubr.bf16.gmra.mrb[0].mxu0 %v3957
      %v4066 = vpop.f32.mrb[0].mxu0
      %v4067 = vadd.f32 %v3855, %v4066
      %v4068 = vpop.f32.mrb[0].mxu0
      %v4069 = vpop.f32.mrb[0].mxu0
      %v4070 = vadd.f32 %v3858, %v4069
      %v4071 = vpop.f32.mrb[0].mxu0
      %4072 = vmatprep.mubr.bf16.mxu0 0
      %4073 = vmatmul.mubr.bf16.gmra.mrb[0].mxu0 %v3960
      %v4074 = vpop.f32.mrb[0].mxu0
      %v4075 = vadd.f32 %v3863, %v4074
      %v4076 = vpop.f32.mrb[0].mxu0
      %v4077 = vpop.f32.mrb[0].mxu0
      %v4078 = vadd.f32 %v3866, %v4077
      %v4079 = vpop.f32.mrb[0].mxu0
      %4080 = vmatprep.mubr.bf16.mxu0 0
      %4081 = vmatmul.mubr.bf16.gmra.mrb[0].mxu0 %v3963
      %v4082 = vpop.f32.mrb[0].mxu0
      %v4083 = vadd.f32 %v3871, %v4082
      %v4084 = vpop.f32.mrb[0].mxu0
      %v4085 = vpop.f32.mrb[0].mxu0
      %v4086 = vadd.f32 %v3874, %v4085
      %v4087 = vpop.f32.mrb[0].mxu0
      %4088 = vmatprep.mubr.bf16.mxu0 0
      %4089 = vmatmul.mubr.bf16.gmra.mrb[0].mxu0 %v3966
      %v4090 = vpop.f32.mrb[0].mxu0
      %v4091 = vadd.f32 %v3879, %v4090
      %v4092 = vpop.f32.mrb[0].mxu0
      %v4093 = vpop.f32.mrb[0].mxu0
      %v4094 = vadd.f32 %v3882, %v4093
      %v4095 = vpop.f32.mrb[0].mxu0
      %4096 = vmatprep.mubr.bf16.mxu0 0
      %4097 = vmatmul.mubr.bf16.gmra.mrb[0].mxu0 %v3969
      %v4098 = vpop.f32.mrb[0].mxu0
      %v4099 = vadd.f32 %v3887, %v4098
      %v4100 = vpop.f32.mrb[0].mxu0
      %v4101 = vpop.f32.mrb[0].mxu0
      %v4102 = vadd.f32 %v3890, %v4101
      %v4103 = vpop.f32.mrb[0].mxu0
      %4104 = vmatprep.mubr.bf16.mxu0 0
      %4105 = vmatmul.mubr.bf16.gmra.mrb[0].mxu0 %v3972
      %v4106 = vpop.f32.mrb[0].mxu0
      %v4107 = vadd.f32 %v3895, %v4106
      %v4108 = vpop.f32.mrb[0].mxu0
      %v4109 = vpop.f32.mrb[0].mxu0
      %v4110 = vadd.f32 %v3898, %v4109
      %v4111 = vpop.f32.mrb[0].mxu0
      %4112 = vmatprep.mubr.bf16.mxu0 0
      %4113 = vmatmul.mubr.bf16.gmra.mrb[0].mxu0 %v3975
      %v4114 = vpop.f32.mrb[0].mxu0
      %v4115 = vadd.f32 %v3903, %v4114
      %v4116 = vpop.f32.mrb[0].mxu0
      %v4117 = vpop.f32.mrb[0].mxu0
      %v4118 = vadd.f32 %v3906, %v4117
      %v4119 = vpop.f32.mrb[0].mxu0
      %4120 = vmatprep.mubr.bf16.mxu0 0
      %4121 = vmatmul.mubr.bf16.gmra.mrb[0].mxu0 %v3978
      %v4122 = vpop.f32.mrb[0].mxu0
      %v4123 = vadd.f32 %v3911, %v4122
      %v4124 = vpop.f32.mrb[0].mxu0
      %v4125 = vpop.f32.mrb[0].mxu0
      %v4126 = vadd.f32 %v3914, %v4125
      %v4127 = vpop.f32.mrb[0].mxu0
      %4128 = vmatprep.mubr.bf16.mxu0 0
      %4129 = vmatmul.mubr.bf16.gmra.mrb[0].mxu0 %v3981
      %v4130 = vpop.f32.mrb[0].mxu0
      %v4131 = vadd.f32 %v3919, %v4130
      %v4132 = vpop.f32.mrb[0].mxu0
      %v4133 = vpop.f32.mrb[0].mxu0
      %v4134 = vadd.f32 %v3922, %v4133
      %v4135 = vpop.f32.mrb[0].mxu0
      %4136 = vmatprep.mubr.bf16.mxu0 0
      %4137 = vmatmul.mubr.bf16.gmra.mrb[0].mxu0 %v3984
      %v4138 = vpop.f32.mrb[0].mxu0
      %v4139 = vadd.f32 %v3927, %v4138
      %v4140 = vpop.f32.mrb[0].mxu0
      %v4141 = vpop.f32.mrb[0].mxu0
      %v4142 = vadd.f32 %v3930, %v4141
      %v4143 = vpop.f32.mrb[0].mxu0
      %4144 = vmatprep.mubr.bf16.mxu0 0
      %4145 = vmatmul.mubr.bf16.gmra.mrb[0].mxu0 %v3987
      %v4146 = vpop.f32.mrb[0].mxu0
      %v4147 = vadd.f32 %v3935, %v4146
      %v4148 = vpop.f32.mrb[0].mxu0
      %v4149 = vpop.f32.mrb[0].mxu0
      %v4150 = vadd.f32 %v3938, %v4149
      %v4151 = vpop.f32.mrb[0].mxu0
      %4152 = vdwg.mxu0
      %v4153 = vpack.c.bf16 %v3663, %v3662
      %v4154 = vpack.c.bf16 %v3665, %v3664
      %v4155 = vpack.c.bf16 %v3667, %v3666
      %v4156 = vpack.c.bf16 %v3669, %v3668
      %v4157 = vpack.c.bf16 %v3671, %v3670
      %v4158 = vpack.c.bf16 %v3673, %v3672
      %v4159 = vpack.c.bf16 %v3675, %v3674
      %v4160 = vpack.c.bf16 %v3677, %v3676
      %v4161 = vpack.c.bf16 %v3679, %v3678
      %v4162 = vpack.c.bf16 %v3681, %v3680
      %v4163 = vpack.c.bf16 %v3683, %v3682
      %v4164 = vpack.c.bf16 %v3685, %v3684
      %v4165 = vpack.c.bf16 %v3687, %v3686
      %v4166 = vpack.c.bf16 %v3689, %v3688
      %v4167 = vpack.c.bf16 %v3691, %v3690
      %v4168 = vpack.c.bf16 %v3693, %v3692
      %s4169 = scalar_lea.vmem %s2, 4
      %v4170 = vld [vmem:[%s4169] sm:$0x3]
      %v4172 = vsel %vm1229, %v4153, 0
      %v4175 = vsel %vm1229, %v4154, 0
      %v4178 = vsel %vm1229, %v4155, 0
      %v4181 = vsel %vm1229, %v4156, 0
      %v4184 = vsel %vm1229, %v4157, 0
      %v4187 = vsel %vm1229, %v4158, 0
      %v4190 = vsel %vm1229, %v4159, 0
      %v4193 = vsel %vm1229, %v4160, 0
      %v4196 = vsel %vm1229, %v4161, 0
      %v4199 = vsel %vm1229, %v4162, 0
      %v4202 = vsel %vm1229, %v4163, 0
      %v4205 = vsel %vm1229, %v4164, 0
      %v4208 = vsel %vm1229, %v4165, 0
      %v4211 = vsel %vm1229, %v4166, 0
      %v4214 = vsel %vm1229, %v4167, 0
      %v4217 = vsel %vm1229, %v4168, 0
      %v4220 = vsel %vm1275, %v4170, 0
      %4222 = vmatprep.subr.bf16.mxu0 0
      %4223 = vmatpush1.bf16.msra.mxu0 %v4220
      %4224 = vmatprep.subr.bf16.mxu0 0
      %4225 = vmatpush1.bf16.msra.mxu0 0
      %4226 = vmatprep.subr.bf16.mxu0 0
      %4227 = vmatpush1.bf16.msra.mxu0 0
      %4228 = vmatprep.subr.bf16.mxu0 0
      %4229 = vmatpush1.bf16.msra.mxu0 0
      %4230 = vmatprep.subr.bf16.mxu0 0
      %4231 = vmatpush1.bf16.msra.mxu0 0
      %4232 = vmatprep.subr.bf16.mxu0 0
      %4233 = vmatpush1.bf16.msra.mxu0 0
      %4234 = vmatprep.subr.bf16.mxu0 0
      %4235 = vmatpush1.bf16.msra.mxu0 0
      %4236 = vmatprep.subr.bf16.mxu0 0
      %4237 = vmatpush1.bf16.msra.mxu0 0
      %4238 = vmatprep.subr.bf16.mxu0 0
      %4239 = vmatpush1.bf16.msra.mxu0 0
      %4240 = vmatprep.subr.bf16.mxu0 0
      %4241 = vmatpush1.bf16.msra.mxu0 0
      %4242 = vmatprep.subr.bf16.mxu0 0
      %4243 = vmatpush1.bf16.msra.mxu0 0
      %4244 = vmatprep.subr.bf16.mxu0 0
      %4245 = vmatpush1.bf16.msra.mxu0 0
      %4246 = vmatprep.subr.bf16.mxu0 0
      %4247 = vmatpush1.bf16.msra.mxu0 0
      %4248 = vmatprep.subr.bf16.mxu0 0
      %4249 = vmatpush1.bf16.msra.mxu0 0
      %4250 = vmatprep.subr.bf16.mxu0 0
      %4251 = vmatpush1.bf16.msra.mxu0 0
      %4252 = vmatprep.subr.bf16.mxu0 0
      %4253 = vmatpush1.bf16.msra.mxu0 0
      %4254 = vmatprep.mubr.bf16.mxu0 0
      %4255 = vmatmul.mubr.bf16.gmra.mrb[0].mxu0 %v4172
      %v4256 = vpop.f32.mrb[0].mxu0
      %v4257 = vadd.f32 0.0, %v4256
      %v4258 = vpop.f32.mrb[0].mxu0
      %v4259 = vpop.f32.mrb[0].mxu0
      %v4260 = vadd.f32 0.0, %v4259
      %v4261 = vpop.f32.mrb[0].mxu0
      %4262 = vmatprep.mubr.bf16.mxu0 0
      %4263 = vmatmul.mubr.bf16.gmra.mrb[0].mxu0 %v4175
      %v4264 = vpop.f32.mrb[0].mxu0
      %v4265 = vadd.f32 0.0, %v4264
      %v4266 = vpop.f32.mrb[0].mxu0
      %v4267 = vpop.f32.mrb[0].mxu0
      %v4268 = vadd.f32 0.0, %v4267
      %v4269 = vpop.f32.mrb[0].mxu0
      %4270 = vmatprep.mubr.bf16.mxu0 0
      %4271 = vmatmul.mubr.bf16.gmra.mrb[0].mxu0 %v4178
      %v4272 = vpop.f32.mrb[0].mxu0
      %v4273 = vadd.f32 0.0, %v4272
      %v4274 = vpop.f32.mrb[0].mxu0
      %v4275 = vpop.f32.mrb[0].mxu0
      %v4276 = vadd.f32 0.0, %v4275
      %v4277 = vpop.f32.mrb[0].mxu0
      %4278 = vmatprep.mubr.bf16.mxu0 0
      %4279 = vmatmul.mubr.bf16.gmra.mrb[0].mxu0 %v4181
      %v4280 = vpop.f32.mrb[0].mxu0
      %v4281 = vadd.f32 0.0, %v4280
      %v4282 = vpop.f32.mrb[0].mxu0
      %v4283 = vpop.f32.mrb[0].mxu0
      %v4284 = vadd.f32 0.0, %v4283
      %v4285 = vpop.f32.mrb[0].mxu0
      %4286 = vmatprep.mubr.bf16.mxu0 0
      %4287 = vmatmul.mubr.bf16.gmra.mrb[0].mxu0 %v4184
      %v4288 = vpop.f32.mrb[0].mxu0
      %v4289 = vadd.f32 0.0, %v4288
      %v4290 = vpop.f32.mrb[0].mxu0
      %v4291 = vpop.f32.mrb[0].mxu0
      %v4292 = vadd.f32 0.0, %v4291
      %v4293 = vpop.f32.mrb[0].mxu0
      %4294 = vmatprep.mubr.bf16.mxu0 0
      %4295 = vmatmul.mubr.bf16.gmra.mrb[0].mxu0 %v4187
      %v4296 = vpop.f32.mrb[0].mxu0
      %v4297 = vadd.f32 0.0, %v4296
      %v4298 = vpop.f32.mrb[0].mxu0
      %v4299 = vpop.f32.mrb[0].mxu0
      %v4300 = vadd.f32 0.0, %v4299
      %v4301 = vpop.f32.mrb[0].mxu0
      %4302 = vmatprep.mubr.bf16.mxu0 0
      %4303 = vmatmul.mubr.bf16.gmra.mrb[0].mxu0 %v4190
      %v4304 = vpop.f32.mrb[0].mxu0
      %v4305 = vadd.f32 0.0, %v4304
      %v4306 = vpop.f32.mrb[0].mxu0
      %v4307 = vpop.f32.mrb[0].mxu0
      %v4308 = vadd.f32 0.0, %v4307
      %v4309 = vpop.f32.mrb[0].mxu0
      %4310 = vmatprep.mubr.bf16.mxu0 0
      %4311 = vmatmul.mubr.bf16.gmra.mrb[0].mxu0 %v4193
      %v4312 = vpop.f32.mrb[0].mxu0
      %v4313 = vadd.f32 0.0, %v4312
      %v4314 = vpop.f32.mrb[0].mxu0
      %v4315 = vpop.f32.mrb[0].mxu0
      %v4316 = vadd.f32 0.0, %v4315
      %v4317 = vpop.f32.mrb[0].mxu0
      %4318 = vmatprep.mubr.bf16.mxu0 0
      %4319 = vmatmul.mubr.bf16.gmra.mrb[0].mxu0 %v4196
      %v4320 = vpop.f32.mrb[0].mxu0
      %v4321 = vadd.f32 0.0, %v4320
      %v4322 = vpop.f32.mrb[0].mxu0
      %v4323 = vpop.f32.mrb[0].mxu0
      %v4324 = vadd.f32 0.0, %v4323
      %v4325 = vpop.f32.mrb[0].mxu0
      %4326 = vmatprep.mubr.bf16.mxu0 0
      %4327 = vmatmul.mubr.bf16.gmra.mrb[0].mxu0 %v4199
      %v4328 = vpop.f32.mrb[0].mxu0
      %v4329 = vadd.f32 0.0, %v4328
      %v4330 = vpop.f32.mrb[0].mxu0
      %v4331 = vpop.f32.mrb[0].mxu0
      %v4332 = vadd.f32 0.0, %v4331
      %v4333 = vpop.f32.mrb[0].mxu0
      %4334 = vmatprep.mubr.bf16.mxu0 0
      %4335 = vmatmul.mubr.bf16.gmra.mrb[0].mxu0 %v4202
      %v4336 = vpop.f32.mrb[0].mxu0
      %v4337 = vadd.f32 0.0, %v4336
      %v4338 = vpop.f32.mrb[0].mxu0
      %v4339 = vpop.f32.mrb[0].mxu0
      %v4340 = vadd.f32 0.0, %v4339
      %v4341 = vpop.f32.mrb[0].mxu0
      %4342 = vmatprep.mubr.bf16.mxu0 0
      %4343 = vmatmul.mubr.bf16.gmra.mrb[0].mxu0 %v4205
      %v4344 = vpop.f32.mrb[0].mxu0
      %v4345 = vadd.f32 0.0, %v4344
      %v4346 = vpop.f32.mrb[0].mxu0
      %v4347 = vpop.f32.mrb[0].mxu0
      %v4348 = vadd.f32 0.0, %v4347
      %v4349 = vpop.f32.mrb[0].mxu0
      %4350 = vmatprep.mubr.bf16.mxu0 0
      %4351 = vmatmul.mubr.bf16.gmra.mrb[0].mxu0 %v4208
      %v4352 = vpop.f32.mrb[0].mxu0
      %v4353 = vadd.f32 0.0, %v4352
      %v4354 = vpop.f32.mrb[0].mxu0
      %v4355 = vpop.f32.mrb[0].mxu0
      %v4356 = vadd.f32 0.0, %v4355
      %v4357 = vpop.f32.mrb[0].mxu0
      %4358 = vmatprep.mubr.bf16.mxu0 0
      %4359 = vmatmul.mubr.bf16.gmra.mrb[0].mxu0 %v4211
      %v4360 = vpop.f32.mrb[0].mxu0
      %v4361 = vadd.f32 0.0, %v4360
      %v4362 = vpop.f32.mrb[0].mxu0
      %v4363 = vpop.f32.mrb[0].mxu0
      %v4364 = vadd.f32 0.0, %v4363
      %v4365 = vpop.f32.mrb[0].mxu0
      %4366 = vmatprep.mubr.bf16.mxu0 0
      %4367 = vmatmul.mubr.bf16.gmra.mrb[0].mxu0 %v4214
      %v4368 = vpop.f32.mrb[0].mxu0
      %v4369 = vadd.f32 0.0, %v4368
      %v4370 = vpop.f32.mrb[0].mxu0
      %v4371 = vpop.f32.mrb[0].mxu0
      %v4372 = vadd.f32 0.0, %v4371
      %v4373 = vpop.f32.mrb[0].mxu0
      %4374 = vmatprep.mubr.bf16.mxu0 0
      %4375 = vmatmul.mubr.bf16.gmra.mrb[0].mxu0 %v4217
      %v4376 = vpop.f32.mrb[0].mxu0
      %v4377 = vadd.f32 0.0, %v4376
      %v4378 = vpop.f32.mrb[0].mxu0
      %v4379 = vpop.f32.mrb[0].mxu0
      %v4380 = vadd.f32 0.0, %v4379
      %v4381 = vpop.f32.mrb[0].mxu0
      %4382 = vdwg.mxu0
      %v4383 = vadd.f32 %v4027, %v4257
      %v4384 = vadd.f32 %v4030, %v4260
      %v4385 = vadd.f32 %v4035, %v4265
      %v4386 = vadd.f32 %v4038, %v4268
      %v4387 = vadd.f32 %v4043, %v4273
      %v4388 = vadd.f32 %v4046, %v4276
      %v4389 = vadd.f32 %v4051, %v4281
      %v4390 = vadd.f32 %v4054, %v4284
      %v4391 = vadd.f32 %v4059, %v4289
      %v4392 = vadd.f32 %v4062, %v4292
      %v4393 = vadd.f32 %v4067, %v4297
      %v4394 = vadd.f32 %v4070, %v4300
      %v4395 = vadd.f32 %v4075, %v4305
      %v4396 = vadd.f32 %v4078, %v4308
      %v4397 = vadd.f32 %v4083, %v4313
      %v4398 = vadd.f32 %v4086, %v4316
      %v4399 = vadd.f32 %v4091, %v4321
      %v4400 = vadd.f32 %v4094, %v4324
      %v4401 = vadd.f32 %v4099, %v4329
      %v4402 = vadd.f32 %v4102, %v4332
      %v4403 = vadd.f32 %v4107, %v4337
      %v4404 = vadd.f32 %v4110, %v4340
      %v4405 = vadd.f32 %v4115, %v4345
      %v4406 = vadd.f32 %v4118, %v4348
      %v4407 = vadd.f32 %v4123, %v4353
      %v4408 = vadd.f32 %v4126, %v4356
      %v4409 = vadd.f32 %v4131, %v4361
      %v4410 = vadd.f32 %v4134, %v4364
      %v4411 = vadd.f32 %v4139, %v4369
      %v4412 = vadd.f32 %v4142, %v4372
      %v4413 = vadd.f32 %v4147, %v4377
      %v4414 = vadd.f32 %v4150, %v4380
      %v4415 = vpack.c.bf16 %v3659, %v3658
      %s4416 = scalar_lea.vmem %s2, 6
      %v4417 = vld [vmem:[%s4416] sm:$0x3]
      %v4419 = vsel %vm1229, %v4415, 0
      %v4422 = vsel %vm1275, %v4417, 0
      %4424 = vmatprep.subr.bf16.mxu0 0
      %4425 = vmatpush1.bf16.msra.mxu0 %v4422
      %4426 = vmatprep.subr.bf16.mxu0 0
      %4427 = vmatpush1.bf16.msra.mxu0 0
      %4428 = vmatprep.subr.bf16.mxu0 0
      %4429 = vmatpush1.bf16.msra.mxu0 0
      %4430 = vmatprep.subr.bf16.mxu0 0
      %4431 = vmatpush1.bf16.msra.mxu0 0
      %4432 = vmatprep.subr.bf16.mxu0 0
      %4433 = vmatpush1.bf16.msra.mxu0 0
      %4434 = vmatprep.subr.bf16.mxu0 0
      %4435 = vmatpush1.bf16.msra.mxu0 0
      %4436 = vmatprep.subr.bf16.mxu0 0
      %4437 = vmatpush1.bf16.msra.mxu0 0
      %4438 = vmatprep.subr.bf16.mxu0 0
      %4439 = vmatpush1.bf16.msra.mxu0 0
      %4440 = vmatprep.subr.bf16.mxu0 0
      %4441 = vmatpush1.bf16.msra.mxu0 0
      %4442 = vmatprep.subr.bf16.mxu0 0
      %4443 = vmatpush1.bf16.msra.mxu0 0
      %4444 = vmatprep.subr.bf16.mxu0 0
      %4445 = vmatpush1.bf16.msra.mxu0 0
      %4446 = vmatprep.subr.bf16.mxu0 0
      %4447 = vmatpush1.bf16.msra.mxu0 0
      %4448 = vmatprep.subr.bf16.mxu0 0
      %4449 = vmatpush1.bf16.msra.mxu0 0
      %4450 = vmatprep.subr.bf16.mxu0 0
      %4451 = vmatpush1.bf16.msra.mxu0 0
      %4452 = vmatprep.subr.bf16.mxu0 0
      %4453 = vmatpush1.bf16.msra.mxu0 0
      %4454 = vmatprep.subr.bf16.mxu0 0
      %4455 = vmatpush1.bf16.msra.mxu0 0
      %4456 = vmatprep.mubr.bf16.mxu0 0
      %4457 = vmatmul.mubr.bf16.gmra.mrb[0].mxu0 %v3945
      %v4458 = vpop.f32.mrb[0].mxu0
      %v4459 = vadd.f32 0.0, %v4458
      %v4460 = vpop.f32.mrb[0].mxu0
      %v4461 = vpop.f32.mrb[0].mxu0
      %v4462 = vadd.f32 0.0, %v4461
      %v4463 = vpop.f32.mrb[0].mxu0
      %4464 = vmatprep.mubr.bf16.mxu0 0
      %4465 = vmatmul.mubr.bf16.gmra.mrb[0].mxu0 %v3948
      %v4466 = vpop.f32.mrb[0].mxu0
      %v4467 = vadd.f32 0.0, %v4466
      %v4468 = vpop.f32.mrb[0].mxu0
      %v4469 = vpop.f32.mrb[0].mxu0
      %v4470 = vadd.f32 0.0, %v4469
      %v4471 = vpop.f32.mrb[0].mxu0
      %4472 = vmatprep.mubr.bf16.mxu0 0
      %4473 = vmatmul.mubr.bf16.gmra.mrb[0].mxu0 %v3951
      %v4474 = vpop.f32.mrb[0].mxu0
      %v4475 = vadd.f32 0.0, %v4474
      %v4476 = vpop.f32.mrb[0].mxu0
      %v4477 = vpop.f32.mrb[0].mxu0
      %v4478 = vadd.f32 0.0, %v4477
      %v4479 = vpop.f32.mrb[0].mxu0
      %4480 = vmatprep.mubr.bf16.mxu0 0
      %4481 = vmatmul.mubr.bf16.gmra.mrb[0].mxu0 %v3954
      %v4482 = vpop.f32.mrb[0].mxu0
      %v4483 = vadd.f32 0.0, %v4482
      %v4484 = vpop.f32.mrb[0].mxu0
      %v4485 = vpop.f32.mrb[0].mxu0
      %v4486 = vadd.f32 0.0, %v4485
      %v4487 = vpop.f32.mrb[0].mxu0
      %4488 = vmatprep.mubr.bf16.mxu0 0
      %4489 = vmatmul.mubr.bf16.gmra.mrb[0].mxu0 %v3957
      %v4490 = vpop.f32.mrb[0].mxu0
      %v4491 = vadd.f32 0.0, %v4490
      %v4492 = vpop.f32.mrb[0].mxu0
      %v4493 = vpop.f32.mrb[0].mxu0
      %v4494 = vadd.f32 0.0, %v4493
      %v4495 = vpop.f32.mrb[0].mxu0
      %4496 = vmatprep.mubr.bf16.mxu0 0
      %4497 = vmatmul.mubr.bf16.gmra.mrb[0].mxu0 %v3960
      %v4498 = vpop.f32.mrb[0].mxu0
      %v4499 = vadd.f32 0.0, %v4498
      %v4500 = vpop.f32.mrb[0].mxu0
      %v4501 = vpop.f32.mrb[0].mxu0
      %v4502 = vadd.f32 0.0, %v4501
      %v4503 = vpop.f32.mrb[0].mxu0
      %4504 = vmatprep.mubr.bf16.mxu0 0
      %4505 = vmatmul.mubr.bf16.gmra.mrb[0].mxu0 %v3963
      %v4506 = vpop.f32.mrb[0].mxu0
      %v4507 = vadd.f32 0.0, %v4506
      %v4508 = vpop.f32.mrb[0].mxu0
      %v4509 = vpop.f32.mrb[0].mxu0
      %v4510 = vadd.f32 0.0, %v4509
      %v4511 = vpop.f32.mrb[0].mxu0
      %4512 = vmatprep.mubr.bf16.mxu0 0
      %4513 = vmatmul.mubr.bf16.gmra.mrb[0].mxu0 %v3966
      %v4514 = vpop.f32.mrb[0].mxu0
      %v4515 = vadd.f32 0.0, %v4514
      %v4516 = vpop.f32.mrb[0].mxu0
      %v4517 = vpop.f32.mrb[0].mxu0
      %v4518 = vadd.f32 0.0, %v4517
      %v4519 = vpop.f32.mrb[0].mxu0
      %4520 = vmatprep.mubr.bf16.mxu0 0
      %4521 = vmatmul.mubr.bf16.gmra.mrb[0].mxu0 %v3969
      %v4522 = vpop.f32.mrb[0].mxu0
      %v4523 = vadd.f32 0.0, %v4522
      %v4524 = vpop.f32.mrb[0].mxu0
      %v4525 = vpop.f32.mrb[0].mxu0
      %v4526 = vadd.f32 0.0, %v4525
      %v4527 = vpop.f32.mrb[0].mxu0
      %4528 = vmatprep.mubr.bf16.mxu0 0
      %4529 = vmatmul.mubr.bf16.gmra.mrb[0].mxu0 %v3972
      %v4530 = vpop.f32.mrb[0].mxu0
      %v4531 = vadd.f32 0.0, %v4530
      %v4532 = vpop.f32.mrb[0].mxu0
      %v4533 = vpop.f32.mrb[0].mxu0
      %v4534 = vadd.f32 0.0, %v4533
      %v4535 = vpop.f32.mrb[0].mxu0
      %4536 = vmatprep.mubr.bf16.mxu0 0
      %4537 = vmatmul.mubr.bf16.gmra.mrb[0].mxu0 %v3975
      %v4538 = vpop.f32.mrb[0].mxu0
      %v4539 = vadd.f32 0.0, %v4538
      %v4540 = vpop.f32.mrb[0].mxu0
      %v4541 = vpop.f32.mrb[0].mxu0
      %v4542 = vadd.f32 0.0, %v4541
      %v4543 = vpop.f32.mrb[0].mxu0
      %4544 = vmatprep.mubr.bf16.mxu0 0
      %4545 = vmatmul.mubr.bf16.gmra.mrb[0].mxu0 %v3978
      %v4546 = vpop.f32.mrb[0].mxu0
      %v4547 = vadd.f32 0.0, %v4546
      %v4548 = vpop.f32.mrb[0].mxu0
      %v4549 = vpop.f32.mrb[0].mxu0
      %v4550 = vadd.f32 0.0, %v4549
      %v4551 = vpop.f32.mrb[0].mxu0
      %4552 = vmatprep.mubr.bf16.mxu0 0
      %4553 = vmatmul.mubr.bf16.gmra.mrb[0].mxu0 %v3981
      %v4554 = vpop.f32.mrb[0].mxu0
      %v4555 = vadd.f32 0.0, %v4554
      %v4556 = vpop.f32.mrb[0].mxu0
      %v4557 = vpop.f32.mrb[0].mxu0
      %v4558 = vadd.f32 0.0, %v4557
      %v4559 = vpop.f32.mrb[0].mxu0
      %4560 = vmatprep.mubr.bf16.mxu0 0
      %4561 = vmatmul.mubr.bf16.gmra.mrb[0].mxu0 %v3984
      %v4562 = vpop.f32.mrb[0].mxu0
      %v4563 = vadd.f32 0.0, %v4562
      %v4564 = vpop.f32.mrb[0].mxu0
      %v4565 = vpop.f32.mrb[0].mxu0
      %v4566 = vadd.f32 0.0, %v4565
      %v4567 = vpop.f32.mrb[0].mxu0
      %4568 = vmatprep.mubr.bf16.mxu0 0
      %4569 = vmatmul.mubr.bf16.gmra.mrb[0].mxu0 %v3987
      %v4570 = vpop.f32.mrb[0].mxu0
      %v4571 = vadd.f32 0.0, %v4570
      %v4572 = vpop.f32.mrb[0].mxu0
      %v4573 = vpop.f32.mrb[0].mxu0
      %v4574 = vadd.f32 0.0, %v4573
      %v4575 = vpop.f32.mrb[0].mxu0
      %4576 = vmatprep.mubr.bf16.mxu0 0
      %4577 = vmatmul.mubr.bf16.gmra.mrb[0].mxu0 %v4419
      %v4578 = vpop.f32.mrb[0].mxu0
      %v4579 = vadd.f32 0.0, %v4578
      %v4580 = vpop.f32.mrb[0].mxu0
      %v4581 = vpop.f32.mrb[0].mxu0
      %v4582 = vadd.f32 0.0, %v4581
      %v4583 = vpop.f32.mrb[0].mxu0
      %4584 = vdwg.mxu0
      %v4585 = vadd.f32 %v4383, %v4459
      %v4586 = vadd.f32 %v4384, %v4462
      %v4587 = vadd.f32 %v4385, %v4467
      %v4588 = vadd.f32 %v4386, %v4470
      %v4589 = vadd.f32 %v4387, %v4475
      %v4590 = vadd.f32 %v4388, %v4478
      %v4591 = vadd.f32 %v4389, %v4483
      %v4592 = vadd.f32 %v4390, %v4486
      %v4593 = vadd.f32 %v4391, %v4491
      %v4594 = vadd.f32 %v4392, %v4494
      %v4595 = vadd.f32 %v4393, %v4499
      %v4596 = vadd.f32 %v4394, %v4502
      %v4597 = vadd.f32 %v4395, %v4507
      %v4598 = vadd.f32 %v4396, %v4510
      %v4599 = vadd.f32 %v4397, %v4515
      %v4600 = vadd.f32 %v4398, %v4518
      %v4601 = vadd.f32 %v4399, %v4523
      %v4602 = vadd.f32 %v4400, %v4526
      %v4603 = vadd.f32 %v4401, %v4531
      %v4604 = vadd.f32 %v4402, %v4534
      %v4605 = vadd.f32 %v4403, %v4539
      %v4606 = vadd.f32 %v4404, %v4542
      %v4607 = vadd.f32 %v4405, %v4547
      %v4608 = vadd.f32 %v4406, %v4550
      %v4609 = vadd.f32 %v4407, %v4555
      %v4610 = vadd.f32 %v4408, %v4558
      %v4611 = vadd.f32 %v4409, %v4563
      %v4612 = vadd.f32 %v4410, %v4566
      %v4613 = vadd.f32 %v4411, %v4571
      %v4614 = vadd.f32 %v4412, %v4574
      %v4615 = vadd.f32 %v4413, %v4579
      %v4616 = vadd.f32 %v4414, %v4582
      %v4617 = vpack.c.bf16 %v3393, %v3392
      %s4618 = scalar_lea.vmem %s2, 8
      %v4619 = vld [vmem:[%s4618] sm:$0x3]
      %v4621 = vsel %vm1229, %v4617, 0
      %v4624 = vsel %vm1275, %v4619, 0
      %4626 = vmatprep.subr.bf16.mxu0 0
      %4627 = vmatpush1.bf16.msra.mxu0 %v4624
      %4628 = vmatprep.subr.bf16.mxu0 0
      %4629 = vmatpush1.bf16.msra.mxu0 0
      %4630 = vmatprep.subr.bf16.mxu0 0
      %4631 = vmatpush1.bf16.msra.mxu0 0
      %4632 = vmatprep.subr.bf16.mxu0 0
      %4633 = vmatpush1.bf16.msra.mxu0 0
      %4634 = vmatprep.subr.bf16.mxu0 0
      %4635 = vmatpush1.bf16.msra.mxu0 0
      %4636 = vmatprep.subr.bf16.mxu0 0
      %4637 = vmatpush1.bf16.msra.mxu0 0
      %4638 = vmatprep.subr.bf16.mxu0 0
      %4639 = vmatpush1.bf16.msra.mxu0 0
      %4640 = vmatprep.subr.bf16.mxu0 0
      %4641 = vmatpush1.bf16.msra.mxu0 0
      %4642 = vmatprep.subr.bf16.mxu0 0
      %4643 = vmatpush1.bf16.msra.mxu0 0
      %4644 = vmatprep.subr.bf16.mxu0 0
      %4645 = vmatpush1.bf16.msra.mxu0 0
      %4646 = vmatprep.subr.bf16.mxu0 0
      %4647 = vmatpush1.bf16.msra.mxu0 0
      %4648 = vmatprep.subr.bf16.mxu0 0
      %4649 = vmatpush1.bf16.msra.mxu0 0
      %4650 = vmatprep.subr.bf16.mxu0 0
      %4651 = vmatpush1.bf16.msra.mxu0 0
      %4652 = vmatprep.subr.bf16.mxu0 0
      %4653 = vmatpush1.bf16.msra.mxu0 0
      %4654 = vmatprep.subr.bf16.mxu0 0
      %4655 = vmatpush1.bf16.msra.mxu0 0
      %4656 = vmatprep.subr.bf16.mxu0 0
      %4657 = vmatpush1.bf16.msra.mxu0 0
      %4658 = vmatprep.mubr.bf16.mxu0 0
      %4659 = vmatmul.mubr.bf16.gmra.mrb[0].mxu0 %v3736
      %v4660 = vpop.f32.mrb[0].mxu0
      %v4661 = vadd.f32 0.0, %v4660
      %v4662 = vpop.f32.mrb[0].mxu0
      %v4663 = vpop.f32.mrb[0].mxu0
      %v4664 = vadd.f32 0.0, %v4663
      %v4665 = vpop.f32.mrb[0].mxu0
      %4666 = vmatprep.mubr.bf16.mxu0 0
      %4667 = vmatmul.mubr.bf16.gmra.mrb[0].mxu0 %v3733
      %v4668 = vpop.f32.mrb[0].mxu0
      %v4669 = vadd.f32 0.0, %v4668
      %v4670 = vpop.f32.mrb[0].mxu0
      %v4671 = vpop.f32.mrb[0].mxu0
      %v4672 = vadd.f32 0.0, %v4671
      %v4673 = vpop.f32.mrb[0].mxu0
      %4674 = vmatprep.mubr.bf16.mxu0 0
      %4675 = vmatmul.mubr.bf16.gmra.mrb[0].mxu0 %v3739
      %v4676 = vpop.f32.mrb[0].mxu0
      %v4677 = vadd.f32 0.0, %v4676
      %v4678 = vpop.f32.mrb[0].mxu0
      %v4679 = vpop.f32.mrb[0].mxu0
      %v4680 = vadd.f32 0.0, %v4679
      %v4681 = vpop.f32.mrb[0].mxu0
      %4682 = vmatprep.mubr.bf16.mxu0 0
      %4683 = vmatmul.mubr.bf16.gmra.mrb[0].mxu0 %v3742
      %v4684 = vpop.f32.mrb[0].mxu0
      %v4685 = vadd.f32 0.0, %v4684
      %v4686 = vpop.f32.mrb[0].mxu0
      %v4687 = vpop.f32.mrb[0].mxu0
      %v4688 = vadd.f32 0.0, %v4687
      %v4689 = vpop.f32.mrb[0].mxu0
      %4690 = vmatprep.mubr.bf16.mxu0 0
      %4691 = vmatmul.mubr.bf16.gmra.mrb[0].mxu0 %v3745
      %v4692 = vpop.f32.mrb[0].mxu0
      %v4693 = vadd.f32 0.0, %v4692
      %v4694 = vpop.f32.mrb[0].mxu0
      %v4695 = vpop.f32.mrb[0].mxu0
      %v4696 = vadd.f32 0.0, %v4695
      %v4697 = vpop.f32.mrb[0].mxu0
      %4698 = vmatprep.mubr.bf16.mxu0 0
      %4699 = vmatmul.mubr.bf16.gmra.mrb[0].mxu0 %v3748
      %v4700 = vpop.f32.mrb[0].mxu0
      %v4701 = vadd.f32 0.0, %v4700
      %v4702 = vpop.f32.mrb[0].mxu0
      %v4703 = vpop.f32.mrb[0].mxu0
      %v4704 = vadd.f32 0.0, %v4703
      %v4705 = vpop.f32.mrb[0].mxu0
      %4706 = vmatprep.mubr.bf16.mxu0 0
      %4707 = vmatmul.mubr.bf16.gmra.mrb[0].mxu0 %v3751
      %v4708 = vpop.f32.mrb[0].mxu0
      %v4709 = vadd.f32 0.0, %v4708
      %v4710 = vpop.f32.mrb[0].mxu0
      %v4711 = vpop.f32.mrb[0].mxu0
      %v4712 = vadd.f32 0.0, %v4711
      %v4713 = vpop.f32.mrb[0].mxu0
      %4714 = vmatprep.mubr.bf16.mxu0 0
      %4715 = vmatmul.mubr.bf16.gmra.mrb[0].mxu0 %v3754
      %v4716 = vpop.f32.mrb[0].mxu0
      %v4717 = vadd.f32 0.0, %v4716
      %v4718 = vpop.f32.mrb[0].mxu0
      %v4719 = vpop.f32.mrb[0].mxu0
      %v4720 = vadd.f32 0.0, %v4719
      %v4721 = vpop.f32.mrb[0].mxu0
      %4722 = vmatprep.mubr.bf16.mxu0 0
      %4723 = vmatmul.mubr.bf16.gmra.mrb[0].mxu0 %v3757
      %v4724 = vpop.f32.mrb[0].mxu0
      %v4725 = vadd.f32 0.0, %v4724
      %v4726 = vpop.f32.mrb[0].mxu0
      %v4727 = vpop.f32.mrb[0].mxu0
      %v4728 = vadd.f32 0.0, %v4727
      %v4729 = vpop.f32.mrb[0].mxu0
      %4730 = vmatprep.mubr.bf16.mxu0 0
      %4731 = vmatmul.mubr.bf16.gmra.mrb[0].mxu0 %v3760
      %v4732 = vpop.f32.mrb[0].mxu0
      %v4733 = vadd.f32 0.0, %v4732
      %v4734 = vpop.f32.mrb[0].mxu0
      %v4735 = vpop.f32.mrb[0].mxu0
      %v4736 = vadd.f32 0.0, %v4735
      %v4737 = vpop.f32.mrb[0].mxu0
      %4738 = vmatprep.mubr.bf16.mxu0 0
      %4739 = vmatmul.mubr.bf16.gmra.mrb[0].mxu0 %v3763
      %v4740 = vpop.f32.mrb[0].mxu0
      %v4741 = vadd.f32 0.0, %v4740
      %v4742 = vpop.f32.mrb[0].mxu0
      %v4743 = vpop.f32.mrb[0].mxu0
      %v4744 = vadd.f32 0.0, %v4743
      %v4745 = vpop.f32.mrb[0].mxu0
      %4746 = vmatprep.mubr.bf16.mxu0 0
      %4747 = vmatmul.mubr.bf16.gmra.mrb[0].mxu0 %v3766
      %v4748 = vpop.f32.mrb[0].mxu0
      %v4749 = vadd.f32 0.0, %v4748
      %v4750 = vpop.f32.mrb[0].mxu0
      %v4751 = vpop.f32.mrb[0].mxu0
      %v4752 = vadd.f32 0.0, %v4751
      %v4753 = vpop.f32.mrb[0].mxu0
      %4754 = vmatprep.mubr.bf16.mxu0 0
      %4755 = vmatmul.mubr.bf16.gmra.mrb[0].mxu0 %v3769
      %v4756 = vpop.f32.mrb[0].mxu0
      %v4757 = vadd.f32 0.0, %v4756
      %v4758 = vpop.f32.mrb[0].mxu0
      %v4759 = vpop.f32.mrb[0].mxu0
      %v4760 = vadd.f32 0.0, %v4759
      %v4761 = vpop.f32.mrb[0].mxu0
      %4762 = vmatprep.mubr.bf16.mxu0 0
      %4763 = vmatmul.mubr.bf16.gmra.mrb[0].mxu0 %v3772
      %v4764 = vpop.f32.mrb[0].mxu0
      %v4765 = vadd.f32 0.0, %v4764
      %v4766 = vpop.f32.mrb[0].mxu0
      %v4767 = vpop.f32.mrb[0].mxu0
      %v4768 = vadd.f32 0.0, %v4767
      %v4769 = vpop.f32.mrb[0].mxu0
      %4770 = vmatprep.mubr.bf16.mxu0 0
      %4771 = vmatmul.mubr.bf16.gmra.mrb[0].mxu0 %v3775
      %v4772 = vpop.f32.mrb[0].mxu0
      %v4773 = vadd.f32 0.0, %v4772
      %v4774 = vpop.f32.mrb[0].mxu0
      %v4775 = vpop.f32.mrb[0].mxu0
      %v4776 = vadd.f32 0.0, %v4775
      %v4777 = vpop.f32.mrb[0].mxu0
      %4778 = vmatprep.mubr.bf16.mxu0 0
      %4779 = vmatmul.mubr.bf16.gmra.mrb[0].mxu0 %v4621
      %v4780 = vpop.f32.mrb[0].mxu0
      %v4781 = vadd.f32 0.0, %v4780
      %v4782 = vpop.f32.mrb[0].mxu0
      %v4783 = vpop.f32.mrb[0].mxu0
      %v4784 = vadd.f32 0.0, %v4783
      %v4785 = vpop.f32.mrb[0].mxu0
      %4786 = vdwg.mxu0
      %v4787 = vadd.f32 %v4585, %v4661
      %v4788 = vadd.f32 %v4586, %v4664
      %v4789 = vadd.f32 %v4587, %v4669
      %v4790 = vadd.f32 %v4588, %v4672
      %v4791 = vadd.f32 %v4589, %v4677
      %v4792 = vadd.f32 %v4590, %v4680
      %v4793 = vadd.f32 %v4591, %v4685
      %v4794 = vadd.f32 %v4592, %v4688
      %v4795 = vadd.f32 %v4593, %v4693
      %v4796 = vadd.f32 %v4594, %v4696
      %v4797 = vadd.f32 %v4595, %v4701
      %v4798 = vadd.f32 %v4596, %v4704
      %v4799 = vadd.f32 %v4597, %v4709
      %v4800 = vadd.f32 %v4598, %v4712
      %v4801 = vadd.f32 %v4599, %v4717
      %v4802 = vadd.f32 %v4600, %v4720
      %v4803 = vadd.f32 %v4601, %v4725
      %v4804 = vadd.f32 %v4602, %v4728
      %v4805 = vadd.f32 %v4603, %v4733
      %v4806 = vadd.f32 %v4604, %v4736
      %v4807 = vadd.f32 %v4605, %v4741
      %v4808 = vadd.f32 %v4606, %v4744
      %v4809 = vadd.f32 %v4607, %v4749
      %v4810 = vadd.f32 %v4608, %v4752
      %v4811 = vadd.f32 %v4609, %v4757
      %v4812 = vadd.f32 %v4610, %v4760
      %v4813 = vadd.f32 %v4611, %v4765
      %v4814 = vadd.f32 %v4612, %v4768
      %v4815 = vadd.f32 %v4613, %v4773
      %v4816 = vadd.f32 %v4614, %v4776
      %v4817 = vadd.f32 %v4615, %v4781
      %v4818 = vadd.f32 %v4616, %v4784
      %v4819 = vpack.c.bf16 %v3695, %v3694
      %s4820 = scalar_lea.vmem %s2, 10
      %v4821 = vld [vmem:[%s4820] sm:$0x3]
      %v4823 = vsel %vm1229, %v4819, 0
      %v4826 = vsel %vm1275, %v4821, 0
      %4828 = vmatprep.subr.bf16.mxu0 0
      %4829 = vmatpush1.bf16.msra.mxu0 %v4826
      %4830 = vmatprep.subr.bf16.mxu0 0
      %4831 = vmatpush1.bf16.msra.mxu0 0
      %4832 = vmatprep.subr.bf16.mxu0 0
      %4833 = vmatpush1.bf16.msra.mxu0 0
      %4834 = vmatprep.subr.bf16.mxu0 0
      %4835 = vmatpush1.bf16.msra.mxu0 0
      %4836 = vmatprep.subr.bf16.mxu0 0
      %4837 = vmatpush1.bf16.msra.mxu0 0
      %4838 = vmatprep.subr.bf16.mxu0 0
      %4839 = vmatpush1.bf16.msra.mxu0 0
      %4840 = vmatprep.subr.bf16.mxu0 0
      %4841 = vmatpush1.bf16.msra.mxu0 0
      %4842 = vmatprep.subr.bf16.mxu0 0
      %4843 = vmatpush1.bf16.msra.mxu0 0
      %4844 = vmatprep.subr.bf16.mxu0 0
      %4845 = vmatpush1.bf16.msra.mxu0 0
      %4846 = vmatprep.subr.bf16.mxu0 0
      %4847 = vmatpush1.bf16.msra.mxu0 0
      %4848 = vmatprep.subr.bf16.mxu0 0
      %4849 = vmatpush1.bf16.msra.mxu0 0
      %4850 = vmatprep.subr.bf16.mxu0 0
      %4851 = vmatpush1.bf16.msra.mxu0 0
      %4852 = vmatprep.subr.bf16.mxu0 0
      %4853 = vmatpush1.bf16.msra.mxu0 0
      %4854 = vmatprep.subr.bf16.mxu0 0
      %4855 = vmatpush1.bf16.msra.mxu0 0
      %4856 = vmatprep.subr.bf16.mxu0 0
      %4857 = vmatpush1.bf16.msra.mxu0 0
      %4858 = vmatprep.subr.bf16.mxu0 0
      %4859 = vmatpush1.bf16.msra.mxu0 0
      %4860 = vmatprep.mubr.bf16.mxu0 0
      %4861 = vmatmul.mubr.bf16.gmra.mrb[0].mxu0 %v4175
      %v4862 = vpop.f32.mrb[0].mxu0
      %v4863 = vadd.f32 0.0, %v4862
      %v4864 = vpop.f32.mrb[0].mxu0
      %v4865 = vpop.f32.mrb[0].mxu0
      %v4866 = vadd.f32 0.0, %v4865
      %v4867 = vpop.f32.mrb[0].mxu0
      %4868 = vmatprep.mubr.bf16.mxu0 0
      %4869 = vmatmul.mubr.bf16.gmra.mrb[0].mxu0 %v4178
      %v4870 = vpop.f32.mrb[0].mxu0
      %v4871 = vadd.f32 0.0, %v4870
      %v4872 = vpop.f32.mrb[0].mxu0
      %v4873 = vpop.f32.mrb[0].mxu0
      %v4874 = vadd.f32 0.0, %v4873
      %v4875 = vpop.f32.mrb[0].mxu0
      %4876 = vmatprep.mubr.bf16.mxu0 0
      %4877 = vmatmul.mubr.bf16.gmra.mrb[0].mxu0 %v4181
      %v4878 = vpop.f32.mrb[0].mxu0
      %v4879 = vadd.f32 0.0, %v4878
      %v4880 = vpop.f32.mrb[0].mxu0
      %v4881 = vpop.f32.mrb[0].mxu0
      %v4882 = vadd.f32 0.0, %v4881
      %v4883 = vpop.f32.mrb[0].mxu0
      %4884 = vmatprep.mubr.bf16.mxu0 0
      %4885 = vmatmul.mubr.bf16.gmra.mrb[0].mxu0 %v4184
      %v4886 = vpop.f32.mrb[0].mxu0
      %v4887 = vadd.f32 0.0, %v4886
      %v4888 = vpop.f32.mrb[0].mxu0
      %v4889 = vpop.f32.mrb[0].mxu0
      %v4890 = vadd.f32 0.0, %v4889
      %v4891 = vpop.f32.mrb[0].mxu0
      %4892 = vmatprep.mubr.bf16.mxu0 0
      %4893 = vmatmul.mubr.bf16.gmra.mrb[0].mxu0 %v4187
      %v4894 = vpop.f32.mrb[0].mxu0
      %v4895 = vadd.f32 0.0, %v4894
      %v4896 = vpop.f32.mrb[0].mxu0
      %v4897 = vpop.f32.mrb[0].mxu0
      %v4898 = vadd.f32 0.0, %v4897
      %v4899 = vpop.f32.mrb[0].mxu0
      %4900 = vmatprep.mubr.bf16.mxu0 0
      %4901 = vmatmul.mubr.bf16.gmra.mrb[0].mxu0 %v4190
      %v4902 = vpop.f32.mrb[0].mxu0
      %v4903 = vadd.f32 0.0, %v4902
      %v4904 = vpop.f32.mrb[0].mxu0
      %v4905 = vpop.f32.mrb[0].mxu0
      %v4906 = vadd.f32 0.0, %v4905
      %v4907 = vpop.f32.mrb[0].mxu0
      %4908 = vmatprep.mubr.bf16.mxu0 0
      %4909 = vmatmul.mubr.bf16.gmra.mrb[0].mxu0 %v4193
      %v4910 = vpop.f32.mrb[0].mxu0
      %v4911 = vadd.f32 0.0, %v4910
      %v4912 = vpop.f32.mrb[0].mxu0
      %v4913 = vpop.f32.mrb[0].mxu0
      %v4914 = vadd.f32 0.0, %v4913
      %v4915 = vpop.f32.mrb[0].mxu0
      %4916 = vmatprep.mubr.bf16.mxu0 0
      %4917 = vmatmul.mubr.bf16.gmra.mrb[0].mxu0 %v4196
      %v4918 = vpop.f32.mrb[0].mxu0
      %v4919 = vadd.f32 0.0, %v4918
      %v4920 = vpop.f32.mrb[0].mxu0
      %v4921 = vpop.f32.mrb[0].mxu0
      %v4922 = vadd.f32 0.0, %v4921
      %v4923 = vpop.f32.mrb[0].mxu0
      %4924 = vmatprep.mubr.bf16.mxu0 0
      %4925 = vmatmul.mubr.bf16.gmra.mrb[0].mxu0 %v4199
      %v4926 = vpop.f32.mrb[0].mxu0
      %v4927 = vadd.f32 0.0, %v4926
      %v4928 = vpop.f32.mrb[0].mxu0
      %v4929 = vpop.f32.mrb[0].mxu0
      %v4930 = vadd.f32 0.0, %v4929
      %v4931 = vpop.f32.mrb[0].mxu0
      %4932 = vmatprep.mubr.bf16.mxu0 0
      %4933 = vmatmul.mubr.bf16.gmra.mrb[0].mxu0 %v4202
      %v4934 = vpop.f32.mrb[0].mxu0
      %v4935 = vadd.f32 0.0, %v4934
      %v4936 = vpop.f32.mrb[0].mxu0
      %v4937 = vpop.f32.mrb[0].mxu0
      %v4938 = vadd.f32 0.0, %v4937
      %v4939 = vpop.f32.mrb[0].mxu0
      %4940 = vmatprep.mubr.bf16.mxu0 0
      %4941 = vmatmul.mubr.bf16.gmra.mrb[0].mxu0 %v4205
      %v4942 = vpop.f32.mrb[0].mxu0
      %v4943 = vadd.f32 0.0, %v4942
      %v4944 = vpop.f32.mrb[0].mxu0
      %v4945 = vpop.f32.mrb[0].mxu0
      %v4946 = vadd.f32 0.0, %v4945
      %v4947 = vpop.f32.mrb[0].mxu0
      %4948 = vmatprep.mubr.bf16.mxu0 0
      %4949 = vmatmul.mubr.bf16.gmra.mrb[0].mxu0 %v4208
      %v4950 = vpop.f32.mrb[0].mxu0
      %v4951 = vadd.f32 0.0, %v4950
      %v4952 = vpop.f32.mrb[0].mxu0
      %v4953 = vpop.f32.mrb[0].mxu0
      %v4954 = vadd.f32 0.0, %v4953
      %v4955 = vpop.f32.mrb[0].mxu0
      %4956 = vmatprep.mubr.bf16.mxu0 0
      %4957 = vmatmul.mubr.bf16.gmra.mrb[0].mxu0 %v4211
      %v4958 = vpop.f32.mrb[0].mxu0
      %v4959 = vadd.f32 0.0, %v4958
      %v4960 = vpop.f32.mrb[0].mxu0
      %v4961 = vpop.f32.mrb[0].mxu0
      %v4962 = vadd.f32 0.0, %v4961
      %v4963 = vpop.f32.mrb[0].mxu0
      %4964 = vmatprep.mubr.bf16.mxu0 0
      %4965 = vmatmul.mubr.bf16.gmra.mrb[0].mxu0 %v4214
      %v4966 = vpop.f32.mrb[0].mxu0
      %v4967 = vadd.f32 0.0, %v4966
      %v4968 = vpop.f32.mrb[0].mxu0
      %v4969 = vpop.f32.mrb[0].mxu0
      %v4970 = vadd.f32 0.0, %v4969
      %v4971 = vpop.f32.mrb[0].mxu0
      %4972 = vmatprep.mubr.bf16.mxu0 0
      %4973 = vmatmul.mubr.bf16.gmra.mrb[0].mxu0 %v4217
      %v4974 = vpop.f32.mrb[0].mxu0
      %v4975 = vadd.f32 0.0, %v4974
      %v4976 = vpop.f32.mrb[0].mxu0
      %v4977 = vpop.f32.mrb[0].mxu0
      %v4978 = vadd.f32 0.0, %v4977
      %v4979 = vpop.f32.mrb[0].mxu0
      %4980 = vmatprep.mubr.bf16.mxu0 0
      %4981 = vmatmul.mubr.bf16.gmra.mrb[0].mxu0 %v4823
      %v4982 = vpop.f32.mrb[0].mxu0
      %v4983 = vadd.f32 0.0, %v4982
      %v4984 = vpop.f32.mrb[0].mxu0
      %v4985 = vpop.f32.mrb[0].mxu0
      %v4986 = vadd.f32 0.0, %v4985
      %v4987 = vpop.f32.mrb[0].mxu0
      %4988 = vdwg.mxu0
      %v4989 = vadd.f32 %v4787, %v4863
      %v4990 = vadd.f32 %v4788, %v4866
      %v4991 = vadd.f32 %v4789, %v4871
      %v4992 = vadd.f32 %v4790, %v4874
      %v4993 = vadd.f32 %v4791, %v4879
      %v4994 = vadd.f32 %v4792, %v4882
      %v4995 = vadd.f32 %v4793, %v4887
      %v4996 = vadd.f32 %v4794, %v4890
      %v4997 = vadd.f32 %v4795, %v4895
      %v4998 = vadd.f32 %v4796, %v4898
      %v4999 = vadd.f32 %v4797, %v4903
      %v5000 = vadd.f32 %v4798, %v4906
      %v5001 = vadd.f32 %v4799, %v4911
      %v5002 = vadd.f32 %v4800, %v4914
      %v5003 = vadd.f32 %v4801, %v4919
      %v5004 = vadd.f32 %v4802, %v4922
      %v5005 = vadd.f32 %v4803, %v4927
      %v5006 = vadd.f32 %v4804, %v4930
      %v5007 = vadd.f32 %v4805, %v4935
      %v5008 = vadd.f32 %v4806, %v4938
      %v5009 = vadd.f32 %v4807, %v4943
      %v5010 = vadd.f32 %v4808, %v4946
      %v5011 = vadd.f32 %v4809, %v4951
      %v5012 = vadd.f32 %v4810, %v4954
      %v5013 = vadd.f32 %v4811, %v4959
      %v5014 = vadd.f32 %v4812, %v4962
      %v5015 = vadd.f32 %v4813, %v4967
      %v5016 = vadd.f32 %v4814, %v4970
      %v5017 = vadd.f32 %v4815, %v4975
      %v5018 = vadd.f32 %v4816, %v4978
      %v5019 = vadd.f32 %v4817, %v4983
      %v5020 = vadd.f32 %v4818, %v4986
      %v5021 = vpack.c.bf16 %v3661, %v3660
      %s5022 = scalar_lea.vmem %s2, 12
      %v5023 = vld [vmem:[%s5022] sm:$0x3]
      %v5025 = vsel %vm1229, %v5021, 0
      %v5028 = vsel %vm1275, %v5023, 0
      %5030 = vmatprep.subr.bf16.mxu0 0
      %5031 = vmatpush1.bf16.msra.mxu0 %v5028
      %5032 = vmatprep.subr.bf16.mxu0 0
      %5033 = vmatpush1.bf16.msra.mxu0 0
      %5034 = vmatprep.subr.bf16.mxu0 0
      %5035 = vmatpush1.bf16.msra.mxu0 0
      %5036 = vmatprep.subr.bf16.mxu0 0
      %5037 = vmatpush1.bf16.msra.mxu0 0
      %5038 = vmatprep.subr.bf16.mxu0 0
      %5039 = vmatpush1.bf16.msra.mxu0 0
      %5040 = vmatprep.subr.bf16.mxu0 0
      %5041 = vmatpush1.bf16.msra.mxu0 0
      %5042 = vmatprep.subr.bf16.mxu0 0
      %5043 = vmatpush1.bf16.msra.mxu0 0
      %5044 = vmatprep.subr.bf16.mxu0 0
      %5045 = vmatpush1.bf16.msra.mxu0 0
      %5046 = vmatprep.subr.bf16.mxu0 0
      %5047 = vmatpush1.bf16.msra.mxu0 0
      %5048 = vmatprep.subr.bf16.mxu0 0
      %5049 = vmatpush1.bf16.msra.mxu0 0
      %5050 = vmatprep.subr.bf16.mxu0 0
      %5051 = vmatpush1.bf16.msra.mxu0 0
      %5052 = vmatprep.subr.bf16.mxu0 0
      %5053 = vmatpush1.bf16.msra.mxu0 0
      %5054 = vmatprep.subr.bf16.mxu0 0
      %5055 = vmatpush1.bf16.msra.mxu0 0
      %5056 = vmatprep.subr.bf16.mxu0 0
      %5057 = vmatpush1.bf16.msra.mxu0 0
      %5058 = vmatprep.subr.bf16.mxu0 0
      %5059 = vmatpush1.bf16.msra.mxu0 0
      %5060 = vmatprep.subr.bf16.mxu0 0
      %5061 = vmatpush1.bf16.msra.mxu0 0
      %5062 = vmatprep.mubr.bf16.mxu0 0
      %5063 = vmatmul.mubr.bf16.gmra.mrb[0].mxu0 %v3948
      %v5064 = vpop.f32.mrb[0].mxu0
      %v5065 = vadd.f32 0.0, %v5064
      %v5066 = vpop.f32.mrb[0].mxu0
      %v5067 = vpop.f32.mrb[0].mxu0
      %v5068 = vadd.f32 0.0, %v5067
      %v5069 = vpop.f32.mrb[0].mxu0
      %5070 = vmatprep.mubr.bf16.mxu0 0
      %5071 = vmatmul.mubr.bf16.gmra.mrb[0].mxu0 %v3951
      %v5072 = vpop.f32.mrb[0].mxu0
      %v5073 = vadd.f32 0.0, %v5072
      %v5074 = vpop.f32.mrb[0].mxu0
      %v5075 = vpop.f32.mrb[0].mxu0
      %v5076 = vadd.f32 0.0, %v5075
      %v5077 = vpop.f32.mrb[0].mxu0
      %5078 = vmatprep.mubr.bf16.mxu0 0
      %5079 = vmatmul.mubr.bf16.gmra.mrb[0].mxu0 %v3954
      %v5080 = vpop.f32.mrb[0].mxu0
      %v5081 = vadd.f32 0.0, %v5080
      %v5082 = vpop.f32.mrb[0].mxu0
      %v5083 = vpop.f32.mrb[0].mxu0
      %v5084 = vadd.f32 0.0, %v5083
      %v5085 = vpop.f32.mrb[0].mxu0
      %5086 = vmatprep.mubr.bf16.mxu0 0
      %5087 = vmatmul.mubr.bf16.gmra.mrb[0].mxu0 %v3957
      %v5088 = vpop.f32.mrb[0].mxu0
      %v5089 = vadd.f32 0.0, %v5088
      %v5090 = vpop.f32.mrb[0].mxu0
      %v5091 = vpop.f32.mrb[0].mxu0
      %v5092 = vadd.f32 0.0, %v5091
      %v5093 = vpop.f32.mrb[0].mxu0
      %5094 = vmatprep.mubr.bf16.mxu0 0
      %5095 = vmatmul.mubr.bf16.gmra.mrb[0].mxu0 %v3960
      %v5096 = vpop.f32.mrb[0].mxu0
      %v5097 = vadd.f32 0.0, %v5096
      %v5098 = vpop.f32.mrb[0].mxu0
      %v5099 = vpop.f32.mrb[0].mxu0
      %v5100 = vadd.f32 0.0, %v5099
      %v5101 = vpop.f32.mrb[0].mxu0
      %5102 = vmatprep.mubr.bf16.mxu0 0
      %5103 = vmatmul.mubr.bf16.gmra.mrb[0].mxu0 %v3963
      %v5104 = vpop.f32.mrb[0].mxu0
      %v5105 = vadd.f32 0.0, %v5104
      %v5106 = vpop.f32.mrb[0].mxu0
      %v5107 = vpop.f32.mrb[0].mxu0
      %v5108 = vadd.f32 0.0, %v5107
      %v5109 = vpop.f32.mrb[0].mxu0
      %5110 = vmatprep.mubr.bf16.mxu0 0
      %5111 = vmatmul.mubr.bf16.gmra.mrb[0].mxu0 %v3966
      %v5112 = vpop.f32.mrb[0].mxu0
      %v5113 = vadd.f32 0.0, %v5112
      %v5114 = vpop.f32.mrb[0].mxu0
      %v5115 = vpop.f32.mrb[0].mxu0
      %v5116 = vadd.f32 0.0, %v5115
      %v5117 = vpop.f32.mrb[0].mxu0
      %5118 = vmatprep.mubr.bf16.mxu0 0
      %5119 = vmatmul.mubr.bf16.gmra.mrb[0].mxu0 %v3969
      %v5120 = vpop.f32.mrb[0].mxu0
      %v5121 = vadd.f32 0.0, %v5120
      %v5122 = vpop.f32.mrb[0].mxu0
      %v5123 = vpop.f32.mrb[0].mxu0
      %v5124 = vadd.f32 0.0, %v5123
      %v5125 = vpop.f32.mrb[0].mxu0
      %5126 = vmatprep.mubr.bf16.mxu0 0
      %5127 = vmatmul.mubr.bf16.gmra.mrb[0].mxu0 %v3972
      %v5128 = vpop.f32.mrb[0].mxu0
      %v5129 = vadd.f32 0.0, %v5128
      %v5130 = vpop.f32.mrb[0].mxu0
      %v5131 = vpop.f32.mrb[0].mxu0
      %v5132 = vadd.f32 0.0, %v5131
      %v5133 = vpop.f32.mrb[0].mxu0
      %5134 = vmatprep.mubr.bf16.mxu0 0
      %5135 = vmatmul.mubr.bf16.gmra.mrb[0].mxu0 %v3975
      %v5136 = vpop.f32.mrb[0].mxu0
      %v5137 = vadd.f32 0.0, %v5136
      %v5138 = vpop.f32.mrb[0].mxu0
      %v5139 = vpop.f32.mrb[0].mxu0
      %v5140 = vadd.f32 0.0, %v5139
      %v5141 = vpop.f32.mrb[0].mxu0
      %5142 = vmatprep.mubr.bf16.mxu0 0
      %5143 = vmatmul.mubr.bf16.gmra.mrb[0].mxu0 %v3978
      %v5144 = vpop.f32.mrb[0].mxu0
      %v5145 = vadd.f32 0.0, %v5144
      %v5146 = vpop.f32.mrb[0].mxu0
      %v5147 = vpop.f32.mrb[0].mxu0
      %v5148 = vadd.f32 0.0, %v5147
      %v5149 = vpop.f32.mrb[0].mxu0
      %5150 = vmatprep.mubr.bf16.mxu0 0
      %5151 = vmatmul.mubr.bf16.gmra.mrb[0].mxu0 %v3981
      %v5152 = vpop.f32.mrb[0].mxu0
      %v5153 = vadd.f32 0.0, %v5152
      %v5154 = vpop.f32.mrb[0].mxu0
      %v5155 = vpop.f32.mrb[0].mxu0
      %v5156 = vadd.f32 0.0, %v5155
      %v5157 = vpop.f32.mrb[0].mxu0
      %5158 = vmatprep.mubr.bf16.mxu0 0
      %5159 = vmatmul.mubr.bf16.gmra.mrb[0].mxu0 %v3984
      %v5160 = vpop.f32.mrb[0].mxu0
      %v5161 = vadd.f32 0.0, %v5160
      %v5162 = vpop.f32.mrb[0].mxu0
      %v5163 = vpop.f32.mrb[0].mxu0
      %v5164 = vadd.f32 0.0, %v5163
      %v5165 = vpop.f32.mrb[0].mxu0
      %5166 = vmatprep.mubr.bf16.mxu0 0
      %5167 = vmatmul.mubr.bf16.gmra.mrb[0].mxu0 %v3987
      %v5168 = vpop.f32.mrb[0].mxu0
      %v5169 = vadd.f32 0.0, %v5168
      %v5170 = vpop.f32.mrb[0].mxu0
      %v5171 = vpop.f32.mrb[0].mxu0
      %v5172 = vadd.f32 0.0, %v5171
      %v5173 = vpop.f32.mrb[0].mxu0
      %5174 = vmatprep.mubr.bf16.mxu0 0
      %5175 = vmatmul.mubr.bf16.gmra.mrb[0].mxu0 %v4419
      %v5176 = vpop.f32.mrb[0].mxu0
      %v5177 = vadd.f32 0.0, %v5176
      %v5178 = vpop.f32.mrb[0].mxu0
      %v5179 = vpop.f32.mrb[0].mxu0
      %v5180 = vadd.f32 0.0, %v5179
      %v5181 = vpop.f32.mrb[0].mxu0
      %5182 = vmatprep.mubr.bf16.mxu0 0
      %5183 = vmatmul.mubr.bf16.gmra.mrb[0].mxu0 %v5025
      %v5184 = vpop.f32.mrb[0].mxu0
      %v5185 = vadd.f32 0.0, %v5184
      %v5186 = vpop.f32.mrb[0].mxu0
      %v5187 = vpop.f32.mrb[0].mxu0
      %v5188 = vadd.f32 0.0, %v5187
      %v5189 = vpop.f32.mrb[0].mxu0
      %5190 = vdwg.mxu0
      %v5191 = vadd.f32 %v4989, %v5065
      %v5192 = vadd.f32 %v4990, %v5068
      %v5193 = vadd.f32 %v4991, %v5073
      %v5194 = vadd.f32 %v4992, %v5076
      %v5195 = vadd.f32 %v4993, %v5081
      %v5196 = vadd.f32 %v4994, %v5084
      %v5197 = vadd.f32 %v4995, %v5089
      %v5198 = vadd.f32 %v4996, %v5092
      %v5199 = vadd.f32 %v4997, %v5097
      %v5200 = vadd.f32 %v4998, %v5100
      %v5201 = vadd.f32 %v4999, %v5105
      %v5202 = vadd.f32 %v5000, %v5108
      %v5203 = vadd.f32 %v5001, %v5113
      %v5204 = vadd.f32 %v5002, %v5116
      %v5205 = vadd.f32 %v5003, %v5121
      %v5206 = vadd.f32 %v5004, %v5124
      %v5207 = vadd.f32 %v5005, %v5129
      %v5208 = vadd.f32 %v5006, %v5132
      %v5209 = vadd.f32 %v5007, %v5137
      %v5210 = vadd.f32 %v5008, %v5140
      %v5211 = vadd.f32 %v5009, %v5145
      %v5212 = vadd.f32 %v5010, %v5148
      %v5213 = vadd.f32 %v5011, %v5153
      %v5214 = vadd.f32 %v5012, %v5156
      %v5215 = vadd.f32 %v5013, %v5161
      %v5216 = vadd.f32 %v5014, %v5164
      %v5217 = vadd.f32 %v5015, %v5169
      %v5218 = vadd.f32 %v5016, %v5172
      %v5219 = vadd.f32 %v5017, %v5177
      %v5220 = vadd.f32 %v5018, %v5180
      %v5221 = vadd.f32 %v5019, %v5185
      %v5222 = vadd.f32 %v5020, %v5188
      %s5223 = scalar_lea.vmem %s2, 14
      %v5224 = vld [vmem:[%s5223] sm:$0x3]
      %v5226 = vsel %vm1275, %v5224, 0
      %5228 = vmatprep.subr.bf16.mxu0 0
      %5229 = vmatpush1.bf16.msra.mxu0 %v5226
      %5230 = vmatprep.subr.bf16.mxu0 0
      %5231 = vmatpush1.bf16.msra.mxu0 0
      %5232 = vmatprep.subr.bf16.mxu0 0
      %5233 = vmatpush1.bf16.msra.mxu0 0
      %5234 = vmatprep.subr.bf16.mxu0 0
      %5235 = vmatpush1.bf16.msra.mxu0 0
      %5236 = vmatprep.subr.bf16.mxu0 0
      %5237 = vmatpush1.bf16.msra.mxu0 0
      %5238 = vmatprep.subr.bf16.mxu0 0
      %5239 = vmatpush1.bf16.msra.mxu0 0
      %5240 = vmatprep.subr.bf16.mxu0 0
      %5241 = vmatpush1.bf16.msra.mxu0 0
      %5242 = vmatprep.subr.bf16.mxu0 0
      %5243 = vmatpush1.bf16.msra.mxu0 0
      %5244 = vmatprep.subr.bf16.mxu0 0
      %5245 = vmatpush1.bf16.msra.mxu0 0
      %5246 = vmatprep.subr.bf16.mxu0 0
      %5247 = vmatpush1.bf16.msra.mxu0 0
      %5248 = vmatprep.subr.bf16.mxu0 0
      %5249 = vmatpush1.bf16.msra.mxu0 0
      %5250 = vmatprep.subr.bf16.mxu0 0
      %5251 = vmatpush1.bf16.msra.mxu0 0
      %5252 = vmatprep.subr.bf16.mxu0 0
      %5253 = vmatpush1.bf16.msra.mxu0 0
      %5254 = vmatprep.subr.bf16.mxu0 0
      %5255 = vmatpush1.bf16.msra.mxu0 0
      %5256 = vmatprep.subr.bf16.mxu0 0
      %5257 = vmatpush1.bf16.msra.mxu0 0
      %5258 = vmatprep.subr.bf16.mxu0 0
      %5259 = vmatpush1.bf16.msra.mxu0 0
      %5260 = vmatprep.mubr.bf16.mxu0 0
      %5261 = vmatmul.mubr.bf16.gmra.mrb[0].mxu0 %v3733
      %v5262 = vpop.f32.mrb[0].mxu0
      %v5263 = vadd.f32 0.0, %v5262
      %v5264 = vpop.f32.mrb[0].mxu0
      %v5265 = vpop.f32.mrb[0].mxu0
      %v5266 = vadd.f32 0.0, %v5265
      %v5267 = vpop.f32.mrb[0].mxu0
      %5268 = vmatprep.mubr.bf16.mxu0 0
      %5269 = vmatmul.mubr.bf16.gmra.mrb[0].mxu0 %v3739
      %v5270 = vpop.f32.mrb[0].mxu0
      %v5271 = vadd.f32 0.0, %v5270
      %v5272 = vpop.f32.mrb[0].mxu0
      %v5273 = vpop.f32.mrb[0].mxu0
      %v5274 = vadd.f32 0.0, %v5273
      %v5275 = vpop.f32.mrb[0].mxu0
      %5276 = vmatprep.mubr.bf16.mxu0 0
      %5277 = vmatmul.mubr.bf16.gmra.mrb[0].mxu0 %v3742
      %v5278 = vpop.f32.mrb[0].mxu0
      %v5279 = vadd.f32 0.0, %v5278
      %v5280 = vpop.f32.mrb[0].mxu0
      %v5281 = vpop.f32.mrb[0].mxu0
      %v5282 = vadd.f32 0.0, %v5281
      %v5283 = vpop.f32.mrb[0].mxu0
      %5284 = vmatprep.mubr.bf16.mxu0 0
      %5285 = vmatmul.mubr.bf16.gmra.mrb[0].mxu0 %v3745
      %v5286 = vpop.f32.mrb[0].mxu0
      %v5287 = vadd.f32 0.0, %v5286
      %v5288 = vpop.f32.mrb[0].mxu0
      %v5289 = vpop.f32.mrb[0].mxu0
      %v5290 = vadd.f32 0.0, %v5289
      %v5291 = vpop.f32.mrb[0].mxu0
      %5292 = vmatprep.mubr.bf16.mxu0 0
      %5293 = vmatmul.mubr.bf16.gmra.mrb[0].mxu0 %v3748
      %v5294 = vpop.f32.mrb[0].mxu0
      %v5295 = vadd.f32 0.0, %v5294
      %v5296 = vpop.f32.mrb[0].mxu0
      %v5297 = vpop.f32.mrb[0].mxu0
      %v5298 = vadd.f32 0.0, %v5297
      %v5299 = vpop.f32.mrb[0].mxu0
      %5300 = vmatprep.mubr.bf16.mxu0 0
      %5301 = vmatmul.mubr.bf16.gmra.mrb[0].mxu0 %v3751
      %v5302 = vpop.f32.mrb[0].mxu0
      %v5303 = vadd.f32 0.0, %v5302
      %v5304 = vpop.f32.mrb[0].mxu0
      %v5305 = vpop.f32.mrb[0].mxu0
      %v5306 = vadd.f32 0.0, %v5305
      %v5307 = vpop.f32.mrb[0].mxu0
      %5308 = vmatprep.mubr.bf16.mxu0 0
      %5309 = vmatmul.mubr.bf16.gmra.mrb[0].mxu0 %v3754
      %v5310 = vpop.f32.mrb[0].mxu0
      %v5311 = vadd.f32 0.0, %v5310
      %v5312 = vpop.f32.mrb[0].mxu0
      %v5313 = vpop.f32.mrb[0].mxu0
      %v5314 = vadd.f32 0.0, %v5313
      %v5315 = vpop.f32.mrb[0].mxu0
      %5316 = vmatprep.mubr.bf16.mxu0 0
      %5317 = vmatmul.mubr.bf16.gmra.mrb[0].mxu0 %v3757
      %v5318 = vpop.f32.mrb[0].mxu0
      %v5319 = vadd.f32 0.0, %v5318
      %v5320 = vpop.f32.mrb[0].mxu0
      %v5321 = vpop.f32.mrb[0].mxu0
      %v5322 = vadd.f32 0.0, %v5321
      %v5323 = vpop.f32.mrb[0].mxu0
      %5324 = vmatprep.mubr.bf16.mxu0 0
      %5325 = vmatmul.mubr.bf16.gmra.mrb[0].mxu0 %v3760
      %v5326 = vpop.f32.mrb[0].mxu0
      %v5327 = vadd.f32 0.0, %v5326
      %v5328 = vpop.f32.mrb[0].mxu0
      %v5329 = vpop.f32.mrb[0].mxu0
      %v5330 = vadd.f32 0.0, %v5329
      %v5331 = vpop.f32.mrb[0].mxu0
      %5332 = vmatprep.mubr.bf16.mxu0 0
      %5333 = vmatmul.mubr.bf16.gmra.mrb[0].mxu0 %v3763
      %v5334 = vpop.f32.mrb[0].mxu0
      %v5335 = vadd.f32 0.0, %v5334
      %v5336 = vpop.f32.mrb[0].mxu0
      %v5337 = vpop.f32.mrb[0].mxu0
      %v5338 = vadd.f32 0.0, %v5337
      %v5339 = vpop.f32.mrb[0].mxu0
      %5340 = vmatprep.mubr.bf16.mxu0 0
      %5341 = vmatmul.mubr.bf16.gmra.mrb[0].mxu0 %v3766
      %v5342 = vpop.f32.mrb[0].mxu0
      %v5343 = vadd.f32 0.0, %v5342
      %v5344 = vpop.f32.mrb[0].mxu0
      %v5345 = vpop.f32.mrb[0].mxu0
      %v5346 = vadd.f32 0.0, %v5345
      %v5347 = vpop.f32.mrb[0].mxu0
      %5348 = vmatprep.mubr.bf16.mxu0 0
      %5349 = vmatmul.mubr.bf16.gmra.mrb[0].mxu0 %v3769
      %v5350 = vpop.f32.mrb[0].mxu0
      %v5351 = vadd.f32 0.0, %v5350
      %v5352 = vpop.f32.mrb[0].mxu0
      %v5353 = vpop.f32.mrb[0].mxu0
      %v5354 = vadd.f32 0.0, %v5353
      %v5355 = vpop.f32.mrb[0].mxu0
      %5356 = vmatprep.mubr.bf16.mxu0 0
      %5357 = vmatmul.mubr.bf16.gmra.mrb[0].mxu0 %v3772
      %v5358 = vpop.f32.mrb[0].mxu0
      %v5359 = vadd.f32 0.0, %v5358
      %v5360 = vpop.f32.mrb[0].mxu0
      %v5361 = vpop.f32.mrb[0].mxu0
      %v5362 = vadd.f32 0.0, %v5361
      %v5363 = vpop.f32.mrb[0].mxu0
      %5364 = vmatprep.mubr.bf16.mxu0 0
      %5365 = vmatmul.mubr.bf16.gmra.mrb[0].mxu0 %v3775
      %v5366 = vpop.f32.mrb[0].mxu0
      %v5367 = vadd.f32 0.0, %v5366
      %v5368 = vpop.f32.mrb[0].mxu0
      %v5369 = vpop.f32.mrb[0].mxu0
      %v5370 = vadd.f32 0.0, %v5369
      %v5371 = vpop.f32.mrb[0].mxu0
      %5372 = vmatprep.mubr.bf16.mxu0 0
      %5373 = vmatmul.mubr.bf16.gmra.mrb[0].mxu0 %v4621
      %v5374 = vpop.f32.mrb[0].mxu0
      %v5375 = vadd.f32 0.0, %v5374
      %v5376 = vpop.f32.mrb[0].mxu0
      %v5377 = vpop.f32.mrb[0].mxu0
      %v5378 = vadd.f32 0.0, %v5377
      %v5379 = vpop.f32.mrb[0].mxu0
      %5380 = vmatprep.mubr.bf16.mxu0 0
      %5381 = vmatmul.mubr.bf16.gmra.mrb[0].mxu0 %v3775
      %v5382 = vpop.f32.mrb[0].mxu0
      %v5383 = vadd.f32 0.0, %v5382
      %v5384 = vpop.f32.mrb[0].mxu0
      %v5385 = vpop.f32.mrb[0].mxu0
      %v5386 = vadd.f32 0.0, %v5385
      %v5387 = vpop.f32.mrb[0].mxu0
      %5388 = vdwg.mxu0
      %v5389 = vadd.f32 %v5191, %v5263
      %v5390 = vadd.f32 %v5192, %v5266
      %v5391 = vadd.f32 %v5193, %v5271
      %v5392 = vadd.f32 %v5194, %v5274
      %v5393 = vadd.f32 %v5195, %v5279
      %v5394 = vadd.f32 %v5196, %v5282
      %v5395 = vadd.f32 %v5197, %v5287
      %v5396 = vadd.f32 %v5198, %v5290
      %v5397 = vadd.f32 %v5199, %v5295
      %v5398 = vadd.f32 %v5200, %v5298
      %v5399 = vadd.f32 %v5201, %v5303
      %v5400 = vadd.f32 %v5202, %v5306
      %v5401 = vadd.f32 %v5203, %v5311
      %v5402 = vadd.f32 %v5204, %v5314
      %v5403 = vadd.f32 %v5205, %v5319
      %v5404 = vadd.f32 %v5206, %v5322
      %v5405 = vadd.f32 %v5207, %v5327
      %v5406 = vadd.f32 %v5208, %v5330
      %v5407 = vadd.f32 %v5209, %v5335
      %v5408 = vadd.f32 %v5210, %v5338
      %v5409 = vadd.f32 %v5211, %v5343
      %v5410 = vadd.f32 %v5212, %v5346
      %v5411 = vadd.f32 %v5213, %v5351
      %v5412 = vadd.f32 %v5214, %v5354
      %v5413 = vadd.f32 %v5215, %v5359
      %v5414 = vadd.f32 %v5216, %v5362
      %v5415 = vadd.f32 %v5217, %v5367
      %v5416 = vadd.f32 %v5218, %v5370
      %v5417 = vadd.f32 %v5219, %v5375
      %v5418 = vadd.f32 %v5220, %v5378
      %v5419 = vadd.f32 %v5221, %v5383
      %v5420 = vadd.f32 %v5222, %v5386
      %v5421 = vpack.c.bf16 %v3697, %v3696
      %s5422 = scalar_lea.vmem %s2, 16
      %v5423 = vld [vmem:[%s5422] sm:$0x3]
      %v5425 = vsel %vm1229, %v5421, 0
      %v5428 = vsel %vm1275, %v5423, 0
      %5430 = vmatprep.subr.bf16.mxu0 0
      %5431 = vmatpush1.bf16.msra.mxu0 %v5428
      %5432 = vmatprep.subr.bf16.mxu0 0
      %5433 = vmatpush1.bf16.msra.mxu0 0
      %5434 = vmatprep.subr.bf16.mxu0 0
      %5435 = vmatpush1.bf16.msra.mxu0 0
      %5436 = vmatprep.subr.bf16.mxu0 0
      %5437 = vmatpush1.bf16.msra.mxu0 0
      %5438 = vmatprep.subr.bf16.mxu0 0
      %5439 = vmatpush1.bf16.msra.mxu0 0
      %5440 = vmatprep.subr.bf16.mxu0 0
      %5441 = vmatpush1.bf16.msra.mxu0 0
      %5442 = vmatprep.subr.bf16.mxu0 0
      %5443 = vmatpush1.bf16.msra.mxu0 0
      %5444 = vmatprep.subr.bf16.mxu0 0
      %5445 = vmatpush1.bf16.msra.mxu0 0
      %5446 = vmatprep.subr.bf16.mxu0 0
      %5447 = vmatpush1.bf16.msra.mxu0 0
      %5448 = vmatprep.subr.bf16.mxu0 0
      %5449 = vmatpush1.bf16.msra.mxu0 0
      %5450 = vmatprep.subr.bf16.mxu0 0
      %5451 = vmatpush1.bf16.msra.mxu0 0
      %5452 = vmatprep.subr.bf16.mxu0 0
      %5453 = vmatpush1.bf16.msra.mxu0 0
      %5454 = vmatprep.subr.bf16.mxu0 0
      %5455 = vmatpush1.bf16.msra.mxu0 0
      %5456 = vmatprep.subr.bf16.mxu0 0
      %5457 = vmatpush1.bf16.msra.mxu0 0
      %5458 = vmatprep.subr.bf16.mxu0 0
      %5459 = vmatpush1.bf16.msra.mxu0 0
      %5460 = vmatprep.subr.bf16.mxu0 0
      %5461 = vmatpush1.bf16.msra.mxu0 0
      %5462 = vmatprep.mubr.bf16.mxu0 0
      %5463 = vmatmul.mubr.bf16.gmra.mrb[0].mxu0 %v4178
      %v5464 = vpop.f32.mrb[0].mxu0
      %v5465 = vadd.f32 0.0, %v5464
      %v5466 = vpop.f32.mrb[0].mxu0
      %v5467 = vpop.f32.mrb[0].mxu0
      %v5468 = vadd.f32 0.0, %v5467
      %v5469 = vpop.f32.mrb[0].mxu0
      %5470 = vmatprep.mubr.bf16.mxu0 0
      %5471 = vmatmul.mubr.bf16.gmra.mrb[0].mxu0 %v4181
      %v5472 = vpop.f32.mrb[0].mxu0
      %v5473 = vadd.f32 0.0, %v5472
      %v5474 = vpop.f32.mrb[0].mxu0
      %v5475 = vpop.f32.mrb[0].mxu0
      %v5476 = vadd.f32 0.0, %v5475
      %v5477 = vpop.f32.mrb[0].mxu0
      %5478 = vmatprep.mubr.bf16.mxu0 0
      %5479 = vmatmul.mubr.bf16.gmra.mrb[0].mxu0 %v4184
      %v5480 = vpop.f32.mrb[0].mxu0
      %v5481 = vadd.f32 0.0, %v5480
      %v5482 = vpop.f32.mrb[0].mxu0
      %v5483 = vpop.f32.mrb[0].mxu0
      %v5484 = vadd.f32 0.0, %v5483
      %v5485 = vpop.f32.mrb[0].mxu0
      %5486 = vmatprep.mubr.bf16.mxu0 0
      %5487 = vmatmul.mubr.bf16.gmra.mrb[0].mxu0 %v4187
      %v5488 = vpop.f32.mrb[0].mxu0
      %v5489 = vadd.f32 0.0, %v5488
      %v5490 = vpop.f32.mrb[0].mxu0
      %v5491 = vpop.f32.mrb[0].mxu0
      %v5492 = vadd.f32 0.0, %v5491
      %v5493 = vpop.f32.mrb[0].mxu0
      %5494 = vmatprep.mubr.bf16.mxu0 0
      %5495 = vmatmul.mubr.bf16.gmra.mrb[0].mxu0 %v4190
      %v5496 = vpop.f32.mrb[0].mxu0
      %v5497 = vadd.f32 0.0, %v5496
      %v5498 = vpop.f32.mrb[0].mxu0
      %v5499 = vpop.f32.mrb[0].mxu0
      %v5500 = vadd.f32 0.0, %v5499
      %v5501 = vpop.f32.mrb[0].mxu0
      %5502 = vmatprep.mubr.bf16.mxu0 0
      %5503 = vmatmul.mubr.bf16.gmra.mrb[0].mxu0 %v4193
      %v5504 = vpop.f32.mrb[0].mxu0
      %v5505 = vadd.f32 0.0, %v5504
      %v5506 = vpop.f32.mrb[0].mxu0
      %v5507 = vpop.f32.mrb[0].mxu0
      %v5508 = vadd.f32 0.0, %v5507
      %v5509 = vpop.f32.mrb[0].mxu0
      %5510 = vmatprep.mubr.bf16.mxu0 0
      %5511 = vmatmul.mubr.bf16.gmra.mrb[0].mxu0 %v4196
      %v5512 = vpop.f32.mrb[0].mxu0
      %v5513 = vadd.f32 0.0, %v5512
      %v5514 = vpop.f32.mrb[0].mxu0
      %v5515 = vpop.f32.mrb[0].mxu0
      %v5516 = vadd.f32 0.0, %v5515
      %v5517 = vpop.f32.mrb[0].mxu0
      %5518 = vmatprep.mubr.bf16.mxu0 0
      %5519 = vmatmul.mubr.bf16.gmra.mrb[0].mxu0 %v4199
      %v5520 = vpop.f32.mrb[0].mxu0
      %v5521 = vadd.f32 0.0, %v5520
      %v5522 = vpop.f32.mrb[0].mxu0
      %v5523 = vpop.f32.mrb[0].mxu0
      %v5524 = vadd.f32 0.0, %v5523
      %v5525 = vpop.f32.mrb[0].mxu0
      %5526 = vmatprep.mubr.bf16.mxu0 0
      %5527 = vmatmul.mubr.bf16.gmra.mrb[0].mxu0 %v4202
      %v5528 = vpop.f32.mrb[0].mxu0
      %v5529 = vadd.f32 0.0, %v5528
      %v5530 = vpop.f32.mrb[0].mxu0
      %v5531 = vpop.f32.mrb[0].mxu0
      %v5532 = vadd.f32 0.0, %v5531
      %v5533 = vpop.f32.mrb[0].mxu0
      %5534 = vmatprep.mubr.bf16.mxu0 0
      %5535 = vmatmul.mubr.bf16.gmra.mrb[0].mxu0 %v4205
      %v5536 = vpop.f32.mrb[0].mxu0
      %v5537 = vadd.f32 0.0, %v5536
      %v5538 = vpop.f32.mrb[0].mxu0
      %v5539 = vpop.f32.mrb[0].mxu0
      %v5540 = vadd.f32 0.0, %v5539
      %v5541 = vpop.f32.mrb[0].mxu0
      %5542 = vmatprep.mubr.bf16.mxu0 0
      %5543 = vmatmul.mubr.bf16.gmra.mrb[0].mxu0 %v4208
      %v5544 = vpop.f32.mrb[0].mxu0
      %v5545 = vadd.f32 0.0, %v5544
      %v5546 = vpop.f32.mrb[0].mxu0
      %v5547 = vpop.f32.mrb[0].mxu0
      %v5548 = vadd.f32 0.0, %v5547
      %v5549 = vpop.f32.mrb[0].mxu0
      %5550 = vmatprep.mubr.bf16.mxu0 0
      %5551 = vmatmul.mubr.bf16.gmra.mrb[0].mxu0 %v4211
      %v5552 = vpop.f32.mrb[0].mxu0
      %v5553 = vadd.f32 0.0, %v5552
      %v5554 = vpop.f32.mrb[0].mxu0
      %v5555 = vpop.f32.mrb[0].mxu0
      %v5556 = vadd.f32 0.0, %v5555
      %v5557 = vpop.f32.mrb[0].mxu0
      %5558 = vmatprep.mubr.bf16.mxu0 0
      %5559 = vmatmul.mubr.bf16.gmra.mrb[0].mxu0 %v4214
      %v5560 = vpop.f32.mrb[0].mxu0
      %v5561 = vadd.f32 0.0, %v5560
      %v5562 = vpop.f32.mrb[0].mxu0
      %v5563 = vpop.f32.mrb[0].mxu0
      %v5564 = vadd.f32 0.0, %v5563
      %v5565 = vpop.f32.mrb[0].mxu0
      %5566 = vmatprep.mubr.bf16.mxu0 0
      %5567 = vmatmul.mubr.bf16.gmra.mrb[0].mxu0 %v4217
      %v5568 = vpop.f32.mrb[0].mxu0
      %v5569 = vadd.f32 0.0, %v5568
      %v5570 = vpop.f32.mrb[0].mxu0
      %v5571 = vpop.f32.mrb[0].mxu0
      %v5572 = vadd.f32 0.0, %v5571
      %v5573 = vpop.f32.mrb[0].mxu0
      %5574 = vmatprep.mubr.bf16.mxu0 0
      %5575 = vmatmul.mubr.bf16.gmra.mrb[0].mxu0 %v4823
      %v5576 = vpop.f32.mrb[0].mxu0
      %v5577 = vadd.f32 0.0, %v5576
      %v5578 = vpop.f32.mrb[0].mxu0
      %v5579 = vpop.f32.mrb[0].mxu0
      %v5580 = vadd.f32 0.0, %v5579
      %v5581 = vpop.f32.mrb[0].mxu0
      %5582 = vmatprep.mubr.bf16.mxu0 0
      %5583 = vmatmul.mubr.bf16.gmra.mrb[0].mxu0 %v5425
      %v5584 = vpop.f32.mrb[0].mxu0
      %v5585 = vadd.f32 0.0, %v5584
      %v5586 = vpop.f32.mrb[0].mxu0
      %v5587 = vpop.f32.mrb[0].mxu0
      %v5588 = vadd.f32 0.0, %v5587
      %v5589 = vpop.f32.mrb[0].mxu0
      %5590 = vdwg.mxu0
      %v5591 = vadd.f32 %v5389, %v5465
      %v5592 = vadd.f32 %v5390, %v5468
      %v5593 = vadd.f32 %v5391, %v5473
      %v5594 = vadd.f32 %v5392, %v5476
      %v5595 = vadd.f32 %v5393, %v5481
      %v5596 = vadd.f32 %v5394, %v5484
      %v5597 = vadd.f32 %v5395, %v5489
      %v5598 = vadd.f32 %v5396, %v5492
      %v5599 = vadd.f32 %v5397, %v5497
      %v5600 = vadd.f32 %v5398, %v5500
      %v5601 = vadd.f32 %v5399, %v5505
      %v5602 = vadd.f32 %v5400, %v5508
      %v5603 = vadd.f32 %v5401, %v5513
      %v5604 = vadd.f32 %v5402, %v5516
      %v5605 = vadd.f32 %v5403, %v5521
      %v5606 = vadd.f32 %v5404, %v5524
      %v5607 = vadd.f32 %v5405, %v5529
      %v5608 = vadd.f32 %v5406, %v5532
      %v5609 = vadd.f32 %v5407, %v5537
      %v5610 = vadd.f32 %v5408, %v5540
      %v5611 = vadd.f32 %v5409, %v5545
      %v5612 = vadd.f32 %v5410, %v5548
      %v5613 = vadd.f32 %v5411, %v5553
      %v5614 = vadd.f32 %v5412, %v5556
      %v5615 = vadd.f32 %v5413, %v5561
      %v5616 = vadd.f32 %v5414, %v5564
      %v5617 = vadd.f32 %v5415, %v5569
      %v5618 = vadd.f32 %v5416, %v5572
      %v5619 = vadd.f32 %v5417, %v5577
      %v5620 = vadd.f32 %v5418, %v5580
      %v5621 = vadd.f32 %v5419, %v5585
      %v5622 = vadd.f32 %v5420, %v5588
      %v5623 = vsel %vm1229, %v5591, 0.0
      %v5624 = vsel %vm1229, %v5592, 0.0
      %v5625 = vadd.f32 %v5623, %v5624
      %v5626 = vsel %vm1229, %v5593, 0.0
      %v5627 = vadd.f32 %v5625, %v5626
      %v5628 = vsel %vm1229, %v5594, 0.0
      %v5629 = vadd.f32 %v5627, %v5628
      %v5630 = vsel %vm1229, %v5595, 0.0
      %v5631 = vadd.f32 %v5629, %v5630
      %v5632 = vsel %vm1229, %v5596, 0.0
      %v5633 = vadd.f32 %v5631, %v5632
      %v5634 = vsel %vm1229, %v5597, 0.0
      %v5635 = vadd.f32 %v5633, %v5634
      %v5636 = vsel %vm1229, %v5598, 0.0
      %v5637 = vadd.f32 %v5635, %v5636
      %v5638 = vsel %vm1229, %v5599, 0.0
      %v5639 = vadd.f32 %v5637, %v5638
      %v5640 = vsel %vm1229, %v5600, 0.0
      %v5641 = vadd.f32 %v5639, %v5640
      %v5642 = vsel %vm1229, %v5601, 0.0
      %v5643 = vadd.f32 %v5641, %v5642
      %v5644 = vsel %vm1229, %v5602, 0.0
      %v5645 = vadd.f32 %v5643, %v5644
      %v5646 = vsel %vm1229, %v5603, 0.0
      %v5647 = vadd.f32 %v5645, %v5646
      %v5648 = vsel %vm1229, %v5604, 0.0
      %v5649 = vadd.f32 %v5647, %v5648
      %v5650 = vsel %vm1229, %v5605, 0.0
      %v5651 = vadd.f32 %v5649, %v5650
      %v5652 = vsel %vm1229, %v5606, 0.0
      %v5653 = vadd.f32 %v5651, %v5652
      %v5654 = vsel %vm1229, %v5607, 0.0
      %v5655 = vadd.f32 %v5653, %v5654
      %v5656 = vsel %vm1229, %v5608, 0.0
      %v5657 = vadd.f32 %v5655, %v5656
      %v5658 = vsel %vm1229, %v5609, 0.0
      %v5659 = vadd.f32 %v5657, %v5658
      %v5660 = vsel %vm1229, %v5610, 0.0
      %v5661 = vadd.f32 %v5659, %v5660
      %v5662 = vsel %vm1229, %v5611, 0.0
      %v5663 = vadd.f32 %v5661, %v5662
      %v5664 = vsel %vm1229, %v5612, 0.0
      %v5665 = vadd.f32 %v5663, %v5664
      %v5666 = vsel %vm1229, %v5613, 0.0
      %v5667 = vadd.f32 %v5665, %v5666
      %v5668 = vsel %vm1229, %v5614, 0.0
      %v5669 = vadd.f32 %v5667, %v5668
      %v5670 = vsel %vm1229, %v5615, 0.0
      %v5671 = vadd.f32 %v5669, %v5670
      %v5672 = vsel %vm1229, %v5616, 0.0
      %v5673 = vadd.f32 %v5671, %v5672
      %v5674 = vsel %vm1229, %v5617, 0.0
      %v5675 = vadd.f32 %v5673, %v5674
      %v5676 = vsel %vm1229, %v5618, 0.0
      %v5677 = vadd.f32 %v5675, %v5676
      %v5678 = vsel %vm1229, %v5619, 0.0
      %v5679 = vadd.f32 %v5677, %v5678
      %v5680 = vsel %vm1229, %v5620, 0.0
      %v5681 = vadd.f32 %v5679, %v5680
      %v5682 = vsel %vm1229, %v5621, 0.0
      %v5683 = vadd.f32 %v5681, %v5682
      %v5684 = vsel %vm1229, %v5622, 0.0
      %v5685 = vadd.f32 %v5683, %v5684
      %v5686 = vrot.slane %v5685, 4
      %v5687 = vadd.f32 %v5685, %v5686
      %v5688 = vrot.slane %v5687, 2
      %v5689 = vadd.f32 %v5687, %v5688
      %v5690 = vrot.slane %v5689, 1
      %v5691 = vadd.f32 %v5689, %v5690
      %v5692 = vmul.f32 %v5691, 0.00390625
      %v5693 = vmul.f32 %v5591, %v5591
      %v5694 = vmul.f32 %v5592, %v5592
      %v5695 = vmul.f32 %v5593, %v5593
      %v5696 = vmul.f32 %v5594, %v5594
      %v5697 = vmul.f32 %v5595, %v5595
      %v5698 = vmul.f32 %v5596, %v5596
      %v5699 = vmul.f32 %v5597, %v5597
      %v5700 = vmul.f32 %v5598, %v5598
      %v5701 = vmul.f32 %v5599, %v5599
      %v5702 = vmul.f32 %v5600, %v5600
      %v5703 = vmul.f32 %v5601, %v5601
      %v5704 = vmul.f32 %v5602, %v5602
      %v5705 = vmul.f32 %v5603, %v5603
      %v5706 = vmul.f32 %v5604, %v5604
      %v5707 = vmul.f32 %v5605, %v5605
      %v5708 = vmul.f32 %v5606, %v5606
      %v5709 = vmul.f32 %v5607, %v5607
      %v5710 = vmul.f32 %v5608, %v5608
      %v5711 = vmul.f32 %v5609, %v5609
      %v5712 = vmul.f32 %v5610, %v5610
      %v5713 = vmul.f32 %v5611, %v5611
      %v5714 = vmul.f32 %v5612, %v5612
      %v5715 = vmul.f32 %v5613, %v5613
      %v5716 = vmul.f32 %v5614, %v5614
      %v5717 = vmul.f32 %v5615, %v5615
      %v5718 = vmul.f32 %v5616, %v5616
      %v5719 = vmul.f32 %v5617, %v5617
      %v5720 = vmul.f32 %v5618, %v5618
      %v5721 = vmul.f32 %v5619, %v5619
      %v5722 = vmul.f32 %v5620, %v5620
      %v5723 = vmul.f32 %v5621, %v5621
      %v5724 = vmul.f32 %v5622, %v5622
      %v5725 = vsel %vm1229, %v5693, 0.0
      %v5726 = vsel %vm1229, %v5694, 0.0
      %v5727 = vadd.f32 %v5725, %v5726
      %v5728 = vsel %vm1229, %v5695, 0.0
      %v5729 = vadd.f32 %v5727, %v5728
      %v5730 = vsel %vm1229, %v5696, 0.0
      %v5731 = vadd.f32 %v5729, %v5730
      %v5732 = vsel %vm1229, %v5697, 0.0
      %v5733 = vadd.f32 %v5731, %v5732
      %v5734 = vsel %vm1229, %v5698, 0.0
      %v5735 = vadd.f32 %v5733, %v5734
      %v5736 = vsel %vm1229, %v5699, 0.0
      %v5737 = vadd.f32 %v5735, %v5736
      %v5738 = vsel %vm1229, %v5700, 0.0
      %v5739 = vadd.f32 %v5737, %v5738
      %v5740 = vsel %vm1229, %v5701, 0.0
      %v5741 = vadd.f32 %v5739, %v5740
      %v5742 = vsel %vm1229, %v5702, 0.0
      %v5743 = vadd.f32 %v5741, %v5742
      %v5744 = vsel %vm1229, %v5703, 0.0
      %v5745 = vadd.f32 %v5743, %v5744
      %v5746 = vsel %vm1229, %v5704, 0.0
      %v5747 = vadd.f32 %v5745, %v5746
      %v5748 = vsel %vm1229, %v5705, 0.0
      %v5749 = vadd.f32 %v5747, %v5748
      %v5750 = vsel %vm1229, %v5706, 0.0
      %v5751 = vadd.f32 %v5749, %v5750
      %v5752 = vsel %vm1229, %v5707, 0.0
      %v5753 = vadd.f32 %v5751, %v5752
      %v5754 = vsel %vm1229, %v5708, 0.0
      %v5755 = vadd.f32 %v5753, %v5754
      %v5756 = vsel %vm1229, %v5709, 0.0
      %v5757 = vadd.f32 %v5755, %v5756
      %v5758 = vsel %vm1229, %v5710, 0.0
      %v5759 = vadd.f32 %v5757, %v5758
      %v5760 = vsel %vm1229, %v5711, 0.0
      %v5761 = vadd.f32 %v5759, %v5760
      %v5762 = vsel %vm1229, %v5712, 0.0
      %v5763 = vadd.f32 %v5761, %v5762
      %v5764 = vsel %vm1229, %v5713, 0.0
      %v5765 = vadd.f32 %v5763, %v5764
      %v5766 = vsel %vm1229, %v5714, 0.0
      %v5767 = vadd.f32 %v5765, %v5766
      %v5768 = vsel %vm1229, %v5715, 0.0
      %v5769 = vadd.f32 %v5767, %v5768
      %v5770 = vsel %vm1229, %v5716, 0.0
      %v5771 = vadd.f32 %v5769, %v5770
      %v5772 = vsel %vm1229, %v5717, 0.0
      %v5773 = vadd.f32 %v5771, %v5772
      %v5774 = vsel %vm1229, %v5718, 0.0
      %v5775 = vadd.f32 %v5773, %v5774
      %v5776 = vsel %vm1229, %v5719, 0.0
      %v5777 = vadd.f32 %v5775, %v5776
      %v5778 = vsel %vm1229, %v5720, 0.0
      %v5779 = vadd.f32 %v5777, %v5778
      %v5780 = vsel %vm1229, %v5721, 0.0
      %v5781 = vadd.f32 %v5779, %v5780
      %v5782 = vsel %vm1229, %v5722, 0.0
      %v5783 = vadd.f32 %v5781, %v5782
      %v5784 = vsel %vm1229, %v5723, 0.0
      %v5785 = vadd.f32 %v5783, %v5784
      %v5786 = vsel %vm1229, %v5724, 0.0
      %v5787 = vadd.f32 %v5785, %v5786
      %v5788 = vrot.slane %v5787, 4
      %v5789 = vadd.f32 %v5787, %v5788
      %v5790 = vrot.slane %v5789, 2
      %v5791 = vadd.f32 %v5789, %v5790
      %v5792 = vrot.slane %v5791, 1
      %v5793 = vadd.f32 %v5791, %v5792
      %v5794 = vmul.f32 %v5793, 0.00390625
      %v5795 = vmul.f32 %v5692, %v5692
      %v5796 = vsub.f32 %v5794, %v5795
      %v5797 = vsub.f32 %v5591, %v5692
      %v5798 = vsub.f32 %v5592, %v5692
      %v5799 = vsub.f32 %v5593, %v5692
      %v5800 = vsub.f32 %v5594, %v5692
      %v5801 = vsub.f32 %v5595, %v5692
      %v5802 = vsub.f32 %v5596, %v5692
      %v5803 = vsub.f32 %v5597, %v5692
      %v5804 = vsub.f32 %v5598, %v5692
      %v5805 = vsub.f32 %v5599, %v5692
      %v5806 = vsub.f32 %v5600, %v5692
      %v5807 = vsub.f32 %v5601, %v5692
      %v5808 = vsub.f32 %v5602, %v5692
      %v5809 = vsub.f32 %v5603, %v5692
      %v5810 = vsub.f32 %v5604, %v5692
      %v5811 = vsub.f32 %v5605, %v5692
      %v5812 = vsub.f32 %v5606, %v5692
      %v5813 = vsub.f32 %v5607, %v5692
      %v5814 = vsub.f32 %v5608, %v5692
      %v5815 = vsub.f32 %v5609, %v5692
      %v5816 = vsub.f32 %v5610, %v5692
      %v5817 = vsub.f32 %v5611, %v5692
      %v5818 = vsub.f32 %v5612, %v5692
      %v5819 = vsub.f32 %v5613, %v5692
      %v5820 = vsub.f32 %v5614, %v5692
      %v5821 = vsub.f32 %v5615, %v5692
      %v5822 = vsub.f32 %v5616, %v5692
      %v5823 = vsub.f32 %v5617, %v5692
      %v5824 = vsub.f32 %v5618, %v5692
      %v5825 = vsub.f32 %v5619, %v5692
      %v5826 = vsub.f32 %v5620, %v5692
      %v5827 = vsub.f32 %v5621, %v5692
      %v5828 = vsub.f32 %v5622, %v5692
      %v5829 = vadd.f32 %v5796, 1e-05
      %v5830 = vrsqrt.pop %v5829
      %v5831 = vmul.f32 %v5797, %v5830
      %v5832 = vmul.f32 %v5798, %v5830
      %v5833 = vmul.f32 %v5799, %v5830
      %v5834 = vmul.f32 %v5800, %v5830
      %v5835 = vmul.f32 %v5801, %v5830
      %v5836 = vmul.f32 %v5802, %v5830
      %v5837 = vmul.f32 %v5803, %v5830
      %v5838 = vmul.f32 %v5804, %v5830
      %v5839 = vmul.f32 %v5805, %v5830
      %v5840 = vmul.f32 %v5806, %v5830
      %v5841 = vmul.f32 %v5807, %v5830
      %v5842 = vmul.f32 %v5808, %v5830
      %v5843 = vmul.f32 %v5809, %v5830
      %v5844 = vmul.f32 %v5810, %v5830
      %v5845 = vmul.f32 %v5811, %v5830
      %v5846 = vmul.f32 %v5812, %v5830
      %v5847 = vmul.f32 %v5813, %v5830
      %v5848 = vmul.f32 %v5814, %v5830
      %v5849 = vmul.f32 %v5815, %v5830
      %v5850 = vmul.f32 %v5816, %v5830
      %v5851 = vmul.f32 %v5817, %v5830
      %v5852 = vmul.f32 %v5818, %v5830
      %v5853 = vmul.f32 %v5819, %v5830
      %v5854 = vmul.f32 %v5820, %v5830
      %v5855 = vmul.f32 %v5821, %v5830
      %v5856 = vmul.f32 %v5822, %v5830
      %v5857 = vmul.f32 %v5823, %v5830
      %v5858 = vmul.f32 %v5824, %v5830
      %v5859 = vmul.f32 %v5825, %v5830
      %v5860 = vmul.f32 %v5826, %v5830
      %v5861 = vmul.f32 %v5827, %v5830
      %v5862 = vmul.f32 %v5828, %v5830
      %v5863 = vadd.f32 %v172, %v5831
      %v5864 = vadd.f32 %v173, %v5832
      %v5865 = vadd.f32 %v174, %v5833
      %v5866 = vadd.f32 %v175, %v5834
      %v5867 = vadd.f32 %v176, %v5835
      %v5868 = vadd.f32 %v177, %v5836
      %v5869 = vadd.f32 %v178, %v5837
      %v5870 = vadd.f32 %v179, %v5838
      %v5871 = vadd.f32 %v180, %v5839
      %v5872 = vadd.f32 %v181, %v5840
      %v5873 = vadd.f32 %v182, %v5841
      %v5874 = vadd.f32 %v183, %v5842
      %v5875 = vadd.f32 %v184, %v5843
      %v5876 = vadd.f32 %v185, %v5844
      %v5877 = vadd.f32 %v186, %v5845
      %v5878 = vadd.f32 %v187, %v5846
      %v5879 = vadd.f32 %v188, %v5847
      %v5880 = vadd.f32 %v189, %v5848
      %v5881 = vadd.f32 %v190, %v5849
      %v5882 = vadd.f32 %v191, %v5850
      %v5883 = vadd.f32 %v192, %v5851
      %v5884 = vadd.f32 %v193, %v5852
      %v5885 = vadd.f32 %v194, %v5853
      %v5886 = vadd.f32 %v195, %v5854
      %v5887 = vadd.f32 %v196, %v5855
      %v5888 = vadd.f32 %v197, %v5856
      %v5889 = vadd.f32 %v198, %v5857
      %v5890 = vadd.f32 %v199, %v5858
      %v5891 = vadd.f32 %v200, %v5859
      %v5892 = vadd.f32 %v201, %v5860
      %v5893 = vadd.f32 %v202, %v5861
      %v5894 = vadd.f32 %v203, %v5862
      %5895 = vst.msk [vmem:[%s170] sm:$0xff] %vm1229, %v5863
      %5896 = vst.msk [vmem:[%s170 + $0x8] sm:$0xff] %vm1229, %v5864
      %5897 = vst.msk [vmem:[%s170 + $0x10] sm:$0xff] %vm1229, %v5865
      %5898 = vst.msk [vmem:[%s170 + $0x18] sm:$0xff] %vm1229, %v5866
      %5899 = vst.msk [vmem:[%s170 + $0x20] sm:$0xff] %vm1229, %v5867
      %5900 = vst.msk [vmem:[%s170 + $0x28] sm:$0xff] %vm1229, %v5868
      %5901 = vst.msk [vmem:[%s170 + $0x30] sm:$0xff] %vm1229, %v5869
      %5902 = vst.msk [vmem:[%s170 + $0x38] sm:$0xff] %vm1229, %v5870
      %5903 = vst.msk [vmem:[%s170 + $0x40] sm:$0xff] %vm1229, %v5871
      %5904 = vst.msk [vmem:[%s170 + $0x48] sm:$0xff] %vm1229, %v5872
      %5905 = vst.msk [vmem:[%s170 + $0x50] sm:$0xff] %vm1229, %v5873
      %5906 = vst.msk [vmem:[%s170 + $0x58] sm:$0xff] %vm1229, %v5874
      %5907 = vst.msk [vmem:[%s170 + $0x60] sm:$0xff] %vm1229, %v5875
      %5908 = vst.msk [vmem:[%s170 + $0x68] sm:$0xff] %vm1229, %v5876
      %5909 = vst.msk [vmem:[%s170 + $0x70] sm:$0xff] %vm1229, %v5877
      %5910 = vst.msk [vmem:[%s170 + $0x78] sm:$0xff] %vm1229, %v5878
      %5911 = vst.msk [vmem:[%s170 + $0x80] sm:$0xff] %vm1229, %v5879
      %5912 = vst.msk [vmem:[%s170 + $0x88] sm:$0xff] %vm1229, %v5880
      %5913 = vst.msk [vmem:[%s170 + $0x90] sm:$0xff] %vm1229, %v5881
      %5914 = vst.msk [vmem:[%s170 + $0x98] sm:$0xff] %vm1229, %v5882
      %5915 = vst.msk [vmem:[%s170 + $0xa0] sm:$0xff] %vm1229, %v5883
      %5916 = vst.msk [vmem:[%s170 + $0xa8] sm:$0xff] %vm1229, %v5884
      %5917 = vst.msk [vmem:[%s170 + $0xb0] sm:$0xff] %vm1229, %v5885
      %5918 = vst.msk [vmem:[%s170 + $0xb8] sm:$0xff] %vm1229, %v5886
      %5919 = vst.msk [vmem:[%s170 + $0xc0] sm:$0xff] %vm1229, %v5887
      %5920 = vst.msk [vmem:[%s170 + $0xc8] sm:$0xff] %vm1229, %v5888
      %5921 = vst.msk [vmem:[%s170 + $0xd0] sm:$0xff] %vm1229, %v5889
      %5922 = vst.msk [vmem:[%s170 + $0xd8] sm:$0xff] %vm1229, %v5890
      %5923 = vst.msk [vmem:[%s170 + $0xe0] sm:$0xff] %vm1229, %v5891
      %5924 = vst.msk [vmem:[%s170 + $0xe8] sm:$0xff] %vm1229, %v5892
      %5925 = vst.msk [vmem:[%s170 + $0xf0] sm:$0xff] %vm1229, %v5893
      %5926 = vst.msk [vmem:[%s170 + $0xf8] sm:$0xff] %vm1229, %v5894
      %p5927 = scmp.lt.s32.totalorder %s14, 1
      %s5928 = scalar_select %p5927, %s14, 1
      %s5929 = smul.addr %s5928, 32
      %s5930 = smul.addr %s5929, 8
      %s5931 = scalar_lea.vmem %s3, %s5930
      // Predicated region
      $region33: #{tpu_custom_call.1} parent=31 // pred_check
        %p5932 = pneg %p100
      $region34: #{tpu_custom_call.1} parent=31 // pred_check_branch
        %5934 = sbr.rel (%p5932) target = $region36
      $region35: #{tpu_custom_call.1} parent=31 // pred_region
        _
      $region36: #{tpu_custom_call.1} parent=31 // pred_fallthru
        _
    $region32: #{tpu_custom_call.1} parent=5 // pred_fallthru
      _
    %p5935 = scmp.le.s32.totalorder 2, %s9
    // Predicated region
    $region37: #{tpu_custom_call.1} parent=5 // pred_check
      %p5936 = pneg %p5935
    $region38: #{tpu_custom_call.1} parent=5 // pred_check_branch
      %5938 = sbr.rel (%p5936) target = $region40
    $region39: #{tpu_custom_call.1} parent=5 // pred_region
      %s5939 = ssub.s32 %s9, 2
      // Predicated region
      $region41: #{tpu_custom_call.1} parent=39 // pred_check
        %p5940 = pneg %p106
      $region42: #{tpu_custom_call.1} parent=39 // pred_check_branch
        %5942 = sbr.rel (%p5940) target = $region44
      $region43: #{tpu_custom_call.1} parent=39 // pred_region
        %p5943 = scmp.lt.s32.totalorder %s15, 1
        %s5944 = scalar_select %p5943, %s15, 1
        %s5945 = smul.addr %s5944, 32
        %s5946 = smul.addr %s5945, 8
        %s5947 = scalar_lea.vmem %s3, %s5946
      $region44: #{tpu_custom_call.1} parent=39 // pred_fallthru
        _
    $region40: #{tpu_custom_call.1} parent=5 // pred_fallthru
      _
  $region6: #{tpu_custom_call.1} parent=0 // loop_footer
    %s13 = sadd.s32 1, %s9
  $region7: #{tpu_custom_call.1} parent=0 // loop_footer_branch
    %8 = sbr.rel target = $region3
  $region8: #{tpu_custom_call.1} parent=0 // loop_exit
    _

</llo_original>
